<compile_context>
chip_gen: v6e
topology: v6e:2x2x1
jax: 0.10.0
libtpu: 0.0.40
codegen_flags: <defaults>
</compile_context>

<pallas_src>
import functools

import jax
import jax.numpy as jnp
from jax.experimental import pallas as pl
from jax.experimental.pallas import tpu as pltpu


def _round_up(x, m):
    return (x + m - 1) // m * m


def _cnn_fused_kernel(x_ref, w1_ref, bc1_ref, w2_ref, bc2_ref,
                      wf1_ref, bf1_ref, wf2_ref, bf2_ref, wf3_ref, bf3_ref,
                      o_ref, h1_scr, *, W, n1, n2):
    """Whole forward pass for one image, everything resident in VMEM.

    Activations use a "wide" row-flattened layout: row index q = r * W + c with
    channels on the lane axis; columns c beyond the valid conv width hold junk
    that is either never read by the next conv or multiplied by zero fc1 weights.
    """
    c1 = w1_ref.shape[1]   # conv1 output channels (12)
    c2 = w2_ref.shape[2]   # conv2 output channels (8)

    # ---- conv1 (1->12, 2x2, stride 1, valid) + ReLU  (VPU; in-channels = 1) ---
    acc1 = x_ref[0, 0:n1, :] * w1_ref[0:1, :]
    for o in range(1, 4):
        i, j = divmod(o, 2)
        s = i * W + j
        acc1 = acc1 + x_ref[0, s:s + n1, :] * w1_ref[o:o + 1, :]
    h1 = jnp.maximum(acc1 + bc1_ref[...], 0.0)                 # [n1, c1]

    # Park conv1 activation in VMEM scratch; zero the over-read tail rows so the
    # conv2 taps that run past n1 never touch uninitialised VMEM (NaN safety).
    if h1_scr.shape[0] > n1:
        h1_scr[n1:, :] = jnp.zeros((h1_scr.shape[0] - n1, c1), jnp.float32)
    h1_scr[0:n1, :] = h1

    # ---- conv2 (12->8, 3x3) + ReLU: 9 shifted [n2,12]@[12,8] MXU matmuls ------
    acc2 = jnp.dot(h1_scr[0:n2, :], w2_ref[0], preferred_element_type=jnp.float32)
    for o in range(1, 9):
        i, j = divmod(o, 3)
        s = i * W + j
        acc2 = acc2 + jnp.dot(h1_scr[s:s + n2, :], w2_ref[o],
                              preferred_element_type=jnp.float32)
    a2 = jnp.maximum(acc2 + bc2_ref[...], 0.0)                 # [n2, c2]

    # ---- fc1 + ReLU (weights pre-permuted to the wide NHWC flatten order) -----
    acc3 = jnp.dot(wf1_ref[0], a2[:, 0:1], preferred_element_type=jnp.float32)
    for ch in range(1, c2):
        acc3 = acc3 + jnp.dot(wf1_ref[ch], a2[:, ch:ch + 1],
                              preferred_element_type=jnp.float32)
    y1 = jnp.maximum(acc3 + bf1_ref[...], 0.0)                 # [h1, 1]

    # ---- fc2 + ReLU, fc3 + sigmoid (column-vector orientation, N = 1) ---------
    y2 = jnp.maximum(
        jnp.dot(wf2_ref[...], y1, preferred_element_type=jnp.float32) + bf2_ref[...],
        0.0)                                                   # [h2, 1]
    z = jnp.dot(wf3_ref[...], y2, preferred_element_type=jnp.float32) + bf3_ref[...]
    o_ref[0] = pl.reciprocal(1.0 + jnp.exp(-z), approx=False)  # sigmoid, [nc, 1]


class CNNParams:
    """PyTorch-layout parameters plus one-time pre-laid-out kernel copies."""

    def __init__(self, key, H, W, h1=256, h2=128, num_classes=1):
        self.H, self.W, self.num_classes = H, W, num_classes
        c1, c2 = 12, 8
        kh1 = kw1 = 2
        kh2 = kw2 = 3
        oh1, ow1 = H - kh1 + 1, W - kw1 + 1          # 15, 15
        oh2, ow2 = oh1 - kh2 + 1, ow1 - kw2 + 1      # 13, 13
        flat = c2 * oh2 * ow2                        # 1352
        self.c1, self.c2 = c1, c2

        ks = jax.random.split(key, 10)

        def init(k, shape, fan_in):
            return jax.random.normal(k, shape, jnp.float32) / jnp.sqrt(fan_in)

        # PyTorch-layout parameters (also used by the pure-JAX reference).
        self.conv1_w = init(ks[0], (c1, 1, kh1, kw1), kh1 * kw1)
        self.conv1_b = init(ks[1], (c1,), kh1 * kw1)
        self.conv2_w = init(ks[2], (c2, c1, kh2, kw2), c1 * kh2 * kw2)
        self.conv2_b = init(ks[3], (c2,), c1 * kh2 * kw2)
        self.fc1_w = init(ks[4], (h1, flat), flat)
        self.fc1_b = init(ks[5], (h1,), flat)
        self.fc2_w = init(ks[6], (h2, h1), h1)
        self.fc2_b = init(ks[7], (h2,), h1)
        self.fc3_w = init(ks[8], (num_classes, h2), h2)
        self.fc3_b = init(ks[9], (num_classes,), h2)

        # ---- one-time pre-layout for the fused kernel (hoisted out of forward)
        self.n1 = oh1 * W                            # conv1 wide-layout rows (240)
        self.n2 = oh2 * W                            # conv2 wide-layout rows (208)
        self.x_rows = _round_up(self.n1 + (kh1 - 1) * W + (kw1 - 1) + 1, 8)
        self.h1_rows = _round_up(
            max(self.n1, self.n2 + (kh2 - 1) * W + (kw2 - 1) + 1), 8)
        # conv1 taps as [kh*kw, out_c]; conv2 taps as [kh*kw, in_c, out_c].
        self.w1_mat = jnp.transpose(self.conv1_w[:, 0], (1, 2, 0)).reshape(kh1 * kw1, c1)
        self.bc1 = self.conv1_b.reshape(1, c1)
        self.w2_blk = jnp.transpose(self.conv2_w, (2, 3, 1, 0)).reshape(kh2 * kw2, c1, c2)
        self.bc2 = self.conv2_b.reshape(1, c2)
        # fc1 permuted to consume the kernel's wide NHWC layout directly
        # (wide columns c >= ow2 carry conv junk -> zero weights).
        w = self.fc1_w.reshape(h1, c2, oh2, ow2)
        w = jnp.pad(w, ((0, 0), (0, 0), (0, 0), (0, W - ow2)))
        self.wf1 = jnp.transpose(w.reshape(h1, c2, self.n2), (1, 0, 2))   # [c2, h1, n2]
        self.bf1 = self.fc1_b.reshape(h1, 1)
        self.wf2 = self.fc2_w                                             # [h2, h1]
        self.bf2 = self.fc2_b.reshape(h2, 1)
        self.wf3 = self.fc3_w                                             # [nc, h2]
        self.bf3 = self.fc3_b.reshape(num_classes, 1)


def cnn_forward(x_nchw, p: CNNParams):
    """Forward pass; accepts PyTorch-style NCHW float input of shape [B, 1, H, W]."""
    B = x_nchw.shape[0]
    HW = p.H * p.W
    # Row-flattened, zero-tail-padded image column; the only per-forward layout op.
    xflat = jnp.zeros((B, p.x_rows, 1), jnp.float32)
    xflat = xflat.at[:, :HW, 0].set(x_nchw.reshape(B, HW).astype(jnp.float32))

    kernel = functools.partial(_cnn_fused_kernel, W=p.W, n1=p.n1, n2=p.n2)

    def full(a, r):
        # Whole-array block with a constant index map -> DMA'd once for the call.
        return pl.BlockSpec(a.shape, lambda b, _r=r: (0,) * _r)

    out = pl.pallas_call(
        kernel,
        out_shape=jax.ShapeDtypeStruct((B, p.num_classes, 1), jnp.float32),
        grid_spec=pltpu.PrefetchScalarGridSpec(
            num_scalar_prefetch=0,
            grid=(B,),
            in_specs=[
                pl.BlockSpec((1, p.x_rows, 1), lambda b: (b, 0, 0)),
                full(p.w1_mat, 2), full(p.bc1, 2),
                full(p.w2_blk, 3), full(p.bc2, 2),
                full(p.wf1, 3), full(p.bf1, 2),
                full(p.wf2, 2), full(p.bf2, 2),
                full(p.wf3, 2), full(p.bf3, 2),
            ],
            out_specs=pl.BlockSpec((1, p.num_classes, 1), lambda b: (b, 0, 0)),
            scratch_shapes=[pltpu.VMEM((p.h1_rows, p.c1), jnp.float32)],
        ),
        compiler_params=pltpu.CompilerParams(
            dimension_semantics=("parallel",)),
    )(xflat, p.w1_mat, p.bc1, p.w2_blk, p.bc2,
      p.wf1, p.bf1, p.wf2, p.bf2, p.wf3, p.bf3)
    return out.reshape(B, p.num_classes)


def cnn_reference(x_nchw, p: CNNParams):
    """Pure-JAX (XLA) reference using the PyTorch-layout weights."""
    def conv(x, w, b):
        dn = jax.lax.conv_dimension_numbers(x.shape, w.shape, ("NCHW", "OIHW", "NCHW"))
        y = jax.lax.conv_general_dilated(x, w, (1, 1), "VALID", dimension_numbers=dn)
        return jax.nn.relu(y + b[None, :, None, None])

    x = conv(x_nchw, p.conv1_w, p.conv1_b)
    x = conv(x, p.conv2_w, p.conv2_b)
    x = x.reshape(x.shape[0], -1)                      # torch.flatten(x, 1) on NCHW
    x = jax.nn.relu(x @ p.fc1_w.T + p.fc1_b)
    x = jax.nn.relu(x @ p.fc2_w.T + p.fc2_b)
    return jax.nn.sigmoid(x @ p.fc3_w.T + p.fc3_b)


if __name__ == "__main__":
    # Small shapes consistent with the module: batch=2, 1 input channel, 16x16.
    # conv1(2x2): 15x15x12 ; conv2(3x3): 13x13x8 ; flatten = 1352 -> 256 -> 128 -> 1.
    B, H, W = 2, 16, 16
    key = jax.random.PRNGKey(0)
    kx, kp = jax.random.split(key)
    x = jax.random.normal(kx, (B, 1, H, W), jnp.float32)
    params = CNNParams(kp, H=H, W=W, h1=256, h2=128, num_classes=1)

    fwd = jax.jit(lambda inp: cnn_forward(inp, params))
    out = jax.block_until_ready(fwd(x))

    assert out.shape == (B, 1)
    assert bool(jnp.all((out >= 0.0) & (out <= 1.0)))
    with jax.default_matmul_precision("highest"):
        ref = jax.block_until_ready(cnn_reference(x, params))
    assert jnp.allclose(out, ref, atol=5e-3, rtol=5e-3), (out, ref)
    print("KERNEL_OK")
</pallas_src>

<mosaic_0001>
module attributes {stable_mosaic.version = 11 : i64} {
  func.func @_cnn_fused_kernel(%arg0: i32, %arg1: memref<1x264x1xf32, #tpu.memory_space<vmem>>, %arg2: memref<4x12xf32, #tpu.memory_space<vmem>>, %arg3: memref<1x12xf32, #tpu.memory_space<vmem>>, %arg4: memref<9x12x8xf32, #tpu.memory_space<vmem>>, %arg5: memref<1x8xf32, #tpu.memory_space<vmem>>, %arg6: memref<8x256x208xf32, #tpu.memory_space<vmem>>, %arg7: memref<256x1xf32, #tpu.memory_space<vmem>>, %arg8: memref<128x256xf32, #tpu.memory_space<vmem>>, %arg9: memref<128x1xf32, #tpu.memory_space<vmem>>, %arg10: memref<1x128xf32, #tpu.memory_space<vmem>>, %arg11: memref<1x1xf32, #tpu.memory_space<vmem>>, %arg12: memref<1x1x1xf32, #tpu.memory_space<vmem>>, %arg13: memref<248x12xf32, #tpu.memory_space<vmem>>) attributes {dimension_semantics = [#tpu.dimension_semantics<parallel>], iteration_bounds = array<i64: 2>, scalar_prefetch = 0 : i64, scratch_operands = 1 : i64, tpu.core_type = #tpu.core_type<tc>, window_params = [{transform_indices = @transform_0, window_bounds = array<i64: 1, 264, 1>}, {pipeline_mode = #tpu.pipeline_mode<synchronous>, transform_indices = @transform_1, window_bounds = array<i64: 4, 12>}, {pipeline_mode = #tpu.pipeline_mode<synchronous>, transform_indices = @transform_2, window_bounds = array<i64: 1, 12>}, {pipeline_mode = #tpu.pipeline_mode<synchronous>, transform_indices = @transform_3, window_bounds = array<i64: 9, 12, 8>}, {pipeline_mode = #tpu.pipeline_mode<synchronous>, transform_indices = @transform_4, window_bounds = array<i64: 1, 8>}, {pipeline_mode = #tpu.pipeline_mode<synchronous>, transform_indices = @transform_5, window_bounds = array<i64: 8, 256, 208>}, {pipeline_mode = #tpu.pipeline_mode<synchronous>, transform_indices = @transform_6, window_bounds = array<i64: 256, 1>}, {pipeline_mode = #tpu.pipeline_mode<synchronous>, transform_indices = @transform_7, window_bounds = array<i64: 128, 256>}, {pipeline_mode = #tpu.pipeline_mode<synchronous>, transform_indices = @transform_8, window_bounds = array<i64: 128, 1>}, {pipeline_mode = #tpu.pipeline_mode<synchronous>, transform_indices = @transform_9, window_bounds = array<i64: 1, 128>}, {pipeline_mode = #tpu.pipeline_mode<synchronous>, transform_indices = @transform_10, window_bounds = array<i64: 1, 1>}, {transform_indices = @transform_11, window_bounds = array<i64: 1, 1, 1>}]} {
    %c0 = arith.constant 0 : index
    %c0_0 = arith.constant 0 : index
    %c0_1 = arith.constant 0 : index
    %0 = vector.load %arg1[%c0, %c0_0, %c0_1] : memref<1x264x1xf32, #tpu.memory_space<vmem>>, vector<1x240x1xf32>
    %1 = vector.shape_cast %0 : vector<1x240x1xf32> to vector<240x1xf32>
    %c0_2 = arith.constant 0 : index
    %c0_3 = arith.constant 0 : index
    %2 = vector.load %arg2[%c0_2, %c0_3] : memref<4x12xf32, #tpu.memory_space<vmem>>, vector<1x12xf32>
    %3 = vector.broadcast %1 : vector<240x1xf32> to vector<240x12xf32>
    %4 = vector.broadcast %2 : vector<1x12xf32> to vector<240x12xf32>
    %5 = arith.mulf %3, %4 : vector<240x12xf32>
    %c0_4 = arith.constant 0 : index
    %c1 = arith.constant 1 : index
    %c0_5 = arith.constant 0 : index
    %6 = vector.load %arg1[%c0_4, %c1, %c0_5] : memref<1x264x1xf32, #tpu.memory_space<vmem>>, vector<1x240x1xf32>
    %7 = vector.shape_cast %6 : vector<1x240x1xf32> to vector<240x1xf32>
    %c1_6 = arith.constant 1 : index
    %c0_7 = arith.constant 0 : index
    %8 = vector.load %arg2[%c1_6, %c0_7] : memref<4x12xf32, #tpu.memory_space<vmem>>, vector<1x12xf32>
    %9 = vector.broadcast %7 : vector<240x1xf32> to vector<240x12xf32>
    %10 = vector.broadcast %8 : vector<1x12xf32> to vector<240x12xf32>
    %11 = arith.mulf %9, %10 : vector<240x12xf32>
    %12 = arith.addf %5, %11 : vector<240x12xf32>
    %c0_8 = arith.constant 0 : index
    %c16 = arith.constant 16 : index
    %c0_9 = arith.constant 0 : index
    %13 = vector.load %arg1[%c0_8, %c16, %c0_9] : memref<1x264x1xf32, #tpu.memory_space<vmem>>, vector<1x240x1xf32>
    %14 = vector.shape_cast %13 : vector<1x240x1xf32> to vector<240x1xf32>
    %c2 = arith.constant 2 : index
    %c0_10 = arith.constant 0 : index
    %15 = vector.load %arg2[%c2, %c0_10] : memref<4x12xf32, #tpu.memory_space<vmem>>, vector<1x12xf32>
    %16 = vector.broadcast %14 : vector<240x1xf32> to vector<240x12xf32>
    %17 = vector.broadcast %15 : vector<1x12xf32> to vector<240x12xf32>
    %18 = arith.mulf %16, %17 : vector<240x12xf32>
    %19 = arith.addf %12, %18 : vector<240x12xf32>
    %c0_11 = arith.constant 0 : index
    %c17 = arith.constant 17 : index
    %c0_12 = arith.constant 0 : index
    %20 = vector.load %arg1[%c0_11, %c17, %c0_12] : memref<1x264x1xf32, #tpu.memory_space<vmem>>, vector<1x240x1xf32>
    %21 = vector.shape_cast %20 : vector<1x240x1xf32> to vector<240x1xf32>
    %c3 = arith.constant 3 : index
    %c0_13 = arith.constant 0 : index
    %22 = vector.load %arg2[%c3, %c0_13] : memref<4x12xf32, #tpu.memory_space<vmem>>, vector<1x12xf32>
    %23 = vector.broadcast %21 : vector<240x1xf32> to vector<240x12xf32>
    %24 = vector.broadcast %22 : vector<1x12xf32> to vector<240x12xf32>
    %25 = arith.mulf %23, %24 : vector<240x12xf32>
    %26 = arith.addf %19, %25 : vector<240x12xf32>
    %c0_14 = arith.constant 0 : index
    %c0_15 = arith.constant 0 : index
    %27 = vector.load %arg3[%c0_14, %c0_15] : memref<1x12xf32, #tpu.memory_space<vmem>>, vector<1x12xf32>
    %28 = vector.broadcast %27 : vector<1x12xf32> to vector<240x12xf32>
    %29 = arith.addf %26, %28 : vector<240x12xf32>
    %cst = arith.constant 0.000000e+00 : f32
    %30 = vector.broadcast %cst : f32 to vector<240x12xf32>
    %31 = arith.maximumf %29, %30 : vector<240x12xf32>
    %cst_16 = arith.constant 0.000000e+00 : f32
    %32 = vector.broadcast %cst_16 : f32 to vector<8x12xf32>
    %c240 = arith.constant 240 : index
    %c0_17 = arith.constant 0 : index
    %33 = vector.load %arg13[%c240, %c0_17] : memref<248x12xf32, #tpu.memory_space<vmem>>, vector<8x12xf32>
    tpu.vector_store %arg13[%c240, %c0_17], %32 {strides = array<i32>} : memref<248x12xf32, #tpu.memory_space<vmem>>, vector<8x12xf32>,
    %c0_18 = arith.constant 0 : index
    %c0_19 = arith.constant 0 : index
    %34 = vector.load %arg13[%c0_18, %c0_19] : memref<248x12xf32, #tpu.memory_space<vmem>>, vector<240x12xf32>
    tpu.vector_store %arg13[%c0_18, %c0_19], %31 {strides = array<i32>} : memref<248x12xf32, #tpu.memory_space<vmem>>, vector<240x12xf32>,
    %c0_20 = arith.constant 0 : index
    %c0_21 = arith.constant 0 : index
    %35 = vector.load %arg13[%c0_20, %c0_21] : memref<248x12xf32, #tpu.memory_space<vmem>>, vector<208x12xf32>
    %c0_22 = arith.constant 0 : index
    %c0_23 = arith.constant 0 : index
    %c0_24 = arith.constant 0 : index
    %36 = vector.load %arg4[%c0_22, %c0_23, %c0_24] : memref<9x12x8xf32, #tpu.memory_space<vmem>>, vector<1x12x8xf32>
    %37 = vector.shape_cast %36 : vector<1x12x8xf32> to vector<12x8xf32>
    %cst_25 = arith.constant dense<0.000000e+00> : vector<208x8xf32>
    %38 = tpu.matmul %35, %37, %cst_25 {dimension_numbers = #tpu.dot_dimension_numbers<[1], [0], [0], [1], [0, 0, 1, 1], [], []>} : vector<208x12xf32>, vector<12x8xf32>, vector<208x8xf32> -> vector<208x8xf32>
    %c1_26 = arith.constant 1 : index
    %c0_27 = arith.constant 0 : index
    %39 = vector.load %arg13[%c1_26, %c0_27] : memref<248x12xf32, #tpu.memory_space<vmem>>, vector<208x12xf32>
    %c1_28 = arith.constant 1 : index
    %c0_29 = arith.constant 0 : index
    %c0_30 = arith.constant 0 : index
    %40 = vector.load %arg4[%c1_28, %c0_29, %c0_30] : memref<9x12x8xf32, #tpu.memory_space<vmem>>, vector<1x12x8xf32>
    %41 = vector.shape_cast %40 : vector<1x12x8xf32> to vector<12x8xf32>
    %cst_31 = arith.constant dense<0.000000e+00> : vector<208x8xf32>
    %42 = tpu.matmul %39, %41, %cst_31 {dimension_numbers = #tpu.dot_dimension_numbers<[1], [0], [0], [1], [0, 0, 1, 1], [], []>} : vector<208x12xf32>, vector<12x8xf32>, vector<208x8xf32> -> vector<208x8xf32>
    %43 = arith.addf %38, %42 : vector<208x8xf32>
    %c2_32 = arith.constant 2 : index
    %c0_33 = arith.constant 0 : index
    %44 = vector.load %arg13[%c2_32, %c0_33] : memref<248x12xf32, #tpu.memory_space<vmem>>, vector<208x12xf32>
    %c2_34 = arith.constant 2 : index
    %c0_35 = arith.constant 0 : index
    %c0_36 = arith.constant 0 : index
    %45 = vector.load %arg4[%c2_34, %c0_35, %c0_36] : memref<9x12x8xf32, #tpu.memory_space<vmem>>, vector<1x12x8xf32>
    %46 = vector.shape_cast %45 : vector<1x12x8xf32> to vector<12x8xf32>
    %cst_37 = arith.constant dense<0.000000e+00> : vector<208x8xf32>
    %47 = tpu.matmul %44, %46, %cst_37 {dimension_numbers = #tpu.dot_dimension_numbers<[1], [0], [0], [1], [0, 0, 1, 1], [], []>} : vector<208x12xf32>, vector<12x8xf32>, vector<208x8xf32> -> vector<208x8xf32>
    %48 = arith.addf %43, %47 : vector<208x8xf32>
    %c16_38 = arith.constant 16 : index
    %c0_39 = arith.constant 0 : index
    %49 = vector.load %arg13[%c16_38, %c0_39] : memref<248x12xf32, #tpu.memory_space<vmem>>, vector<208x12xf32>
    %c3_40 = arith.constant 3 : index
    %c0_41 = arith.constant 0 : index
    %c0_42 = arith.constant 0 : index
    %50 = vector.load %arg4[%c3_40, %c0_41, %c0_42] : memref<9x12x8xf32, #tpu.memory_space<vmem>>, vector<1x12x8xf32>
    %51 = vector.shape_cast %50 : vector<1x12x8xf32> to vector<12x8xf32>
    %cst_43 = arith.constant dense<0.000000e+00> : vector<208x8xf32>
    %52 = tpu.matmul %49, %51, %cst_43 {dimension_numbers = #tpu.dot_dimension_numbers<[1], [0], [0], [1], [0, 0, 1, 1], [], []>} : vector<208x12xf32>, vector<12x8xf32>, vector<208x8xf32> -> vector<208x8xf32>
    %53 = arith.addf %48, %52 : vector<208x8xf32>
    %c17_44 = arith.constant 17 : index
    %c0_45 = arith.constant 0 : index
    %54 = vector.load %arg13[%c17_44, %c0_45] : memref<248x12xf32, #tpu.memory_space<vmem>>, vector<208x12xf32>
    %c4 = arith.constant 4 : index
    %c0_46 = arith.constant 0 : index
    %c0_47 = arith.constant 0 : index
    %55 = vector.load %arg4[%c4, %c0_46, %c0_47] : memref<9x12x8xf32, #tpu.memory_space<vmem>>, vector<1x12x8xf32>
    %56 = vector.shape_cast %55 : vector<1x12x8xf32> to vector<12x8xf32>
    %cst_48 = arith.constant dense<0.000000e+00> : vector<208x8xf32>
    %57 = tpu.matmul %54, %56, %cst_48 {dimension_numbers = #tpu.dot_dimension_numbers<[1], [0], [0], [1], [0, 0, 1, 1], [], []>} : vector<208x12xf32>, vector<12x8xf32>, vector<208x8xf32> -> vector<208x8xf32>
    %58 = arith.addf %53, %57 : vector<208x8xf32>
    %c18 = arith.constant 18 : index
    %c0_49 = arith.constant 0 : index
    %59 = vector.load %arg13[%c18, %c0_49] : memref<248x12xf32, #tpu.memory_space<vmem>>, vector<208x12xf32>
    %c5 = arith.constant 5 : index
    %c0_50 = arith.constant 0 : index
    %c0_51 = arith.constant 0 : index
    %60 = vector.load %arg4[%c5, %c0_50, %c0_51] : memref<9x12x8xf32, #tpu.memory_space<vmem>>, vector<1x12x8xf32>
    %61 = vector.shape_cast %60 : vector<1x12x8xf32> to vector<12x8xf32>
    %cst_52 = arith.constant dense<0.000000e+00> : vector<208x8xf32>
    %62 = tpu.matmul %59, %61, %cst_52 {dimension_numbers = #tpu.dot_dimension_numbers<[1], [0], [0], [1], [0, 0, 1, 1], [], []>} : vector<208x12xf32>, vector<12x8xf32>, vector<208x8xf32> -> vector<208x8xf32>
    %63 = arith.addf %58, %62 : vector<208x8xf32>
    %c32 = arith.constant 32 : index
    %c0_53 = arith.constant 0 : index
    %64 = vector.load %arg13[%c32, %c0_53] : memref<248x12xf32, #tpu.memory_space<vmem>>, vector<208x12xf32>
    %c6 = arith.constant 6 : index
    %c0_54 = arith.constant 0 : index
    %c0_55 = arith.constant 0 : index
    %65 = vector.load %arg4[%c6, %c0_54, %c0_55] : memref<9x12x8xf32, #tpu.memory_space<vmem>>, vector<1x12x8xf32>
    %66 = vector.shape_cast %65 : vector<1x12x8xf32> to vector<12x8xf32>
    %cst_56 = arith.constant dense<0.000000e+00> : vector<208x8xf32>
    %67 = tpu.matmul %64, %66, %cst_56 {dimension_numbers = #tpu.dot_dimension_numbers<[1], [0], [0], [1], [0, 0, 1, 1], [], []>} : vector<208x12xf32>, vector<12x8xf32>, vector<208x8xf32> -> vector<208x8xf32>
    %68 = arith.addf %63, %67 : vector<208x8xf32>
    %c33 = arith.constant 33 : index
    %c0_57 = arith.constant 0 : index
    %69 = vector.load %arg13[%c33, %c0_57] : memref<248x12xf32, #tpu.memory_space<vmem>>, vector<208x12xf32>
    %c7 = arith.constant 7 : index
    %c0_58 = arith.constant 0 : index
    %c0_59 = arith.constant 0 : index
    %70 = vector.load %arg4[%c7, %c0_58, %c0_59] : memref<9x12x8xf32, #tpu.memory_space<vmem>>, vector<1x12x8xf32>
    %71 = vector.shape_cast %70 : vector<1x12x8xf32> to vector<12x8xf32>
    %cst_60 = arith.constant dense<0.000000e+00> : vector<208x8xf32>
    %72 = tpu.matmul %69, %71, %cst_60 {dimension_numbers = #tpu.dot_dimension_numbers<[1], [0], [0], [1], [0, 0, 1, 1], [], []>} : vector<208x12xf32>, vector<12x8xf32>, vector<208x8xf32> -> vector<208x8xf32>
    %73 = arith.addf %68, %72 : vector<208x8xf32>
    %c34 = arith.constant 34 : index
    %c0_61 = arith.constant 0 : index
    %74 = vector.load %arg13[%c34, %c0_61] : memref<248x12xf32, #tpu.memory_space<vmem>>, vector<208x12xf32>
    %c8 = arith.constant 8 : index
    %c0_62 = arith.constant 0 : index
    %c0_63 = arith.constant 0 : index
    %75 = vector.load %arg4[%c8, %c0_62, %c0_63] : memref<9x12x8xf32, #tpu.memory_space<vmem>>, vector<1x12x8xf32>
    %76 = vector.shape_cast %75 : vector<1x12x8xf32> to vector<12x8xf32>
    %cst_64 = arith.constant dense<0.000000e+00> : vector<208x8xf32>
    %77 = tpu.matmul %74, %76, %cst_64 {dimension_numbers = #tpu.dot_dimension_numbers<[1], [0], [0], [1], [0, 0, 1, 1], [], []>} : vector<208x12xf32>, vector<12x8xf32>, vector<208x8xf32> -> vector<208x8xf32>
    %78 = arith.addf %73, %77 : vector<208x8xf32>
    %c0_65 = arith.constant 0 : index
    %c0_66 = arith.constant 0 : index
    %79 = vector.load %arg5[%c0_65, %c0_66] : memref<1x8xf32, #tpu.memory_space<vmem>>, vector<1x8xf32>
    %80 = vector.broadcast %79 : vector<1x8xf32> to vector<208x8xf32>
    %81 = arith.addf %78, %80 : vector<208x8xf32>
    %cst_67 = arith.constant 0.000000e+00 : f32
    %82 = vector.broadcast %cst_67 : f32 to vector<208x8xf32>
    %83 = arith.maximumf %81, %82 : vector<208x8xf32>
    %c0_68 = arith.constant 0 : index
    %c0_69 = arith.constant 0 : index
    %c0_70 = arith.constant 0 : index
    %84 = vector.load %arg6[%c0_68, %c0_69, %c0_70] : memref<8x256x208xf32, #tpu.memory_space<vmem>>, vector<1x256x208xf32>
    %85 = vector.shape_cast %84 : vector<1x256x208xf32> to vector<256x208xf32>
    %86 = vector.extract_strided_slice %83 {offsets = [0, 0], sizes = [208, 1], strides = [1, 1]} : vector<208x8xf32> to vector<208x1xf32>
    %cst_71 = arith.constant dense<0.000000e+00> : vector<256x1xf32>
    %87 = tpu.matmul %85, %86, %cst_71 {dimension_numbers = #tpu.dot_dimension_numbers<[1], [0], [0], [1], [0, 0, 1, 1], [], []>} : vector<256x208xf32>, vector<208x1xf32>, vector<256x1xf32> -> vector<256x1xf32>
    %c1_72 = arith.constant 1 : index
    %c0_73 = arith.constant 0 : index
    %c0_74 = arith.constant 0 : index
    %88 = vector.load %arg6[%c1_72, %c0_73, %c0_74] : memref<8x256x208xf32, #tpu.memory_space<vmem>>, vector<1x256x208xf32>
    %89 = vector.shape_cast %88 : vector<1x256x208xf32> to vector<256x208xf32>
    %90 = vector.extract_strided_slice %83 {offsets = [0, 1], sizes = [208, 1], strides = [1, 1]} : vector<208x8xf32> to vector<208x1xf32>
    %cst_75 = arith.constant dense<0.000000e+00> : vector<256x1xf32>
    %91 = tpu.matmul %89, %90, %cst_75 {dimension_numbers = #tpu.dot_dimension_numbers<[1], [0], [0], [1], [0, 0, 1, 1], [], []>} : vector<256x208xf32>, vector<208x1xf32>, vector<256x1xf32> -> vector<256x1xf32>
    %92 = arith.addf %87, %91 : vector<256x1xf32>
    %c2_76 = arith.constant 2 : index
    %c0_77 = arith.constant 0 : index
    %c0_78 = arith.constant 0 : index
    %93 = vector.load %arg6[%c2_76, %c0_77, %c0_78] : memref<8x256x208xf32, #tpu.memory_space<vmem>>, vector<1x256x208xf32>
    %94 = vector.shape_cast %93 : vector<1x256x208xf32> to vector<256x208xf32>
    %95 = vector.extract_strided_slice %83 {offsets = [0, 2], sizes = [208, 1], strides = [1, 1]} : vector<208x8xf32> to vector<208x1xf32>
    %cst_79 = arith.constant dense<0.000000e+00> : vector<256x1xf32>
    %96 = tpu.matmul %94, %95, %cst_79 {dimension_numbers = #tpu.dot_dimension_numbers<[1], [0], [0], [1], [0, 0, 1, 1], [], []>} : vector<256x208xf32>, vector<208x1xf32>, vector<256x1xf32> -> vector<256x1xf32>
    %97 = arith.addf %92, %96 : vector<256x1xf32>
    %c3_80 = arith.constant 3 : index
    %c0_81 = arith.constant 0 : index
    %c0_82 = arith.constant 0 : index
    %98 = vector.load %arg6[%c3_80, %c0_81, %c0_82] : memref<8x256x208xf32, #tpu.memory_space<vmem>>, vector<1x256x208xf32>
    %99 = vector.shape_cast %98 : vector<1x256x208xf32> to vector<256x208xf32>
    %100 = vector.extract_strided_slice %83 {offsets = [0, 3], sizes = [208, 1], strides = [1, 1]} : vector<208x8xf32> to vector<208x1xf32>
    %cst_83 = arith.constant dense<0.000000e+00> : vector<256x1xf32>
    %101 = tpu.matmul %99, %100, %cst_83 {dimension_numbers = #tpu.dot_dimension_numbers<[1], [0], [0], [1], [0, 0, 1, 1], [], []>} : vector<256x208xf32>, vector<208x1xf32>, vector<256x1xf32> -> vector<256x1xf32>
    %102 = arith.addf %97, %101 : vector<256x1xf32>
    %c4_84 = arith.constant 4 : index
    %c0_85 = arith.constant 0 : index
    %c0_86 = arith.constant 0 : index
    %103 = vector.load %arg6[%c4_84, %c0_85, %c0_86] : memref<8x256x208xf32, #tpu.memory_space<vmem>>, vector<1x256x208xf32>
    %104 = vector.shape_cast %103 : vector<1x256x208xf32> to vector<256x208xf32>
    %105 = vector.extract_strided_slice %83 {offsets = [0, 4], sizes = [208, 1], strides = [1, 1]} : vector<208x8xf32> to vector<208x1xf32>
    %cst_87 = arith.constant dense<0.000000e+00> : vector<256x1xf32>
    %106 = tpu.matmul %104, %105, %cst_87 {dimension_numbers = #tpu.dot_dimension_numbers<[1], [0], [0], [1], [0, 0, 1, 1], [], []>} : vector<256x208xf32>, vector<208x1xf32>, vector<256x1xf32> -> vector<256x1xf32>
    %107 = arith.addf %102, %106 : vector<256x1xf32>
    %c5_88 = arith.constant 5 : index
    %c0_89 = arith.constant 0 : index
    %c0_90 = arith.constant 0 : index
    %108 = vector.load %arg6[%c5_88, %c0_89, %c0_90] : memref<8x256x208xf32, #tpu.memory_space<vmem>>, vector<1x256x208xf32>
    %109 = vector.shape_cast %108 : vector<1x256x208xf32> to vector<256x208xf32>
    %110 = vector.extract_strided_slice %83 {offsets = [0, 5], sizes = [208, 1], strides = [1, 1]} : vector<208x8xf32> to vector<208x1xf32>
    %cst_91 = arith.constant dense<0.000000e+00> : vector<256x1xf32>
    %111 = tpu.matmul %109, %110, %cst_91 {dimension_numbers = #tpu.dot_dimension_numbers<[1], [0], [0], [1], [0, 0, 1, 1], [], []>} : vector<256x208xf32>, vector<208x1xf32>, vector<256x1xf32> -> vector<256x1xf32>
    %112 = arith.addf %107, %111 : vector<256x1xf32>
    %c6_92 = arith.constant 6 : index
    %c0_93 = arith.constant 0 : index
    %c0_94 = arith.constant 0 : index
    %113 = vector.load %arg6[%c6_92, %c0_93, %c0_94] : memref<8x256x208xf32, #tpu.memory_space<vmem>>, vector<1x256x208xf32>
    %114 = vector.shape_cast %113 : vector<1x256x208xf32> to vector<256x208xf32>
    %115 = vector.extract_strided_slice %83 {offsets = [0, 6], sizes = [208, 1], strides = [1, 1]} : vector<208x8xf32> to vector<208x1xf32>
    %cst_95 = arith.constant dense<0.000000e+00> : vector<256x1xf32>
    %116 = tpu.matmul %114, %115, %cst_95 {dimension_numbers = #tpu.dot_dimension_numbers<[1], [0], [0], [1], [0, 0, 1, 1], [], []>} : vector<256x208xf32>, vector<208x1xf32>, vector<256x1xf32> -> vector<256x1xf32>
    %117 = arith.addf %112, %116 : vector<256x1xf32>
    %c7_96 = arith.constant 7 : index
    %c0_97 = arith.constant 0 : index
    %c0_98 = arith.constant 0 : index
    %118 = vector.load %arg6[%c7_96, %c0_97, %c0_98] : memref<8x256x208xf32, #tpu.memory_space<vmem>>, vector<1x256x208xf32>
    %119 = vector.shape_cast %118 : vector<1x256x208xf32> to vector<256x208xf32>
    %120 = vector.extract_strided_slice %83 {offsets = [0, 7], sizes = [208, 1], strides = [1, 1]} : vector<208x8xf32> to vector<208x1xf32>
    %cst_99 = arith.constant dense<0.000000e+00> : vector<256x1xf32>
    %121 = tpu.matmul %119, %120, %cst_99 {dimension_numbers = #tpu.dot_dimension_numbers<[1], [0], [0], [1], [0, 0, 1, 1], [], []>} : vector<256x208xf32>, vector<208x1xf32>, vector<256x1xf32> -> vector<256x1xf32>
    %122 = arith.addf %117, %121 : vector<256x1xf32>
    %c0_100 = arith.constant 0 : index
    %c0_101 = arith.constant 0 : index
    %123 = vector.load %arg7[%c0_100, %c0_101] : memref<256x1xf32, #tpu.memory_space<vmem>>, vector<256x1xf32>
    %124 = arith.addf %122, %123 : vector<256x1xf32>
    %cst_102 = arith.constant 0.000000e+00 : f32
    %125 = vector.broadcast %cst_102 : f32 to vector<256x1xf32>
    %126 = arith.maximumf %124, %125 : vector<256x1xf32>
    %c0_103 = arith.constant 0 : index
    %c0_104 = arith.constant 0 : index
    %127 = vector.load %arg8[%c0_103, %c0_104] : memref<128x256xf32, #tpu.memory_space<vmem>>, vector<128x256xf32>
    %cst_105 = arith.constant dense<0.000000e+00> : vector<128x1xf32>
    %128 = tpu.matmul %127, %126, %cst_105 {dimension_numbers = #tpu.dot_dimension_numbers<[1], [0], [0], [1], [0, 0, 1, 1], [], []>} : vector<128x256xf32>, vector<256x1xf32>, vector<128x1xf32> -> vector<128x1xf32>
    %c0_106 = arith.constant 0 : index
    %c0_107 = arith.constant 0 : index
    %129 = vector.load %arg9[%c0_106, %c0_107] : memref<128x1xf32, #tpu.memory_space<vmem>>, vector<128x1xf32>
    %130 = arith.addf %128, %129 : vector<128x1xf32>
    %cst_108 = arith.constant 0.000000e+00 : f32
    %131 = vector.broadcast %cst_108 : f32 to vector<128x1xf32>
    %132 = arith.maximumf %130, %131 : vector<128x1xf32>
    %c0_109 = arith.constant 0 : index
    %c0_110 = arith.constant 0 : index
    %133 = vector.load %arg10[%c0_109, %c0_110] : memref<1x128xf32, #tpu.memory_space<vmem>>, vector<1x128xf32>
    %cst_111 = arith.constant dense<0.000000e+00> : vector<1x1xf32>
    %134 = tpu.matmul %133, %132, %cst_111 {dimension_numbers = #tpu.dot_dimension_numbers<[1], [0], [0], [1], [0, 0, 1, 1], [], []>} : vector<1x128xf32>, vector<128x1xf32>, vector<1x1xf32> -> vector<1x1xf32>
    %c0_112 = arith.constant 0 : index
    %c0_113 = arith.constant 0 : index
    %135 = vector.load %arg11[%c0_112, %c0_113] : memref<1x1xf32, #tpu.memory_space<vmem>>, vector<1x1xf32>
    %136 = arith.addf %134, %135 : vector<1x1xf32>
    %cst_114 = arith.constant 0.000000e+00 : f32
    %137 = vector.broadcast %cst_114 : f32 to vector<1x1xf32>
    %138 = arith.subf %137, %136 : vector<1x1xf32>
    %139 = math.exp %138 : vector<1x1xf32>
    %cst_115 = arith.constant 1.000000e+00 : f32
    %140 = vector.broadcast %cst_115 : f32 to vector<1x1xf32>
    %141 = arith.addf %140, %139 : vector<1x1xf32>
    %142 = tpu.reciprocal %141 : vector<1x1xf32> -> vector<1x1xf32>
    %c0_116 = arith.constant 0 : index
    %c0_117 = arith.constant 0 : index
    %c0_118 = arith.constant 0 : index
    %143 = vector.load %arg12[%c0_116, %c0_117, %c0_118] : memref<1x1x1xf32, #tpu.memory_space<vmem>>, vector<1x1x1xf32>
    %144 = vector.shape_cast %143 : vector<1x1x1xf32> to vector<1x1xf32>
    %145 = vector.shape_cast %142 : vector<1x1xf32> to vector<1x1x1xf32>
    tpu.vector_store %arg12[%c0_116, %c0_117, %c0_118], %145 {strides = array<i32>} : memref<1x1x1xf32, #tpu.memory_space<vmem>>, vector<1x1x1xf32>,
    return
  }
  func.func @transform_0(%arg0: i32) -> (i32, i32, i32) {
    %c0_i32 = arith.constant 0 : i32
    %c0_i32_0 = arith.constant 0 : i32
    %c0_i32_1 = arith.constant 0 : i32
    return %arg0, %c0_i32, %c0_i32_0 : i32, i32, i32
  }
  func.func @transform_1(%arg0: i32) -> (i32, i32) {
    %c0_i32 = arith.constant 0 : i32
    %c0_i32_0 = arith.constant 0 : i32
    %c0_i32_1 = arith.constant 0 : i32
    return %c0_i32, %c0_i32_0 : i32, i32
  }
  func.func @transform_2(%arg0: i32) -> (i32, i32) {
    %c0_i32 = arith.constant 0 : i32
    %c0_i32_0 = arith.constant 0 : i32
    %c0_i32_1 = arith.constant 0 : i32
    return %c0_i32, %c0_i32_0 : i32, i32
  }
  func.func @transform_3(%arg0: i32) -> (i32, i32, i32) {
    %c0_i32 = arith.constant 0 : i32
    %c0_i32_0 = arith.constant 0 : i32
    %c0_i32_1 = arith.constant 0 : i32
    %c0_i32_2 = arith.constant 0 : i32
    return %c0_i32, %c0_i32_0, %c0_i32_1 : i32, i32, i32
  }
  func.func @transform_4(%arg0: i32) -> (i32, i32) {
    %c0_i32 = arith.constant 0 : i32
    %c0_i32_0 = arith.constant 0 : i32
    %c0_i32_1 = arith.constant 0 : i32
    return %c0_i32, %c0_i32_0 : i32, i32
  }
  func.func @transform_5(%arg0: i32) -> (i32, i32, i32) {
    %c0_i32 = arith.constant 0 : i32
    %c0_i32_0 = arith.constant 0 : i32
    %c0_i32_1 = arith.constant 0 : i32
    %c0_i32_2 = arith.constant 0 : i32
    return %c0_i32, %c0_i32_0, %c0_i32_1 : i32, i32, i32
  }
  func.func @transform_6(%arg0: i32) -> (i32, i32) {
    %c0_i32 = arith.constant 0 : i32
    %c0_i32_0 = arith.constant 0 : i32
    %c0_i32_1 = arith.constant 0 : i32
    return %c0_i32, %c0_i32_0 : i32, i32
  }
  func.func @transform_7(%arg0: i32) -> (i32, i32) {
    %c0_i32 = arith.constant 0 : i32
    %c0_i32_0 = arith.constant 0 : i32
    %c0_i32_1 = arith.constant 0 : i32
    return %c0_i32, %c0_i32_0 : i32, i32
  }
  func.func @transform_8(%arg0: i32) -> (i32, i32) {
    %c0_i32 = arith.constant 0 : i32
    %c0_i32_0 = arith.constant 0 : i32
    %c0_i32_1 = arith.constant 0 : i32
    return %c0_i32, %c0_i32_0 : i32, i32
  }
  func.func @transform_9(%arg0: i32) -> (i32, i32) {
    %c0_i32 = arith.constant 0 : i32
    %c0_i32_0 = arith.constant 0 : i32
    %c0_i32_1 = arith.constant 0 : i32
    return %c0_i32, %c0_i32_0 : i32, i32
  }
  func.func @transform_10(%arg0: i32) -> (i32, i32) {
    %c0_i32 = arith.constant 0 : i32
    %c0_i32_0 = arith.constant 0 : i32
    %c0_i32_1 = arith.constant 0 : i32
    return %c0_i32, %c0_i32_0 : i32, i32
  }
  func.func @transform_11(%arg0: i32) -> (i32, i32, i32) {
    %c0_i32 = arith.constant 0 : i32
    %c0_i32_0 = arith.constant 0 : i32
    %c0_i32_1 = arith.constant 0 : i32
    return %arg0, %c0_i32, %c0_i32_0 : i32, i32, i32
  }
}

</mosaic_0001>

<llo_original>
// kernel: _lambda_.1
$region0: #{_lambda_.1}
  #allocation0 [shape = 'u32[]', space=smem, size = 0x4, offset = 0x4, fixed_abs, tag = 'smem constant byte address 0x4 - core index']
  #allocation1 [shape = 'u32[144,128]{1,0:T(1,128)}', space=vmem, size = 0x12000, scoped, tag = 'internal scratch']
  #allocation2 [shape = 'f32[248,12]{1,0:T(8,128)}', space=vmem, size = 0x1f000, scoped, tag = 'scratch operand']
  #allocation3 [shape = 'f32[1,1]{1,0:T(1,128)S(1)}', space=vmem, size = 0x200, scoped, tag = 'scoped memory for _lambda_.1']
  %s0 = inlined_call_operand.vmem [shape: f32[2,264,1], index: 0, kind: input, shape index: {}]
  %s1 = inlined_call_operand.hbm [shape: f32[4,12], index: 1, kind: input, shape index: {}]
  %s2 = inlined_call_operand.hbm [shape: f32[1,12], index: 2, kind: input, shape index: {}]
  %s3 = inlined_call_operand.hbm [shape: f32[9,12,8], index: 3, kind: input, shape index: {}]
  %s4 = inlined_call_operand.hbm [shape: f32[1,8], index: 4, kind: input, shape index: {}]
  %s5 = inlined_call_operand.hbm [shape: f32[8,256,208], index: 5, kind: input, shape index: {}]
  %s6 = inlined_call_operand.hbm [shape: f32[256,1], index: 6, kind: input, shape index: {}]
  %s7 = inlined_call_operand.hbm [shape: f32[128,256], index: 7, kind: input, shape index: {}]
  %s8 = inlined_call_operand.hbm [shape: f32[128,1], index: 8, kind: input, shape index: {}]
  %s9 = inlined_call_operand.hbm [shape: f32[1,128], index: 9, kind: input, shape index: {}]
  %s10 = inlined_call_operand.<no memory space> [shape: f32[1,1], index: 10, kind: input, shape index: {}]
  %s11 = inlined_call_operand.vmem [shape: f32[2,1,1], index: 11, kind: output, shape index: {}]
  %s12 = sld [smem:[#allocation0]]
  $region113: #{_lambda_.1} parent=0
    _
  %s14 = ssub.s32 1, %s12
  %s15 = scalar_select 0, %s14, %s12
  %v16 = vstv %s10
  %17 = vst [vmem:[#allocation3] sm:$0x1] %v16
  $region1: #{_lambda_.1} parent=0
    #allocation4 [shape = 'u8[2048]{0}', space=vmem, size = 0x800, scoped, tag = 'input window, operand 1, single buffered']
    #allocation5 [shape = 's32[2]{0}', space=sflag, size = 0x8, scoped, tag = 'scoped memory for _lambda_.1']
    #allocation6 [shape = 'u8[512]{0}', space=vmem, size = 0x400, scoped, tag = 'input window, operand 2, single buffered']
    #allocation7 [shape = 's32[1]{0}', space=sflag, size = 0x4, scoped, tag = 'scoped memory for _lambda_.1']
    #allocation8 [shape = 'u8[73728]{0}', space=vmem, size = 0x12000, scoped, tag = 'input window, operand 3, single buffered']
    #allocation9 [shape = 'u8[512]{0}', space=vmem, size = 0x400, scoped, tag = 'input window, operand 4, single buffered']
    #allocation10 [shape = 's32[1]{0}', space=sflag, size = 0x4, scoped, tag = 'scoped memory for _lambda_.1']
    #allocation11 [shape = 'u8[2097152]{0}', space=vmem, size = 0x200000, scoped, tag = 'input window, operand 5, single buffered']
    #allocation12 [shape = 'u8[131072]{0}', space=vmem, size = 0x20000, scoped, tag = 'input window, operand 6, single buffered']
    #allocation13 [shape = 's32[1]{0}', space=sflag, size = 0x4, scoped, tag = 'scoped memory for _lambda_.1']
    #allocation14 [shape = 'u8[131072]{0}', space=vmem, size = 0x20000, scoped, tag = 'input window, operand 7, single buffered']
    #allocation15 [shape = 'u8[65536]{0}', space=vmem, size = 0x10000, scoped, tag = 'input window, operand 8, single buffered']
    #allocation16 [shape = 's32[1]{0}', space=sflag, size = 0x4, scoped, tag = 'scoped memory for _lambda_.1']
    #allocation17 [shape = 'u8[512]{0}', space=vmem, size = 0x400, scoped, tag = 'input window, operand 9, single buffered']
    %18 = vsyncpa [#allocation5], 0
    %19 = vsyncpa [#allocation7], 0
    %20 = vsyncpa [#allocation10], 0
    %21 = vsyncpa [#allocation13], 0
    %22 = vsyncpa [#allocation16], 0
    loop: start=0, step=1, limit=4
    $region2: #{_lambda_.1} parent=1 // loop_pre_header
      _
    $region3: #{_lambda_.1} parent=1 // loop_header
      %s24 = sphi 0, %s28
      %p25 = scmp.ge.s32.totalorder %s24, 4
      %s34 = sphi 0, %s36
      %s37 = sphi 0, %s34
      %s38 = sphi 0, %s37
      %s54 = sphi 0, %s38
      %s58 = sphi 0, %s58
      %s60 = sphi 0, %s58
      %s61 = sphi 0, %s60
      %s75 = sphi 0, %s61
      %s79 = sphi 0, %s79
      %s81 = sphi 0, %s79
      %s82 = sphi 0, %s81
      %s96 = sphi 0, %s82
      %s100 = sphi 0, %s100
      %s102 = sphi 0, %s100
      %s103 = sphi 0, %s102
      %s117 = sphi 0, %s103
      %s121 = sphi 0, %s121
      %s123 = sphi 0, %s121
      %s124 = sphi 0, %s123
      %s138 = sphi 0, %s124
      %s142 = sphi 0, %s142
      %s144 = sphi 0, %s142
      %s145 = sphi 0, %s144
      %s159 = sphi 0, %s145
      %s163 = sphi 0, %s163
      %s165 = sphi 0, %s163
      %s166 = sphi 0, %s165
      %s180 = sphi 0, %s166
      %s184 = sphi 0, %s184
      %s186 = sphi 0, %s184
      %s187 = sphi 0, %s186
      %s201 = sphi 0, %s187
      %s205 = sphi 0, %s205
      %s207 = sphi 0, %s205
      %s208 = sphi 0, %s207
      %s222 = sphi 0, %s208
      %s226 = sphi 0, %s226
      %s228 = sphi 0, %s226
      %s229 = sphi 0, %s228
      %s243 = sphi 0, %s229
      %s247 = sphi 0, %s247
      %s249 = sphi 0, %s247
      %s250 = sphi 0, %s249
      %s264 = sphi 0, %s250
      %s270 = sphi 0, %s272
      %s273 = sphi 0, %s270
      %s274 = sphi 0, %s273
      %s290 = sphi 0, %s274
    $region4: #{_lambda_.1} parent=1 // loop_header_branch
      %27 = sbr.rel (%p25) target = $region8
    $region5: #{_lambda_.1} parent=1 // loop_body
      %s29 = ssub.s32 %s24, 1
      %s30 = ssub.s32 %s24, 2
      %s31 = sadd.s32 %s24, 1
      %s32 = ssub.s32 %s24, %s31
      %p33 = scmp.eq.s32.totalorder %s32, 0
      %s35 = sadd.s32 %s34, 1
      %s36 = scalar_select %p33, %s34, %s35
      %p39 = pneg %p33
      %p40 = scmp.eq.s32.totalorder %s24, 1
      %p41 = por %p39, %p40
      %p42 = scmp.ne.s32.totalorder %s34, %s37
      %p43 = scmp.eq.s32.totalorder %s24, 0
      %p44 = por %p42, %p43
      %p45 = scmp.ne.s32.totalorder %s34, %s37
      %p46 = scmp.eq.s32.totalorder %s29, 1
      %p47 = por %p45, %p46
      %p48 = scmp.ne.s32.totalorder %s37, %s38
      %p49 = scmp.eq.s32.totalorder %s29, 0
      %p50 = por %p48, %p49
      %p51 = scmp.ne.s32.totalorder %s37, %s38
      %p52 = scmp.eq.s32.totalorder %s30, 1
      %p53 = por %p51, %p52
      %p55 = scmp.ne.s32.totalorder %s38, %s54
      %p56 = scmp.eq.s32.totalorder %s30, 0
      %p57 = por %p55, %p56
      %s59 = sadd.s32 %s58, 1
      %p62 = scmp.eq.s32.totalorder %s24, 1
      %p63 = scmp.ne.s32.totalorder %s58, %s60
      %p64 = scmp.eq.s32.totalorder %s24, 0
      %p65 = por %p63, %p64
      %p66 = scmp.ne.s32.totalorder %s58, %s60
      %p67 = scmp.eq.s32.totalorder %s29, 1
      %p68 = por %p66, %p67
      %p69 = scmp.ne.s32.totalorder %s60, %s61
      %p70 = scmp.eq.s32.totalorder %s29, 0
      %p71 = por %p69, %p70
      %p72 = scmp.ne.s32.totalorder %s60, %s61
      %p73 = scmp.eq.s32.totalorder %s30, 1
      %p74 = por %p72, %p73
      %p76 = scmp.ne.s32.totalorder %s61, %s75
      %p77 = scmp.eq.s32.totalorder %s30, 0
      %p78 = por %p76, %p77
      %s80 = sadd.s32 %s79, 1
      %p83 = scmp.eq.s32.totalorder %s24, 1
      %p84 = scmp.ne.s32.totalorder %s79, %s81
      %p85 = scmp.eq.s32.totalorder %s24, 0
      %p86 = por %p84, %p85
      %p87 = scmp.ne.s32.totalorder %s79, %s81
      %p88 = scmp.eq.s32.totalorder %s29, 1
      %p89 = por %p87, %p88
      %p90 = scmp.ne.s32.totalorder %s81, %s82
      %p91 = scmp.eq.s32.totalorder %s29, 0
      %p92 = por %p90, %p91
      %p93 = scmp.ne.s32.totalorder %s81, %s82
      %p94 = scmp.eq.s32.totalorder %s30, 1
      %p95 = por %p93, %p94
      %p97 = scmp.ne.s32.totalorder %s82, %s96
      %p98 = scmp.eq.s32.totalorder %s30, 0
      %p99 = por %p97, %p98
      %s101 = sadd.s32 %s100, 1
      %p104 = scmp.eq.s32.totalorder %s24, 1
      %p105 = scmp.ne.s32.totalorder %s100, %s102
      %p106 = scmp.eq.s32.totalorder %s24, 0
      %p107 = por %p105, %p106
      %p108 = scmp.ne.s32.totalorder %s100, %s102
      %p109 = scmp.eq.s32.totalorder %s29, 1
      %p110 = por %p108, %p109
      %p111 = scmp.ne.s32.totalorder %s102, %s103
      %p112 = scmp.eq.s32.totalorder %s29, 0
      %p113 = por %p111, %p112
      %p114 = scmp.ne.s32.totalorder %s102, %s103
      %p115 = scmp.eq.s32.totalorder %s30, 1
      %p116 = por %p114, %p115
      %p118 = scmp.ne.s32.totalorder %s103, %s117
      %p119 = scmp.eq.s32.totalorder %s30, 0
      %p120 = por %p118, %p119
      %s122 = sadd.s32 %s121, 1
      %p125 = scmp.eq.s32.totalorder %s24, 1
      %p126 = scmp.ne.s32.totalorder %s121, %s123
      %p127 = scmp.eq.s32.totalorder %s24, 0
      %p128 = por %p126, %p127
      %p129 = scmp.ne.s32.totalorder %s121, %s123
      %p130 = scmp.eq.s32.totalorder %s29, 1
      %p131 = por %p129, %p130
      %p132 = scmp.ne.s32.totalorder %s123, %s124
      %p133 = scmp.eq.s32.totalorder %s29, 0
      %p134 = por %p132, %p133
      %p135 = scmp.ne.s32.totalorder %s123, %s124
      %p136 = scmp.eq.s32.totalorder %s30, 1
      %p137 = por %p135, %p136
      %p139 = scmp.ne.s32.totalorder %s124, %s138
      %p140 = scmp.eq.s32.totalorder %s30, 0
      %p141 = por %p139, %p140
      %s143 = sadd.s32 %s142, 1
      %p146 = scmp.eq.s32.totalorder %s24, 1
      %p147 = scmp.ne.s32.totalorder %s142, %s144
      %p148 = scmp.eq.s32.totalorder %s24, 0
      %p149 = por %p147, %p148
      %p150 = scmp.ne.s32.totalorder %s142, %s144
      %p151 = scmp.eq.s32.totalorder %s29, 1
      %p152 = por %p150, %p151
      %p153 = scmp.ne.s32.totalorder %s144, %s145
      %p154 = scmp.eq.s32.totalorder %s29, 0
      %p155 = por %p153, %p154
      %p156 = scmp.ne.s32.totalorder %s144, %s145
      %p157 = scmp.eq.s32.totalorder %s30, 1
      %p158 = por %p156, %p157
      %p160 = scmp.ne.s32.totalorder %s145, %s159
      %p161 = scmp.eq.s32.totalorder %s30, 0
      %p162 = por %p160, %p161
      %s164 = sadd.s32 %s163, 1
      %p167 = scmp.eq.s32.totalorder %s24, 1
      %p168 = scmp.ne.s32.totalorder %s163, %s165
      %p169 = scmp.eq.s32.totalorder %s24, 0
      %p170 = por %p168, %p169
      %p171 = scmp.ne.s32.totalorder %s163, %s165
      %p172 = scmp.eq.s32.totalorder %s29, 1
      %p173 = por %p171, %p172
      %p174 = scmp.ne.s32.totalorder %s165, %s166
      %p175 = scmp.eq.s32.totalorder %s29, 0
      %p176 = por %p174, %p175
      %p177 = scmp.ne.s32.totalorder %s165, %s166
      %p178 = scmp.eq.s32.totalorder %s30, 1
      %p179 = por %p177, %p178
      %p181 = scmp.ne.s32.totalorder %s166, %s180
      %p182 = scmp.eq.s32.totalorder %s30, 0
      %p183 = por %p181, %p182
      %s185 = sadd.s32 %s184, 1
      %p188 = scmp.eq.s32.totalorder %s24, 1
      %p189 = scmp.ne.s32.totalorder %s184, %s186
      %p190 = scmp.eq.s32.totalorder %s24, 0
      %p191 = por %p189, %p190
      %p192 = scmp.ne.s32.totalorder %s184, %s186
      %p193 = scmp.eq.s32.totalorder %s29, 1
      %p194 = por %p192, %p193
      %p195 = scmp.ne.s32.totalorder %s186, %s187
      %p196 = scmp.eq.s32.totalorder %s29, 0
      %p197 = por %p195, %p196
      %p198 = scmp.ne.s32.totalorder %s186, %s187
      %p199 = scmp.eq.s32.totalorder %s30, 1
      %p200 = por %p198, %p199
      %p202 = scmp.ne.s32.totalorder %s187, %s201
      %p203 = scmp.eq.s32.totalorder %s30, 0
      %p204 = por %p202, %p203
      %s206 = sadd.s32 %s205, 1
      %p209 = scmp.eq.s32.totalorder %s24, 1
      %p210 = scmp.ne.s32.totalorder %s205, %s207
      %p211 = scmp.eq.s32.totalorder %s24, 0
      %p212 = por %p210, %p211
      %p213 = scmp.ne.s32.totalorder %s205, %s207
      %p214 = scmp.eq.s32.totalorder %s29, 1
      %p215 = por %p213, %p214
      %p216 = scmp.ne.s32.totalorder %s207, %s208
      %p217 = scmp.eq.s32.totalorder %s29, 0
      %p218 = por %p216, %p217
      %p219 = scmp.ne.s32.totalorder %s207, %s208
      %p220 = scmp.eq.s32.totalorder %s30, 1
      %p221 = por %p219, %p220
      %p223 = scmp.ne.s32.totalorder %s208, %s222
      %p224 = scmp.eq.s32.totalorder %s30, 0
      %p225 = por %p223, %p224
      %s227 = sadd.s32 %s226, 1
      %p230 = scmp.eq.s32.totalorder %s24, 1
      %p231 = scmp.ne.s32.totalorder %s226, %s228
      %p232 = scmp.eq.s32.totalorder %s24, 0
      %p233 = por %p231, %p232
      %p234 = scmp.ne.s32.totalorder %s226, %s228
      %p235 = scmp.eq.s32.totalorder %s29, 1
      %p236 = por %p234, %p235
      %p237 = scmp.ne.s32.totalorder %s228, %s229
      %p238 = scmp.eq.s32.totalorder %s29, 0
      %p239 = por %p237, %p238
      %p240 = scmp.ne.s32.totalorder %s228, %s229
      %p241 = scmp.eq.s32.totalorder %s30, 1
      %p242 = por %p240, %p241
      %p244 = scmp.ne.s32.totalorder %s229, %s243
      %p245 = scmp.eq.s32.totalorder %s30, 0
      %p246 = por %p244, %p245
      %s248 = sadd.s32 %s247, 1
      %p251 = scmp.eq.s32.totalorder %s24, 1
      %p252 = scmp.ne.s32.totalorder %s247, %s249
      %p253 = scmp.eq.s32.totalorder %s24, 0
      %p254 = por %p252, %p253
      %p255 = scmp.ne.s32.totalorder %s247, %s249
      %p256 = scmp.eq.s32.totalorder %s29, 1
      %p257 = por %p255, %p256
      %p258 = scmp.ne.s32.totalorder %s249, %s250
      %p259 = scmp.eq.s32.totalorder %s29, 0
      %p260 = por %p258, %p259
      %p261 = scmp.ne.s32.totalorder %s249, %s250
      %p262 = scmp.eq.s32.totalorder %s30, 1
      %p263 = por %p261, %p262
      %p265 = scmp.ne.s32.totalorder %s250, %s264
      %p266 = scmp.eq.s32.totalorder %s30, 0
      %p267 = por %p265, %p266
      %s268 = ssub.s32 %s24, %s31
      %p269 = scmp.eq.s32.totalorder %s268, 0
      %s271 = sadd.s32 %s270, 1
      %s272 = scalar_select %p269, %s270, %s271
      %p275 = pneg %p269
      %p276 = scmp.eq.s32.totalorder %s24, 1
      %p277 = por %p275, %p276
      %p278 = scmp.ne.s32.totalorder %s270, %s273
      %p279 = scmp.eq.s32.totalorder %s24, 0
      %p280 = por %p278, %p279
      %p281 = scmp.ne.s32.totalorder %s270, %s273
      %p282 = scmp.eq.s32.totalorder %s29, 1
      %p283 = por %p281, %p282
      %p284 = scmp.ne.s32.totalorder %s273, %s274
      %p285 = scmp.eq.s32.totalorder %s29, 0
      %p286 = por %p284, %p285
      %p287 = scmp.ne.s32.totalorder %s273, %s274
      %p288 = scmp.eq.s32.totalorder %s30, 1
      %p289 = por %p287, %p288
      %p291 = scmp.ne.s32.totalorder %s274, %s290
      %p292 = scmp.eq.s32.totalorder %s30, 0
      %p293 = por %p291, %p292
      %p294 = scmp.le.s32.totalorder 1, %s24
      %p295 = scmp.lt.s32.totalorder %s24, 3
      %p296 = pnand %p294, %p295
      %p297 = pneg %p296
      // Predicated region
      $region9: #{_lambda_.1} parent=5 // pred_check
        _
      $region10: #{_lambda_.1} parent=5 // pred_check_branch
        %299 = sbr.rel (%p296) target = $region12
      $region11: #{_lambda_.1} parent=5 // pred_region
        %s300 = ssub.s32 %s24, 1
        // Predicated region
        $region13: #{_lambda_.1} parent=11 // pred_check
          %p301 = pneg %p71
        $region14: #{_lambda_.1} parent=11 // pred_check_branch
          %303 = sbr.rel (%p301) target = $region16
        $region15: #{_lambda_.1} parent=11 // pred_region
          %s305 = ssub.s32 64, 64
          %306 = vsyncadd [#allocation5], %s305
          %s308 = sshll.u32 [#allocation4], 4
          %s309 = int_to_ptr.vmem [resolvable:$true] %s308
          %311 = dma.hbm_to_vmem [thread:$0]  %s1, 64, %s309, [#allocation5]
        $region16: #{_lambda_.1} parent=11 // pred_fallthru
          _
        // Predicated region
        $region17: #{_lambda_.1} parent=11 // pred_check
          %p312 = pneg %p92
        $region18: #{_lambda_.1} parent=11 // pred_check_branch
          %314 = sbr.rel (%p312) target = $region20
        $region19: #{_lambda_.1} parent=11 // pred_region
          %s316 = ssub.s32 16, 16
          %317 = vsyncadd [#allocation7], %s316
          %s319 = sshll.u32 [#allocation6], 4
          %s320 = int_to_ptr.vmem [resolvable:$true] %s319
          %322 = dma.hbm_to_vmem [thread:$0]  %s2, 16, %s320, [#allocation7]
        $region20: #{_lambda_.1} parent=11 // pred_fallthru
          _
        // Predicated region
        $region21: #{_lambda_.1} parent=11 // pred_check
          %p323 = pneg %p113
        $region22: #{_lambda_.1} parent=11 // pred_check_branch
          %325 = sbr.rel (%p323) target = $region24
        $region23: #{_lambda_.1} parent=11 // pred_region
          %s327 = ssub.s32 2304, 2304
          %328 = vsyncadd [#allocation7], %s327
          %s329 = sshll.u32 [#allocation8], 4
          %s330 = int_to_ptr.vmem [resolvable:$true] %s329
          %335 = dma.hbm_to_vmem [thread:$0]  %s3, 2304, %s330, [#allocation7], 128, 128, 8
        $region24: #{_lambda_.1} parent=11 // pred_fallthru
          _
        // Predicated region
        $region25: #{_lambda_.1} parent=11 // pred_check
          %p336 = pneg %p134
        $region26: #{_lambda_.1} parent=11 // pred_check_branch
          %338 = sbr.rel (%p336) target = $region28
        $region27: #{_lambda_.1} parent=11 // pred_region
          %s340 = ssub.s32 16, 16
          %341 = vsyncadd [#allocation10], %s340
          %s343 = sshll.u32 [#allocation9], 4
          %s344 = int_to_ptr.vmem [resolvable:$true] %s343
          %346 = dma.hbm_to_vmem [thread:$0]  %s4, 16, %s344, [#allocation10]
        $region28: #{_lambda_.1} parent=11 // pred_fallthru
          _
        // Predicated region
        $region29: #{_lambda_.1} parent=11 // pred_check
          %p347 = pneg %p155
        $region30: #{_lambda_.1} parent=11 // pred_check_branch
          %349 = sbr.rel (%p347) target = $region32
        $region31: #{_lambda_.1} parent=11 // pred_region
          %s351 = ssub.s32 65536, 65536
          %352 = vsyncadd [#allocation10], %s351
          %s353 = sshll.u32 [#allocation11], 4
          %s354 = int_to_ptr.vmem [resolvable:$true] %s353
          %359 = dma.hbm_to_vmem [thread:$0]  %s5, 65536, %s354, [#allocation10], 256, 256, 16
        $region32: #{_lambda_.1} parent=11 // pred_fallthru
          _
        // Predicated region
        $region33: #{_lambda_.1} parent=11 // pred_check
          %p360 = pneg %p176
        $region34: #{_lambda_.1} parent=11 // pred_check_branch
          %362 = sbr.rel (%p360) target = $region36
        $region35: #{_lambda_.1} parent=11 // pred_region
          %s364 = ssub.s32 4096, 4096
          %365 = vsyncadd [#allocation13], %s364
          %s366 = sshll.u32 [#allocation12], 4
          %s367 = int_to_ptr.vmem [resolvable:$true] %s366
          %372 = dma.hbm_to_vmem [thread:$0]  %s6, 4096, %s367, [#allocation13], 128, 128, 8
        $region36: #{_lambda_.1} parent=11 // pred_fallthru
          _
        // Predicated region
        $region37: #{_lambda_.1} parent=11 // pred_check
          %p373 = pneg %p197
        $region38: #{_lambda_.1} parent=11 // pred_check_branch
          %375 = sbr.rel (%p373) target = $region40
        $region39: #{_lambda_.1} parent=11 // pred_region
          %s377 = ssub.s32 4096, 4096
          %378 = vsyncadd [#allocation13], %s377
          %s379 = sshll.u32 [#allocation14], 4
          %s380 = int_to_ptr.vmem [resolvable:$true] %s379
          %385 = dma.hbm_to_vmem [thread:$0]  %s7, 4096, %s380, [#allocation13], 256, 256, 16
        $region40: #{_lambda_.1} parent=11 // pred_fallthru
          _
        // Predicated region
        $region41: #{_lambda_.1} parent=11 // pred_check
          %p386 = pneg %p218
        $region42: #{_lambda_.1} parent=11 // pred_check_branch
          %388 = sbr.rel (%p386) target = $region44
        $region43: #{_lambda_.1} parent=11 // pred_region
          %s390 = ssub.s32 2048, 2048
          %391 = vsyncadd [#allocation16], %s390
          %s392 = sshll.u32 [#allocation15], 4
          %s393 = int_to_ptr.vmem [resolvable:$true] %s392
          %398 = dma.hbm_to_vmem [thread:$0]  %s8, 2048, %s393, [#allocation16], 128, 128, 8
        $region44: #{_lambda_.1} parent=11 // pred_fallthru
          _
        // Predicated region
        $region45: #{_lambda_.1} parent=11 // pred_check
          %p399 = pneg %p239
        $region46: #{_lambda_.1} parent=11 // pred_check_branch
          %401 = sbr.rel (%p399) target = $region48
        $region47: #{_lambda_.1} parent=11 // pred_region
          %s403 = ssub.s32 16, 16
          %404 = vsyncadd [#allocation16], %s403
          %s406 = sshll.u32 [#allocation17], 4
          %s407 = int_to_ptr.vmem [resolvable:$true] %s406
          %409 = dma.hbm_to_vmem [thread:$0]  %s9, 16, %s407, [#allocation16]
        $region48: #{_lambda_.1} parent=11 // pred_fallthru
          _
        // Predicated region
        $region49: #{_lambda_.1} parent=11 // pred_check
          %p410 = pneg %p260
        $region50: #{_lambda_.1} parent=11 // pred_check_branch
          %412 = sbr.rel (%p410) target = $region52
        $region51: #{_lambda_.1} parent=11 // pred_region
          _
        $region52: #{_lambda_.1} parent=11 // pred_fallthru
          _
      $region12: #{_lambda_.1} parent=5 // pred_fallthru
        _
      %p413 = scmp.lt.s32.totalorder %s24, 2
      // Predicated region
      $region53: #{_lambda_.1} parent=5 // pred_check
        %p414 = pneg %p413
      $region54: #{_lambda_.1} parent=5 // pred_check_branch
        %416 = sbr.rel (%p414) target = $region56
      $region55: #{_lambda_.1} parent=5 // pred_region
        // Predicated region
        $region57: #{_lambda_.1} parent=55 // pred_check
          %p417 = pneg %p44
        $region58: #{_lambda_.1} parent=55 // pred_check_branch
          %419 = sbr.rel (%p417) target = $region60
        $region59: #{_lambda_.1} parent=55 // pred_region
          %p420 = scmp.lt.s32.totalorder %s24, 1
          %s421 = scalar_select %p420, %s24, 1
          %s422 = smul.addr %s421, 33
          %s423 = smul.addr %s422, 8
          %s424 = scalar_lea.vmem %s0, %s423
        $region60: #{_lambda_.1} parent=55 // pred_fallthru
          _
      $region56: #{_lambda_.1} parent=5 // pred_fallthru
        _
      %p425 = scmp.le.s32.totalorder 1, %s24
      %p426 = scmp.lt.s32.totalorder %s24, 3
      %p427 = pnand %p425, %p426
      %p428 = pneg %p427
      // Predicated region
      $region61: #{_lambda_.1} parent=5 // pred_check
        _
      $region62: #{_lambda_.1} parent=5 // pred_check_branch
        %430 = sbr.rel (%p427) target = $region64
      $region63: #{_lambda_.1} parent=5 // pred_region
        %s431 = ssub.s32 %s24, 1
        // Predicated region
        $region65: #{_lambda_.1} parent=63 // pred_check
          %p432 = pneg %p71
        $region66: #{_lambda_.1} parent=63 // pred_check_branch
          %434 = sbr.rel (%p432) target = $region68
        $region67: #{_lambda_.1} parent=63 // pred_region
          %435 = dma.done [#allocation5], 64
        $region68: #{_lambda_.1} parent=63 // pred_fallthru
          _
        // Predicated region
        $region69: #{_lambda_.1} parent=63 // pred_check
          %p436 = pneg %p92
        $region70: #{_lambda_.1} parent=63 // pred_check_branch
          %438 = sbr.rel (%p436) target = $region72
        $region71: #{_lambda_.1} parent=63 // pred_region
          %439 = dma.done [#allocation7], 16
        $region72: #{_lambda_.1} parent=63 // pred_fallthru
          _
        // Predicated region
        $region73: #{_lambda_.1} parent=63 // pred_check
          %p440 = pneg %p113
        $region74: #{_lambda_.1} parent=63 // pred_check_branch
          %442 = sbr.rel (%p440) target = $region76
        $region75: #{_lambda_.1} parent=63 // pred_region
          %443 = dma.done [#allocation7], 2304
        $region76: #{_lambda_.1} parent=63 // pred_fallthru
          _
        // Predicated region
        $region77: #{_lambda_.1} parent=63 // pred_check
          %p444 = pneg %p134
        $region78: #{_lambda_.1} parent=63 // pred_check_branch
          %446 = sbr.rel (%p444) target = $region80
        $region79: #{_lambda_.1} parent=63 // pred_region
          %447 = dma.done [#allocation10], 16
        $region80: #{_lambda_.1} parent=63 // pred_fallthru
          _
        // Predicated region
        $region81: #{_lambda_.1} parent=63 // pred_check
          %p448 = pneg %p155
        $region82: #{_lambda_.1} parent=63 // pred_check_branch
          %450 = sbr.rel (%p448) target = $region84
        $region83: #{_lambda_.1} parent=63 // pred_region
          %451 = dma.done [#allocation10], 65536
        $region84: #{_lambda_.1} parent=63 // pred_fallthru
          _
        // Predicated region
        $region85: #{_lambda_.1} parent=63 // pred_check
          %p452 = pneg %p176
        $region86: #{_lambda_.1} parent=63 // pred_check_branch
          %454 = sbr.rel (%p452) target = $region88
        $region87: #{_lambda_.1} parent=63 // pred_region
          %455 = dma.done [#allocation13], 4096
        $region88: #{_lambda_.1} parent=63 // pred_fallthru
          _
        // Predicated region
        $region89: #{_lambda_.1} parent=63 // pred_check
          %p456 = pneg %p197
        $region90: #{_lambda_.1} parent=63 // pred_check_branch
          %458 = sbr.rel (%p456) target = $region92
        $region91: #{_lambda_.1} parent=63 // pred_region
          %459 = dma.done [#allocation13], 4096
        $region92: #{_lambda_.1} parent=63 // pred_fallthru
          _
        // Predicated region
        $region93: #{_lambda_.1} parent=63 // pred_check
          %p460 = pneg %p218
        $region94: #{_lambda_.1} parent=63 // pred_check_branch
          %462 = sbr.rel (%p460) target = $region96
        $region95: #{_lambda_.1} parent=63 // pred_region
          %463 = dma.done [#allocation16], 2048
        $region96: #{_lambda_.1} parent=63 // pred_fallthru
          _
        // Predicated region
        $region97: #{_lambda_.1} parent=63 // pred_check
          %p464 = pneg %p239
        $region98: #{_lambda_.1} parent=63 // pred_check_branch
          %466 = sbr.rel (%p464) target = $region100
        $region99: #{_lambda_.1} parent=63 // pred_region
          %467 = dma.done [#allocation16], 16
        $region100: #{_lambda_.1} parent=63 // pred_fallthru
          _
        %p468 = scmp.lt.s32.totalorder %s29, 1
        %s469 = scalar_select %p468, %s29, 1
        %s470 = smul.addr %s469, 33
        %s471 = smul.addr %s470, 8
        %s472 = scalar_lea.vmem %s0, %s471
        %p473 = pneg %p50
        %p474 = pneg %p47
        %p475 = pneg %p71
        %p476 = pneg %p68
        %p477 = pneg %p92
        %p478 = pneg %p89
        %p479 = pneg %p113
        %p480 = pneg %p110
        %p481 = pneg %p134
        %p482 = pneg %p131
        %p483 = pneg %p155
        %p484 = pneg %p152
        %p485 = pneg %p176
        %p486 = pneg %p173
        %p487 = pneg %p197
        %p488 = pneg %p194
        %p489 = pneg %p218
        %p490 = pneg %p215
        %p491 = pneg %p239
        %p492 = pneg %p236
        %p493 = pneg %p260
        %p494 = pneg %p257
        %p495 = pneg %p286
        %p496 = pneg %p283
        %p497 = scmp.lt.s32.totalorder %s29, 1
        %s498 = scalar_select %p497, %s29, 1
        %s499 = scalar_lea.vmem %s11, %s498
        %p500 = scmp.lt.s32.totalorder %s29, 1
        %s501 = scalar_select %p500, %s29, 1
        %s502 = smul.addr %s501, 33
        %s503 = smul.addr %s502, 8
        %s504 = scalar_lea.vmem %s0, %s503
        %p505 = scmp.lt.s32.totalorder %s29, 1
        %s506 = scalar_select %p505, %s29, 1
        %s507 = scalar_lea.vmem %s11, %s506
        %v508 = vld [vmem:[%s504] sm:$0xff]
        %v509 = vld [vmem:[%s504 + $0x8] sm:$0xff]
        %v510 = vld [vmem:[%s504 + $0x10] sm:$0xff]
        %v511 = vld [vmem:[%s504 + $0x18] sm:$0xff]
        %v512 = vld [vmem:[%s504 + $0x20] sm:$0xff]
        %v513 = vld [vmem:[%s504 + $0x28] sm:$0xff]
        %v514 = vld [vmem:[%s504 + $0x30] sm:$0xff]
        %v515 = vld [vmem:[%s504 + $0x38] sm:$0xff]
        %v516 = vld [vmem:[%s504 + $0x40] sm:$0xff]
        %v517 = vld [vmem:[%s504 + $0x48] sm:$0xff]
        %v518 = vld [vmem:[%s504 + $0x50] sm:$0xff]
        %v519 = vld [vmem:[%s504 + $0x58] sm:$0xff]
        %v520 = vld [vmem:[%s504 + $0x60] sm:$0xff]
        %v521 = vld [vmem:[%s504 + $0x68] sm:$0xff]
        %v522 = vld [vmem:[%s504 + $0x70] sm:$0xff]
        %v523 = vld [vmem:[%s504 + $0x78] sm:$0xff]
        %v524 = vld [vmem:[%s504 + $0x80] sm:$0xff]
        %v525 = vld [vmem:[%s504 + $0x88] sm:$0xff]
        %v526 = vld [vmem:[%s504 + $0x90] sm:$0xff]
        %v527 = vld [vmem:[%s504 + $0x98] sm:$0xff]
        %v528 = vld [vmem:[%s504 + $0xa0] sm:$0xff]
        %v529 = vld [vmem:[%s504 + $0xa8] sm:$0xff]
        %v530 = vld [vmem:[%s504 + $0xb0] sm:$0xff]
        %v531 = vld [vmem:[%s504 + $0xb8] sm:$0xff]
        %v532 = vld [vmem:[%s504 + $0xc0] sm:$0xff]
        %v533 = vld [vmem:[%s504 + $0xc8] sm:$0xff]
        %v534 = vld [vmem:[%s504 + $0xd0] sm:$0xff]
        %v535 = vld [vmem:[%s504 + $0xd8] sm:$0xff]
        %v536 = vld [vmem:[%s504 + $0xe0] sm:$0xff]
        %v537 = vld [vmem:[%s504 + $0xe8] sm:$0xff]
        %v538 = vld [vmem:[#allocation4] sm:$0x1]
        %540 = vset.pattern.permute.xlu0 0
        %541 = vperm.xlu0 %540, %v508
        %v542 = vpop.permute.xlu0 %541
        %545 = vset.pattern.permute.xlu0 0
        %546 = vperm.xlu0 %545, %v509
        %v547 = vpop.permute.xlu0 %546
        %550 = vset.pattern.permute.xlu0 0
        %551 = vperm.xlu0 %550, %v510
        %v552 = vpop.permute.xlu0 %551
        %555 = vset.pattern.permute.xlu0 0
        %556 = vperm.xlu0 %555, %v511
        %v557 = vpop.permute.xlu0 %556
        %560 = vset.pattern.permute.xlu0 0
        %561 = vperm.xlu0 %560, %v512
        %v562 = vpop.permute.xlu0 %561
        %565 = vset.pattern.permute.xlu0 0
        %566 = vperm.xlu0 %565, %v513
        %v567 = vpop.permute.xlu0 %566
        %570 = vset.pattern.permute.xlu0 0
        %571 = vperm.xlu0 %570, %v514
        %v572 = vpop.permute.xlu0 %571
        %575 = vset.pattern.permute.xlu0 0
        %576 = vperm.xlu0 %575, %v515
        %v577 = vpop.permute.xlu0 %576
        %580 = vset.pattern.permute.xlu0 0
        %581 = vperm.xlu0 %580, %v516
        %v582 = vpop.permute.xlu0 %581
        %585 = vset.pattern.permute.xlu0 0
        %586 = vperm.xlu0 %585, %v517
        %v587 = vpop.permute.xlu0 %586
        %590 = vset.pattern.permute.xlu0 0
        %591 = vperm.xlu0 %590, %v518
        %v592 = vpop.permute.xlu0 %591
        %595 = vset.pattern.permute.xlu0 0
        %596 = vperm.xlu0 %595, %v519
        %v597 = vpop.permute.xlu0 %596
        %600 = vset.pattern.permute.xlu0 0
        %601 = vperm.xlu0 %600, %v520
        %v602 = vpop.permute.xlu0 %601
        %605 = vset.pattern.permute.xlu0 0
        %606 = vperm.xlu0 %605, %v521
        %v607 = vpop.permute.xlu0 %606
        %610 = vset.pattern.permute.xlu0 0
        %611 = vperm.xlu0 %610, %v522
        %v612 = vpop.permute.xlu0 %611
        %615 = vset.pattern.permute.xlu0 0
        %616 = vperm.xlu0 %615, %v523
        %v617 = vpop.permute.xlu0 %616
        %620 = vset.pattern.permute.xlu0 0
        %621 = vperm.xlu0 %620, %v524
        %v622 = vpop.permute.xlu0 %621
        %625 = vset.pattern.permute.xlu0 0
        %626 = vperm.xlu0 %625, %v525
        %v627 = vpop.permute.xlu0 %626
        %630 = vset.pattern.permute.xlu0 0
        %631 = vperm.xlu0 %630, %v526
        %v632 = vpop.permute.xlu0 %631
        %635 = vset.pattern.permute.xlu0 0
        %636 = vperm.xlu0 %635, %v527
        %v637 = vpop.permute.xlu0 %636
        %640 = vset.pattern.permute.xlu0 0
        %641 = vperm.xlu0 %640, %v528
        %v642 = vpop.permute.xlu0 %641
        %645 = vset.pattern.permute.xlu0 0
        %646 = vperm.xlu0 %645, %v529
        %v647 = vpop.permute.xlu0 %646
        %650 = vset.pattern.permute.xlu0 0
        %651 = vperm.xlu0 %650, %v530
        %v652 = vpop.permute.xlu0 %651
        %655 = vset.pattern.permute.xlu0 0
        %656 = vperm.xlu0 %655, %v531
        %v657 = vpop.permute.xlu0 %656
        %660 = vset.pattern.permute.xlu0 0
        %661 = vperm.xlu0 %660, %v532
        %v662 = vpop.permute.xlu0 %661
        %665 = vset.pattern.permute.xlu0 0
        %666 = vperm.xlu0 %665, %v533
        %v667 = vpop.permute.xlu0 %666
        %670 = vset.pattern.permute.xlu0 0
        %671 = vperm.xlu0 %670, %v534
        %v672 = vpop.permute.xlu0 %671
        %675 = vset.pattern.permute.xlu0 0
        %676 = vperm.xlu0 %675, %v535
        %v677 = vpop.permute.xlu0 %676
        %680 = vset.pattern.permute.xlu0 0
        %681 = vperm.xlu0 %680, %v536
        %v682 = vpop.permute.xlu0 %681
        %685 = vset.pattern.permute.xlu0 0
        %686 = vperm.xlu0 %685, %v537
        %v687 = vpop.permute.xlu0 %686
        %v689 = vlaneseq
        %v690 = vshrl.u32 %v689, 7
        %v691 = vsub.s32 0, %v690
        %v692 = vrot.slane %v538, %v691
        %v693 = vmul.f32 %v542, %v692
        %v694 = vmul.f32 %v547, %v692
        %v695 = vmul.f32 %v552, %v692
        %v696 = vmul.f32 %v557, %v692
        %v697 = vmul.f32 %v562, %v692
        %v698 = vmul.f32 %v567, %v692
        %v699 = vmul.f32 %v572, %v692
        %v700 = vmul.f32 %v577, %v692
        %v701 = vmul.f32 %v582, %v692
        %v702 = vmul.f32 %v587, %v692
        %v703 = vmul.f32 %v592, %v692
        %v704 = vmul.f32 %v597, %v692
        %v705 = vmul.f32 %v602, %v692
        %v706 = vmul.f32 %v607, %v692
        %v707 = vmul.f32 %v612, %v692
        %v708 = vmul.f32 %v617, %v692
        %v709 = vmul.f32 %v622, %v692
        %v710 = vmul.f32 %v627, %v692
        %v711 = vmul.f32 %v632, %v692
        %v712 = vmul.f32 %v637, %v692
        %v713 = vmul.f32 %v642, %v692
        %v714 = vmul.f32 %v647, %v692
        %v715 = vmul.f32 %v652, %v692
        %v716 = vmul.f32 %v657, %v692
        %v717 = vmul.f32 %v662, %v692
        %v718 = vmul.f32 %v667, %v692
        %v719 = vmul.f32 %v672, %v692
        %v720 = vmul.f32 %v677, %v692
        %v721 = vmul.f32 %v682, %v692
        %v722 = vmul.f32 %v687, %v692
        %v723 = vld [vmem:[%s504 + $0x1] sm:$0xff]
        %v724 = vld [vmem:[%s504 + $0x9] sm:$0xff]
        %v725 = vld [vmem:[%s504 + $0x11] sm:$0xff]
        %v726 = vld [vmem:[%s504 + $0x19] sm:$0xff]
        %v727 = vld [vmem:[%s504 + $0x21] sm:$0xff]
        %v728 = vld [vmem:[%s504 + $0x29] sm:$0xff]
        %v729 = vld [vmem:[%s504 + $0x31] sm:$0xff]
        %v730 = vld [vmem:[%s504 + $0x39] sm:$0xff]
        %v731 = vld [vmem:[%s504 + $0x41] sm:$0xff]
        %v732 = vld [vmem:[%s504 + $0x49] sm:$0xff]
        %v733 = vld [vmem:[%s504 + $0x51] sm:$0xff]
        %v734 = vld [vmem:[%s504 + $0x59] sm:$0xff]
        %v735 = vld [vmem:[%s504 + $0x61] sm:$0xff]
        %v736 = vld [vmem:[%s504 + $0x69] sm:$0xff]
        %v737 = vld [vmem:[%s504 + $0x71] sm:$0xff]
        %v738 = vld [vmem:[%s504 + $0x79] sm:$0xff]
        %v739 = vld [vmem:[%s504 + $0x81] sm:$0xff]
        %v740 = vld [vmem:[%s504 + $0x89] sm:$0xff]
        %v741 = vld [vmem:[%s504 + $0x91] sm:$0xff]
        %v742 = vld [vmem:[%s504 + $0x99] sm:$0xff]
        %v743 = vld [vmem:[%s504 + $0xa1] sm:$0xff]
        %v744 = vld [vmem:[%s504 + $0xa9] sm:$0xff]
        %v745 = vld [vmem:[%s504 + $0xb1] sm:$0xff]
        %v746 = vld [vmem:[%s504 + $0xb9] sm:$0xff]
        %v747 = vld [vmem:[%s504 + $0xc1] sm:$0xff]
        %v748 = vld [vmem:[%s504 + $0xc9] sm:$0xff]
        %v749 = vld [vmem:[%s504 + $0xd1] sm:$0xff]
        %v750 = vld [vmem:[%s504 + $0xd9] sm:$0xff]
        %v751 = vld [vmem:[%s504 + $0xe1] sm:$0xff]
        %v752 = vld [vmem:[%s504 + $0xe9] sm:$0xff]
        %v753 = vld [vmem:[#allocation4 + $0x1] sm:$0x1]
        %755 = vset.pattern.permute.xlu0 0
        %756 = vperm.xlu0 %755, %v723
        %v757 = vpop.permute.xlu0 %756
        %760 = vset.pattern.permute.xlu0 0
        %761 = vperm.xlu0 %760, %v724
        %v762 = vpop.permute.xlu0 %761
        %765 = vset.pattern.permute.xlu0 0
        %766 = vperm.xlu0 %765, %v725
        %v767 = vpop.permute.xlu0 %766
        %770 = vset.pattern.permute.xlu0 0
        %771 = vperm.xlu0 %770, %v726
        %v772 = vpop.permute.xlu0 %771
        %775 = vset.pattern.permute.xlu0 0
        %776 = vperm.xlu0 %775, %v727
        %v777 = vpop.permute.xlu0 %776
        %780 = vset.pattern.permute.xlu0 0
        %781 = vperm.xlu0 %780, %v728
        %v782 = vpop.permute.xlu0 %781
        %785 = vset.pattern.permute.xlu0 0
        %786 = vperm.xlu0 %785, %v729
        %v787 = vpop.permute.xlu0 %786
        %790 = vset.pattern.permute.xlu0 0
        %791 = vperm.xlu0 %790, %v730
        %v792 = vpop.permute.xlu0 %791
        %795 = vset.pattern.permute.xlu0 0
        %796 = vperm.xlu0 %795, %v731
        %v797 = vpop.permute.xlu0 %796
        %800 = vset.pattern.permute.xlu0 0
        %801 = vperm.xlu0 %800, %v732
        %v802 = vpop.permute.xlu0 %801
        %805 = vset.pattern.permute.xlu0 0
        %806 = vperm.xlu0 %805, %v733
        %v807 = vpop.permute.xlu0 %806
        %810 = vset.pattern.permute.xlu0 0
        %811 = vperm.xlu0 %810, %v734
        %v812 = vpop.permute.xlu0 %811
        %815 = vset.pattern.permute.xlu0 0
        %816 = vperm.xlu0 %815, %v735
        %v817 = vpop.permute.xlu0 %816
        %820 = vset.pattern.permute.xlu0 0
        %821 = vperm.xlu0 %820, %v736
        %v822 = vpop.permute.xlu0 %821
        %825 = vset.pattern.permute.xlu0 0
        %826 = vperm.xlu0 %825, %v737
        %v827 = vpop.permute.xlu0 %826
        %830 = vset.pattern.permute.xlu0 0
        %831 = vperm.xlu0 %830, %v738
        %v832 = vpop.permute.xlu0 %831
        %835 = vset.pattern.permute.xlu0 0
        %836 = vperm.xlu0 %835, %v739
        %v837 = vpop.permute.xlu0 %836
        %840 = vset.pattern.permute.xlu0 0
        %841 = vperm.xlu0 %840, %v740
        %v842 = vpop.permute.xlu0 %841
        %845 = vset.pattern.permute.xlu0 0
        %846 = vperm.xlu0 %845, %v741
        %v847 = vpop.permute.xlu0 %846
        %850 = vset.pattern.permute.xlu0 0
        %851 = vperm.xlu0 %850, %v742
        %v852 = vpop.permute.xlu0 %851
        %855 = vset.pattern.permute.xlu0 0
        %856 = vperm.xlu0 %855, %v743
        %v857 = vpop.permute.xlu0 %856
        %860 = vset.pattern.permute.xlu0 0
        %861 = vperm.xlu0 %860, %v744
        %v862 = vpop.permute.xlu0 %861
        %865 = vset.pattern.permute.xlu0 0
        %866 = vperm.xlu0 %865, %v745
        %v867 = vpop.permute.xlu0 %866
        %870 = vset.pattern.permute.xlu0 0
        %871 = vperm.xlu0 %870, %v746
        %v872 = vpop.permute.xlu0 %871
        %875 = vset.pattern.permute.xlu0 0
        %876 = vperm.xlu0 %875, %v747
        %v877 = vpop.permute.xlu0 %876
        %880 = vset.pattern.permute.xlu0 0
        %881 = vperm.xlu0 %880, %v748
        %v882 = vpop.permute.xlu0 %881
        %885 = vset.pattern.permute.xlu0 0
        %886 = vperm.xlu0 %885, %v749
        %v887 = vpop.permute.xlu0 %886
        %890 = vset.pattern.permute.xlu0 0
        %891 = vperm.xlu0 %890, %v750
        %v892 = vpop.permute.xlu0 %891
        %895 = vset.pattern.permute.xlu0 0
        %896 = vperm.xlu0 %895, %v751
        %v897 = vpop.permute.xlu0 %896
        %900 = vset.pattern.permute.xlu0 0
        %901 = vperm.xlu0 %900, %v752
        %v902 = vpop.permute.xlu0 %901
        %v904 = vlaneseq
        %v905 = vshrl.u32 %v904, 7
        %v906 = vsub.s32 0, %v905
        %v907 = vrot.slane %v753, %v906
        %v908 = vmul.f32 %v757, %v907
        %v909 = vmul.f32 %v762, %v907
        %v910 = vmul.f32 %v767, %v907
        %v911 = vmul.f32 %v772, %v907
        %v912 = vmul.f32 %v777, %v907
        %v913 = vmul.f32 %v782, %v907
        %v914 = vmul.f32 %v787, %v907
        %v915 = vmul.f32 %v792, %v907
        %v916 = vmul.f32 %v797, %v907
        %v917 = vmul.f32 %v802, %v907
        %v918 = vmul.f32 %v807, %v907
        %v919 = vmul.f32 %v812, %v907
        %v920 = vmul.f32 %v817, %v907
        %v921 = vmul.f32 %v822, %v907
        %v922 = vmul.f32 %v827, %v907
        %v923 = vmul.f32 %v832, %v907
        %v924 = vmul.f32 %v837, %v907
        %v925 = vmul.f32 %v842, %v907
        %v926 = vmul.f32 %v847, %v907
        %v927 = vmul.f32 %v852, %v907
        %v928 = vmul.f32 %v857, %v907
        %v929 = vmul.f32 %v862, %v907
        %v930 = vmul.f32 %v867, %v907
        %v931 = vmul.f32 %v872, %v907
        %v932 = vmul.f32 %v877, %v907
        %v933 = vmul.f32 %v882, %v907
        %v934 = vmul.f32 %v887, %v907
        %v935 = vmul.f32 %v892, %v907
        %v936 = vmul.f32 %v897, %v907
        %v937 = vmul.f32 %v902, %v907
        %v938 = vadd.f32 %v693, %v908
        %v939 = vadd.f32 %v694, %v909
        %v940 = vadd.f32 %v695, %v910
        %v941 = vadd.f32 %v696, %v911
        %v942 = vadd.f32 %v697, %v912
        %v943 = vadd.f32 %v698, %v913
        %v944 = vadd.f32 %v699, %v914
        %v945 = vadd.f32 %v700, %v915
        %v946 = vadd.f32 %v701, %v916
        %v947 = vadd.f32 %v702, %v917
        %v948 = vadd.f32 %v703, %v918
        %v949 = vadd.f32 %v704, %v919
        %v950 = vadd.f32 %v705, %v920
        %v951 = vadd.f32 %v706, %v921
        %v952 = vadd.f32 %v707, %v922
        %v953 = vadd.f32 %v708, %v923
        %v954 = vadd.f32 %v709, %v924
        %v955 = vadd.f32 %v710, %v925
        %v956 = vadd.f32 %v711, %v926
        %v957 = vadd.f32 %v712, %v927
        %v958 = vadd.f32 %v713, %v928
        %v959 = vadd.f32 %v714, %v929
        %v960 = vadd.f32 %v715, %v930
        %v961 = vadd.f32 %v716, %v931
        %v962 = vadd.f32 %v717, %v932
        %v963 = vadd.f32 %v718, %v933
        %v964 = vadd.f32 %v719, %v934
        %v965 = vadd.f32 %v720, %v935
        %v966 = vadd.f32 %v721, %v936
        %v967 = vadd.f32 %v722, %v937
        %v968 = vld [vmem:[%s504 + $0x10] sm:$0xff]
        %v969 = vld [vmem:[%s504 + $0x18] sm:$0xff]
        %v970 = vld [vmem:[%s504 + $0x20] sm:$0xff]
        %v971 = vld [vmem:[%s504 + $0x28] sm:$0xff]
        %v972 = vld [vmem:[%s504 + $0x30] sm:$0xff]
        %v973 = vld [vmem:[%s504 + $0x38] sm:$0xff]
        %v974 = vld [vmem:[%s504 + $0x40] sm:$0xff]
        %v975 = vld [vmem:[%s504 + $0x48] sm:$0xff]
        %v976 = vld [vmem:[%s504 + $0x50] sm:$0xff]
        %v977 = vld [vmem:[%s504 + $0x58] sm:$0xff]
        %v978 = vld [vmem:[%s504 + $0x60] sm:$0xff]
        %v979 = vld [vmem:[%s504 + $0x68] sm:$0xff]
        %v980 = vld [vmem:[%s504 + $0x70] sm:$0xff]
        %v981 = vld [vmem:[%s504 + $0x78] sm:$0xff]
        %v982 = vld [vmem:[%s504 + $0x80] sm:$0xff]
        %v983 = vld [vmem:[%s504 + $0x88] sm:$0xff]
        %v984 = vld [vmem:[%s504 + $0x90] sm:$0xff]
        %v985 = vld [vmem:[%s504 + $0x98] sm:$0xff]
        %v986 = vld [vmem:[%s504 + $0xa0] sm:$0xff]
        %v987 = vld [vmem:[%s504 + $0xa8] sm:$0xff]
        %v988 = vld [vmem:[%s504 + $0xb0] sm:$0xff]
        %v989 = vld [vmem:[%s504 + $0xb8] sm:$0xff]
        %v990 = vld [vmem:[%s504 + $0xc0] sm:$0xff]
        %v991 = vld [vmem:[%s504 + $0xc8] sm:$0xff]
        %v992 = vld [vmem:[%s504 + $0xd0] sm:$0xff]
        %v993 = vld [vmem:[%s504 + $0xd8] sm:$0xff]
        %v994 = vld [vmem:[%s504 + $0xe0] sm:$0xff]
        %v995 = vld [vmem:[%s504 + $0xe8] sm:$0xff]
        %v996 = vld [vmem:[%s504 + $0xf0] sm:$0xff]
        %v997 = vld [vmem:[%s504 + $0xf8] sm:$0xff]
        %v998 = vld [vmem:[#allocation4 + $0x2] sm:$0x1]
        %1000 = vset.pattern.permute.xlu0 0
        %1001 = vperm.xlu0 %1000, %v968
        %v1002 = vpop.permute.xlu0 %1001
        %1005 = vset.pattern.permute.xlu0 0
        %1006 = vperm.xlu0 %1005, %v969
        %v1007 = vpop.permute.xlu0 %1006
        %1010 = vset.pattern.permute.xlu0 0
        %1011 = vperm.xlu0 %1010, %v970
        %v1012 = vpop.permute.xlu0 %1011
        %1015 = vset.pattern.permute.xlu0 0
        %1016 = vperm.xlu0 %1015, %v971
        %v1017 = vpop.permute.xlu0 %1016
        %1020 = vset.pattern.permute.xlu0 0
        %1021 = vperm.xlu0 %1020, %v972
        %v1022 = vpop.permute.xlu0 %1021
        %1025 = vset.pattern.permute.xlu0 0
        %1026 = vperm.xlu0 %1025, %v973
        %v1027 = vpop.permute.xlu0 %1026
        %1030 = vset.pattern.permute.xlu0 0
        %1031 = vperm.xlu0 %1030, %v974
        %v1032 = vpop.permute.xlu0 %1031
        %1035 = vset.pattern.permute.xlu0 0
        %1036 = vperm.xlu0 %1035, %v975
        %v1037 = vpop.permute.xlu0 %1036
        %1040 = vset.pattern.permute.xlu0 0
        %1041 = vperm.xlu0 %1040, %v976
        %v1042 = vpop.permute.xlu0 %1041
        %1045 = vset.pattern.permute.xlu0 0
        %1046 = vperm.xlu0 %1045, %v977
        %v1047 = vpop.permute.xlu0 %1046
        %1050 = vset.pattern.permute.xlu0 0
        %1051 = vperm.xlu0 %1050, %v978
        %v1052 = vpop.permute.xlu0 %1051
        %1055 = vset.pattern.permute.xlu0 0
        %1056 = vperm.xlu0 %1055, %v979
        %v1057 = vpop.permute.xlu0 %1056
        %1060 = vset.pattern.permute.xlu0 0
        %1061 = vperm.xlu0 %1060, %v980
        %v1062 = vpop.permute.xlu0 %1061
        %1065 = vset.pattern.permute.xlu0 0
        %1066 = vperm.xlu0 %1065, %v981
        %v1067 = vpop.permute.xlu0 %1066
        %1070 = vset.pattern.permute.xlu0 0
        %1071 = vperm.xlu0 %1070, %v982
        %v1072 = vpop.permute.xlu0 %1071
        %1075 = vset.pattern.permute.xlu0 0
        %1076 = vperm.xlu0 %1075, %v983
        %v1077 = vpop.permute.xlu0 %1076
        %1080 = vset.pattern.permute.xlu0 0
        %1081 = vperm.xlu0 %1080, %v984
        %v1082 = vpop.permute.xlu0 %1081
        %1085 = vset.pattern.permute.xlu0 0
        %1086 = vperm.xlu0 %1085, %v985
        %v1087 = vpop.permute.xlu0 %1086
        %1090 = vset.pattern.permute.xlu0 0
        %1091 = vperm.xlu0 %1090, %v986
        %v1092 = vpop.permute.xlu0 %1091
        %1095 = vset.pattern.permute.xlu0 0
        %1096 = vperm.xlu0 %1095, %v987
        %v1097 = vpop.permute.xlu0 %1096
        %1100 = vset.pattern.permute.xlu0 0
        %1101 = vperm.xlu0 %1100, %v988
        %v1102 = vpop.permute.xlu0 %1101
        %1105 = vset.pattern.permute.xlu0 0
        %1106 = vperm.xlu0 %1105, %v989
        %v1107 = vpop.permute.xlu0 %1106
        %1110 = vset.pattern.permute.xlu0 0
        %1111 = vperm.xlu0 %1110, %v990
        %v1112 = vpop.permute.xlu0 %1111
        %1115 = vset.pattern.permute.xlu0 0
        %1116 = vperm.xlu0 %1115, %v991
        %v1117 = vpop.permute.xlu0 %1116
        %1120 = vset.pattern.permute.xlu0 0
        %1121 = vperm.xlu0 %1120, %v992
        %v1122 = vpop.permute.xlu0 %1121
        %1125 = vset.pattern.permute.xlu0 0
        %1126 = vperm.xlu0 %1125, %v993
        %v1127 = vpop.permute.xlu0 %1126
        %1130 = vset.pattern.permute.xlu0 0
        %1131 = vperm.xlu0 %1130, %v994
        %v1132 = vpop.permute.xlu0 %1131
        %1135 = vset.pattern.permute.xlu0 0
        %1136 = vperm.xlu0 %1135, %v995
        %v1137 = vpop.permute.xlu0 %1136
        %1140 = vset.pattern.permute.xlu0 0
        %1141 = vperm.xlu0 %1140, %v996
        %v1142 = vpop.permute.xlu0 %1141
        %1145 = vset.pattern.permute.xlu0 0
        %1146 = vperm.xlu0 %1145, %v997
        %v1147 = vpop.permute.xlu0 %1146
        %v1149 = vlaneseq
        %v1150 = vshrl.u32 %v1149, 7
        %v1151 = vsub.s32 0, %v1150
        %v1152 = vrot.slane %v998, %v1151
        %v1153 = vmul.f32 %v1002, %v1152
        %v1154 = vmul.f32 %v1007, %v1152
        %v1155 = vmul.f32 %v1012, %v1152
        %v1156 = vmul.f32 %v1017, %v1152
        %v1157 = vmul.f32 %v1022, %v1152
        %v1158 = vmul.f32 %v1027, %v1152
        %v1159 = vmul.f32 %v1032, %v1152
        %v1160 = vmul.f32 %v1037, %v1152
        %v1161 = vmul.f32 %v1042, %v1152
        %v1162 = vmul.f32 %v1047, %v1152
        %v1163 = vmul.f32 %v1052, %v1152
        %v1164 = vmul.f32 %v1057, %v1152
        %v1165 = vmul.f32 %v1062, %v1152
        %v1166 = vmul.f32 %v1067, %v1152
        %v1167 = vmul.f32 %v1072, %v1152
        %v1168 = vmul.f32 %v1077, %v1152
        %v1169 = vmul.f32 %v1082, %v1152
        %v1170 = vmul.f32 %v1087, %v1152
        %v1171 = vmul.f32 %v1092, %v1152
        %v1172 = vmul.f32 %v1097, %v1152
        %v1173 = vmul.f32 %v1102, %v1152
        %v1174 = vmul.f32 %v1107, %v1152
        %v1175 = vmul.f32 %v1112, %v1152
        %v1176 = vmul.f32 %v1117, %v1152
        %v1177 = vmul.f32 %v1122, %v1152
        %v1178 = vmul.f32 %v1127, %v1152
        %v1179 = vmul.f32 %v1132, %v1152
        %v1180 = vmul.f32 %v1137, %v1152
        %v1181 = vmul.f32 %v1142, %v1152
        %v1182 = vmul.f32 %v1147, %v1152
        %v1183 = vadd.f32 %v938, %v1153
        %v1184 = vadd.f32 %v939, %v1154
        %v1185 = vadd.f32 %v940, %v1155
        %v1186 = vadd.f32 %v941, %v1156
        %v1187 = vadd.f32 %v942, %v1157
        %v1188 = vadd.f32 %v943, %v1158
        %v1189 = vadd.f32 %v944, %v1159
        %v1190 = vadd.f32 %v945, %v1160
        %v1191 = vadd.f32 %v946, %v1161
        %v1192 = vadd.f32 %v947, %v1162
        %v1193 = vadd.f32 %v948, %v1163
        %v1194 = vadd.f32 %v949, %v1164
        %v1195 = vadd.f32 %v950, %v1165
        %v1196 = vadd.f32 %v951, %v1166
        %v1197 = vadd.f32 %v952, %v1167
        %v1198 = vadd.f32 %v953, %v1168
        %v1199 = vadd.f32 %v954, %v1169
        %v1200 = vadd.f32 %v955, %v1170
        %v1201 = vadd.f32 %v956, %v1171
        %v1202 = vadd.f32 %v957, %v1172
        %v1203 = vadd.f32 %v958, %v1173
        %v1204 = vadd.f32 %v959, %v1174
        %v1205 = vadd.f32 %v960, %v1175
        %v1206 = vadd.f32 %v961, %v1176
        %v1207 = vadd.f32 %v962, %v1177
        %v1208 = vadd.f32 %v963, %v1178
        %v1209 = vadd.f32 %v964, %v1179
        %v1210 = vadd.f32 %v965, %v1180
        %v1211 = vadd.f32 %v966, %v1181
        %v1212 = vadd.f32 %v967, %v1182
        %v1213 = vld [vmem:[%s504 + $0x11] sm:$0xff]
        %v1214 = vld [vmem:[%s504 + $0x19] sm:$0xff]
        %v1215 = vld [vmem:[%s504 + $0x21] sm:$0xff]
        %v1216 = vld [vmem:[%s504 + $0x29] sm:$0xff]
        %v1217 = vld [vmem:[%s504 + $0x31] sm:$0xff]
        %v1218 = vld [vmem:[%s504 + $0x39] sm:$0xff]
        %v1219 = vld [vmem:[%s504 + $0x41] sm:$0xff]
        %v1220 = vld [vmem:[%s504 + $0x49] sm:$0xff]
        %v1221 = vld [vmem:[%s504 + $0x51] sm:$0xff]
        %v1222 = vld [vmem:[%s504 + $0x59] sm:$0xff]
        %v1223 = vld [vmem:[%s504 + $0x61] sm:$0xff]
        %v1224 = vld [vmem:[%s504 + $0x69] sm:$0xff]
        %v1225 = vld [vmem:[%s504 + $0x71] sm:$0xff]
        %v1226 = vld [vmem:[%s504 + $0x79] sm:$0xff]
        %v1227 = vld [vmem:[%s504 + $0x81] sm:$0xff]
        %v1228 = vld [vmem:[%s504 + $0x89] sm:$0xff]
        %v1229 = vld [vmem:[%s504 + $0x91] sm:$0xff]
        %v1230 = vld [vmem:[%s504 + $0x99] sm:$0xff]
        %v1231 = vld [vmem:[%s504 + $0xa1] sm:$0xff]
        %v1232 = vld [vmem:[%s504 + $0xa9] sm:$0xff]
        %v1233 = vld [vmem:[%s504 + $0xb1] sm:$0xff]
        %v1234 = vld [vmem:[%s504 + $0xb9] sm:$0xff]
        %v1235 = vld [vmem:[%s504 + $0xc1] sm:$0xff]
        %v1236 = vld [vmem:[%s504 + $0xc9] sm:$0xff]
        %v1237 = vld [vmem:[%s504 + $0xd1] sm:$0xff]
        %v1238 = vld [vmem:[%s504 + $0xd9] sm:$0xff]
        %v1239 = vld [vmem:[%s504 + $0xe1] sm:$0xff]
        %v1240 = vld [vmem:[%s504 + $0xe9] sm:$0xff]
        %v1241 = vld [vmem:[%s504 + $0xf1] sm:$0xff]
        %v1242 = vld [vmem:[%s504 + $0xf9] sm:$0xff]
        %v1243 = vld [vmem:[#allocation4 + $0x3] sm:$0x1]
        %1245 = vset.pattern.permute.xlu0 0
        %1246 = vperm.xlu0 %1245, %v1213
        %v1247 = vpop.permute.xlu0 %1246
        %1250 = vset.pattern.permute.xlu0 0
        %1251 = vperm.xlu0 %1250, %v1214
        %v1252 = vpop.permute.xlu0 %1251
        %1255 = vset.pattern.permute.xlu0 0
        %1256 = vperm.xlu0 %1255, %v1215
        %v1257 = vpop.permute.xlu0 %1256
        %1260 = vset.pattern.permute.xlu0 0
        %1261 = vperm.xlu0 %1260, %v1216
        %v1262 = vpop.permute.xlu0 %1261
        %1265 = vset.pattern.permute.xlu0 0
        %1266 = vperm.xlu0 %1265, %v1217
        %v1267 = vpop.permute.xlu0 %1266
        %1270 = vset.pattern.permute.xlu0 0
        %1271 = vperm.xlu0 %1270, %v1218
        %v1272 = vpop.permute.xlu0 %1271
        %1275 = vset.pattern.permute.xlu0 0
        %1276 = vperm.xlu0 %1275, %v1219
        %v1277 = vpop.permute.xlu0 %1276
        %1280 = vset.pattern.permute.xlu0 0
        %1281 = vperm.xlu0 %1280, %v1220
        %v1282 = vpop.permute.xlu0 %1281
        %1285 = vset.pattern.permute.xlu0 0
        %1286 = vperm.xlu0 %1285, %v1221
        %v1287 = vpop.permute.xlu0 %1286
        %1290 = vset.pattern.permute.xlu0 0
        %1291 = vperm.xlu0 %1290, %v1222
        %v1292 = vpop.permute.xlu0 %1291
        %1295 = vset.pattern.permute.xlu0 0
        %1296 = vperm.xlu0 %1295, %v1223
        %v1297 = vpop.permute.xlu0 %1296
        %1300 = vset.pattern.permute.xlu0 0
        %1301 = vperm.xlu0 %1300, %v1224
        %v1302 = vpop.permute.xlu0 %1301
        %1305 = vset.pattern.permute.xlu0 0
        %1306 = vperm.xlu0 %1305, %v1225
        %v1307 = vpop.permute.xlu0 %1306
        %1310 = vset.pattern.permute.xlu0 0
        %1311 = vperm.xlu0 %1310, %v1226
        %v1312 = vpop.permute.xlu0 %1311
        %1315 = vset.pattern.permute.xlu0 0
        %1316 = vperm.xlu0 %1315, %v1227
        %v1317 = vpop.permute.xlu0 %1316
        %1320 = vset.pattern.permute.xlu0 0
        %1321 = vperm.xlu0 %1320, %v1228
        %v1322 = vpop.permute.xlu0 %1321
        %1325 = vset.pattern.permute.xlu0 0
        %1326 = vperm.xlu0 %1325, %v1229
        %v1327 = vpop.permute.xlu0 %1326
        %1330 = vset.pattern.permute.xlu0 0
        %1331 = vperm.xlu0 %1330, %v1230
        %v1332 = vpop.permute.xlu0 %1331
        %1335 = vset.pattern.permute.xlu0 0
        %1336 = vperm.xlu0 %1335, %v1231
        %v1337 = vpop.permute.xlu0 %1336
        %1340 = vset.pattern.permute.xlu0 0
        %1341 = vperm.xlu0 %1340, %v1232
        %v1342 = vpop.permute.xlu0 %1341
        %1345 = vset.pattern.permute.xlu0 0
        %1346 = vperm.xlu0 %1345, %v1233
        %v1347 = vpop.permute.xlu0 %1346
        %1350 = vset.pattern.permute.xlu0 0
        %1351 = vperm.xlu0 %1350, %v1234
        %v1352 = vpop.permute.xlu0 %1351
        %1355 = vset.pattern.permute.xlu0 0
        %1356 = vperm.xlu0 %1355, %v1235
        %v1357 = vpop.permute.xlu0 %1356
        %1360 = vset.pattern.permute.xlu0 0
        %1361 = vperm.xlu0 %1360, %v1236
        %v1362 = vpop.permute.xlu0 %1361
        %1365 = vset.pattern.permute.xlu0 0
        %1366 = vperm.xlu0 %1365, %v1237
        %v1367 = vpop.permute.xlu0 %1366
        %1370 = vset.pattern.permute.xlu0 0
        %1371 = vperm.xlu0 %1370, %v1238
        %v1372 = vpop.permute.xlu0 %1371
        %1375 = vset.pattern.permute.xlu0 0
        %1376 = vperm.xlu0 %1375, %v1239
        %v1377 = vpop.permute.xlu0 %1376
        %1380 = vset.pattern.permute.xlu0 0
        %1381 = vperm.xlu0 %1380, %v1240
        %v1382 = vpop.permute.xlu0 %1381
        %1385 = vset.pattern.permute.xlu0 0
        %1386 = vperm.xlu0 %1385, %v1241
        %v1387 = vpop.permute.xlu0 %1386
        %1390 = vset.pattern.permute.xlu0 0
        %1391 = vperm.xlu0 %1390, %v1242
        %v1392 = vpop.permute.xlu0 %1391
        %v1394 = vlaneseq
        %v1395 = vshrl.u32 %v1394, 7
        %v1396 = vsub.s32 0, %v1395
        %v1397 = vrot.slane %v1243, %v1396
        %v1398 = vmul.f32 %v1247, %v1397
        %v1399 = vmul.f32 %v1252, %v1397
        %v1400 = vmul.f32 %v1257, %v1397
        %v1401 = vmul.f32 %v1262, %v1397
        %v1402 = vmul.f32 %v1267, %v1397
        %v1403 = vmul.f32 %v1272, %v1397
        %v1404 = vmul.f32 %v1277, %v1397
        %v1405 = vmul.f32 %v1282, %v1397
        %v1406 = vmul.f32 %v1287, %v1397
        %v1407 = vmul.f32 %v1292, %v1397
        %v1408 = vmul.f32 %v1297, %v1397
        %v1409 = vmul.f32 %v1302, %v1397
        %v1410 = vmul.f32 %v1307, %v1397
        %v1411 = vmul.f32 %v1312, %v1397
        %v1412 = vmul.f32 %v1317, %v1397
        %v1413 = vmul.f32 %v1322, %v1397
        %v1414 = vmul.f32 %v1327, %v1397
        %v1415 = vmul.f32 %v1332, %v1397
        %v1416 = vmul.f32 %v1337, %v1397
        %v1417 = vmul.f32 %v1342, %v1397
        %v1418 = vmul.f32 %v1347, %v1397
        %v1419 = vmul.f32 %v1352, %v1397
        %v1420 = vmul.f32 %v1357, %v1397
        %v1421 = vmul.f32 %v1362, %v1397
        %v1422 = vmul.f32 %v1367, %v1397
        %v1423 = vmul.f32 %v1372, %v1397
        %v1424 = vmul.f32 %v1377, %v1397
        %v1425 = vmul.f32 %v1382, %v1397
        %v1426 = vmul.f32 %v1387, %v1397
        %v1427 = vmul.f32 %v1392, %v1397
        %v1428 = vadd.f32 %v1183, %v1398
        %v1429 = vadd.f32 %v1184, %v1399
        %v1430 = vadd.f32 %v1185, %v1400
        %v1431 = vadd.f32 %v1186, %v1401
        %v1432 = vadd.f32 %v1187, %v1402
        %v1433 = vadd.f32 %v1188, %v1403
        %v1434 = vadd.f32 %v1189, %v1404
        %v1435 = vadd.f32 %v1190, %v1405
        %v1436 = vadd.f32 %v1191, %v1406
        %v1437 = vadd.f32 %v1192, %v1407
        %v1438 = vadd.f32 %v1193, %v1408
        %v1439 = vadd.f32 %v1194, %v1409
        %v1440 = vadd.f32 %v1195, %v1410
        %v1441 = vadd.f32 %v1196, %v1411
        %v1442 = vadd.f32 %v1197, %v1412
        %v1443 = vadd.f32 %v1198, %v1413
        %v1444 = vadd.f32 %v1199, %v1414
        %v1445 = vadd.f32 %v1200, %v1415
        %v1446 = vadd.f32 %v1201, %v1416
        %v1447 = vadd.f32 %v1202, %v1417
        %v1448 = vadd.f32 %v1203, %v1418
        %v1449 = vadd.f32 %v1204, %v1419
        %v1450 = vadd.f32 %v1205, %v1420
        %v1451 = vadd.f32 %v1206, %v1421
        %v1452 = vadd.f32 %v1207, %v1422
        %v1453 = vadd.f32 %v1208, %v1423
        %v1454 = vadd.f32 %v1209, %v1424
        %v1455 = vadd.f32 %v1210, %v1425
        %v1456 = vadd.f32 %v1211, %v1426
        %v1457 = vadd.f32 %v1212, %v1427
        %v1458 = vld [vmem:[#allocation6] sm:$0x1]
        %v1460 = vlaneseq
        %v1461 = vshrl.u32 %v1460, 7
        %v1462 = vsub.s32 0, %v1461
        %v1463 = vrot.slane %v1458, %v1462
        %v1465 = vadd.f32 %v1428, %v1463
        %v1466 = vadd.f32 %v1429, %v1463
        %v1467 = vadd.f32 %v1430, %v1463
        %v1468 = vadd.f32 %v1431, %v1463
        %v1469 = vadd.f32 %v1432, %v1463
        %v1470 = vadd.f32 %v1433, %v1463
        %v1471 = vadd.f32 %v1434, %v1463
        %v1472 = vadd.f32 %v1435, %v1463
        %v1473 = vadd.f32 %v1436, %v1463
        %v1474 = vadd.f32 %v1437, %v1463
        %v1475 = vadd.f32 %v1438, %v1463
        %v1476 = vadd.f32 %v1439, %v1463
        %v1477 = vadd.f32 %v1440, %v1463
        %v1478 = vadd.f32 %v1441, %v1463
        %v1479 = vadd.f32 %v1442, %v1463
        %v1480 = vadd.f32 %v1443, %v1463
        %v1481 = vadd.f32 %v1444, %v1463
        %v1482 = vadd.f32 %v1445, %v1463
        %v1483 = vadd.f32 %v1446, %v1463
        %v1484 = vadd.f32 %v1447, %v1463
        %v1485 = vadd.f32 %v1448, %v1463
        %v1486 = vadd.f32 %v1449, %v1463
        %v1487 = vadd.f32 %v1450, %v1463
        %v1488 = vadd.f32 %v1451, %v1463
        %v1489 = vadd.f32 %v1452, %v1463
        %v1490 = vadd.f32 %v1453, %v1463
        %v1491 = vadd.f32 %v1454, %v1463
        %v1492 = vadd.f32 %v1455, %v1463
        %v1493 = vadd.f32 %v1456, %v1463
        %v1494 = vadd.f32 %v1457, %v1463
        %v1495 = vmax.f32 %v1465, 0.0
        %v1496 = vmax.f32 %v1466, 0.0
        %v1497 = vmax.f32 %v1467, 0.0
        %v1498 = vmax.f32 %v1468, 0.0
        %v1499 = vmax.f32 %v1469, 0.0
        %v1500 = vmax.f32 %v1470, 0.0
        %v1501 = vmax.f32 %v1471, 0.0
        %v1502 = vmax.f32 %v1472, 0.0
        %v1503 = vmax.f32 %v1473, 0.0
        %v1504 = vmax.f32 %v1474, 0.0
        %v1505 = vmax.f32 %v1475, 0.0
        %v1506 = vmax.f32 %v1476, 0.0
        %v1507 = vmax.f32 %v1477, 0.0
        %v1508 = vmax.f32 %v1478, 0.0
        %v1509 = vmax.f32 %v1479, 0.0
        %v1510 = vmax.f32 %v1480, 0.0
        %v1511 = vmax.f32 %v1481, 0.0
        %v1512 = vmax.f32 %v1482, 0.0
        %v1513 = vmax.f32 %v1483, 0.0
        %v1514 = vmax.f32 %v1484, 0.0
        %v1515 = vmax.f32 %v1485, 0.0
        %v1516 = vmax.f32 %v1486, 0.0
        %v1517 = vmax.f32 %v1487, 0.0
        %v1518 = vmax.f32 %v1488, 0.0
        %v1519 = vmax.f32 %v1489, 0.0
        %v1520 = vmax.f32 %v1490, 0.0
        %v1521 = vmax.f32 %v1491, 0.0
        %v1522 = vmax.f32 %v1492, 0.0
        %v1523 = vmax.f32 %v1493, 0.0
        %v1524 = vmax.f32 %v1494, 0.0
        %vm1525 = vcmask 97280
        %1526 = vst.msk [vmem:[#allocation2 + $0xf0] sm:$0xff] %vm1525, 0.0
        %1527 = vst.msk [vmem:[#allocation2] sm:$0xff] %vm1525, %v1495
        %1528 = vst.msk [vmem:[#allocation2 + $0x8] sm:$0xff] %vm1525, %v1496
        %1529 = vst.msk [vmem:[#allocation2 + $0x10] sm:$0xff] %vm1525, %v1497
        %1530 = vst.msk [vmem:[#allocation2 + $0x18] sm:$0xff] %vm1525, %v1498
        %1531 = vst.msk [vmem:[#allocation2 + $0x20] sm:$0xff] %vm1525, %v1499
        %1532 = vst.msk [vmem:[#allocation2 + $0x28] sm:$0xff] %vm1525, %v1500
        %1533 = vst.msk [vmem:[#allocation2 + $0x30] sm:$0xff] %vm1525, %v1501
        %1534 = vst.msk [vmem:[#allocation2 + $0x38] sm:$0xff] %vm1525, %v1502
        %1535 = vst.msk [vmem:[#allocation2 + $0x40] sm:$0xff] %vm1525, %v1503
        %1536 = vst.msk [vmem:[#allocation2 + $0x48] sm:$0xff] %vm1525, %v1504
        %1537 = vst.msk [vmem:[#allocation2 + $0x50] sm:$0xff] %vm1525, %v1505
        %1538 = vst.msk [vmem:[#allocation2 + $0x58] sm:$0xff] %vm1525, %v1506
        %1539 = vst.msk [vmem:[#allocation2 + $0x60] sm:$0xff] %vm1525, %v1507
        %1540 = vst.msk [vmem:[#allocation2 + $0x68] sm:$0xff] %vm1525, %v1508
        %1541 = vst.msk [vmem:[#allocation2 + $0x70] sm:$0xff] %vm1525, %v1509
        %1542 = vst.msk [vmem:[#allocation2 + $0x78] sm:$0xff] %vm1525, %v1510
        %1543 = vst.msk [vmem:[#allocation2 + $0x80] sm:$0xff] %vm1525, %v1511
        %1544 = vst.msk [vmem:[#allocation2 + $0x88] sm:$0xff] %vm1525, %v1512
        %1545 = vst.msk [vmem:[#allocation2 + $0x90] sm:$0xff] %vm1525, %v1513
        %1546 = vst.msk [vmem:[#allocation2 + $0x98] sm:$0xff] %vm1525, %v1514
        %1547 = vst.msk [vmem:[#allocation2 + $0xa0] sm:$0xff] %vm1525, %v1515
        %1548 = vst.msk [vmem:[#allocation2 + $0xa8] sm:$0xff] %vm1525, %v1516
        %1549 = vst.msk [vmem:[#allocation2 + $0xb0] sm:$0xff] %vm1525, %v1517
        %1550 = vst.msk [vmem:[#allocation2 + $0xb8] sm:$0xff] %vm1525, %v1518
        %1551 = vst.msk [vmem:[#allocation2 + $0xc0] sm:$0xff] %vm1525, %v1519
        %1552 = vst.msk [vmem:[#allocation2 + $0xc8] sm:$0xff] %vm1525, %v1520
        %1553 = vst.msk [vmem:[#allocation2 + $0xd0] sm:$0xff] %vm1525, %v1521
        %1554 = vst.msk [vmem:[#allocation2 + $0xd8] sm:$0xff] %vm1525, %v1522
        %1555 = vst.msk [vmem:[#allocation2 + $0xe0] sm:$0xff] %vm1525, %v1523
        %1556 = vst.msk [vmem:[#allocation2 + $0xe8] sm:$0xff] %vm1525, %v1524
        %v1557 = vld [vmem:[#allocation2] sm:$0xff]
        %v1558 = vld [vmem:[#allocation2 + $0x8] sm:$0xff]
        %v1559 = vld [vmem:[#allocation2 + $0x10] sm:$0xff]
        %v1560 = vld [vmem:[#allocation2 + $0x18] sm:$0xff]
        %v1561 = vld [vmem:[#allocation2 + $0x20] sm:$0xff]
        %v1562 = vld [vmem:[#allocation2 + $0x28] sm:$0xff]
        %v1563 = vld [vmem:[#allocation2 + $0x30] sm:$0xff]
        %v1564 = vld [vmem:[#allocation2 + $0x38] sm:$0xff]
        %v1565 = vld [vmem:[#allocation2 + $0x40] sm:$0xff]
        %v1566 = vld [vmem:[#allocation2 + $0x48] sm:$0xff]
        %v1567 = vld [vmem:[#allocation2 + $0x50] sm:$0xff]
        %v1568 = vld [vmem:[#allocation2 + $0x58] sm:$0xff]
        %v1569 = vld [vmem:[#allocation2 + $0x60] sm:$0xff]
        %v1570 = vld [vmem:[#allocation2 + $0x68] sm:$0xff]
        %v1571 = vld [vmem:[#allocation2 + $0x70] sm:$0xff]
        %v1572 = vld [vmem:[#allocation2 + $0x78] sm:$0xff]
        %v1573 = vld [vmem:[#allocation2 + $0x80] sm:$0xff]
        %v1574 = vld [vmem:[#allocation2 + $0x88] sm:$0xff]
        %v1575 = vld [vmem:[#allocation2 + $0x90] sm:$0xff]
        %v1576 = vld [vmem:[#allocation2 + $0x98] sm:$0xff]
        %v1577 = vld [vmem:[#allocation2 + $0xa0] sm:$0xff]
        %v1578 = vld [vmem:[#allocation2 + $0xa8] sm:$0xff]
        %v1579 = vld [vmem:[#allocation2 + $0xb0] sm:$0xff]
        %v1580 = vld [vmem:[#allocation2 + $0xb8] sm:$0xff]
        %v1581 = vld [vmem:[#allocation2 + $0xc0] sm:$0xff]
        %v1582 = vld [vmem:[#allocation2 + $0xc8] sm:$0xff]
        %v1583 = vld [vmem:[#allocation8] sm:$0xff]
        %v1584 = vld [vmem:[#allocation8 + $0x8] sm:$0xf]
        %v1585 = vld [vmem:[#allocation2 + $0x1] sm:$0xff]
        %v1586 = vld [vmem:[#allocation2 + $0x9] sm:$0xff]
        %v1587 = vld [vmem:[#allocation2 + $0x11] sm:$0xff]
        %v1588 = vld [vmem:[#allocation2 + $0x19] sm:$0xff]
        %v1589 = vld [vmem:[#allocation2 + $0x21] sm:$0xff]
        %v1590 = vld [vmem:[#allocation2 + $0x29] sm:$0xff]
        %v1591 = vld [vmem:[#allocation2 + $0x31] sm:$0xff]
        %v1592 = vld [vmem:[#allocation2 + $0x39] sm:$0xff]
        %v1593 = vld [vmem:[#allocation2 + $0x41] sm:$0xff]
        %v1594 = vld [vmem:[#allocation2 + $0x49] sm:$0xff]
        %v1595 = vld [vmem:[#allocation2 + $0x51] sm:$0xff]
        %v1596 = vld [vmem:[#allocation2 + $0x59] sm:$0xff]
        %v1597 = vld [vmem:[#allocation2 + $0x61] sm:$0xff]
        %v1598 = vld [vmem:[#allocation2 + $0x69] sm:$0xff]
        %v1599 = vld [vmem:[#allocation2 + $0x71] sm:$0xff]
        %v1600 = vld [vmem:[#allocation2 + $0x79] sm:$0xff]
        %v1601 = vld [vmem:[#allocation2 + $0x81] sm:$0xff]
        %v1602 = vld [vmem:[#allocation2 + $0x89] sm:$0xff]
        %v1603 = vld [vmem:[#allocation2 + $0x91] sm:$0xff]
        %v1604 = vld [vmem:[#allocation2 + $0x99] sm:$0xff]
        %v1605 = vld [vmem:[#allocation2 + $0xa1] sm:$0xff]
        %v1606 = vld [vmem:[#allocation2 + $0xa9] sm:$0xff]
        %v1607 = vld [vmem:[#allocation2 + $0xb1] sm:$0xff]
        %v1608 = vld [vmem:[#allocation2 + $0xb9] sm:$0xff]
        %v1609 = vld [vmem:[#allocation2 + $0xc1] sm:$0xff]
        %v1610 = vld [vmem:[#allocation2 + $0xc9] sm:$0xff]
        %s1611 = scalar_lea.vmem [#allocation8], 16
        %v1612 = vld [vmem:[%s1611] sm:$0xff]
        %v1613 = vld [vmem:[%s1611 + $0x8] sm:$0xf]
        %v1615 = vsel %vm1525, %v1585, 0
        %v1618 = vsel %vm1525, %v1586, 0
        %v1621 = vsel %vm1525, %v1587, 0
        %v1624 = vsel %vm1525, %v1588, 0
        %v1627 = vsel %vm1525, %v1589, 0
        %v1630 = vsel %vm1525, %v1590, 0
        %v1633 = vsel %vm1525, %v1591, 0
        %v1636 = vsel %vm1525, %v1592, 0
        %v1639 = vsel %vm1525, %v1593, 0
        %v1642 = vsel %vm1525, %v1594, 0
        %v1645 = vsel %vm1525, %v1595, 0
        %v1648 = vsel %vm1525, %v1596, 0
        %v1651 = vsel %vm1525, %v1597, 0
        %v1654 = vsel %vm1525, %v1598, 0
        %v1657 = vsel %vm1525, %v1599, 0
        %v1660 = vsel %vm1525, %v1600, 0
        %v1663 = vsel %vm1525, %v1601, 0
        %v1666 = vsel %vm1525, %v1602, 0
        %v1669 = vsel %vm1525, %v1603, 0
        %v1672 = vsel %vm1525, %v1604, 0
        %v1675 = vsel %vm1525, %v1605, 0
        %v1678 = vsel %vm1525, %v1606, 0
        %v1681 = vsel %vm1525, %v1607, 0
        %v1684 = vsel %vm1525, %v1608, 0
        %v1687 = vsel %vm1525, %v1609, 0
        %v1690 = vsel %vm1525, %v1610, 0
        %vm1692 = vcmask 1043456
        %v1694 = vsel %vm1692, %v1613, 0
        %1696 = vmatprep.subr.mxu0 0.0
        %1697 = vmatpush1.msra.mxu0 0.0
        %1698 = vmatprep.subr.mxu0 0.0
        %1699 = vmatpush1.msra.mxu0 0.0
        %1700 = vmatprep.subr.mxu0 0.0
        %1701 = vmatpush1.msra.mxu0 0.0
        %1702 = vmatprep.subr.mxu0 0.0
        %1703 = vmatpush1.msra.mxu0 0.0
        %1704 = vmatprep.subr.mxu0 0.0
        %1705 = vmatpush1.msra.mxu0 0.0
        %1706 = vmatprep.subr.mxu0 0.0
        %1707 = vmatpush1.msra.mxu0 0.0
        %1708 = vmatprep.subr.mxu0 0.0
        %1709 = vmatpush1.msra.mxu0 0.0
        %1710 = vmatprep.subr.mxu0 0.0
        %1711 = vmatpush1.msra.mxu0 0.0
        %1712 = vmatprep.subr.mxu0 0.0
        %1713 = vmatpush1.msra.mxu0 0.0
        %1714 = vmatprep.subr.mxu0 0.0
        %1715 = vmatpush1.msra.mxu0 0.0
        %1716 = vmatprep.subr.mxu0 0.0
        %1717 = vmatpush1.msra.mxu0 0.0
        %1718 = vmatprep.subr.mxu0 0.0
        %1719 = vmatpush1.msra.mxu0 0.0
        %1720 = vmatprep.subr.mxu0 0.0
        %1721 = vmatpush1.msra.mxu0 0.0
        %1722 = vmatprep.subr.mxu0 0.0
        %1723 = vmatpush1.msra.mxu0 0.0
        %1724 = vmatprep.subr.mxu0 0.0
        %1725 = vmatpush1.msra.mxu0 %v1694
        %1726 = vmatprep.subr.mxu0 0.0
        %1727 = vmatpush1.msra.mxu0 %v1612
        %1728 = vmatprep.subr.mxu0 0.0
        %1729 = vmatpush2.msra.mxu0 0.0
        %1730 = vmatprep.subr.mxu0 0.0
        %1731 = vmatpush2.msra.mxu0 0.0
        %1732 = vmatprep.subr.mxu0 0.0
        %1733 = vmatpush2.msra.mxu0 0.0
        %1734 = vmatprep.subr.mxu0 0.0
        %1735 = vmatpush2.msra.mxu0 0.0
        %1736 = vmatprep.subr.mxu0 0.0
        %1737 = vmatpush2.msra.mxu0 0.0
        %1738 = vmatprep.subr.mxu0 0.0
        %1739 = vmatpush2.msra.mxu0 0.0
        %1740 = vmatprep.subr.mxu0 0.0
        %1741 = vmatpush2.msra.mxu0 0.0
        %1742 = vmatprep.subr.mxu0 0.0
        %1743 = vmatpush2.msra.mxu0 0.0
        %1744 = vmatprep.subr.mxu0 0.0
        %1745 = vmatpush2.msra.mxu0 0.0
        %1746 = vmatprep.subr.mxu0 0.0
        %1747 = vmatpush2.msra.mxu0 0.0
        %1748 = vmatprep.subr.mxu0 0.0
        %1749 = vmatpush2.msra.mxu0 0.0
        %1750 = vmatprep.subr.mxu0 0.0
        %1751 = vmatpush2.msra.mxu0 0.0
        %1752 = vmatprep.subr.mxu0 0.0
        %1753 = vmatpush2.msra.mxu0 0.0
        %1754 = vmatprep.subr.mxu0 0.0
        %1755 = vmatpush2.msra.mxu0 0.0
        %1756 = vmatprep.subr.mxu0 0.0
        %1757 = vmatpush2.msra.mxu0 0.0
        %1758 = vmatprep.subr.mxu0 0.0
        %1759 = vmatpush2.msra.mxu0 0.0
        %1760 = vmatprep.mubr.f32.mxu0 0.0
        %1761 = vmatmul.mubr.f32.gmra.mxu0 %v1615
        %v1762 = vpop.f32.mrf.mxu0
        %v1763 = vadd.f32 0.0, %v1762
        %v1764 = vpop.f32.mrf.mxu0
        %1765 = vmatprep.mubr.f32.mxu0 0.0
        %1766 = vmatmul.mubr.f32.gmra.mxu0 %v1618
        %v1767 = vpop.f32.mrf.mxu0
        %v1768 = vadd.f32 0.0, %v1767
        %v1769 = vpop.f32.mrf.mxu0
        %1770 = vmatprep.mubr.f32.mxu0 0.0
        %1771 = vmatmul.mubr.f32.gmra.mxu0 %v1621
        %v1772 = vpop.f32.mrf.mxu0
        %v1773 = vadd.f32 0.0, %v1772
        %v1774 = vpop.f32.mrf.mxu0
        %1775 = vmatprep.mubr.f32.mxu0 0.0
        %1776 = vmatmul.mubr.f32.gmra.mxu0 %v1624
        %v1777 = vpop.f32.mrf.mxu0
        %v1778 = vadd.f32 0.0, %v1777
        %v1779 = vpop.f32.mrf.mxu0
        %1780 = vmatprep.mubr.f32.mxu0 0.0
        %1781 = vmatmul.mubr.f32.gmra.mxu0 %v1627
        %v1782 = vpop.f32.mrf.mxu0
        %v1783 = vadd.f32 0.0, %v1782
        %v1784 = vpop.f32.mrf.mxu0
        %1785 = vmatprep.mubr.f32.mxu0 0.0
        %1786 = vmatmul.mubr.f32.gmra.mxu0 %v1630
        %v1787 = vpop.f32.mrf.mxu0
        %v1788 = vadd.f32 0.0, %v1787
        %v1789 = vpop.f32.mrf.mxu0
        %1790 = vmatprep.mubr.f32.mxu0 0.0
        %1791 = vmatmul.mubr.f32.gmra.mxu0 %v1633
        %v1792 = vpop.f32.mrf.mxu0
        %v1793 = vadd.f32 0.0, %v1792
        %v1794 = vpop.f32.mrf.mxu0
        %1795 = vmatprep.mubr.f32.mxu0 0.0
        %1796 = vmatmul.mubr.f32.gmra.mxu0 %v1636
        %v1797 = vpop.f32.mrf.mxu0
        %v1798 = vadd.f32 0.0, %v1797
        %v1799 = vpop.f32.mrf.mxu0
        %1800 = vmatprep.mubr.f32.mxu0 0.0
        %1801 = vmatmul.mubr.f32.gmra.mxu0 %v1639
        %v1802 = vpop.f32.mrf.mxu0
        %v1803 = vadd.f32 0.0, %v1802
        %v1804 = vpop.f32.mrf.mxu0
        %1805 = vmatprep.mubr.f32.mxu0 0.0
        %1806 = vmatmul.mubr.f32.gmra.mxu0 %v1642
        %v1807 = vpop.f32.mrf.mxu0
        %v1808 = vadd.f32 0.0, %v1807
        %v1809 = vpop.f32.mrf.mxu0
        %1810 = vmatprep.mubr.f32.mxu0 0.0
        %1811 = vmatmul.mubr.f32.gmra.mxu0 %v1645
        %v1812 = vpop.f32.mrf.mxu0
        %v1813 = vadd.f32 0.0, %v1812
        %v1814 = vpop.f32.mrf.mxu0
        %1815 = vmatprep.mubr.f32.mxu0 0.0
        %1816 = vmatmul.mubr.f32.gmra.mxu0 %v1648
        %v1817 = vpop.f32.mrf.mxu0
        %v1818 = vadd.f32 0.0, %v1817
        %v1819 = vpop.f32.mrf.mxu0
        %1820 = vmatprep.mubr.f32.mxu0 0.0
        %1821 = vmatmul.mubr.f32.gmra.mxu0 %v1651
        %v1822 = vpop.f32.mrf.mxu0
        %v1823 = vadd.f32 0.0, %v1822
        %v1824 = vpop.f32.mrf.mxu0
        %1825 = vmatprep.mubr.f32.mxu0 0.0
        %1826 = vmatmul.mubr.f32.gmra.mxu0 %v1654
        %v1827 = vpop.f32.mrf.mxu0
        %v1828 = vadd.f32 0.0, %v1827
        %v1829 = vpop.f32.mrf.mxu0
        %1830 = vmatprep.mubr.f32.mxu0 0.0
        %1831 = vmatmul.mubr.f32.gmra.mxu0 %v1657
        %v1832 = vpop.f32.mrf.mxu0
        %v1833 = vadd.f32 0.0, %v1832
        %v1834 = vpop.f32.mrf.mxu0
        %1835 = vmatprep.mubr.f32.mxu0 0.0
        %1836 = vmatmul.mubr.f32.gmra.mxu0 %v1660
        %v1837 = vpop.f32.mrf.mxu0
        %v1838 = vadd.f32 0.0, %v1837
        %v1839 = vpop.f32.mrf.mxu0
        %1840 = vmatprep.mubr.f32.mxu0 0.0
        %1841 = vmatmul.mubr.f32.gmra.mxu0 %v1663
        %v1842 = vpop.f32.mrf.mxu0
        %v1843 = vadd.f32 0.0, %v1842
        %v1844 = vpop.f32.mrf.mxu0
        %1845 = vmatprep.mubr.f32.mxu0 0.0
        %1846 = vmatmul.mubr.f32.gmra.mxu0 %v1666
        %v1847 = vpop.f32.mrf.mxu0
        %v1848 = vadd.f32 0.0, %v1847
        %v1849 = vpop.f32.mrf.mxu0
        %1850 = vmatprep.mubr.f32.mxu0 0.0
        %1851 = vmatmul.mubr.f32.gmra.mxu0 %v1669
        %v1852 = vpop.f32.mrf.mxu0
        %v1853 = vadd.f32 0.0, %v1852
        %v1854 = vpop.f32.mrf.mxu0
        %1855 = vmatprep.mubr.f32.mxu0 0.0
        %1856 = vmatmul.mubr.f32.gmra.mxu0 %v1672
        %v1857 = vpop.f32.mrf.mxu0
        %v1858 = vadd.f32 0.0, %v1857
        %v1859 = vpop.f32.mrf.mxu0
        %1860 = vmatprep.mubr.f32.mxu0 0.0
        %1861 = vmatmul.mubr.f32.gmra.mxu0 %v1675
        %v1862 = vpop.f32.mrf.mxu0
        %v1863 = vadd.f32 0.0, %v1862
        %v1864 = vpop.f32.mrf.mxu0
        %1865 = vmatprep.mubr.f32.mxu0 0.0
        %1866 = vmatmul.mubr.f32.gmra.mxu0 %v1678
        %v1867 = vpop.f32.mrf.mxu0
        %v1868 = vadd.f32 0.0, %v1867
        %v1869 = vpop.f32.mrf.mxu0
        %1870 = vmatprep.mubr.f32.mxu0 0.0
        %1871 = vmatmul.mubr.f32.gmra.mxu0 %v1681
        %v1872 = vpop.f32.mrf.mxu0
        %v1873 = vadd.f32 0.0, %v1872
        %v1874 = vpop.f32.mrf.mxu0
        %1875 = vmatprep.mubr.f32.mxu0 0.0
        %1876 = vmatmul.mubr.f32.gmra.mxu0 %v1684
        %v1877 = vpop.f32.mrf.mxu0
        %v1878 = vadd.f32 0.0, %v1877
        %v1879 = vpop.f32.mrf.mxu0
        %1880 = vmatprep.mubr.f32.mxu0 0.0
        %1881 = vmatmul.mubr.f32.gmra.mxu0 %v1687
        %v1882 = vpop.f32.mrf.mxu0
        %v1883 = vadd.f32 0.0, %v1882
        %v1884 = vpop.f32.mrf.mxu0
        %1885 = vmatprep.mubr.f32.mxu0 0.0
        %1886 = vmatmul.mubr.f32.gmra.mxu0 %v1690
        %v1887 = vpop.f32.mrf.mxu0
        %v1888 = vadd.f32 0.0, %v1887
        %v1889 = vpop.f32.mrf.mxu0
        %1890 = vdwg.mxu0
        %v1892 = vsel %vm1525, %v1557, 0
        %v1895 = vsel %vm1525, %v1558, 0
        %v1898 = vsel %vm1525, %v1559, 0
        %v1901 = vsel %vm1525, %v1560, 0
        %v1904 = vsel %vm1525, %v1561, 0
        %v1907 = vsel %vm1525, %v1562, 0
        %v1910 = vsel %vm1525, %v1563, 0
        %v1913 = vsel %vm1525, %v1564, 0
        %v1916 = vsel %vm1525, %v1565, 0
        %v1919 = vsel %vm1525, %v1566, 0
        %v1922 = vsel %vm1525, %v1567, 0
        %v1925 = vsel %vm1525, %v1568, 0
        %v1928 = vsel %vm1525, %v1569, 0
        %v1931 = vsel %vm1525, %v1570, 0
        %v1934 = vsel %vm1525, %v1571, 0
        %v1937 = vsel %vm1525, %v1572, 0
        %v1940 = vsel %vm1525, %v1573, 0
        %v1943 = vsel %vm1525, %v1574, 0
        %v1946 = vsel %vm1525, %v1575, 0
        %v1949 = vsel %vm1525, %v1576, 0
        %v1952 = vsel %vm1525, %v1577, 0
        %v1955 = vsel %vm1525, %v1578, 0
        %v1958 = vsel %vm1525, %v1579, 0
        %v1961 = vsel %vm1525, %v1580, 0
        %v1964 = vsel %vm1525, %v1581, 0
        %v1967 = vsel %vm1525, %v1582, 0
        %v1970 = vsel %vm1692, %v1584, 0
        %1972 = vmatprep.subr.mxu0 0.0
        %1973 = vmatpush1.msra.mxu0 0.0
        %1974 = vmatprep.subr.mxu0 0.0
        %1975 = vmatpush1.msra.mxu0 0.0
        %1976 = vmatprep.subr.mxu0 0.0
        %1977 = vmatpush1.msra.mxu0 0.0
        %1978 = vmatprep.subr.mxu0 0.0
        %1979 = vmatpush1.msra.mxu0 0.0
        %1980 = vmatprep.subr.mxu0 0.0
        %1981 = vmatpush1.msra.mxu0 0.0
        %1982 = vmatprep.subr.mxu0 0.0
        %1983 = vmatpush1.msra.mxu0 0.0
        %1984 = vmatprep.subr.mxu0 0.0
        %1985 = vmatpush1.msra.mxu0 0.0
        %1986 = vmatprep.subr.mxu0 0.0
        %1987 = vmatpush1.msra.mxu0 0.0
        %1988 = vmatprep.subr.mxu0 0.0
        %1989 = vmatpush1.msra.mxu0 0.0
        %1990 = vmatprep.subr.mxu0 0.0
        %1991 = vmatpush1.msra.mxu0 0.0
        %1992 = vmatprep.subr.mxu0 0.0
        %1993 = vmatpush1.msra.mxu0 0.0
        %1994 = vmatprep.subr.mxu0 0.0
        %1995 = vmatpush1.msra.mxu0 0.0
        %1996 = vmatprep.subr.mxu0 0.0
        %1997 = vmatpush1.msra.mxu0 0.0
        %1998 = vmatprep.subr.mxu0 0.0
        %1999 = vmatpush1.msra.mxu0 0.0
        %2000 = vmatprep.subr.mxu0 0.0
        %2001 = vmatpush1.msra.mxu0 %v1970
        %2002 = vmatprep.subr.mxu0 0.0
        %2003 = vmatpush1.msra.mxu0 %v1583
        %2004 = vmatprep.subr.mxu0 0.0
        %2005 = vmatpush2.msra.mxu0 0.0
        %2006 = vmatprep.subr.mxu0 0.0
        %2007 = vmatpush2.msra.mxu0 0.0
        %2008 = vmatprep.subr.mxu0 0.0
        %2009 = vmatpush2.msra.mxu0 0.0
        %2010 = vmatprep.subr.mxu0 0.0
        %2011 = vmatpush2.msra.mxu0 0.0
        %2012 = vmatprep.subr.mxu0 0.0
        %2013 = vmatpush2.msra.mxu0 0.0
        %2014 = vmatprep.subr.mxu0 0.0
        %2015 = vmatpush2.msra.mxu0 0.0
        %2016 = vmatprep.subr.mxu0 0.0
        %2017 = vmatpush2.msra.mxu0 0.0
        %2018 = vmatprep.subr.mxu0 0.0
        %2019 = vmatpush2.msra.mxu0 0.0
        %2020 = vmatprep.subr.mxu0 0.0
        %2021 = vmatpush2.msra.mxu0 0.0
        %2022 = vmatprep.subr.mxu0 0.0
        %2023 = vmatpush2.msra.mxu0 0.0
        %2024 = vmatprep.subr.mxu0 0.0
        %2025 = vmatpush2.msra.mxu0 0.0
        %2026 = vmatprep.subr.mxu0 0.0
        %2027 = vmatpush2.msra.mxu0 0.0
        %2028 = vmatprep.subr.mxu0 0.0
        %2029 = vmatpush2.msra.mxu0 0.0
        %2030 = vmatprep.subr.mxu0 0.0
        %2031 = vmatpush2.msra.mxu0 0.0
        %2032 = vmatprep.subr.mxu0 0.0
        %2033 = vmatpush2.msra.mxu0 0.0
        %2034 = vmatprep.subr.mxu0 0.0
        %2035 = vmatpush2.msra.mxu0 0.0
        %2036 = vmatprep.mubr.f32.mxu0 0.0
        %2037 = vmatmul.mubr.f32.gmra.mxu0 %v1892
        %v2038 = vpop.f32.mrf.mxu0
        %v2039 = vadd.f32 %v1763, %v2038
        %v2040 = vpop.f32.mrf.mxu0
        %2041 = vmatprep.mubr.f32.mxu0 0.0
        %2042 = vmatmul.mubr.f32.gmra.mxu0 %v1895
        %v2043 = vpop.f32.mrf.mxu0
        %v2044 = vadd.f32 %v1768, %v2043
        %v2045 = vpop.f32.mrf.mxu0
        %2046 = vmatprep.mubr.f32.mxu0 0.0
        %2047 = vmatmul.mubr.f32.gmra.mxu0 %v1898
        %v2048 = vpop.f32.mrf.mxu0
        %v2049 = vadd.f32 %v1773, %v2048
        %v2050 = vpop.f32.mrf.mxu0
        %2051 = vmatprep.mubr.f32.mxu0 0.0
        %2052 = vmatmul.mubr.f32.gmra.mxu0 %v1901
        %v2053 = vpop.f32.mrf.mxu0
        %v2054 = vadd.f32 %v1778, %v2053
        %v2055 = vpop.f32.mrf.mxu0
        %2056 = vmatprep.mubr.f32.mxu0 0.0
        %2057 = vmatmul.mubr.f32.gmra.mxu0 %v1904
        %v2058 = vpop.f32.mrf.mxu0
        %v2059 = vadd.f32 %v1783, %v2058
        %v2060 = vpop.f32.mrf.mxu0
        %2061 = vmatprep.mubr.f32.mxu0 0.0
        %2062 = vmatmul.mubr.f32.gmra.mxu0 %v1907
        %v2063 = vpop.f32.mrf.mxu0
        %v2064 = vadd.f32 %v1788, %v2063
        %v2065 = vpop.f32.mrf.mxu0
        %2066 = vmatprep.mubr.f32.mxu0 0.0
        %2067 = vmatmul.mubr.f32.gmra.mxu0 %v1910
        %v2068 = vpop.f32.mrf.mxu0
        %v2069 = vadd.f32 %v1793, %v2068
        %v2070 = vpop.f32.mrf.mxu0
        %2071 = vmatprep.mubr.f32.mxu0 0.0
        %2072 = vmatmul.mubr.f32.gmra.mxu0 %v1913
        %v2073 = vpop.f32.mrf.mxu0
        %v2074 = vadd.f32 %v1798, %v2073
        %v2075 = vpop.f32.mrf.mxu0
        %2076 = vmatprep.mubr.f32.mxu0 0.0
        %2077 = vmatmul.mubr.f32.gmra.mxu0 %v1916
        %v2078 = vpop.f32.mrf.mxu0
        %v2079 = vadd.f32 %v1803, %v2078
        %v2080 = vpop.f32.mrf.mxu0
        %2081 = vmatprep.mubr.f32.mxu0 0.0
        %2082 = vmatmul.mubr.f32.gmra.mxu0 %v1919
        %v2083 = vpop.f32.mrf.mxu0
        %v2084 = vadd.f32 %v1808, %v2083
        %v2085 = vpop.f32.mrf.mxu0
        %2086 = vmatprep.mubr.f32.mxu0 0.0
        %2087 = vmatmul.mubr.f32.gmra.mxu0 %v1922
        %v2088 = vpop.f32.mrf.mxu0
        %v2089 = vadd.f32 %v1813, %v2088
        %v2090 = vpop.f32.mrf.mxu0
        %2091 = vmatprep.mubr.f32.mxu0 0.0
        %2092 = vmatmul.mubr.f32.gmra.mxu0 %v1925
        %v2093 = vpop.f32.mrf.mxu0
        %v2094 = vadd.f32 %v1818, %v2093
        %v2095 = vpop.f32.mrf.mxu0
        %2096 = vmatprep.mubr.f32.mxu0 0.0
        %2097 = vmatmul.mubr.f32.gmra.mxu0 %v1928
        %v2098 = vpop.f32.mrf.mxu0
        %v2099 = vadd.f32 %v1823, %v2098
        %v2100 = vpop.f32.mrf.mxu0
        %2101 = vmatprep.mubr.f32.mxu0 0.0
        %2102 = vmatmul.mubr.f32.gmra.mxu0 %v1931
        %v2103 = vpop.f32.mrf.mxu0
        %v2104 = vadd.f32 %v1828, %v2103
        %v2105 = vpop.f32.mrf.mxu0
        %2106 = vmatprep.mubr.f32.mxu0 0.0
        %2107 = vmatmul.mubr.f32.gmra.mxu0 %v1934
        %v2108 = vpop.f32.mrf.mxu0
        %v2109 = vadd.f32 %v1833, %v2108
        %v2110 = vpop.f32.mrf.mxu0
        %2111 = vmatprep.mubr.f32.mxu0 0.0
        %2112 = vmatmul.mubr.f32.gmra.mxu0 %v1937
        %v2113 = vpop.f32.mrf.mxu0
        %v2114 = vadd.f32 %v1838, %v2113
        %v2115 = vpop.f32.mrf.mxu0
        %2116 = vmatprep.mubr.f32.mxu0 0.0
        %2117 = vmatmul.mubr.f32.gmra.mxu0 %v1940
        %v2118 = vpop.f32.mrf.mxu0
        %v2119 = vadd.f32 %v1843, %v2118
        %v2120 = vpop.f32.mrf.mxu0
        %2121 = vmatprep.mubr.f32.mxu0 0.0
        %2122 = vmatmul.mubr.f32.gmra.mxu0 %v1943
        %v2123 = vpop.f32.mrf.mxu0
        %v2124 = vadd.f32 %v1848, %v2123
        %v2125 = vpop.f32.mrf.mxu0
        %2126 = vmatprep.mubr.f32.mxu0 0.0
        %2127 = vmatmul.mubr.f32.gmra.mxu0 %v1946
        %v2128 = vpop.f32.mrf.mxu0
        %v2129 = vadd.f32 %v1853, %v2128
        %v2130 = vpop.f32.mrf.mxu0
        %2131 = vmatprep.mubr.f32.mxu0 0.0
        %2132 = vmatmul.mubr.f32.gmra.mxu0 %v1949
        %v2133 = vpop.f32.mrf.mxu0
        %v2134 = vadd.f32 %v1858, %v2133
        %v2135 = vpop.f32.mrf.mxu0
        %2136 = vmatprep.mubr.f32.mxu0 0.0
        %2137 = vmatmul.mubr.f32.gmra.mxu0 %v1952
        %v2138 = vpop.f32.mrf.mxu0
        %v2139 = vadd.f32 %v1863, %v2138
        %v2140 = vpop.f32.mrf.mxu0
        %2141 = vmatprep.mubr.f32.mxu0 0.0
        %2142 = vmatmul.mubr.f32.gmra.mxu0 %v1955
        %v2143 = vpop.f32.mrf.mxu0
        %v2144 = vadd.f32 %v1868, %v2143
        %v2145 = vpop.f32.mrf.mxu0
        %2146 = vmatprep.mubr.f32.mxu0 0.0
        %2147 = vmatmul.mubr.f32.gmra.mxu0 %v1958
        %v2148 = vpop.f32.mrf.mxu0
        %v2149 = vadd.f32 %v1873, %v2148
        %v2150 = vpop.f32.mrf.mxu0
        %2151 = vmatprep.mubr.f32.mxu0 0.0
        %2152 = vmatmul.mubr.f32.gmra.mxu0 %v1961
        %v2153 = vpop.f32.mrf.mxu0
        %v2154 = vadd.f32 %v1878, %v2153
        %v2155 = vpop.f32.mrf.mxu0
        %2156 = vmatprep.mubr.f32.mxu0 0.0
        %2157 = vmatmul.mubr.f32.gmra.mxu0 %v1964
        %v2158 = vpop.f32.mrf.mxu0
        %v2159 = vadd.f32 %v1883, %v2158
        %v2160 = vpop.f32.mrf.mxu0
        %2161 = vmatprep.mubr.f32.mxu0 0.0
        %2162 = vmatmul.mubr.f32.gmra.mxu0 %v1967
        %v2163 = vpop.f32.mrf.mxu0
        %v2164 = vadd.f32 %v1888, %v2163
        %v2165 = vpop.f32.mrf.mxu0
        %2166 = vdwg.mxu0
        %v2167 = vld [vmem:[#allocation2 + $0x2] sm:$0xff]
        %v2168 = vld [vmem:[#allocation2 + $0xa] sm:$0xff]
        %v2169 = vld [vmem:[#allocation2 + $0x12] sm:$0xff]
        %v2170 = vld [vmem:[#allocation2 + $0x1a] sm:$0xff]
        %v2171 = vld [vmem:[#allocation2 + $0x22] sm:$0xff]
        %v2172 = vld [vmem:[#allocation2 + $0x2a] sm:$0xff]
        %v2173 = vld [vmem:[#allocation2 + $0x32] sm:$0xff]
        %v2174 = vld [vmem:[#allocation2 + $0x3a] sm:$0xff]
        %v2175 = vld [vmem:[#allocation2 + $0x42] sm:$0xff]
        %v2176 = vld [vmem:[#allocation2 + $0x4a] sm:$0xff]
        %v2177 = vld [vmem:[#allocation2 + $0x52] sm:$0xff]
        %v2178 = vld [vmem:[#allocation2 + $0x5a] sm:$0xff]
        %v2179 = vld [vmem:[#allocation2 + $0x62] sm:$0xff]
        %v2180 = vld [vmem:[#allocation2 + $0x6a] sm:$0xff]
        %v2181 = vld [vmem:[#allocation2 + $0x72] sm:$0xff]
        %v2182 = vld [vmem:[#allocation2 + $0x7a] sm:$0xff]
        %v2183 = vld [vmem:[#allocation2 + $0x82] sm:$0xff]
        %v2184 = vld [vmem:[#allocation2 + $0x8a] sm:$0xff]
        %v2185 = vld [vmem:[#allocation2 + $0x92] sm:$0xff]
        %v2186 = vld [vmem:[#allocation2 + $0x9a] sm:$0xff]
        %v2187 = vld [vmem:[#allocation2 + $0xa2] sm:$0xff]
        %v2188 = vld [vmem:[#allocation2 + $0xaa] sm:$0xff]
        %v2189 = vld [vmem:[#allocation2 + $0xb2] sm:$0xff]
        %v2190 = vld [vmem:[#allocation2 + $0xba] sm:$0xff]
        %v2191 = vld [vmem:[#allocation2 + $0xc2] sm:$0xff]
        %v2192 = vld [vmem:[#allocation2 + $0xca] sm:$0xff]
        %s2193 = scalar_lea.vmem [#allocation8], 32
        %v2194 = vld [vmem:[%s2193] sm:$0xff]
        %v2195 = vld [vmem:[%s2193 + $0x8] sm:$0xf]
        %v2197 = vsel %vm1525, %v2167, 0
        %v2200 = vsel %vm1525, %v2168, 0
        %v2203 = vsel %vm1525, %v2169, 0
        %v2206 = vsel %vm1525, %v2170, 0
        %v2209 = vsel %vm1525, %v2171, 0
        %v2212 = vsel %vm1525, %v2172, 0
        %v2215 = vsel %vm1525, %v2173, 0
        %v2218 = vsel %vm1525, %v2174, 0
        %v2221 = vsel %vm1525, %v2175, 0
        %v2224 = vsel %vm1525, %v2176, 0
        %v2227 = vsel %vm1525, %v2177, 0
        %v2230 = vsel %vm1525, %v2178, 0
        %v2233 = vsel %vm1525, %v2179, 0
        %v2236 = vsel %vm1525, %v2180, 0
        %v2239 = vsel %vm1525, %v2181, 0
        %v2242 = vsel %vm1525, %v2182, 0
        %v2245 = vsel %vm1525, %v2183, 0
        %v2248 = vsel %vm1525, %v2184, 0
        %v2251 = vsel %vm1525, %v2185, 0
        %v2254 = vsel %vm1525, %v2186, 0
        %v2257 = vsel %vm1525, %v2187, 0
        %v2260 = vsel %vm1525, %v2188, 0
        %v2263 = vsel %vm1525, %v2189, 0
        %v2266 = vsel %vm1525, %v2190, 0
        %v2269 = vsel %vm1525, %v2191, 0
        %v2272 = vsel %vm1525, %v2192, 0
        %v2275 = vsel %vm1692, %v2195, 0
        %2277 = vmatprep.subr.mxu0 0.0
        %2278 = vmatpush1.msra.mxu0 0.0
        %2279 = vmatprep.subr.mxu0 0.0
        %2280 = vmatpush1.msra.mxu0 0.0
        %2281 = vmatprep.subr.mxu0 0.0
        %2282 = vmatpush1.msra.mxu0 0.0
        %2283 = vmatprep.subr.mxu0 0.0
        %2284 = vmatpush1.msra.mxu0 0.0
        %2285 = vmatprep.subr.mxu0 0.0
        %2286 = vmatpush1.msra.mxu0 0.0
        %2287 = vmatprep.subr.mxu0 0.0
        %2288 = vmatpush1.msra.mxu0 0.0
        %2289 = vmatprep.subr.mxu0 0.0
        %2290 = vmatpush1.msra.mxu0 0.0
        %2291 = vmatprep.subr.mxu0 0.0
        %2292 = vmatpush1.msra.mxu0 0.0
        %2293 = vmatprep.subr.mxu0 0.0
        %2294 = vmatpush1.msra.mxu0 0.0
        %2295 = vmatprep.subr.mxu0 0.0
        %2296 = vmatpush1.msra.mxu0 0.0
        %2297 = vmatprep.subr.mxu0 0.0
        %2298 = vmatpush1.msra.mxu0 0.0
        %2299 = vmatprep.subr.mxu0 0.0
        %2300 = vmatpush1.msra.mxu0 0.0
        %2301 = vmatprep.subr.mxu0 0.0
        %2302 = vmatpush1.msra.mxu0 0.0
        %2303 = vmatprep.subr.mxu0 0.0
        %2304 = vmatpush1.msra.mxu0 0.0
        %2305 = vmatprep.subr.mxu0 0.0
        %2306 = vmatpush1.msra.mxu0 %v2275
        %2307 = vmatprep.subr.mxu0 0.0
        %2308 = vmatpush1.msra.mxu0 %v2194
        %2309 = vmatprep.subr.mxu0 0.0
        %2310 = vmatpush2.msra.mxu0 0.0
        %2311 = vmatprep.subr.mxu0 0.0
        %2312 = vmatpush2.msra.mxu0 0.0
        %2313 = vmatprep.subr.mxu0 0.0
        %2314 = vmatpush2.msra.mxu0 0.0
        %2315 = vmatprep.subr.mxu0 0.0
        %2316 = vmatpush2.msra.mxu0 0.0
        %2317 = vmatprep.subr.mxu0 0.0
        %2318 = vmatpush2.msra.mxu0 0.0
        %2319 = vmatprep.subr.mxu0 0.0
        %2320 = vmatpush2.msra.mxu0 0.0
        %2321 = vmatprep.subr.mxu0 0.0
        %2322 = vmatpush2.msra.mxu0 0.0
        %2323 = vmatprep.subr.mxu0 0.0
        %2324 = vmatpush2.msra.mxu0 0.0
        %2325 = vmatprep.subr.mxu0 0.0
        %2326 = vmatpush2.msra.mxu0 0.0
        %2327 = vmatprep.subr.mxu0 0.0
        %2328 = vmatpush2.msra.mxu0 0.0
        %2329 = vmatprep.subr.mxu0 0.0
        %2330 = vmatpush2.msra.mxu0 0.0
        %2331 = vmatprep.subr.mxu0 0.0
        %2332 = vmatpush2.msra.mxu0 0.0
        %2333 = vmatprep.subr.mxu0 0.0
        %2334 = vmatpush2.msra.mxu0 0.0
        %2335 = vmatprep.subr.mxu0 0.0
        %2336 = vmatpush2.msra.mxu0 0.0
        %2337 = vmatprep.subr.mxu0 0.0
        %2338 = vmatpush2.msra.mxu0 0.0
        %2339 = vmatprep.subr.mxu0 0.0
        %2340 = vmatpush2.msra.mxu0 0.0
        %2341 = vmatprep.mubr.f32.mxu0 0.0
        %2342 = vmatmul.mubr.f32.gmra.mxu0 %v2197
        %v2343 = vpop.f32.mrf.mxu0
        %v2344 = vadd.f32 0.0, %v2343
        %v2345 = vpop.f32.mrf.mxu0
        %2346 = vmatprep.mubr.f32.mxu0 0.0
        %2347 = vmatmul.mubr.f32.gmra.mxu0 %v2200
        %v2348 = vpop.f32.mrf.mxu0
        %v2349 = vadd.f32 0.0, %v2348
        %v2350 = vpop.f32.mrf.mxu0
        %2351 = vmatprep.mubr.f32.mxu0 0.0
        %2352 = vmatmul.mubr.f32.gmra.mxu0 %v2203
        %v2353 = vpop.f32.mrf.mxu0
        %v2354 = vadd.f32 0.0, %v2353
        %v2355 = vpop.f32.mrf.mxu0
        %2356 = vmatprep.mubr.f32.mxu0 0.0
        %2357 = vmatmul.mubr.f32.gmra.mxu0 %v2206
        %v2358 = vpop.f32.mrf.mxu0
        %v2359 = vadd.f32 0.0, %v2358
        %v2360 = vpop.f32.mrf.mxu0
        %2361 = vmatprep.mubr.f32.mxu0 0.0
        %2362 = vmatmul.mubr.f32.gmra.mxu0 %v2209
        %v2363 = vpop.f32.mrf.mxu0
        %v2364 = vadd.f32 0.0, %v2363
        %v2365 = vpop.f32.mrf.mxu0
        %2366 = vmatprep.mubr.f32.mxu0 0.0
        %2367 = vmatmul.mubr.f32.gmra.mxu0 %v2212
        %v2368 = vpop.f32.mrf.mxu0
        %v2369 = vadd.f32 0.0, %v2368
        %v2370 = vpop.f32.mrf.mxu0
        %2371 = vmatprep.mubr.f32.mxu0 0.0
        %2372 = vmatmul.mubr.f32.gmra.mxu0 %v2215
        %v2373 = vpop.f32.mrf.mxu0
        %v2374 = vadd.f32 0.0, %v2373
        %v2375 = vpop.f32.mrf.mxu0
        %2376 = vmatprep.mubr.f32.mxu0 0.0
        %2377 = vmatmul.mubr.f32.gmra.mxu0 %v2218
        %v2378 = vpop.f32.mrf.mxu0
        %v2379 = vadd.f32 0.0, %v2378
        %v2380 = vpop.f32.mrf.mxu0
        %2381 = vmatprep.mubr.f32.mxu0 0.0
        %2382 = vmatmul.mubr.f32.gmra.mxu0 %v2221
        %v2383 = vpop.f32.mrf.mxu0
        %v2384 = vadd.f32 0.0, %v2383
        %v2385 = vpop.f32.mrf.mxu0
        %2386 = vmatprep.mubr.f32.mxu0 0.0
        %2387 = vmatmul.mubr.f32.gmra.mxu0 %v2224
        %v2388 = vpop.f32.mrf.mxu0
        %v2389 = vadd.f32 0.0, %v2388
        %v2390 = vpop.f32.mrf.mxu0
        %2391 = vmatprep.mubr.f32.mxu0 0.0
        %2392 = vmatmul.mubr.f32.gmra.mxu0 %v2227
        %v2393 = vpop.f32.mrf.mxu0
        %v2394 = vadd.f32 0.0, %v2393
        %v2395 = vpop.f32.mrf.mxu0
        %2396 = vmatprep.mubr.f32.mxu0 0.0
        %2397 = vmatmul.mubr.f32.gmra.mxu0 %v2230
        %v2398 = vpop.f32.mrf.mxu0
        %v2399 = vadd.f32 0.0, %v2398
        %v2400 = vpop.f32.mrf.mxu0
        %2401 = vmatprep.mubr.f32.mxu0 0.0
        %2402 = vmatmul.mubr.f32.gmra.mxu0 %v2233
        %v2403 = vpop.f32.mrf.mxu0
        %v2404 = vadd.f32 0.0, %v2403
        %v2405 = vpop.f32.mrf.mxu0
        %2406 = vmatprep.mubr.f32.mxu0 0.0
        %2407 = vmatmul.mubr.f32.gmra.mxu0 %v2236
        %v2408 = vpop.f32.mrf.mxu0
        %v2409 = vadd.f32 0.0, %v2408
        %v2410 = vpop.f32.mrf.mxu0
        %2411 = vmatprep.mubr.f32.mxu0 0.0
        %2412 = vmatmul.mubr.f32.gmra.mxu0 %v2239
        %v2413 = vpop.f32.mrf.mxu0
        %v2414 = vadd.f32 0.0, %v2413
        %v2415 = vpop.f32.mrf.mxu0
        %2416 = vmatprep.mubr.f32.mxu0 0.0
        %2417 = vmatmul.mubr.f32.gmra.mxu0 %v2242
        %v2418 = vpop.f32.mrf.mxu0
        %v2419 = vadd.f32 0.0, %v2418
        %v2420 = vpop.f32.mrf.mxu0
        %2421 = vmatprep.mubr.f32.mxu0 0.0
        %2422 = vmatmul.mubr.f32.gmra.mxu0 %v2245
        %v2423 = vpop.f32.mrf.mxu0
        %v2424 = vadd.f32 0.0, %v2423
        %v2425 = vpop.f32.mrf.mxu0
        %2426 = vmatprep.mubr.f32.mxu0 0.0
        %2427 = vmatmul.mubr.f32.gmra.mxu0 %v2248
        %v2428 = vpop.f32.mrf.mxu0
        %v2429 = vadd.f32 0.0, %v2428
        %v2430 = vpop.f32.mrf.mxu0
        %2431 = vmatprep.mubr.f32.mxu0 0.0
        %2432 = vmatmul.mubr.f32.gmra.mxu0 %v2251
        %v2433 = vpop.f32.mrf.mxu0
        %v2434 = vadd.f32 0.0, %v2433
        %v2435 = vpop.f32.mrf.mxu0
        %2436 = vmatprep.mubr.f32.mxu0 0.0
        %2437 = vmatmul.mubr.f32.gmra.mxu0 %v2254
        %v2438 = vpop.f32.mrf.mxu0
        %v2439 = vadd.f32 0.0, %v2438
        %v2440 = vpop.f32.mrf.mxu0
        %2441 = vmatprep.mubr.f32.mxu0 0.0
        %2442 = vmatmul.mubr.f32.gmra.mxu0 %v2257
        %v2443 = vpop.f32.mrf.mxu0
        %v2444 = vadd.f32 0.0, %v2443
        %v2445 = vpop.f32.mrf.mxu0
        %2446 = vmatprep.mubr.f32.mxu0 0.0
        %2447 = vmatmul.mubr.f32.gmra.mxu0 %v2260
        %v2448 = vpop.f32.mrf.mxu0
        %v2449 = vadd.f32 0.0, %v2448
        %v2450 = vpop.f32.mrf.mxu0
        %2451 = vmatprep.mubr.f32.mxu0 0.0
        %2452 = vmatmul.mubr.f32.gmra.mxu0 %v2263
        %v2453 = vpop.f32.mrf.mxu0
        %v2454 = vadd.f32 0.0, %v2453
        %v2455 = vpop.f32.mrf.mxu0
        %2456 = vmatprep.mubr.f32.mxu0 0.0
        %2457 = vmatmul.mubr.f32.gmra.mxu0 %v2266
        %v2458 = vpop.f32.mrf.mxu0
        %v2459 = vadd.f32 0.0, %v2458
        %v2460 = vpop.f32.mrf.mxu0
        %2461 = vmatprep.mubr.f32.mxu0 0.0
        %2462 = vmatmul.mubr.f32.gmra.mxu0 %v2269
        %v2463 = vpop.f32.mrf.mxu0
        %v2464 = vadd.f32 0.0, %v2463
        %v2465 = vpop.f32.mrf.mxu0
        %2466 = vmatprep.mubr.f32.mxu0 0.0
        %2467 = vmatmul.mubr.f32.gmra.mxu0 %v2272
        %v2468 = vpop.f32.mrf.mxu0
        %v2469 = vadd.f32 0.0, %v2468
        %v2470 = vpop.f32.mrf.mxu0
        %2471 = vdwg.mxu0
        %v2472 = vadd.f32 %v2039, %v2344
        %v2473 = vadd.f32 %v2044, %v2349
        %v2474 = vadd.f32 %v2049, %v2354
        %v2475 = vadd.f32 %v2054, %v2359
        %v2476 = vadd.f32 %v2059, %v2364
        %v2477 = vadd.f32 %v2064, %v2369
        %v2478 = vadd.f32 %v2069, %v2374
        %v2479 = vadd.f32 %v2074, %v2379
        %v2480 = vadd.f32 %v2079, %v2384
        %v2481 = vadd.f32 %v2084, %v2389
        %v2482 = vadd.f32 %v2089, %v2394
        %v2483 = vadd.f32 %v2094, %v2399
        %v2484 = vadd.f32 %v2099, %v2404
        %v2485 = vadd.f32 %v2104, %v2409
        %v2486 = vadd.f32 %v2109, %v2414
        %v2487 = vadd.f32 %v2114, %v2419
        %v2488 = vadd.f32 %v2119, %v2424
        %v2489 = vadd.f32 %v2124, %v2429
        %v2490 = vadd.f32 %v2129, %v2434
        %v2491 = vadd.f32 %v2134, %v2439
        %v2492 = vadd.f32 %v2139, %v2444
        %v2493 = vadd.f32 %v2144, %v2449
        %v2494 = vadd.f32 %v2149, %v2454
        %v2495 = vadd.f32 %v2154, %v2459
        %v2496 = vadd.f32 %v2159, %v2464
        %v2497 = vadd.f32 %v2164, %v2469
        %v2498 = vld [vmem:[#allocation2 + $0x10] sm:$0xff]
        %v2499 = vld [vmem:[#allocation2 + $0x18] sm:$0xff]
        %v2500 = vld [vmem:[#allocation2 + $0x20] sm:$0xff]
        %v2501 = vld [vmem:[#allocation2 + $0x28] sm:$0xff]
        %v2502 = vld [vmem:[#allocation2 + $0x30] sm:$0xff]
        %v2503 = vld [vmem:[#allocation2 + $0x38] sm:$0xff]
        %v2504 = vld [vmem:[#allocation2 + $0x40] sm:$0xff]
        %v2505 = vld [vmem:[#allocation2 + $0x48] sm:$0xff]
        %v2506 = vld [vmem:[#allocation2 + $0x50] sm:$0xff]
        %v2507 = vld [vmem:[#allocation2 + $0x58] sm:$0xff]
        %v2508 = vld [vmem:[#allocation2 + $0x60] sm:$0xff]
        %v2509 = vld [vmem:[#allocation2 + $0x68] sm:$0xff]
        %v2510 = vld [vmem:[#allocation2 + $0x70] sm:$0xff]
        %v2511 = vld [vmem:[#allocation2 + $0x78] sm:$0xff]
        %v2512 = vld [vmem:[#allocation2 + $0x80] sm:$0xff]
        %v2513 = vld [vmem:[#allocation2 + $0x88] sm:$0xff]
        %v2514 = vld [vmem:[#allocation2 + $0x90] sm:$0xff]
        %v2515 = vld [vmem:[#allocation2 + $0x98] sm:$0xff]
        %v2516 = vld [vmem:[#allocation2 + $0xa0] sm:$0xff]
        %v2517 = vld [vmem:[#allocation2 + $0xa8] sm:$0xff]
        %v2518 = vld [vmem:[#allocation2 + $0xb0] sm:$0xff]
        %v2519 = vld [vmem:[#allocation2 + $0xb8] sm:$0xff]
        %v2520 = vld [vmem:[#allocation2 + $0xc0] sm:$0xff]
        %v2521 = vld [vmem:[#allocation2 + $0xc8] sm:$0xff]
        %v2522 = vld [vmem:[#allocation2 + $0xd0] sm:$0xff]
        %v2523 = vld [vmem:[#allocation2 + $0xd8] sm:$0xff]
        %s2524 = scalar_lea.vmem [#allocation8], 48
        %v2525 = vld [vmem:[%s2524] sm:$0xff]
        %v2526 = vld [vmem:[%s2524 + $0x8] sm:$0xf]
        %v2528 = vsel %vm1525, %v2498, 0
        %v2531 = vsel %vm1525, %v2499, 0
        %v2534 = vsel %vm1525, %v2500, 0
        %v2537 = vsel %vm1525, %v2501, 0
        %v2540 = vsel %vm1525, %v2502, 0
        %v2543 = vsel %vm1525, %v2503, 0
        %v2546 = vsel %vm1525, %v2504, 0
        %v2549 = vsel %vm1525, %v2505, 0
        %v2552 = vsel %vm1525, %v2506, 0
        %v2555 = vsel %vm1525, %v2507, 0
        %v2558 = vsel %vm1525, %v2508, 0
        %v2561 = vsel %vm1525, %v2509, 0
        %v2564 = vsel %vm1525, %v2510, 0
        %v2567 = vsel %vm1525, %v2511, 0
        %v2570 = vsel %vm1525, %v2512, 0
        %v2573 = vsel %vm1525, %v2513, 0
        %v2576 = vsel %vm1525, %v2514, 0
        %v2579 = vsel %vm1525, %v2515, 0
        %v2582 = vsel %vm1525, %v2516, 0
        %v2585 = vsel %vm1525, %v2517, 0
        %v2588 = vsel %vm1525, %v2518, 0
        %v2591 = vsel %vm1525, %v2519, 0
        %v2594 = vsel %vm1525, %v2520, 0
        %v2597 = vsel %vm1525, %v2521, 0
        %v2600 = vsel %vm1525, %v2522, 0
        %v2603 = vsel %vm1525, %v2523, 0
        %v2606 = vsel %vm1692, %v2526, 0
        %2608 = vmatprep.subr.mxu0 0.0
        %2609 = vmatpush1.msra.mxu0 0.0
        %2610 = vmatprep.subr.mxu0 0.0
        %2611 = vmatpush1.msra.mxu0 0.0
        %2612 = vmatprep.subr.mxu0 0.0
        %2613 = vmatpush1.msra.mxu0 0.0
        %2614 = vmatprep.subr.mxu0 0.0
        %2615 = vmatpush1.msra.mxu0 0.0
        %2616 = vmatprep.subr.mxu0 0.0
        %2617 = vmatpush1.msra.mxu0 0.0
        %2618 = vmatprep.subr.mxu0 0.0
        %2619 = vmatpush1.msra.mxu0 0.0
        %2620 = vmatprep.subr.mxu0 0.0
        %2621 = vmatpush1.msra.mxu0 0.0
        %2622 = vmatprep.subr.mxu0 0.0
        %2623 = vmatpush1.msra.mxu0 0.0
        %2624 = vmatprep.subr.mxu0 0.0
        %2625 = vmatpush1.msra.mxu0 0.0
        %2626 = vmatprep.subr.mxu0 0.0
        %2627 = vmatpush1.msra.mxu0 0.0
        %2628 = vmatprep.subr.mxu0 0.0
        %2629 = vmatpush1.msra.mxu0 0.0
        %2630 = vmatprep.subr.mxu0 0.0
        %2631 = vmatpush1.msra.mxu0 0.0
        %2632 = vmatprep.subr.mxu0 0.0
        %2633 = vmatpush1.msra.mxu0 0.0
        %2634 = vmatprep.subr.mxu0 0.0
        %2635 = vmatpush1.msra.mxu0 0.0
        %2636 = vmatprep.subr.mxu0 0.0
        %2637 = vmatpush1.msra.mxu0 %v2606
        %2638 = vmatprep.subr.mxu0 0.0
        %2639 = vmatpush1.msra.mxu0 %v2525
        %2640 = vmatprep.subr.mxu0 0.0
        %2641 = vmatpush2.msra.mxu0 0.0
        %2642 = vmatprep.subr.mxu0 0.0
        %2643 = vmatpush2.msra.mxu0 0.0
        %2644 = vmatprep.subr.mxu0 0.0
        %2645 = vmatpush2.msra.mxu0 0.0
        %2646 = vmatprep.subr.mxu0 0.0
        %2647 = vmatpush2.msra.mxu0 0.0
        %2648 = vmatprep.subr.mxu0 0.0
        %2649 = vmatpush2.msra.mxu0 0.0
        %2650 = vmatprep.subr.mxu0 0.0
        %2651 = vmatpush2.msra.mxu0 0.0
        %2652 = vmatprep.subr.mxu0 0.0
        %2653 = vmatpush2.msra.mxu0 0.0
        %2654 = vmatprep.subr.mxu0 0.0
        %2655 = vmatpush2.msra.mxu0 0.0
        %2656 = vmatprep.subr.mxu0 0.0
        %2657 = vmatpush2.msra.mxu0 0.0
        %2658 = vmatprep.subr.mxu0 0.0
        %2659 = vmatpush2.msra.mxu0 0.0
        %2660 = vmatprep.subr.mxu0 0.0
        %2661 = vmatpush2.msra.mxu0 0.0
        %2662 = vmatprep.subr.mxu0 0.0
        %2663 = vmatpush2.msra.mxu0 0.0
        %2664 = vmatprep.subr.mxu0 0.0
        %2665 = vmatpush2.msra.mxu0 0.0
        %2666 = vmatprep.subr.mxu0 0.0
        %2667 = vmatpush2.msra.mxu0 0.0
        %2668 = vmatprep.subr.mxu0 0.0
        %2669 = vmatpush2.msra.mxu0 0.0
        %2670 = vmatprep.subr.mxu0 0.0
        %2671 = vmatpush2.msra.mxu0 0.0
        %2672 = vmatprep.mubr.f32.mxu0 0.0
        %2673 = vmatmul.mubr.f32.gmra.mxu0 %v2528
        %v2674 = vpop.f32.mrf.mxu0
        %v2675 = vadd.f32 0.0, %v2674
        %v2676 = vpop.f32.mrf.mxu0
        %2677 = vmatprep.mubr.f32.mxu0 0.0
        %2678 = vmatmul.mubr.f32.gmra.mxu0 %v2531
        %v2679 = vpop.f32.mrf.mxu0
        %v2680 = vadd.f32 0.0, %v2679
        %v2681 = vpop.f32.mrf.mxu0
        %2682 = vmatprep.mubr.f32.mxu0 0.0
        %2683 = vmatmul.mubr.f32.gmra.mxu0 %v2534
        %v2684 = vpop.f32.mrf.mxu0
        %v2685 = vadd.f32 0.0, %v2684
        %v2686 = vpop.f32.mrf.mxu0
        %2687 = vmatprep.mubr.f32.mxu0 0.0
        %2688 = vmatmul.mubr.f32.gmra.mxu0 %v2537
        %v2689 = vpop.f32.mrf.mxu0
        %v2690 = vadd.f32 0.0, %v2689
        %v2691 = vpop.f32.mrf.mxu0
        %2692 = vmatprep.mubr.f32.mxu0 0.0
        %2693 = vmatmul.mubr.f32.gmra.mxu0 %v2540
        %v2694 = vpop.f32.mrf.mxu0
        %v2695 = vadd.f32 0.0, %v2694
        %v2696 = vpop.f32.mrf.mxu0
        %2697 = vmatprep.mubr.f32.mxu0 0.0
        %2698 = vmatmul.mubr.f32.gmra.mxu0 %v2543
        %v2699 = vpop.f32.mrf.mxu0
        %v2700 = vadd.f32 0.0, %v2699
        %v2701 = vpop.f32.mrf.mxu0
        %2702 = vmatprep.mubr.f32.mxu0 0.0
        %2703 = vmatmul.mubr.f32.gmra.mxu0 %v2546
        %v2704 = vpop.f32.mrf.mxu0
        %v2705 = vadd.f32 0.0, %v2704
        %v2706 = vpop.f32.mrf.mxu0
        %2707 = vmatprep.mubr.f32.mxu0 0.0
        %2708 = vmatmul.mubr.f32.gmra.mxu0 %v2549
        %v2709 = vpop.f32.mrf.mxu0
        %v2710 = vadd.f32 0.0, %v2709
        %v2711 = vpop.f32.mrf.mxu0
        %2712 = vmatprep.mubr.f32.mxu0 0.0
        %2713 = vmatmul.mubr.f32.gmra.mxu0 %v2552
        %v2714 = vpop.f32.mrf.mxu0
        %v2715 = vadd.f32 0.0, %v2714
        %v2716 = vpop.f32.mrf.mxu0
        %2717 = vmatprep.mubr.f32.mxu0 0.0
        %2718 = vmatmul.mubr.f32.gmra.mxu0 %v2555
        %v2719 = vpop.f32.mrf.mxu0
        %v2720 = vadd.f32 0.0, %v2719
        %v2721 = vpop.f32.mrf.mxu0
        %2722 = vmatprep.mubr.f32.mxu0 0.0
        %2723 = vmatmul.mubr.f32.gmra.mxu0 %v2558
        %v2724 = vpop.f32.mrf.mxu0
        %v2725 = vadd.f32 0.0, %v2724
        %v2726 = vpop.f32.mrf.mxu0
        %2727 = vmatprep.mubr.f32.mxu0 0.0
        %2728 = vmatmul.mubr.f32.gmra.mxu0 %v2561
        %v2729 = vpop.f32.mrf.mxu0
        %v2730 = vadd.f32 0.0, %v2729
        %v2731 = vpop.f32.mrf.mxu0
        %2732 = vmatprep.mubr.f32.mxu0 0.0
        %2733 = vmatmul.mubr.f32.gmra.mxu0 %v2564
        %v2734 = vpop.f32.mrf.mxu0
        %v2735 = vadd.f32 0.0, %v2734
        %v2736 = vpop.f32.mrf.mxu0
        %2737 = vmatprep.mubr.f32.mxu0 0.0
        %2738 = vmatmul.mubr.f32.gmra.mxu0 %v2567
        %v2739 = vpop.f32.mrf.mxu0
        %v2740 = vadd.f32 0.0, %v2739
        %v2741 = vpop.f32.mrf.mxu0
        %2742 = vmatprep.mubr.f32.mxu0 0.0
        %2743 = vmatmul.mubr.f32.gmra.mxu0 %v2570
        %v2744 = vpop.f32.mrf.mxu0
        %v2745 = vadd.f32 0.0, %v2744
        %v2746 = vpop.f32.mrf.mxu0
        %2747 = vmatprep.mubr.f32.mxu0 0.0
        %2748 = vmatmul.mubr.f32.gmra.mxu0 %v2573
        %v2749 = vpop.f32.mrf.mxu0
        %v2750 = vadd.f32 0.0, %v2749
        %v2751 = vpop.f32.mrf.mxu0
        %2752 = vmatprep.mubr.f32.mxu0 0.0
        %2753 = vmatmul.mubr.f32.gmra.mxu0 %v2576
        %v2754 = vpop.f32.mrf.mxu0
        %v2755 = vadd.f32 0.0, %v2754
        %v2756 = vpop.f32.mrf.mxu0
        %2757 = vmatprep.mubr.f32.mxu0 0.0
        %2758 = vmatmul.mubr.f32.gmra.mxu0 %v2579
        %v2759 = vpop.f32.mrf.mxu0
        %v2760 = vadd.f32 0.0, %v2759
        %v2761 = vpop.f32.mrf.mxu0
        %2762 = vmatprep.mubr.f32.mxu0 0.0
        %2763 = vmatmul.mubr.f32.gmra.mxu0 %v2582
        %v2764 = vpop.f32.mrf.mxu0
        %v2765 = vadd.f32 0.0, %v2764
        %v2766 = vpop.f32.mrf.mxu0
        %2767 = vmatprep.mubr.f32.mxu0 0.0
        %2768 = vmatmul.mubr.f32.gmra.mxu0 %v2585
        %v2769 = vpop.f32.mrf.mxu0
        %v2770 = vadd.f32 0.0, %v2769
        %v2771 = vpop.f32.mrf.mxu0
        %2772 = vmatprep.mubr.f32.mxu0 0.0
        %2773 = vmatmul.mubr.f32.gmra.mxu0 %v2588
        %v2774 = vpop.f32.mrf.mxu0
        %v2775 = vadd.f32 0.0, %v2774
        %v2776 = vpop.f32.mrf.mxu0
        %2777 = vmatprep.mubr.f32.mxu0 0.0
        %2778 = vmatmul.mubr.f32.gmra.mxu0 %v2591
        %v2779 = vpop.f32.mrf.mxu0
        %v2780 = vadd.f32 0.0, %v2779
        %v2781 = vpop.f32.mrf.mxu0
        %2782 = vmatprep.mubr.f32.mxu0 0.0
        %2783 = vmatmul.mubr.f32.gmra.mxu0 %v2594
        %v2784 = vpop.f32.mrf.mxu0
        %v2785 = vadd.f32 0.0, %v2784
        %v2786 = vpop.f32.mrf.mxu0
        %2787 = vmatprep.mubr.f32.mxu0 0.0
        %2788 = vmatmul.mubr.f32.gmra.mxu0 %v2597
        %v2789 = vpop.f32.mrf.mxu0
        %v2790 = vadd.f32 0.0, %v2789
        %v2791 = vpop.f32.mrf.mxu0
        %2792 = vmatprep.mubr.f32.mxu0 0.0
        %2793 = vmatmul.mubr.f32.gmra.mxu0 %v2600
        %v2794 = vpop.f32.mrf.mxu0
        %v2795 = vadd.f32 0.0, %v2794
        %v2796 = vpop.f32.mrf.mxu0
        %2797 = vmatprep.mubr.f32.mxu0 0.0
        %2798 = vmatmul.mubr.f32.gmra.mxu0 %v2603
        %v2799 = vpop.f32.mrf.mxu0
        %v2800 = vadd.f32 0.0, %v2799
        %v2801 = vpop.f32.mrf.mxu0
        %2802 = vdwg.mxu0
        %v2803 = vadd.f32 %v2472, %v2675
        %v2804 = vadd.f32 %v2473, %v2680
        %v2805 = vadd.f32 %v2474, %v2685
        %v2806 = vadd.f32 %v2475, %v2690
        %v2807 = vadd.f32 %v2476, %v2695
        %v2808 = vadd.f32 %v2477, %v2700
        %v2809 = vadd.f32 %v2478, %v2705
        %v2810 = vadd.f32 %v2479, %v2710
        %v2811 = vadd.f32 %v2480, %v2715
        %v2812 = vadd.f32 %v2481, %v2720
        %v2813 = vadd.f32 %v2482, %v2725
        %v2814 = vadd.f32 %v2483, %v2730
        %v2815 = vadd.f32 %v2484, %v2735
        %v2816 = vadd.f32 %v2485, %v2740
        %v2817 = vadd.f32 %v2486, %v2745
        %v2818 = vadd.f32 %v2487, %v2750
        %v2819 = vadd.f32 %v2488, %v2755
        %v2820 = vadd.f32 %v2489, %v2760
        %v2821 = vadd.f32 %v2490, %v2765
        %v2822 = vadd.f32 %v2491, %v2770
        %v2823 = vadd.f32 %v2492, %v2775
        %v2824 = vadd.f32 %v2493, %v2780
        %v2825 = vadd.f32 %v2494, %v2785
        %v2826 = vadd.f32 %v2495, %v2790
        %v2827 = vadd.f32 %v2496, %v2795
        %v2828 = vadd.f32 %v2497, %v2800
        %v2829 = vld [vmem:[#allocation2 + $0x11] sm:$0xff]
        %v2830 = vld [vmem:[#allocation2 + $0x19] sm:$0xff]
        %v2831 = vld [vmem:[#allocation2 + $0x21] sm:$0xff]
        %v2832 = vld [vmem:[#allocation2 + $0x29] sm:$0xff]
        %v2833 = vld [vmem:[#allocation2 + $0x31] sm:$0xff]
        %v2834 = vld [vmem:[#allocation2 + $0x39] sm:$0xff]
        %v2835 = vld [vmem:[#allocation2 + $0x41] sm:$0xff]
        %v2836 = vld [vmem:[#allocation2 + $0x49] sm:$0xff]
        %v2837 = vld [vmem:[#allocation2 + $0x51] sm:$0xff]
        %v2838 = vld [vmem:[#allocation2 + $0x59] sm:$0xff]
        %v2839 = vld [vmem:[#allocation2 + $0x61] sm:$0xff]
        %v2840 = vld [vmem:[#allocation2 + $0x69] sm:$0xff]
        %v2841 = vld [vmem:[#allocation2 + $0x71] sm:$0xff]
        %v2842 = vld [vmem:[#allocation2 + $0x79] sm:$0xff]
        %v2843 = vld [vmem:[#allocation2 + $0x81] sm:$0xff]
        %v2844 = vld [vmem:[#allocation2 + $0x89] sm:$0xff]
        %v2845 = vld [vmem:[#allocation2 + $0x91] sm:$0xff]
        %v2846 = vld [vmem:[#allocation2 + $0x99] sm:$0xff]
        %v2847 = vld [vmem:[#allocation2 + $0xa1] sm:$0xff]
        %v2848 = vld [vmem:[#allocation2 + $0xa9] sm:$0xff]
        %v2849 = vld [vmem:[#allocation2 + $0xb1] sm:$0xff]
        %v2850 = vld [vmem:[#allocation2 + $0xb9] sm:$0xff]
        %v2851 = vld [vmem:[#allocation2 + $0xc1] sm:$0xff]
        %v2852 = vld [vmem:[#allocation2 + $0xc9] sm:$0xff]
        %v2853 = vld [vmem:[#allocation2 + $0xd1] sm:$0xff]
        %v2854 = vld [vmem:[#allocation2 + $0xd9] sm:$0xff]
        %s2855 = scalar_lea.vmem [#allocation8], 64
        %v2856 = vld [vmem:[%s2855] sm:$0xff]
        %v2857 = vld [vmem:[%s2855 + $0x8] sm:$0xf]
        %v2859 = vsel %vm1525, %v2829, 0
        %v2862 = vsel %vm1525, %v2830, 0
        %v2865 = vsel %vm1525, %v2831, 0
        %v2868 = vsel %vm1525, %v2832, 0
        %v2871 = vsel %vm1525, %v2833, 0
        %v2874 = vsel %vm1525, %v2834, 0
        %v2877 = vsel %vm1525, %v2835, 0
        %v2880 = vsel %vm1525, %v2836, 0
        %v2883 = vsel %vm1525, %v2837, 0
        %v2886 = vsel %vm1525, %v2838, 0
        %v2889 = vsel %vm1525, %v2839, 0
        %v2892 = vsel %vm1525, %v2840, 0
        %v2895 = vsel %vm1525, %v2841, 0
        %v2898 = vsel %vm1525, %v2842, 0
        %v2901 = vsel %vm1525, %v2843, 0
        %v2904 = vsel %vm1525, %v2844, 0
        %v2907 = vsel %vm1525, %v2845, 0
        %v2910 = vsel %vm1525, %v2846, 0
        %v2913 = vsel %vm1525, %v2847, 0
        %v2916 = vsel %vm1525, %v2848, 0
        %v2919 = vsel %vm1525, %v2849, 0
        %v2922 = vsel %vm1525, %v2850, 0
        %v2925 = vsel %vm1525, %v2851, 0
        %v2928 = vsel %vm1525, %v2852, 0
        %v2931 = vsel %vm1525, %v2853, 0
        %v2934 = vsel %vm1525, %v2854, 0
        %v2937 = vsel %vm1692, %v2857, 0
        %2939 = vmatprep.subr.mxu0 0.0
        %2940 = vmatpush1.msra.mxu0 0.0
        %2941 = vmatprep.subr.mxu0 0.0
        %2942 = vmatpush1.msra.mxu0 0.0
        %2943 = vmatprep.subr.mxu0 0.0
        %2944 = vmatpush1.msra.mxu0 0.0
        %2945 = vmatprep.subr.mxu0 0.0
        %2946 = vmatpush1.msra.mxu0 0.0
        %2947 = vmatprep.subr.mxu0 0.0
        %2948 = vmatpush1.msra.mxu0 0.0
        %2949 = vmatprep.subr.mxu0 0.0
        %2950 = vmatpush1.msra.mxu0 0.0
        %2951 = vmatprep.subr.mxu0 0.0
        %2952 = vmatpush1.msra.mxu0 0.0
        %2953 = vmatprep.subr.mxu0 0.0
        %2954 = vmatpush1.msra.mxu0 0.0
        %2955 = vmatprep.subr.mxu0 0.0
        %2956 = vmatpush1.msra.mxu0 0.0
        %2957 = vmatprep.subr.mxu0 0.0
        %2958 = vmatpush1.msra.mxu0 0.0
        %2959 = vmatprep.subr.mxu0 0.0
        %2960 = vmatpush1.msra.mxu0 0.0
        %2961 = vmatprep.subr.mxu0 0.0
        %2962 = vmatpush1.msra.mxu0 0.0
        %2963 = vmatprep.subr.mxu0 0.0
        %2964 = vmatpush1.msra.mxu0 0.0
        %2965 = vmatprep.subr.mxu0 0.0
        %2966 = vmatpush1.msra.mxu0 0.0
        %2967 = vmatprep.subr.mxu0 0.0
        %2968 = vmatpush1.msra.mxu0 %v2937
        %2969 = vmatprep.subr.mxu0 0.0
        %2970 = vmatpush1.msra.mxu0 %v2856
        %2971 = vmatprep.subr.mxu0 0.0
        %2972 = vmatpush2.msra.mxu0 0.0
        %2973 = vmatprep.subr.mxu0 0.0
        %2974 = vmatpush2.msra.mxu0 0.0
        %2975 = vmatprep.subr.mxu0 0.0
        %2976 = vmatpush2.msra.mxu0 0.0
        %2977 = vmatprep.subr.mxu0 0.0
        %2978 = vmatpush2.msra.mxu0 0.0
        %2979 = vmatprep.subr.mxu0 0.0
        %2980 = vmatpush2.msra.mxu0 0.0
        %2981 = vmatprep.subr.mxu0 0.0
        %2982 = vmatpush2.msra.mxu0 0.0
        %2983 = vmatprep.subr.mxu0 0.0
        %2984 = vmatpush2.msra.mxu0 0.0
        %2985 = vmatprep.subr.mxu0 0.0
        %2986 = vmatpush2.msra.mxu0 0.0
        %2987 = vmatprep.subr.mxu0 0.0
        %2988 = vmatpush2.msra.mxu0 0.0
        %2989 = vmatprep.subr.mxu0 0.0
        %2990 = vmatpush2.msra.mxu0 0.0
        %2991 = vmatprep.subr.mxu0 0.0
        %2992 = vmatpush2.msra.mxu0 0.0
        %2993 = vmatprep.subr.mxu0 0.0
        %2994 = vmatpush2.msra.mxu0 0.0
        %2995 = vmatprep.subr.mxu0 0.0
        %2996 = vmatpush2.msra.mxu0 0.0
        %2997 = vmatprep.subr.mxu0 0.0
        %2998 = vmatpush2.msra.mxu0 0.0
        %2999 = vmatprep.subr.mxu0 0.0
        %3000 = vmatpush2.msra.mxu0 0.0
        %3001 = vmatprep.subr.mxu0 0.0
        %3002 = vmatpush2.msra.mxu0 0.0
        %3003 = vmatprep.mubr.f32.mxu0 0.0
        %3004 = vmatmul.mubr.f32.gmra.mxu0 %v2859
        %v3005 = vpop.f32.mrf.mxu0
        %v3006 = vadd.f32 0.0, %v3005
        %v3007 = vpop.f32.mrf.mxu0
        %3008 = vmatprep.mubr.f32.mxu0 0.0
        %3009 = vmatmul.mubr.f32.gmra.mxu0 %v2862
        %v3010 = vpop.f32.mrf.mxu0
        %v3011 = vadd.f32 0.0, %v3010
        %v3012 = vpop.f32.mrf.mxu0
        %3013 = vmatprep.mubr.f32.mxu0 0.0
        %3014 = vmatmul.mubr.f32.gmra.mxu0 %v2865
        %v3015 = vpop.f32.mrf.mxu0
        %v3016 = vadd.f32 0.0, %v3015
        %v3017 = vpop.f32.mrf.mxu0
        %3018 = vmatprep.mubr.f32.mxu0 0.0
        %3019 = vmatmul.mubr.f32.gmra.mxu0 %v2868
        %v3020 = vpop.f32.mrf.mxu0
        %v3021 = vadd.f32 0.0, %v3020
        %v3022 = vpop.f32.mrf.mxu0
        %3023 = vmatprep.mubr.f32.mxu0 0.0
        %3024 = vmatmul.mubr.f32.gmra.mxu0 %v2871
        %v3025 = vpop.f32.mrf.mxu0
        %v3026 = vadd.f32 0.0, %v3025
        %v3027 = vpop.f32.mrf.mxu0
        %3028 = vmatprep.mubr.f32.mxu0 0.0
        %3029 = vmatmul.mubr.f32.gmra.mxu0 %v2874
        %v3030 = vpop.f32.mrf.mxu0
        %v3031 = vadd.f32 0.0, %v3030
        %v3032 = vpop.f32.mrf.mxu0
        %3033 = vmatprep.mubr.f32.mxu0 0.0
        %3034 = vmatmul.mubr.f32.gmra.mxu0 %v2877
        %v3035 = vpop.f32.mrf.mxu0
        %v3036 = vadd.f32 0.0, %v3035
        %v3037 = vpop.f32.mrf.mxu0
        %3038 = vmatprep.mubr.f32.mxu0 0.0
        %3039 = vmatmul.mubr.f32.gmra.mxu0 %v2880
        %v3040 = vpop.f32.mrf.mxu0
        %v3041 = vadd.f32 0.0, %v3040
        %v3042 = vpop.f32.mrf.mxu0
        %3043 = vmatprep.mubr.f32.mxu0 0.0
        %3044 = vmatmul.mubr.f32.gmra.mxu0 %v2883
        %v3045 = vpop.f32.mrf.mxu0
        %v3046 = vadd.f32 0.0, %v3045
        %v3047 = vpop.f32.mrf.mxu0
        %3048 = vmatprep.mubr.f32.mxu0 0.0
        %3049 = vmatmul.mubr.f32.gmra.mxu0 %v2886
        %v3050 = vpop.f32.mrf.mxu0
        %v3051 = vadd.f32 0.0, %v3050
        %v3052 = vpop.f32.mrf.mxu0
        %3053 = vmatprep.mubr.f32.mxu0 0.0
        %3054 = vmatmul.mubr.f32.gmra.mxu0 %v2889
        %v3055 = vpop.f32.mrf.mxu0
        %v3056 = vadd.f32 0.0, %v3055
        %v3057 = vpop.f32.mrf.mxu0
        %3058 = vmatprep.mubr.f32.mxu0 0.0
        %3059 = vmatmul.mubr.f32.gmra.mxu0 %v2892
        %v3060 = vpop.f32.mrf.mxu0
        %v3061 = vadd.f32 0.0, %v3060
        %v3062 = vpop.f32.mrf.mxu0
        %3063 = vmatprep.mubr.f32.mxu0 0.0
        %3064 = vmatmul.mubr.f32.gmra.mxu0 %v2895
        %v3065 = vpop.f32.mrf.mxu0
        %v3066 = vadd.f32 0.0, %v3065
        %v3067 = vpop.f32.mrf.mxu0
        %3068 = vmatprep.mubr.f32.mxu0 0.0
        %3069 = vmatmul.mubr.f32.gmra.mxu0 %v2898
        %v3070 = vpop.f32.mrf.mxu0
        %v3071 = vadd.f32 0.0, %v3070
        %v3072 = vpop.f32.mrf.mxu0
        %3073 = vmatprep.mubr.f32.mxu0 0.0
        %3074 = vmatmul.mubr.f32.gmra.mxu0 %v2901
        %v3075 = vpop.f32.mrf.mxu0
        %v3076 = vadd.f32 0.0, %v3075
        %v3077 = vpop.f32.mrf.mxu0
        %3078 = vmatprep.mubr.f32.mxu0 0.0
        %3079 = vmatmul.mubr.f32.gmra.mxu0 %v2904
        %v3080 = vpop.f32.mrf.mxu0
        %v3081 = vadd.f32 0.0, %v3080
        %v3082 = vpop.f32.mrf.mxu0
        %3083 = vmatprep.mubr.f32.mxu0 0.0
        %3084 = vmatmul.mubr.f32.gmra.mxu0 %v2907
        %v3085 = vpop.f32.mrf.mxu0
        %v3086 = vadd.f32 0.0, %v3085
        %v3087 = vpop.f32.mrf.mxu0
        %3088 = vmatprep.mubr.f32.mxu0 0.0
        %3089 = vmatmul.mubr.f32.gmra.mxu0 %v2910
        %v3090 = vpop.f32.mrf.mxu0
        %v3091 = vadd.f32 0.0, %v3090
        %v3092 = vpop.f32.mrf.mxu0
        %3093 = vmatprep.mubr.f32.mxu0 0.0
        %3094 = vmatmul.mubr.f32.gmra.mxu0 %v2913
        %v3095 = vpop.f32.mrf.mxu0
        %v3096 = vadd.f32 0.0, %v3095
        %v3097 = vpop.f32.mrf.mxu0
        %3098 = vmatprep.mubr.f32.mxu0 0.0
        %3099 = vmatmul.mubr.f32.gmra.mxu0 %v2916
        %v3100 = vpop.f32.mrf.mxu0
        %v3101 = vadd.f32 0.0, %v3100
        %v3102 = vpop.f32.mrf.mxu0
        %3103 = vmatprep.mubr.f32.mxu0 0.0
        %3104 = vmatmul.mubr.f32.gmra.mxu0 %v2919
        %v3105 = vpop.f32.mrf.mxu0
        %v3106 = vadd.f32 0.0, %v3105
        %v3107 = vpop.f32.mrf.mxu0
        %3108 = vmatprep.mubr.f32.mxu0 0.0
        %3109 = vmatmul.mubr.f32.gmra.mxu0 %v2922
        %v3110 = vpop.f32.mrf.mxu0
        %v3111 = vadd.f32 0.0, %v3110
        %v3112 = vpop.f32.mrf.mxu0
        %3113 = vmatprep.mubr.f32.mxu0 0.0
        %3114 = vmatmul.mubr.f32.gmra.mxu0 %v2925
        %v3115 = vpop.f32.mrf.mxu0
        %v3116 = vadd.f32 0.0, %v3115
        %v3117 = vpop.f32.mrf.mxu0
        %3118 = vmatprep.mubr.f32.mxu0 0.0
        %3119 = vmatmul.mubr.f32.gmra.mxu0 %v2928
        %v3120 = vpop.f32.mrf.mxu0
        %v3121 = vadd.f32 0.0, %v3120
        %v3122 = vpop.f32.mrf.mxu0
        %3123 = vmatprep.mubr.f32.mxu0 0.0
        %3124 = vmatmul.mubr.f32.gmra.mxu0 %v2931
        %v3125 = vpop.f32.mrf.mxu0
        %v3126 = vadd.f32 0.0, %v3125
        %v3127 = vpop.f32.mrf.mxu0
        %3128 = vmatprep.mubr.f32.mxu0 0.0
        %3129 = vmatmul.mubr.f32.gmra.mxu0 %v2934
        %v3130 = vpop.f32.mrf.mxu0
        %v3131 = vadd.f32 0.0, %v3130
        %v3132 = vpop.f32.mrf.mxu0
        %3133 = vdwg.mxu0
        %v3134 = vadd.f32 %v2803, %v3006
        %v3135 = vadd.f32 %v2804, %v3011
        %v3136 = vadd.f32 %v2805, %v3016
        %v3137 = vadd.f32 %v2806, %v3021
        %v3138 = vadd.f32 %v2807, %v3026
        %v3139 = vadd.f32 %v2808, %v3031
        %v3140 = vadd.f32 %v2809, %v3036
        %v3141 = vadd.f32 %v2810, %v3041
        %v3142 = vadd.f32 %v2811, %v3046
        %v3143 = vadd.f32 %v2812, %v3051
        %v3144 = vadd.f32 %v2813, %v3056
        %v3145 = vadd.f32 %v2814, %v3061
        %v3146 = vadd.f32 %v2815, %v3066
        %v3147 = vadd.f32 %v2816, %v3071
        %v3148 = vadd.f32 %v2817, %v3076
        %v3149 = vadd.f32 %v2818, %v3081
        %v3150 = vadd.f32 %v2819, %v3086
        %v3151 = vadd.f32 %v2820, %v3091
        %v3152 = vadd.f32 %v2821, %v3096
        %v3153 = vadd.f32 %v2822, %v3101
        %v3154 = vadd.f32 %v2823, %v3106
        %v3155 = vadd.f32 %v2824, %v3111
        %v3156 = vadd.f32 %v2825, %v3116
        %v3157 = vadd.f32 %v2826, %v3121
        %v3158 = vadd.f32 %v2827, %v3126
        %v3159 = vadd.f32 %v2828, %v3131
        %v3160 = vld [vmem:[#allocation2 + $0x12] sm:$0xff]
        %v3161 = vld [vmem:[#allocation2 + $0x1a] sm:$0xff]
        %v3162 = vld [vmem:[#allocation2 + $0x22] sm:$0xff]
        %v3163 = vld [vmem:[#allocation2 + $0x2a] sm:$0xff]
        %v3164 = vld [vmem:[#allocation2 + $0x32] sm:$0xff]
        %v3165 = vld [vmem:[#allocation2 + $0x3a] sm:$0xff]
        %v3166 = vld [vmem:[#allocation2 + $0x42] sm:$0xff]
        %v3167 = vld [vmem:[#allocation2 + $0x4a] sm:$0xff]
        %v3168 = vld [vmem:[#allocation2 + $0x52] sm:$0xff]
        %v3169 = vld [vmem:[#allocation2 + $0x5a] sm:$0xff]
        %v3170 = vld [vmem:[#allocation2 + $0x62] sm:$0xff]
        %v3171 = vld [vmem:[#allocation2 + $0x6a] sm:$0xff]
        %v3172 = vld [vmem:[#allocation2 + $0x72] sm:$0xff]
        %v3173 = vld [vmem:[#allocation2 + $0x7a] sm:$0xff]
        %v3174 = vld [vmem:[#allocation2 + $0x82] sm:$0xff]
        %v3175 = vld [vmem:[#allocation2 + $0x8a] sm:$0xff]
        %v3176 = vld [vmem:[#allocation2 + $0x92] sm:$0xff]
        %v3177 = vld [vmem:[#allocation2 + $0x9a] sm:$0xff]
        %v3178 = vld [vmem:[#allocation2 + $0xa2] sm:$0xff]
        %v3179 = vld [vmem:[#allocation2 + $0xaa] sm:$0xff]
        %v3180 = vld [vmem:[#allocation2 + $0xb2] sm:$0xff]
        %v3181 = vld [vmem:[#allocation2 + $0xba] sm:$0xff]
        %v3182 = vld [vmem:[#allocation2 + $0xc2] sm:$0xff]
        %v3183 = vld [vmem:[#allocation2 + $0xca] sm:$0xff]
        %v3184 = vld [vmem:[#allocation2 + $0xd2] sm:$0xff]
        %v3185 = vld [vmem:[#allocation2 + $0xda] sm:$0xff]
        %s3186 = scalar_lea.vmem [#allocation8], 80
        %v3187 = vld [vmem:[%s3186] sm:$0xff]
        %v3188 = vld [vmem:[%s3186 + $0x8] sm:$0xf]
        %v3190 = vsel %vm1525, %v3160, 0
        %v3193 = vsel %vm1525, %v3161, 0
        %v3196 = vsel %vm1525, %v3162, 0
        %v3199 = vsel %vm1525, %v3163, 0
        %v3202 = vsel %vm1525, %v3164, 0
        %v3205 = vsel %vm1525, %v3165, 0
        %v3208 = vsel %vm1525, %v3166, 0
        %v3211 = vsel %vm1525, %v3167, 0
        %v3214 = vsel %vm1525, %v3168, 0
        %v3217 = vsel %vm1525, %v3169, 0
        %v3220 = vsel %vm1525, %v3170, 0
        %v3223 = vsel %vm1525, %v3171, 0
        %v3226 = vsel %vm1525, %v3172, 0
        %v3229 = vsel %vm1525, %v3173, 0
        %v3232 = vsel %vm1525, %v3174, 0
        %v3235 = vsel %vm1525, %v3175, 0
        %v3238 = vsel %vm1525, %v3176, 0
        %v3241 = vsel %vm1525, %v3177, 0
        %v3244 = vsel %vm1525, %v3178, 0
        %v3247 = vsel %vm1525, %v3179, 0
        %v3250 = vsel %vm1525, %v3180, 0
        %v3253 = vsel %vm1525, %v3181, 0
        %v3256 = vsel %vm1525, %v3182, 0
        %v3259 = vsel %vm1525, %v3183, 0
        %v3262 = vsel %vm1525, %v3184, 0
        %v3265 = vsel %vm1525, %v3185, 0
        %v3268 = vsel %vm1692, %v3188, 0
        %3270 = vmatprep.subr.mxu0 0.0
        %3271 = vmatpush1.msra.mxu0 0.0
        %3272 = vmatprep.subr.mxu0 0.0
        %3273 = vmatpush1.msra.mxu0 0.0
        %3274 = vmatprep.subr.mxu0 0.0
        %3275 = vmatpush1.msra.mxu0 0.0
        %3276 = vmatprep.subr.mxu0 0.0
        %3277 = vmatpush1.msra.mxu0 0.0
        %3278 = vmatprep.subr.mxu0 0.0
        %3279 = vmatpush1.msra.mxu0 0.0
        %3280 = vmatprep.subr.mxu0 0.0
        %3281 = vmatpush1.msra.mxu0 0.0
        %3282 = vmatprep.subr.mxu0 0.0
        %3283 = vmatpush1.msra.mxu0 0.0
        %3284 = vmatprep.subr.mxu0 0.0
        %3285 = vmatpush1.msra.mxu0 0.0
        %3286 = vmatprep.subr.mxu0 0.0
        %3287 = vmatpush1.msra.mxu0 0.0
        %3288 = vmatprep.subr.mxu0 0.0
        %3289 = vmatpush1.msra.mxu0 0.0
        %3290 = vmatprep.subr.mxu0 0.0
        %3291 = vmatpush1.msra.mxu0 0.0
        %3292 = vmatprep.subr.mxu0 0.0
        %3293 = vmatpush1.msra.mxu0 0.0
        %3294 = vmatprep.subr.mxu0 0.0
        %3295 = vmatpush1.msra.mxu0 0.0
        %3296 = vmatprep.subr.mxu0 0.0
        %3297 = vmatpush1.msra.mxu0 0.0
        %3298 = vmatprep.subr.mxu0 0.0
        %3299 = vmatpush1.msra.mxu0 %v3268
        %3300 = vmatprep.subr.mxu0 0.0
        %3301 = vmatpush1.msra.mxu0 %v3187
        %3302 = vmatprep.subr.mxu0 0.0
        %3303 = vmatpush2.msra.mxu0 0.0
        %3304 = vmatprep.subr.mxu0 0.0
        %3305 = vmatpush2.msra.mxu0 0.0
        %3306 = vmatprep.subr.mxu0 0.0
        %3307 = vmatpush2.msra.mxu0 0.0
        %3308 = vmatprep.subr.mxu0 0.0
        %3309 = vmatpush2.msra.mxu0 0.0
        %3310 = vmatprep.subr.mxu0 0.0
        %3311 = vmatpush2.msra.mxu0 0.0
        %3312 = vmatprep.subr.mxu0 0.0
        %3313 = vmatpush2.msra.mxu0 0.0
        %3314 = vmatprep.subr.mxu0 0.0
        %3315 = vmatpush2.msra.mxu0 0.0
        %3316 = vmatprep.subr.mxu0 0.0
        %3317 = vmatpush2.msra.mxu0 0.0
        %3318 = vmatprep.subr.mxu0 0.0
        %3319 = vmatpush2.msra.mxu0 0.0
        %3320 = vmatprep.subr.mxu0 0.0
        %3321 = vmatpush2.msra.mxu0 0.0
        %3322 = vmatprep.subr.mxu0 0.0
        %3323 = vmatpush2.msra.mxu0 0.0
        %3324 = vmatprep.subr.mxu0 0.0
        %3325 = vmatpush2.msra.mxu0 0.0
        %3326 = vmatprep.subr.mxu0 0.0
        %3327 = vmatpush2.msra.mxu0 0.0
        %3328 = vmatprep.subr.mxu0 0.0
        %3329 = vmatpush2.msra.mxu0 0.0
        %3330 = vmatprep.subr.mxu0 0.0
        %3331 = vmatpush2.msra.mxu0 0.0
        %3332 = vmatprep.subr.mxu0 0.0
        %3333 = vmatpush2.msra.mxu0 0.0
        %3334 = vmatprep.mubr.f32.mxu0 0.0
        %3335 = vmatmul.mubr.f32.gmra.mxu0 %v3190
        %v3336 = vpop.f32.mrf.mxu0
        %v3337 = vadd.f32 0.0, %v3336
        %v3338 = vpop.f32.mrf.mxu0
        %3339 = vmatprep.mubr.f32.mxu0 0.0
        %3340 = vmatmul.mubr.f32.gmra.mxu0 %v3193
        %v3341 = vpop.f32.mrf.mxu0
        %v3342 = vadd.f32 0.0, %v3341
        %v3343 = vpop.f32.mrf.mxu0
        %3344 = vmatprep.mubr.f32.mxu0 0.0
        %3345 = vmatmul.mubr.f32.gmra.mxu0 %v3196
        %v3346 = vpop.f32.mrf.mxu0
        %v3347 = vadd.f32 0.0, %v3346
        %v3348 = vpop.f32.mrf.mxu0
        %3349 = vmatprep.mubr.f32.mxu0 0.0
        %3350 = vmatmul.mubr.f32.gmra.mxu0 %v3199
        %v3351 = vpop.f32.mrf.mxu0
        %v3352 = vadd.f32 0.0, %v3351
        %v3353 = vpop.f32.mrf.mxu0
        %3354 = vmatprep.mubr.f32.mxu0 0.0
        %3355 = vmatmul.mubr.f32.gmra.mxu0 %v3202
        %v3356 = vpop.f32.mrf.mxu0
        %v3357 = vadd.f32 0.0, %v3356
        %v3358 = vpop.f32.mrf.mxu0
        %3359 = vmatprep.mubr.f32.mxu0 0.0
        %3360 = vmatmul.mubr.f32.gmra.mxu0 %v3205
        %v3361 = vpop.f32.mrf.mxu0
        %v3362 = vadd.f32 0.0, %v3361
        %v3363 = vpop.f32.mrf.mxu0
        %3364 = vmatprep.mubr.f32.mxu0 0.0
        %3365 = vmatmul.mubr.f32.gmra.mxu0 %v3208
        %v3366 = vpop.f32.mrf.mxu0
        %v3367 = vadd.f32 0.0, %v3366
        %v3368 = vpop.f32.mrf.mxu0
        %3369 = vmatprep.mubr.f32.mxu0 0.0
        %3370 = vmatmul.mubr.f32.gmra.mxu0 %v3211
        %v3371 = vpop.f32.mrf.mxu0
        %v3372 = vadd.f32 0.0, %v3371
        %v3373 = vpop.f32.mrf.mxu0
        %3374 = vmatprep.mubr.f32.mxu0 0.0
        %3375 = vmatmul.mubr.f32.gmra.mxu0 %v3214
        %v3376 = vpop.f32.mrf.mxu0
        %v3377 = vadd.f32 0.0, %v3376
        %v3378 = vpop.f32.mrf.mxu0
        %3379 = vmatprep.mubr.f32.mxu0 0.0
        %3380 = vmatmul.mubr.f32.gmra.mxu0 %v3217
        %v3381 = vpop.f32.mrf.mxu0
        %v3382 = vadd.f32 0.0, %v3381
        %v3383 = vpop.f32.mrf.mxu0
        %3384 = vmatprep.mubr.f32.mxu0 0.0
        %3385 = vmatmul.mubr.f32.gmra.mxu0 %v3220
        %v3386 = vpop.f32.mrf.mxu0
        %v3387 = vadd.f32 0.0, %v3386
        %v3388 = vpop.f32.mrf.mxu0
        %3389 = vmatprep.mubr.f32.mxu0 0.0
        %3390 = vmatmul.mubr.f32.gmra.mxu0 %v3223
        %v3391 = vpop.f32.mrf.mxu0
        %v3392 = vadd.f32 0.0, %v3391
        %v3393 = vpop.f32.mrf.mxu0
        %3394 = vmatprep.mubr.f32.mxu0 0.0
        %3395 = vmatmul.mubr.f32.gmra.mxu0 %v3226
        %v3396 = vpop.f32.mrf.mxu0
        %v3397 = vadd.f32 0.0, %v3396
        %v3398 = vpop.f32.mrf.mxu0
        %3399 = vmatprep.mubr.f32.mxu0 0.0
        %3400 = vmatmul.mubr.f32.gmra.mxu0 %v3229
        %v3401 = vpop.f32.mrf.mxu0
        %v3402 = vadd.f32 0.0, %v3401
        %v3403 = vpop.f32.mrf.mxu0
        %3404 = vmatprep.mubr.f32.mxu0 0.0
        %3405 = vmatmul.mubr.f32.gmra.mxu0 %v3232
        %v3406 = vpop.f32.mrf.mxu0
        %v3407 = vadd.f32 0.0, %v3406
        %v3408 = vpop.f32.mrf.mxu0
        %3409 = vmatprep.mubr.f32.mxu0 0.0
        %3410 = vmatmul.mubr.f32.gmra.mxu0 %v3235
        %v3411 = vpop.f32.mrf.mxu0
        %v3412 = vadd.f32 0.0, %v3411
        %v3413 = vpop.f32.mrf.mxu0
        %3414 = vmatprep.mubr.f32.mxu0 0.0
        %3415 = vmatmul.mubr.f32.gmra.mxu0 %v3238
        %v3416 = vpop.f32.mrf.mxu0
        %v3417 = vadd.f32 0.0, %v3416
        %v3418 = vpop.f32.mrf.mxu0
        %3419 = vmatprep.mubr.f32.mxu0 0.0
        %3420 = vmatmul.mubr.f32.gmra.mxu0 %v3241
        %v3421 = vpop.f32.mrf.mxu0
        %v3422 = vadd.f32 0.0, %v3421
        %v3423 = vpop.f32.mrf.mxu0
        %3424 = vmatprep.mubr.f32.mxu0 0.0
        %3425 = vmatmul.mubr.f32.gmra.mxu0 %v3244
        %v3426 = vpop.f32.mrf.mxu0
        %v3427 = vadd.f32 0.0, %v3426
        %v3428 = vpop.f32.mrf.mxu0
        %3429 = vmatprep.mubr.f32.mxu0 0.0
        %3430 = vmatmul.mubr.f32.gmra.mxu0 %v3247
        %v3431 = vpop.f32.mrf.mxu0
        %v3432 = vadd.f32 0.0, %v3431
        %v3433 = vpop.f32.mrf.mxu0
        %3434 = vmatprep.mubr.f32.mxu0 0.0
        %3435 = vmatmul.mubr.f32.gmra.mxu0 %v3250
        %v3436 = vpop.f32.mrf.mxu0
        %v3437 = vadd.f32 0.0, %v3436
        %v3438 = vpop.f32.mrf.mxu0
        %3439 = vmatprep.mubr.f32.mxu0 0.0
        %3440 = vmatmul.mubr.f32.gmra.mxu0 %v3253
        %v3441 = vpop.f32.mrf.mxu0
        %v3442 = vadd.f32 0.0, %v3441
        %v3443 = vpop.f32.mrf.mxu0
        %3444 = vmatprep.mubr.f32.mxu0 0.0
        %3445 = vmatmul.mubr.f32.gmra.mxu0 %v3256
        %v3446 = vpop.f32.mrf.mxu0
        %v3447 = vadd.f32 0.0, %v3446
        %v3448 = vpop.f32.mrf.mxu0
        %3449 = vmatprep.mubr.f32.mxu0 0.0
        %3450 = vmatmul.mubr.f32.gmra.mxu0 %v3259
        %v3451 = vpop.f32.mrf.mxu0
        %v3452 = vadd.f32 0.0, %v3451
        %v3453 = vpop.f32.mrf.mxu0
        %3454 = vmatprep.mubr.f32.mxu0 0.0
        %3455 = vmatmul.mubr.f32.gmra.mxu0 %v3262
        %v3456 = vpop.f32.mrf.mxu0
        %v3457 = vadd.f32 0.0, %v3456
        %v3458 = vpop.f32.mrf.mxu0
        %3459 = vmatprep.mubr.f32.mxu0 0.0
        %3460 = vmatmul.mubr.f32.gmra.mxu0 %v3265
        %v3461 = vpop.f32.mrf.mxu0
        %v3462 = vadd.f32 0.0, %v3461
        %v3463 = vpop.f32.mrf.mxu0
        %3464 = vdwg.mxu0
        %v3465 = vadd.f32 %v3134, %v3337
        %v3466 = vadd.f32 %v3135, %v3342
        %v3467 = vadd.f32 %v3136, %v3347
        %v3468 = vadd.f32 %v3137, %v3352
        %v3469 = vadd.f32 %v3138, %v3357
        %v3470 = vadd.f32 %v3139, %v3362
        %v3471 = vadd.f32 %v3140, %v3367
        %v3472 = vadd.f32 %v3141, %v3372
        %v3473 = vadd.f32 %v3142, %v3377
        %v3474 = vadd.f32 %v3143, %v3382
        %v3475 = vadd.f32 %v3144, %v3387
        %v3476 = vadd.f32 %v3145, %v3392
        %v3477 = vadd.f32 %v3146, %v3397
        %v3478 = vadd.f32 %v3147, %v3402
        %v3479 = vadd.f32 %v3148, %v3407
        %v3480 = vadd.f32 %v3149, %v3412
        %v3481 = vadd.f32 %v3150, %v3417
        %v3482 = vadd.f32 %v3151, %v3422
        %v3483 = vadd.f32 %v3152, %v3427
        %v3484 = vadd.f32 %v3153, %v3432
        %v3485 = vadd.f32 %v3154, %v3437
        %v3486 = vadd.f32 %v3155, %v3442
        %v3487 = vadd.f32 %v3156, %v3447
        %v3488 = vadd.f32 %v3157, %v3452
        %v3489 = vadd.f32 %v3158, %v3457
        %v3490 = vadd.f32 %v3159, %v3462
        %v3491 = vld [vmem:[#allocation2 + $0x20] sm:$0xff]
        %v3492 = vld [vmem:[#allocation2 + $0x28] sm:$0xff]
        %v3493 = vld [vmem:[#allocation2 + $0x30] sm:$0xff]
        %v3494 = vld [vmem:[#allocation2 + $0x38] sm:$0xff]
        %v3495 = vld [vmem:[#allocation2 + $0x40] sm:$0xff]
        %v3496 = vld [vmem:[#allocation2 + $0x48] sm:$0xff]
        %v3497 = vld [vmem:[#allocation2 + $0x50] sm:$0xff]
        %v3498 = vld [vmem:[#allocation2 + $0x58] sm:$0xff]
        %v3499 = vld [vmem:[#allocation2 + $0x60] sm:$0xff]
        %v3500 = vld [vmem:[#allocation2 + $0x68] sm:$0xff]
        %v3501 = vld [vmem:[#allocation2 + $0x70] sm:$0xff]
        %v3502 = vld [vmem:[#allocation2 + $0x78] sm:$0xff]
        %v3503 = vld [vmem:[#allocation2 + $0x80] sm:$0xff]
        %v3504 = vld [vmem:[#allocation2 + $0x88] sm:$0xff]
        %v3505 = vld [vmem:[#allocation2 + $0x90] sm:$0xff]
        %v3506 = vld [vmem:[#allocation2 + $0x98] sm:$0xff]
        %v3507 = vld [vmem:[#allocation2 + $0xa0] sm:$0xff]
        %v3508 = vld [vmem:[#allocation2 + $0xa8] sm:$0xff]
        %v3509 = vld [vmem:[#allocation2 + $0xb0] sm:$0xff]
        %v3510 = vld [vmem:[#allocation2 + $0xb8] sm:$0xff]
        %v3511 = vld [vmem:[#allocation2 + $0xc0] sm:$0xff]
        %v3512 = vld [vmem:[#allocation2 + $0xc8] sm:$0xff]
        %v3513 = vld [vmem:[#allocation2 + $0xd0] sm:$0xff]
        %v3514 = vld [vmem:[#allocation2 + $0xd8] sm:$0xff]
        %v3515 = vld [vmem:[#allocation2 + $0xe0] sm:$0xff]
        %v3516 = vld [vmem:[#allocation2 + $0xe8] sm:$0xff]
        %s3517 = scalar_lea.vmem [#allocation8], 96
        %v3518 = vld [vmem:[%s3517] sm:$0xff]
        %v3519 = vld [vmem:[%s3517 + $0x8] sm:$0xf]
        %v3521 = vsel %vm1525, %v3491, 0
        %v3524 = vsel %vm1525, %v3492, 0
        %v3527 = vsel %vm1525, %v3493, 0
        %v3530 = vsel %vm1525, %v3494, 0
        %v3533 = vsel %vm1525, %v3495, 0
        %v3536 = vsel %vm1525, %v3496, 0
        %v3539 = vsel %vm1525, %v3497, 0
        %v3542 = vsel %vm1525, %v3498, 0
        %v3545 = vsel %vm1525, %v3499, 0
        %v3548 = vsel %vm1525, %v3500, 0
        %v3551 = vsel %vm1525, %v3501, 0
        %v3554 = vsel %vm1525, %v3502, 0
        %v3557 = vsel %vm1525, %v3503, 0
        %v3560 = vsel %vm1525, %v3504, 0
        %v3563 = vsel %vm1525, %v3505, 0
        %v3566 = vsel %vm1525, %v3506, 0
        %v3569 = vsel %vm1525, %v3507, 0
        %v3572 = vsel %vm1525, %v3508, 0
        %v3575 = vsel %vm1525, %v3509, 0
        %v3578 = vsel %vm1525, %v3510, 0
        %v3581 = vsel %vm1525, %v3511, 0
        %v3584 = vsel %vm1525, %v3512, 0
        %v3587 = vsel %vm1525, %v3513, 0
        %v3590 = vsel %vm1525, %v3514, 0
        %v3593 = vsel %vm1525, %v3515, 0
        %v3596 = vsel %vm1525, %v3516, 0
        %v3599 = vsel %vm1692, %v3519, 0
        %3601 = vmatprep.subr.mxu0 0.0
        %3602 = vmatpush1.msra.mxu0 0.0
        %3603 = vmatprep.subr.mxu0 0.0
        %3604 = vmatpush1.msra.mxu0 0.0
        %3605 = vmatprep.subr.mxu0 0.0
        %3606 = vmatpush1.msra.mxu0 0.0
        %3607 = vmatprep.subr.mxu0 0.0
        %3608 = vmatpush1.msra.mxu0 0.0
        %3609 = vmatprep.subr.mxu0 0.0
        %3610 = vmatpush1.msra.mxu0 0.0
        %3611 = vmatprep.subr.mxu0 0.0
        %3612 = vmatpush1.msra.mxu0 0.0
        %3613 = vmatprep.subr.mxu0 0.0
        %3614 = vmatpush1.msra.mxu0 0.0
        %3615 = vmatprep.subr.mxu0 0.0
        %3616 = vmatpush1.msra.mxu0 0.0
        %3617 = vmatprep.subr.mxu0 0.0
        %3618 = vmatpush1.msra.mxu0 0.0
        %3619 = vmatprep.subr.mxu0 0.0
        %3620 = vmatpush1.msra.mxu0 0.0
        %3621 = vmatprep.subr.mxu0 0.0
        %3622 = vmatpush1.msra.mxu0 0.0
        %3623 = vmatprep.subr.mxu0 0.0
        %3624 = vmatpush1.msra.mxu0 0.0
        %3625 = vmatprep.subr.mxu0 0.0
        %3626 = vmatpush1.msra.mxu0 0.0
        %3627 = vmatprep.subr.mxu0 0.0
        %3628 = vmatpush1.msra.mxu0 0.0
        %3629 = vmatprep.subr.mxu0 0.0
        %3630 = vmatpush1.msra.mxu0 %v3599
        %3631 = vmatprep.subr.mxu0 0.0
        %3632 = vmatpush1.msra.mxu0 %v3518
        %3633 = vmatprep.subr.mxu0 0.0
        %3634 = vmatpush2.msra.mxu0 0.0
        %3635 = vmatprep.subr.mxu0 0.0
        %3636 = vmatpush2.msra.mxu0 0.0
        %3637 = vmatprep.subr.mxu0 0.0
        %3638 = vmatpush2.msra.mxu0 0.0
        %3639 = vmatprep.subr.mxu0 0.0
        %3640 = vmatpush2.msra.mxu0 0.0
        %3641 = vmatprep.subr.mxu0 0.0
        %3642 = vmatpush2.msra.mxu0 0.0
        %3643 = vmatprep.subr.mxu0 0.0
        %3644 = vmatpush2.msra.mxu0 0.0
        %3645 = vmatprep.subr.mxu0 0.0
        %3646 = vmatpush2.msra.mxu0 0.0
        %3647 = vmatprep.subr.mxu0 0.0
        %3648 = vmatpush2.msra.mxu0 0.0
        %3649 = vmatprep.subr.mxu0 0.0
        %3650 = vmatpush2.msra.mxu0 0.0
        %3651 = vmatprep.subr.mxu0 0.0
        %3652 = vmatpush2.msra.mxu0 0.0
        %3653 = vmatprep.subr.mxu0 0.0
        %3654 = vmatpush2.msra.mxu0 0.0
        %3655 = vmatprep.subr.mxu0 0.0
        %3656 = vmatpush2.msra.mxu0 0.0
        %3657 = vmatprep.subr.mxu0 0.0
        %3658 = vmatpush2.msra.mxu0 0.0
        %3659 = vmatprep.subr.mxu0 0.0
        %3660 = vmatpush2.msra.mxu0 0.0
        %3661 = vmatprep.subr.mxu0 0.0
        %3662 = vmatpush2.msra.mxu0 0.0
        %3663 = vmatprep.subr.mxu0 0.0
        %3664 = vmatpush2.msra.mxu0 0.0
        %3665 = vmatprep.mubr.f32.mxu0 0.0
        %3666 = vmatmul.mubr.f32.gmra.mxu0 %v3521
        %v3667 = vpop.f32.mrf.mxu0
        %v3668 = vadd.f32 0.0, %v3667
        %v3669 = vpop.f32.mrf.mxu0
        %3670 = vmatprep.mubr.f32.mxu0 0.0
        %3671 = vmatmul.mubr.f32.gmra.mxu0 %v3524
        %v3672 = vpop.f32.mrf.mxu0
        %v3673 = vadd.f32 0.0, %v3672
        %v3674 = vpop.f32.mrf.mxu0
        %3675 = vmatprep.mubr.f32.mxu0 0.0
        %3676 = vmatmul.mubr.f32.gmra.mxu0 %v3527
        %v3677 = vpop.f32.mrf.mxu0
        %v3678 = vadd.f32 0.0, %v3677
        %v3679 = vpop.f32.mrf.mxu0
        %3680 = vmatprep.mubr.f32.mxu0 0.0
        %3681 = vmatmul.mubr.f32.gmra.mxu0 %v3530
        %v3682 = vpop.f32.mrf.mxu0
        %v3683 = vadd.f32 0.0, %v3682
        %v3684 = vpop.f32.mrf.mxu0
        %3685 = vmatprep.mubr.f32.mxu0 0.0
        %3686 = vmatmul.mubr.f32.gmra.mxu0 %v3533
        %v3687 = vpop.f32.mrf.mxu0
        %v3688 = vadd.f32 0.0, %v3687
        %v3689 = vpop.f32.mrf.mxu0
        %3690 = vmatprep.mubr.f32.mxu0 0.0
        %3691 = vmatmul.mubr.f32.gmra.mxu0 %v3536
        %v3692 = vpop.f32.mrf.mxu0
        %v3693 = vadd.f32 0.0, %v3692
        %v3694 = vpop.f32.mrf.mxu0
        %3695 = vmatprep.mubr.f32.mxu0 0.0
        %3696 = vmatmul.mubr.f32.gmra.mxu0 %v3539
        %v3697 = vpop.f32.mrf.mxu0
        %v3698 = vadd.f32 0.0, %v3697
        %v3699 = vpop.f32.mrf.mxu0
        %3700 = vmatprep.mubr.f32.mxu0 0.0
        %3701 = vmatmul.mubr.f32.gmra.mxu0 %v3542
        %v3702 = vpop.f32.mrf.mxu0
        %v3703 = vadd.f32 0.0, %v3702
        %v3704 = vpop.f32.mrf.mxu0
        %3705 = vmatprep.mubr.f32.mxu0 0.0
        %3706 = vmatmul.mubr.f32.gmra.mxu0 %v3545
        %v3707 = vpop.f32.mrf.mxu0
        %v3708 = vadd.f32 0.0, %v3707
        %v3709 = vpop.f32.mrf.mxu0
        %3710 = vmatprep.mubr.f32.mxu0 0.0
        %3711 = vmatmul.mubr.f32.gmra.mxu0 %v3548
        %v3712 = vpop.f32.mrf.mxu0
        %v3713 = vadd.f32 0.0, %v3712
        %v3714 = vpop.f32.mrf.mxu0
        %3715 = vmatprep.mubr.f32.mxu0 0.0
        %3716 = vmatmul.mubr.f32.gmra.mxu0 %v3551
        %v3717 = vpop.f32.mrf.mxu0
        %v3718 = vadd.f32 0.0, %v3717
        %v3719 = vpop.f32.mrf.mxu0
        %3720 = vmatprep.mubr.f32.mxu0 0.0
        %3721 = vmatmul.mubr.f32.gmra.mxu0 %v3554
        %v3722 = vpop.f32.mrf.mxu0
        %v3723 = vadd.f32 0.0, %v3722
        %v3724 = vpop.f32.mrf.mxu0
        %3725 = vmatprep.mubr.f32.mxu0 0.0
        %3726 = vmatmul.mubr.f32.gmra.mxu0 %v3557
        %v3727 = vpop.f32.mrf.mxu0
        %v3728 = vadd.f32 0.0, %v3727
        %v3729 = vpop.f32.mrf.mxu0
        %3730 = vmatprep.mubr.f32.mxu0 0.0
        %3731 = vmatmul.mubr.f32.gmra.mxu0 %v3560
        %v3732 = vpop.f32.mrf.mxu0
        %v3733 = vadd.f32 0.0, %v3732
        %v3734 = vpop.f32.mrf.mxu0
        %3735 = vmatprep.mubr.f32.mxu0 0.0
        %3736 = vmatmul.mubr.f32.gmra.mxu0 %v3563
        %v3737 = vpop.f32.mrf.mxu0
        %v3738 = vadd.f32 0.0, %v3737
        %v3739 = vpop.f32.mrf.mxu0
        %3740 = vmatprep.mubr.f32.mxu0 0.0
        %3741 = vmatmul.mubr.f32.gmra.mxu0 %v3566
        %v3742 = vpop.f32.mrf.mxu0
        %v3743 = vadd.f32 0.0, %v3742
        %v3744 = vpop.f32.mrf.mxu0
        %3745 = vmatprep.mubr.f32.mxu0 0.0
        %3746 = vmatmul.mubr.f32.gmra.mxu0 %v3569
        %v3747 = vpop.f32.mrf.mxu0
        %v3748 = vadd.f32 0.0, %v3747
        %v3749 = vpop.f32.mrf.mxu0
        %3750 = vmatprep.mubr.f32.mxu0 0.0
        %3751 = vmatmul.mubr.f32.gmra.mxu0 %v3572
        %v3752 = vpop.f32.mrf.mxu0
        %v3753 = vadd.f32 0.0, %v3752
        %v3754 = vpop.f32.mrf.mxu0
        %3755 = vmatprep.mubr.f32.mxu0 0.0
        %3756 = vmatmul.mubr.f32.gmra.mxu0 %v3575
        %v3757 = vpop.f32.mrf.mxu0
        %v3758 = vadd.f32 0.0, %v3757
        %v3759 = vpop.f32.mrf.mxu0
        %3760 = vmatprep.mubr.f32.mxu0 0.0
        %3761 = vmatmul.mubr.f32.gmra.mxu0 %v3578
        %v3762 = vpop.f32.mrf.mxu0
        %v3763 = vadd.f32 0.0, %v3762
        %v3764 = vpop.f32.mrf.mxu0
        %3765 = vmatprep.mubr.f32.mxu0 0.0
        %3766 = vmatmul.mubr.f32.gmra.mxu0 %v3581
        %v3767 = vpop.f32.mrf.mxu0
        %v3768 = vadd.f32 0.0, %v3767
        %v3769 = vpop.f32.mrf.mxu0
        %3770 = vmatprep.mubr.f32.mxu0 0.0
        %3771 = vmatmul.mubr.f32.gmra.mxu0 %v3584
        %v3772 = vpop.f32.mrf.mxu0
        %v3773 = vadd.f32 0.0, %v3772
        %v3774 = vpop.f32.mrf.mxu0
        %3775 = vmatprep.mubr.f32.mxu0 0.0
        %3776 = vmatmul.mubr.f32.gmra.mxu0 %v3587
        %v3777 = vpop.f32.mrf.mxu0
        %v3778 = vadd.f32 0.0, %v3777
        %v3779 = vpop.f32.mrf.mxu0
        %3780 = vmatprep.mubr.f32.mxu0 0.0
        %3781 = vmatmul.mubr.f32.gmra.mxu0 %v3590
        %v3782 = vpop.f32.mrf.mxu0
        %v3783 = vadd.f32 0.0, %v3782
        %v3784 = vpop.f32.mrf.mxu0
        %3785 = vmatprep.mubr.f32.mxu0 0.0
        %3786 = vmatmul.mubr.f32.gmra.mxu0 %v3593
        %v3787 = vpop.f32.mrf.mxu0
        %v3788 = vadd.f32 0.0, %v3787
        %v3789 = vpop.f32.mrf.mxu0
        %3790 = vmatprep.mubr.f32.mxu0 0.0
        %3791 = vmatmul.mubr.f32.gmra.mxu0 %v3596
        %v3792 = vpop.f32.mrf.mxu0
        %v3793 = vadd.f32 0.0, %v3792
        %v3794 = vpop.f32.mrf.mxu0
        %3795 = vdwg.mxu0
        %v3796 = vadd.f32 %v3465, %v3668
        %v3797 = vadd.f32 %v3466, %v3673
        %v3798 = vadd.f32 %v3467, %v3678
        %v3799 = vadd.f32 %v3468, %v3683
        %v3800 = vadd.f32 %v3469, %v3688
        %v3801 = vadd.f32 %v3470, %v3693
        %v3802 = vadd.f32 %v3471, %v3698
        %v3803 = vadd.f32 %v3472, %v3703
        %v3804 = vadd.f32 %v3473, %v3708
        %v3805 = vadd.f32 %v3474, %v3713
        %v3806 = vadd.f32 %v3475, %v3718
        %v3807 = vadd.f32 %v3476, %v3723
        %v3808 = vadd.f32 %v3477, %v3728
        %v3809 = vadd.f32 %v3478, %v3733
        %v3810 = vadd.f32 %v3479, %v3738
        %v3811 = vadd.f32 %v3480, %v3743
        %v3812 = vadd.f32 %v3481, %v3748
        %v3813 = vadd.f32 %v3482, %v3753
        %v3814 = vadd.f32 %v3483, %v3758
        %v3815 = vadd.f32 %v3484, %v3763
        %v3816 = vadd.f32 %v3485, %v3768
        %v3817 = vadd.f32 %v3486, %v3773
        %v3818 = vadd.f32 %v3487, %v3778
        %v3819 = vadd.f32 %v3488, %v3783
        %v3820 = vadd.f32 %v3489, %v3788
        %v3821 = vadd.f32 %v3490, %v3793
        %v3822 = vld [vmem:[#allocation2 + $0x21] sm:$0xff]
        %v3823 = vld [vmem:[#allocation2 + $0x29] sm:$0xff]
        %v3824 = vld [vmem:[#allocation2 + $0x31] sm:$0xff]
        %v3825 = vld [vmem:[#allocation2 + $0x39] sm:$0xff]
        %v3826 = vld [vmem:[#allocation2 + $0x41] sm:$0xff]
        %v3827 = vld [vmem:[#allocation2 + $0x49] sm:$0xff]
        %v3828 = vld [vmem:[#allocation2 + $0x51] sm:$0xff]
        %v3829 = vld [vmem:[#allocation2 + $0x59] sm:$0xff]
        %v3830 = vld [vmem:[#allocation2 + $0x61] sm:$0xff]
        %v3831 = vld [vmem:[#allocation2 + $0x69] sm:$0xff]
        %v3832 = vld [vmem:[#allocation2 + $0x71] sm:$0xff]
        %v3833 = vld [vmem:[#allocation2 + $0x79] sm:$0xff]
        %v3834 = vld [vmem:[#allocation2 + $0x81] sm:$0xff]
        %v3835 = vld [vmem:[#allocation2 + $0x89] sm:$0xff]
        %v3836 = vld [vmem:[#allocation2 + $0x91] sm:$0xff]
        %v3837 = vld [vmem:[#allocation2 + $0x99] sm:$0xff]
        %v3838 = vld [vmem:[#allocation2 + $0xa1] sm:$0xff]
        %v3839 = vld [vmem:[#allocation2 + $0xa9] sm:$0xff]
        %v3840 = vld [vmem:[#allocation2 + $0xb1] sm:$0xff]
        %v3841 = vld [vmem:[#allocation2 + $0xb9] sm:$0xff]
        %v3842 = vld [vmem:[#allocation2 + $0xc1] sm:$0xff]
        %v3843 = vld [vmem:[#allocation2 + $0xc9] sm:$0xff]
        %v3844 = vld [vmem:[#allocation2 + $0xd1] sm:$0xff]
        %v3845 = vld [vmem:[#allocation2 + $0xd9] sm:$0xff]
        %v3846 = vld [vmem:[#allocation2 + $0xe1] sm:$0xff]
        %v3847 = vld [vmem:[#allocation2 + $0xe9] sm:$0xff]
        %s3848 = scalar_lea.vmem [#allocation8], 112
        %v3849 = vld [vmem:[%s3848] sm:$0xff]
        %v3850 = vld [vmem:[%s3848 + $0x8] sm:$0xf]
        %v3852 = vsel %vm1525, %v3822, 0
        %v3855 = vsel %vm1525, %v3823, 0
        %v3858 = vsel %vm1525, %v3824, 0
        %v3861 = vsel %vm1525, %v3825, 0
        %v3864 = vsel %vm1525, %v3826, 0
        %v3867 = vsel %vm1525, %v3827, 0
        %v3870 = vsel %vm1525, %v3828, 0
        %v3873 = vsel %vm1525, %v3829, 0
        %v3876 = vsel %vm1525, %v3830, 0
        %v3879 = vsel %vm1525, %v3831, 0
        %v3882 = vsel %vm1525, %v3832, 0
        %v3885 = vsel %vm1525, %v3833, 0
        %v3888 = vsel %vm1525, %v3834, 0
        %v3891 = vsel %vm1525, %v3835, 0
        %v3894 = vsel %vm1525, %v3836, 0
        %v3897 = vsel %vm1525, %v3837, 0
        %v3900 = vsel %vm1525, %v3838, 0
        %v3903 = vsel %vm1525, %v3839, 0
        %v3906 = vsel %vm1525, %v3840, 0
        %v3909 = vsel %vm1525, %v3841, 0
        %v3912 = vsel %vm1525, %v3842, 0
        %v3915 = vsel %vm1525, %v3843, 0
        %v3918 = vsel %vm1525, %v3844, 0
        %v3921 = vsel %vm1525, %v3845, 0
        %v3924 = vsel %vm1525, %v3846, 0
        %v3927 = vsel %vm1525, %v3847, 0
        %v3930 = vsel %vm1692, %v3850, 0
        %3932 = vmatprep.subr.mxu0 0.0
        %3933 = vmatpush1.msra.mxu0 0.0
        %3934 = vmatprep.subr.mxu0 0.0
        %3935 = vmatpush1.msra.mxu0 0.0
        %3936 = vmatprep.subr.mxu0 0.0
        %3937 = vmatpush1.msra.mxu0 0.0
        %3938 = vmatprep.subr.mxu0 0.0
        %3939 = vmatpush1.msra.mxu0 0.0
        %3940 = vmatprep.subr.mxu0 0.0
        %3941 = vmatpush1.msra.mxu0 0.0
        %3942 = vmatprep.subr.mxu0 0.0
        %3943 = vmatpush1.msra.mxu0 0.0
        %3944 = vmatprep.subr.mxu0 0.0
        %3945 = vmatpush1.msra.mxu0 0.0
        %3946 = vmatprep.subr.mxu0 0.0
        %3947 = vmatpush1.msra.mxu0 0.0
        %3948 = vmatprep.subr.mxu0 0.0
        %3949 = vmatpush1.msra.mxu0 0.0
        %3950 = vmatprep.subr.mxu0 0.0
        %3951 = vmatpush1.msra.mxu0 0.0
        %3952 = vmatprep.subr.mxu0 0.0
        %3953 = vmatpush1.msra.mxu0 0.0
        %3954 = vmatprep.subr.mxu0 0.0
        %3955 = vmatpush1.msra.mxu0 0.0
        %3956 = vmatprep.subr.mxu0 0.0
        %3957 = vmatpush1.msra.mxu0 0.0
        %3958 = vmatprep.subr.mxu0 0.0
        %3959 = vmatpush1.msra.mxu0 0.0
        %3960 = vmatprep.subr.mxu0 0.0
        %3961 = vmatpush1.msra.mxu0 %v3930
        %3962 = vmatprep.subr.mxu0 0.0
        %3963 = vmatpush1.msra.mxu0 %v3849
        %3964 = vmatprep.subr.mxu0 0.0
        %3965 = vmatpush2.msra.mxu0 0.0
        %3966 = vmatprep.subr.mxu0 0.0
        %3967 = vmatpush2.msra.mxu0 0.0
        %3968 = vmatprep.subr.mxu0 0.0
        %3969 = vmatpush2.msra.mxu0 0.0
        %3970 = vmatprep.subr.mxu0 0.0
        %3971 = vmatpush2.msra.mxu0 0.0
        %3972 = vmatprep.subr.mxu0 0.0
        %3973 = vmatpush2.msra.mxu0 0.0
        %3974 = vmatprep.subr.mxu0 0.0
        %3975 = vmatpush2.msra.mxu0 0.0
        %3976 = vmatprep.subr.mxu0 0.0
        %3977 = vmatpush2.msra.mxu0 0.0
        %3978 = vmatprep.subr.mxu0 0.0
        %3979 = vmatpush2.msra.mxu0 0.0
        %3980 = vmatprep.subr.mxu0 0.0
        %3981 = vmatpush2.msra.mxu0 0.0
        %3982 = vmatprep.subr.mxu0 0.0
        %3983 = vmatpush2.msra.mxu0 0.0
        %3984 = vmatprep.subr.mxu0 0.0
        %3985 = vmatpush2.msra.mxu0 0.0
        %3986 = vmatprep.subr.mxu0 0.0
        %3987 = vmatpush2.msra.mxu0 0.0
        %3988 = vmatprep.subr.mxu0 0.0
        %3989 = vmatpush2.msra.mxu0 0.0
        %3990 = vmatprep.subr.mxu0 0.0
        %3991 = vmatpush2.msra.mxu0 0.0
        %3992 = vmatprep.subr.mxu0 0.0
        %3993 = vmatpush2.msra.mxu0 0.0
        %3994 = vmatprep.subr.mxu0 0.0
        %3995 = vmatpush2.msra.mxu0 0.0
        %3996 = vmatprep.mubr.f32.mxu0 0.0
        %3997 = vmatmul.mubr.f32.gmra.mxu0 %v3852
        %v3998 = vpop.f32.mrf.mxu0
        %v3999 = vadd.f32 0.0, %v3998
        %v4000 = vpop.f32.mrf.mxu0
        %4001 = vmatprep.mubr.f32.mxu0 0.0
        %4002 = vmatmul.mubr.f32.gmra.mxu0 %v3855
        %v4003 = vpop.f32.mrf.mxu0
        %v4004 = vadd.f32 0.0, %v4003
        %v4005 = vpop.f32.mrf.mxu0
        %4006 = vmatprep.mubr.f32.mxu0 0.0
        %4007 = vmatmul.mubr.f32.gmra.mxu0 %v3858
        %v4008 = vpop.f32.mrf.mxu0
        %v4009 = vadd.f32 0.0, %v4008
        %v4010 = vpop.f32.mrf.mxu0
        %4011 = vmatprep.mubr.f32.mxu0 0.0
        %4012 = vmatmul.mubr.f32.gmra.mxu0 %v3861
        %v4013 = vpop.f32.mrf.mxu0
        %v4014 = vadd.f32 0.0, %v4013
        %v4015 = vpop.f32.mrf.mxu0
        %4016 = vmatprep.mubr.f32.mxu0 0.0
        %4017 = vmatmul.mubr.f32.gmra.mxu0 %v3864
        %v4018 = vpop.f32.mrf.mxu0
        %v4019 = vadd.f32 0.0, %v4018
        %v4020 = vpop.f32.mrf.mxu0
        %4021 = vmatprep.mubr.f32.mxu0 0.0
        %4022 = vmatmul.mubr.f32.gmra.mxu0 %v3867
        %v4023 = vpop.f32.mrf.mxu0
        %v4024 = vadd.f32 0.0, %v4023
        %v4025 = vpop.f32.mrf.mxu0
        %4026 = vmatprep.mubr.f32.mxu0 0.0
        %4027 = vmatmul.mubr.f32.gmra.mxu0 %v3870
        %v4028 = vpop.f32.mrf.mxu0
        %v4029 = vadd.f32 0.0, %v4028
        %v4030 = vpop.f32.mrf.mxu0
        %4031 = vmatprep.mubr.f32.mxu0 0.0
        %4032 = vmatmul.mubr.f32.gmra.mxu0 %v3873
        %v4033 = vpop.f32.mrf.mxu0
        %v4034 = vadd.f32 0.0, %v4033
        %v4035 = vpop.f32.mrf.mxu0
        %4036 = vmatprep.mubr.f32.mxu0 0.0
        %4037 = vmatmul.mubr.f32.gmra.mxu0 %v3876
        %v4038 = vpop.f32.mrf.mxu0
        %v4039 = vadd.f32 0.0, %v4038
        %v4040 = vpop.f32.mrf.mxu0
        %4041 = vmatprep.mubr.f32.mxu0 0.0
        %4042 = vmatmul.mubr.f32.gmra.mxu0 %v3879
        %v4043 = vpop.f32.mrf.mxu0
        %v4044 = vadd.f32 0.0, %v4043
        %v4045 = vpop.f32.mrf.mxu0
        %4046 = vmatprep.mubr.f32.mxu0 0.0
        %4047 = vmatmul.mubr.f32.gmra.mxu0 %v3882
        %v4048 = vpop.f32.mrf.mxu0
        %v4049 = vadd.f32 0.0, %v4048
        %v4050 = vpop.f32.mrf.mxu0
        %4051 = vmatprep.mubr.f32.mxu0 0.0
        %4052 = vmatmul.mubr.f32.gmra.mxu0 %v3885
        %v4053 = vpop.f32.mrf.mxu0
        %v4054 = vadd.f32 0.0, %v4053
        %v4055 = vpop.f32.mrf.mxu0
        %4056 = vmatprep.mubr.f32.mxu0 0.0
        %4057 = vmatmul.mubr.f32.gmra.mxu0 %v3888
        %v4058 = vpop.f32.mrf.mxu0
        %v4059 = vadd.f32 0.0, %v4058
        %v4060 = vpop.f32.mrf.mxu0
        %4061 = vmatprep.mubr.f32.mxu0 0.0
        %4062 = vmatmul.mubr.f32.gmra.mxu0 %v3891
        %v4063 = vpop.f32.mrf.mxu0
        %v4064 = vadd.f32 0.0, %v4063
        %v4065 = vpop.f32.mrf.mxu0
        %4066 = vmatprep.mubr.f32.mxu0 0.0
        %4067 = vmatmul.mubr.f32.gmra.mxu0 %v3894
        %v4068 = vpop.f32.mrf.mxu0
        %v4069 = vadd.f32 0.0, %v4068
        %v4070 = vpop.f32.mrf.mxu0
        %4071 = vmatprep.mubr.f32.mxu0 0.0
        %4072 = vmatmul.mubr.f32.gmra.mxu0 %v3897
        %v4073 = vpop.f32.mrf.mxu0
        %v4074 = vadd.f32 0.0, %v4073
        %v4075 = vpop.f32.mrf.mxu0
        %4076 = vmatprep.mubr.f32.mxu0 0.0
        %4077 = vmatmul.mubr.f32.gmra.mxu0 %v3900
        %v4078 = vpop.f32.mrf.mxu0
        %v4079 = vadd.f32 0.0, %v4078
        %v4080 = vpop.f32.mrf.mxu0
        %4081 = vmatprep.mubr.f32.mxu0 0.0
        %4082 = vmatmul.mubr.f32.gmra.mxu0 %v3903
        %v4083 = vpop.f32.mrf.mxu0
        %v4084 = vadd.f32 0.0, %v4083
        %v4085 = vpop.f32.mrf.mxu0
        %4086 = vmatprep.mubr.f32.mxu0 0.0
        %4087 = vmatmul.mubr.f32.gmra.mxu0 %v3906
        %v4088 = vpop.f32.mrf.mxu0
        %v4089 = vadd.f32 0.0, %v4088
        %v4090 = vpop.f32.mrf.mxu0
        %4091 = vmatprep.mubr.f32.mxu0 0.0
        %4092 = vmatmul.mubr.f32.gmra.mxu0 %v3909
        %v4093 = vpop.f32.mrf.mxu0
        %v4094 = vadd.f32 0.0, %v4093
        %v4095 = vpop.f32.mrf.mxu0
        %4096 = vmatprep.mubr.f32.mxu0 0.0
        %4097 = vmatmul.mubr.f32.gmra.mxu0 %v3912
        %v4098 = vpop.f32.mrf.mxu0
        %v4099 = vadd.f32 0.0, %v4098
        %v4100 = vpop.f32.mrf.mxu0
        %4101 = vmatprep.mubr.f32.mxu0 0.0
        %4102 = vmatmul.mubr.f32.gmra.mxu0 %v3915
        %v4103 = vpop.f32.mrf.mxu0
        %v4104 = vadd.f32 0.0, %v4103
        %v4105 = vpop.f32.mrf.mxu0
        %4106 = vmatprep.mubr.f32.mxu0 0.0
        %4107 = vmatmul.mubr.f32.gmra.mxu0 %v3918
        %v4108 = vpop.f32.mrf.mxu0
        %v4109 = vadd.f32 0.0, %v4108
        %v4110 = vpop.f32.mrf.mxu0
        %4111 = vmatprep.mubr.f32.mxu0 0.0
        %4112 = vmatmul.mubr.f32.gmra.mxu0 %v3921
        %v4113 = vpop.f32.mrf.mxu0
        %v4114 = vadd.f32 0.0, %v4113
        %v4115 = vpop.f32.mrf.mxu0
        %4116 = vmatprep.mubr.f32.mxu0 0.0
        %4117 = vmatmul.mubr.f32.gmra.mxu0 %v3924
        %v4118 = vpop.f32.mrf.mxu0
        %v4119 = vadd.f32 0.0, %v4118
        %v4120 = vpop.f32.mrf.mxu0
        %4121 = vmatprep.mubr.f32.mxu0 0.0
        %4122 = vmatmul.mubr.f32.gmra.mxu0 %v3927
        %v4123 = vpop.f32.mrf.mxu0
        %v4124 = vadd.f32 0.0, %v4123
        %v4125 = vpop.f32.mrf.mxu0
        %4126 = vdwg.mxu0
        %v4127 = vadd.f32 %v3796, %v3999
        %v4128 = vadd.f32 %v3797, %v4004
        %v4129 = vadd.f32 %v3798, %v4009
        %v4130 = vadd.f32 %v3799, %v4014
        %v4131 = vadd.f32 %v3800, %v4019
        %v4132 = vadd.f32 %v3801, %v4024
        %v4133 = vadd.f32 %v3802, %v4029
        %v4134 = vadd.f32 %v3803, %v4034
        %v4135 = vadd.f32 %v3804, %v4039
        %v4136 = vadd.f32 %v3805, %v4044
        %v4137 = vadd.f32 %v3806, %v4049
        %v4138 = vadd.f32 %v3807, %v4054
        %v4139 = vadd.f32 %v3808, %v4059
        %v4140 = vadd.f32 %v3809, %v4064
        %v4141 = vadd.f32 %v3810, %v4069
        %v4142 = vadd.f32 %v3811, %v4074
        %v4143 = vadd.f32 %v3812, %v4079
        %v4144 = vadd.f32 %v3813, %v4084
        %v4145 = vadd.f32 %v3814, %v4089
        %v4146 = vadd.f32 %v3815, %v4094
        %v4147 = vadd.f32 %v3816, %v4099
        %v4148 = vadd.f32 %v3817, %v4104
        %v4149 = vadd.f32 %v3818, %v4109
        %v4150 = vadd.f32 %v3819, %v4114
        %v4151 = vadd.f32 %v3820, %v4119
        %v4152 = vadd.f32 %v3821, %v4124
        %v4153 = vld [vmem:[#allocation2 + $0x22] sm:$0xff]
        %v4154 = vld [vmem:[#allocation2 + $0x2a] sm:$0xff]
        %v4155 = vld [vmem:[#allocation2 + $0x32] sm:$0xff]
        %v4156 = vld [vmem:[#allocation2 + $0x3a] sm:$0xff]
        %v4157 = vld [vmem:[#allocation2 + $0x42] sm:$0xff]
        %v4158 = vld [vmem:[#allocation2 + $0x4a] sm:$0xff]
        %v4159 = vld [vmem:[#allocation2 + $0x52] sm:$0xff]
        %v4160 = vld [vmem:[#allocation2 + $0x5a] sm:$0xff]
        %v4161 = vld [vmem:[#allocation2 + $0x62] sm:$0xff]
        %v4162 = vld [vmem:[#allocation2 + $0x6a] sm:$0xff]
        %v4163 = vld [vmem:[#allocation2 + $0x72] sm:$0xff]
        %v4164 = vld [vmem:[#allocation2 + $0x7a] sm:$0xff]
        %v4165 = vld [vmem:[#allocation2 + $0x82] sm:$0xff]
        %v4166 = vld [vmem:[#allocation2 + $0x8a] sm:$0xff]
        %v4167 = vld [vmem:[#allocation2 + $0x92] sm:$0xff]
        %v4168 = vld [vmem:[#allocation2 + $0x9a] sm:$0xff]
        %v4169 = vld [vmem:[#allocation2 + $0xa2] sm:$0xff]
        %v4170 = vld [vmem:[#allocation2 + $0xaa] sm:$0xff]
        %v4171 = vld [vmem:[#allocation2 + $0xb2] sm:$0xff]
        %v4172 = vld [vmem:[#allocation2 + $0xba] sm:$0xff]
        %v4173 = vld [vmem:[#allocation2 + $0xc2] sm:$0xff]
        %v4174 = vld [vmem:[#allocation2 + $0xca] sm:$0xff]
        %v4175 = vld [vmem:[#allocation2 + $0xd2] sm:$0xff]
        %v4176 = vld [vmem:[#allocation2 + $0xda] sm:$0xff]
        %v4177 = vld [vmem:[#allocation2 + $0xe2] sm:$0xff]
        %v4178 = vld [vmem:[#allocation2 + $0xea] sm:$0xff]
        %s4179 = scalar_lea.vmem [#allocation8], 128
        %v4180 = vld [vmem:[%s4179] sm:$0xff]
        %v4181 = vld [vmem:[%s4179 + $0x8] sm:$0xf]
        %v4183 = vsel %vm1525, %v4153, 0
        %v4186 = vsel %vm1525, %v4154, 0
        %v4189 = vsel %vm1525, %v4155, 0
        %v4192 = vsel %vm1525, %v4156, 0
        %v4195 = vsel %vm1525, %v4157, 0
        %v4198 = vsel %vm1525, %v4158, 0
        %v4201 = vsel %vm1525, %v4159, 0
        %v4204 = vsel %vm1525, %v4160, 0
        %v4207 = vsel %vm1525, %v4161, 0
        %v4210 = vsel %vm1525, %v4162, 0
        %v4213 = vsel %vm1525, %v4163, 0
        %v4216 = vsel %vm1525, %v4164, 0
        %v4219 = vsel %vm1525, %v4165, 0
        %v4222 = vsel %vm1525, %v4166, 0
        %v4225 = vsel %vm1525, %v4167, 0
        %v4228 = vsel %vm1525, %v4168, 0
        %v4231 = vsel %vm1525, %v4169, 0
        %v4234 = vsel %vm1525, %v4170, 0
        %v4237 = vsel %vm1525, %v4171, 0
        %v4240 = vsel %vm1525, %v4172, 0
        %v4243 = vsel %vm1525, %v4173, 0
        %v4246 = vsel %vm1525, %v4174, 0
        %v4249 = vsel %vm1525, %v4175, 0
        %v4252 = vsel %vm1525, %v4176, 0
        %v4255 = vsel %vm1525, %v4177, 0
        %v4258 = vsel %vm1525, %v4178, 0
        %v4261 = vsel %vm1692, %v4181, 0
        %4263 = vmatprep.subr.mxu0 0.0
        %4264 = vmatpush1.msra.mxu0 0.0
        %4265 = vmatprep.subr.mxu0 0.0
        %4266 = vmatpush1.msra.mxu0 0.0
        %4267 = vmatprep.subr.mxu0 0.0
        %4268 = vmatpush1.msra.mxu0 0.0
        %4269 = vmatprep.subr.mxu0 0.0
        %4270 = vmatpush1.msra.mxu0 0.0
        %4271 = vmatprep.subr.mxu0 0.0
        %4272 = vmatpush1.msra.mxu0 0.0
        %4273 = vmatprep.subr.mxu0 0.0
        %4274 = vmatpush1.msra.mxu0 0.0
        %4275 = vmatprep.subr.mxu0 0.0
        %4276 = vmatpush1.msra.mxu0 0.0
        %4277 = vmatprep.subr.mxu0 0.0
        %4278 = vmatpush1.msra.mxu0 0.0
        %4279 = vmatprep.subr.mxu0 0.0
        %4280 = vmatpush1.msra.mxu0 0.0
        %4281 = vmatprep.subr.mxu0 0.0
        %4282 = vmatpush1.msra.mxu0 0.0
        %4283 = vmatprep.subr.mxu0 0.0
        %4284 = vmatpush1.msra.mxu0 0.0
        %4285 = vmatprep.subr.mxu0 0.0
        %4286 = vmatpush1.msra.mxu0 0.0
        %4287 = vmatprep.subr.mxu0 0.0
        %4288 = vmatpush1.msra.mxu0 0.0
        %4289 = vmatprep.subr.mxu0 0.0
        %4290 = vmatpush1.msra.mxu0 0.0
        %4291 = vmatprep.subr.mxu0 0.0
        %4292 = vmatpush1.msra.mxu0 %v4261
        %4293 = vmatprep.subr.mxu0 0.0
        %4294 = vmatpush1.msra.mxu0 %v4180
        %4295 = vmatprep.subr.mxu0 0.0
        %4296 = vmatpush2.msra.mxu0 0.0
        %4297 = vmatprep.subr.mxu0 0.0
        %4298 = vmatpush2.msra.mxu0 0.0
        %4299 = vmatprep.subr.mxu0 0.0
        %4300 = vmatpush2.msra.mxu0 0.0
        %4301 = vmatprep.subr.mxu0 0.0
        %4302 = vmatpush2.msra.mxu0 0.0
        %4303 = vmatprep.subr.mxu0 0.0
        %4304 = vmatpush2.msra.mxu0 0.0
        %4305 = vmatprep.subr.mxu0 0.0
        %4306 = vmatpush2.msra.mxu0 0.0
        %4307 = vmatprep.subr.mxu0 0.0
        %4308 = vmatpush2.msra.mxu0 0.0
        %4309 = vmatprep.subr.mxu0 0.0
        %4310 = vmatpush2.msra.mxu0 0.0
        %4311 = vmatprep.subr.mxu0 0.0
        %4312 = vmatpush2.msra.mxu0 0.0
        %4313 = vmatprep.subr.mxu0 0.0
        %4314 = vmatpush2.msra.mxu0 0.0
        %4315 = vmatprep.subr.mxu0 0.0
        %4316 = vmatpush2.msra.mxu0 0.0
        %4317 = vmatprep.subr.mxu0 0.0
        %4318 = vmatpush2.msra.mxu0 0.0
        %4319 = vmatprep.subr.mxu0 0.0
        %4320 = vmatpush2.msra.mxu0 0.0
        %4321 = vmatprep.subr.mxu0 0.0
        %4322 = vmatpush2.msra.mxu0 0.0
        %4323 = vmatprep.subr.mxu0 0.0
        %4324 = vmatpush2.msra.mxu0 0.0
        %4325 = vmatprep.subr.mxu0 0.0
        %4326 = vmatpush2.msra.mxu0 0.0
        %4327 = vmatprep.mubr.f32.mxu0 0.0
        %4328 = vmatmul.mubr.f32.gmra.mxu0 %v4183
        %v4329 = vpop.f32.mrf.mxu0
        %v4330 = vadd.f32 0.0, %v4329
        %v4331 = vpop.f32.mrf.mxu0
        %4332 = vmatprep.mubr.f32.mxu0 0.0
        %4333 = vmatmul.mubr.f32.gmra.mxu0 %v4186
        %v4334 = vpop.f32.mrf.mxu0
        %v4335 = vadd.f32 0.0, %v4334
        %v4336 = vpop.f32.mrf.mxu0
        %4337 = vmatprep.mubr.f32.mxu0 0.0
        %4338 = vmatmul.mubr.f32.gmra.mxu0 %v4189
        %v4339 = vpop.f32.mrf.mxu0
        %v4340 = vadd.f32 0.0, %v4339
        %v4341 = vpop.f32.mrf.mxu0
        %4342 = vmatprep.mubr.f32.mxu0 0.0
        %4343 = vmatmul.mubr.f32.gmra.mxu0 %v4192
        %v4344 = vpop.f32.mrf.mxu0
        %v4345 = vadd.f32 0.0, %v4344
        %v4346 = vpop.f32.mrf.mxu0
        %4347 = vmatprep.mubr.f32.mxu0 0.0
        %4348 = vmatmul.mubr.f32.gmra.mxu0 %v4195
        %v4349 = vpop.f32.mrf.mxu0
        %v4350 = vadd.f32 0.0, %v4349
        %v4351 = vpop.f32.mrf.mxu0
        %4352 = vmatprep.mubr.f32.mxu0 0.0
        %4353 = vmatmul.mubr.f32.gmra.mxu0 %v4198
        %v4354 = vpop.f32.mrf.mxu0
        %v4355 = vadd.f32 0.0, %v4354
        %v4356 = vpop.f32.mrf.mxu0
        %4357 = vmatprep.mubr.f32.mxu0 0.0
        %4358 = vmatmul.mubr.f32.gmra.mxu0 %v4201
        %v4359 = vpop.f32.mrf.mxu0
        %v4360 = vadd.f32 0.0, %v4359
        %v4361 = vpop.f32.mrf.mxu0
        %4362 = vmatprep.mubr.f32.mxu0 0.0
        %4363 = vmatmul.mubr.f32.gmra.mxu0 %v4204
        %v4364 = vpop.f32.mrf.mxu0
        %v4365 = vadd.f32 0.0, %v4364
        %v4366 = vpop.f32.mrf.mxu0
        %4367 = vmatprep.mubr.f32.mxu0 0.0
        %4368 = vmatmul.mubr.f32.gmra.mxu0 %v4207
        %v4369 = vpop.f32.mrf.mxu0
        %v4370 = vadd.f32 0.0, %v4369
        %v4371 = vpop.f32.mrf.mxu0
        %4372 = vmatprep.mubr.f32.mxu0 0.0
        %4373 = vmatmul.mubr.f32.gmra.mxu0 %v4210
        %v4374 = vpop.f32.mrf.mxu0
        %v4375 = vadd.f32 0.0, %v4374
        %v4376 = vpop.f32.mrf.mxu0
        %4377 = vmatprep.mubr.f32.mxu0 0.0
        %4378 = vmatmul.mubr.f32.gmra.mxu0 %v4213
        %v4379 = vpop.f32.mrf.mxu0
        %v4380 = vadd.f32 0.0, %v4379
        %v4381 = vpop.f32.mrf.mxu0
        %4382 = vmatprep.mubr.f32.mxu0 0.0
        %4383 = vmatmul.mubr.f32.gmra.mxu0 %v4216
        %v4384 = vpop.f32.mrf.mxu0
        %v4385 = vadd.f32 0.0, %v4384
        %v4386 = vpop.f32.mrf.mxu0
        %4387 = vmatprep.mubr.f32.mxu0 0.0
        %4388 = vmatmul.mubr.f32.gmra.mxu0 %v4219
        %v4389 = vpop.f32.mrf.mxu0
        %v4390 = vadd.f32 0.0, %v4389
        %v4391 = vpop.f32.mrf.mxu0
        %4392 = vmatprep.mubr.f32.mxu0 0.0
        %4393 = vmatmul.mubr.f32.gmra.mxu0 %v4222
        %v4394 = vpop.f32.mrf.mxu0
        %v4395 = vadd.f32 0.0, %v4394
        %v4396 = vpop.f32.mrf.mxu0
        %4397 = vmatprep.mubr.f32.mxu0 0.0
        %4398 = vmatmul.mubr.f32.gmra.mxu0 %v4225
        %v4399 = vpop.f32.mrf.mxu0
        %v4400 = vadd.f32 0.0, %v4399
        %v4401 = vpop.f32.mrf.mxu0
        %4402 = vmatprep.mubr.f32.mxu0 0.0
        %4403 = vmatmul.mubr.f32.gmra.mxu0 %v4228
        %v4404 = vpop.f32.mrf.mxu0
        %v4405 = vadd.f32 0.0, %v4404
        %v4406 = vpop.f32.mrf.mxu0
        %4407 = vmatprep.mubr.f32.mxu0 0.0
        %4408 = vmatmul.mubr.f32.gmra.mxu0 %v4231
        %v4409 = vpop.f32.mrf.mxu0
        %v4410 = vadd.f32 0.0, %v4409
        %v4411 = vpop.f32.mrf.mxu0
        %4412 = vmatprep.mubr.f32.mxu0 0.0
        %4413 = vmatmul.mubr.f32.gmra.mxu0 %v4234
        %v4414 = vpop.f32.mrf.mxu0
        %v4415 = vadd.f32 0.0, %v4414
        %v4416 = vpop.f32.mrf.mxu0
        %4417 = vmatprep.mubr.f32.mxu0 0.0
        %4418 = vmatmul.mubr.f32.gmra.mxu0 %v4237
        %v4419 = vpop.f32.mrf.mxu0
        %v4420 = vadd.f32 0.0, %v4419
        %v4421 = vpop.f32.mrf.mxu0
        %4422 = vmatprep.mubr.f32.mxu0 0.0
        %4423 = vmatmul.mubr.f32.gmra.mxu0 %v4240
        %v4424 = vpop.f32.mrf.mxu0
        %v4425 = vadd.f32 0.0, %v4424
        %v4426 = vpop.f32.mrf.mxu0
        %4427 = vmatprep.mubr.f32.mxu0 0.0
        %4428 = vmatmul.mubr.f32.gmra.mxu0 %v4243
        %v4429 = vpop.f32.mrf.mxu0
        %v4430 = vadd.f32 0.0, %v4429
        %v4431 = vpop.f32.mrf.mxu0
        %4432 = vmatprep.mubr.f32.mxu0 0.0
        %4433 = vmatmul.mubr.f32.gmra.mxu0 %v4246
        %v4434 = vpop.f32.mrf.mxu0
        %v4435 = vadd.f32 0.0, %v4434
        %v4436 = vpop.f32.mrf.mxu0
        %4437 = vmatprep.mubr.f32.mxu0 0.0
        %4438 = vmatmul.mubr.f32.gmra.mxu0 %v4249
        %v4439 = vpop.f32.mrf.mxu0
        %v4440 = vadd.f32 0.0, %v4439
        %v4441 = vpop.f32.mrf.mxu0
        %4442 = vmatprep.mubr.f32.mxu0 0.0
        %4443 = vmatmul.mubr.f32.gmra.mxu0 %v4252
        %v4444 = vpop.f32.mrf.mxu0
        %v4445 = vadd.f32 0.0, %v4444
        %v4446 = vpop.f32.mrf.mxu0
        %4447 = vmatprep.mubr.f32.mxu0 0.0
        %4448 = vmatmul.mubr.f32.gmra.mxu0 %v4255
        %v4449 = vpop.f32.mrf.mxu0
        %v4450 = vadd.f32 0.0, %v4449
        %v4451 = vpop.f32.mrf.mxu0
        %4452 = vmatprep.mubr.f32.mxu0 0.0
        %4453 = vmatmul.mubr.f32.gmra.mxu0 %v4258
        %v4454 = vpop.f32.mrf.mxu0
        %v4455 = vadd.f32 0.0, %v4454
        %v4456 = vpop.f32.mrf.mxu0
        %4457 = vdwg.mxu0
        %v4458 = vadd.f32 %v4127, %v4330
        %v4459 = vadd.f32 %v4128, %v4335
        %v4460 = vadd.f32 %v4129, %v4340
        %v4461 = vadd.f32 %v4130, %v4345
        %v4462 = vadd.f32 %v4131, %v4350
        %v4463 = vadd.f32 %v4132, %v4355
        %v4464 = vadd.f32 %v4133, %v4360
        %v4465 = vadd.f32 %v4134, %v4365
        %v4466 = vadd.f32 %v4135, %v4370
        %v4467 = vadd.f32 %v4136, %v4375
        %v4468 = vadd.f32 %v4137, %v4380
        %v4469 = vadd.f32 %v4138, %v4385
        %v4470 = vadd.f32 %v4139, %v4390
        %v4471 = vadd.f32 %v4140, %v4395
        %v4472 = vadd.f32 %v4141, %v4400
        %v4473 = vadd.f32 %v4142, %v4405
        %v4474 = vadd.f32 %v4143, %v4410
        %v4475 = vadd.f32 %v4144, %v4415
        %v4476 = vadd.f32 %v4145, %v4420
        %v4477 = vadd.f32 %v4146, %v4425
        %v4478 = vadd.f32 %v4147, %v4430
        %v4479 = vadd.f32 %v4148, %v4435
        %v4480 = vadd.f32 %v4149, %v4440
        %v4481 = vadd.f32 %v4150, %v4445
        %v4482 = vadd.f32 %v4151, %v4450
        %v4483 = vadd.f32 %v4152, %v4455
        %v4484 = vld [vmem:[#allocation9] sm:$0x1]
        %v4486 = vlaneseq
        %v4487 = vshrl.u32 %v4486, 7
        %v4488 = vsub.s32 0, %v4487
        %v4489 = vrot.slane %v4484, %v4488
        %v4491 = vadd.f32 %v4458, %v4489
        %v4492 = vadd.f32 %v4459, %v4489
        %v4493 = vadd.f32 %v4460, %v4489
        %v4494 = vadd.f32 %v4461, %v4489
        %v4495 = vadd.f32 %v4462, %v4489
        %v4496 = vadd.f32 %v4463, %v4489
        %v4497 = vadd.f32 %v4464, %v4489
        %v4498 = vadd.f32 %v4465, %v4489
        %v4499 = vadd.f32 %v4466, %v4489
        %v4500 = vadd.f32 %v4467, %v4489
        %v4501 = vadd.f32 %v4468, %v4489
        %v4502 = vadd.f32 %v4469, %v4489
        %v4503 = vadd.f32 %v4470, %v4489
        %v4504 = vadd.f32 %v4471, %v4489
        %v4505 = vadd.f32 %v4472, %v4489
        %v4506 = vadd.f32 %v4473, %v4489
        %v4507 = vadd.f32 %v4474, %v4489
        %v4508 = vadd.f32 %v4475, %v4489
        %v4509 = vadd.f32 %v4476, %v4489
        %v4510 = vadd.f32 %v4477, %v4489
        %v4511 = vadd.f32 %v4478, %v4489
        %v4512 = vadd.f32 %v4479, %v4489
        %v4513 = vadd.f32 %v4480, %v4489
        %v4514 = vadd.f32 %v4481, %v4489
        %v4515 = vadd.f32 %v4482, %v4489
        %v4516 = vadd.f32 %v4483, %v4489
        %v4517 = vmax.f32 %v4491, 0.0
        %v4518 = vmax.f32 %v4492, 0.0
        %v4519 = vmax.f32 %v4493, 0.0
        %v4520 = vmax.f32 %v4494, 0.0
        %v4521 = vmax.f32 %v4495, 0.0
        %v4522 = vmax.f32 %v4496, 0.0
        %v4523 = vmax.f32 %v4497, 0.0
        %v4524 = vmax.f32 %v4498, 0.0
        %v4525 = vmax.f32 %v4499, 0.0
        %v4526 = vmax.f32 %v4500, 0.0
        %v4527 = vmax.f32 %v4501, 0.0
        %v4528 = vmax.f32 %v4502, 0.0
        %v4529 = vmax.f32 %v4503, 0.0
        %v4530 = vmax.f32 %v4504, 0.0
        %v4531 = vmax.f32 %v4505, 0.0
        %v4532 = vmax.f32 %v4506, 0.0
        %v4533 = vmax.f32 %v4507, 0.0
        %v4534 = vmax.f32 %v4508, 0.0
        %v4535 = vmax.f32 %v4509, 0.0
        %v4536 = vmax.f32 %v4510, 0.0
        %v4537 = vmax.f32 %v4511, 0.0
        %v4538 = vmax.f32 %v4512, 0.0
        %v4539 = vmax.f32 %v4513, 0.0
        %v4540 = vmax.f32 %v4514, 0.0
        %v4541 = vmax.f32 %v4515, 0.0
        %v4542 = vmax.f32 %v4516, 0.0
        %v4543 = vld [vmem:[#allocation11] sm:$0xff]
        %v4544 = vld [vmem:[#allocation11 + $0x8] sm:$0xff]
        %v4545 = vld [vmem:[#allocation11 + $0x10] sm:$0xff]
        %v4546 = vld [vmem:[#allocation11 + $0x18] sm:$0xff]
        %v4547 = vld [vmem:[#allocation11 + $0x20] sm:$0xff]
        %v4548 = vld [vmem:[#allocation11 + $0x28] sm:$0xff]
        %v4549 = vld [vmem:[#allocation11 + $0x30] sm:$0xff]
        %v4550 = vld [vmem:[#allocation11 + $0x38] sm:$0xff]
        %v4551 = vld [vmem:[#allocation11 + $0x40] sm:$0xff]
        %v4552 = vld [vmem:[#allocation11 + $0x48] sm:$0xff]
        %v4553 = vld [vmem:[#allocation11 + $0x50] sm:$0xff]
        %v4554 = vld [vmem:[#allocation11 + $0x58] sm:$0xff]
        %v4555 = vld [vmem:[#allocation11 + $0x60] sm:$0xff]
        %v4556 = vld [vmem:[#allocation11 + $0x68] sm:$0xff]
        %v4557 = vld [vmem:[#allocation11 + $0x70] sm:$0xff]
        %v4558 = vld [vmem:[#allocation11 + $0x78] sm:$0xff]
        %v4559 = vld [vmem:[#allocation11 + $0x80] sm:$0xff]
        %v4560 = vld [vmem:[#allocation11 + $0x88] sm:$0xff]
        %v4561 = vld [vmem:[#allocation11 + $0x90] sm:$0xff]
        %v4562 = vld [vmem:[#allocation11 + $0x98] sm:$0xff]
        %v4563 = vld [vmem:[#allocation11 + $0xa0] sm:$0xff]
        %v4564 = vld [vmem:[#allocation11 + $0xa8] sm:$0xff]
        %v4565 = vld [vmem:[#allocation11 + $0xb0] sm:$0xff]
        %v4566 = vld [vmem:[#allocation11 + $0xb8] sm:$0xff]
        %v4567 = vld [vmem:[#allocation11 + $0xc0] sm:$0xff]
        %v4568 = vld [vmem:[#allocation11 + $0xc8] sm:$0xff]
        %v4569 = vld [vmem:[#allocation11 + $0xd0] sm:$0xff]
        %v4570 = vld [vmem:[#allocation11 + $0xd8] sm:$0xff]
        %v4571 = vld [vmem:[#allocation11 + $0xe0] sm:$0xff]
        %v4572 = vld [vmem:[#allocation11 + $0xe8] sm:$0xff]
        %v4573 = vld [vmem:[#allocation11 + $0xf0] sm:$0xff]
        %v4574 = vld [vmem:[#allocation11 + $0xf8] sm:$0xff]
        %v4575 = vld [vmem:[#allocation11 + $0x100] sm:$0xff]
        %v4576 = vld [vmem:[#allocation11 + $0x108] sm:$0xff]
        %v4577 = vld [vmem:[#allocation11 + $0x110] sm:$0xff]
        %v4578 = vld [vmem:[#allocation11 + $0x118] sm:$0xff]
        %v4579 = vld [vmem:[#allocation11 + $0x120] sm:$0xff]
        %v4580 = vld [vmem:[#allocation11 + $0x128] sm:$0xff]
        %v4581 = vld [vmem:[#allocation11 + $0x130] sm:$0xff]
        %v4582 = vld [vmem:[#allocation11 + $0x138] sm:$0xff]
        %v4583 = vld [vmem:[#allocation11 + $0x140] sm:$0xff]
        %v4584 = vld [vmem:[#allocation11 + $0x148] sm:$0xff]
        %v4585 = vld [vmem:[#allocation11 + $0x150] sm:$0xff]
        %v4586 = vld [vmem:[#allocation11 + $0x158] sm:$0xff]
        %v4587 = vld [vmem:[#allocation11 + $0x160] sm:$0xff]
        %v4588 = vld [vmem:[#allocation11 + $0x168] sm:$0xff]
        %v4589 = vld [vmem:[#allocation11 + $0x170] sm:$0xff]
        %v4590 = vld [vmem:[#allocation11 + $0x178] sm:$0xff]
        %v4591 = vld [vmem:[#allocation11 + $0x180] sm:$0xff]
        %v4592 = vld [vmem:[#allocation11 + $0x188] sm:$0xff]
        %v4593 = vld [vmem:[#allocation11 + $0x190] sm:$0xff]
        %v4594 = vld [vmem:[#allocation11 + $0x198] sm:$0xff]
        %v4595 = vld [vmem:[#allocation11 + $0x1a0] sm:$0xff]
        %v4596 = vld [vmem:[#allocation11 + $0x1a8] sm:$0xff]
        %v4597 = vld [vmem:[#allocation11 + $0x1b0] sm:$0xff]
        %v4598 = vld [vmem:[#allocation11 + $0x1b8] sm:$0xff]
        %v4599 = vld [vmem:[#allocation11 + $0x1c0] sm:$0xff]
        %v4600 = vld [vmem:[#allocation11 + $0x1c8] sm:$0xff]
        %v4601 = vld [vmem:[#allocation11 + $0x1d0] sm:$0xff]
        %v4602 = vld [vmem:[#allocation11 + $0x1d8] sm:$0xff]
        %v4603 = vld [vmem:[#allocation11 + $0x1e0] sm:$0xff]
        %v4604 = vld [vmem:[#allocation11 + $0x1e8] sm:$0xff]
        %v4605 = vld [vmem:[#allocation11 + $0x1f0] sm:$0xff]
        %v4606 = vld [vmem:[#allocation11 + $0x1f8] sm:$0xff]
        %s4607 = scalar_lea.vmem [#allocation11], 512
        %v4608 = vld [vmem:[%s4607] sm:$0xff]
        %v4609 = vld [vmem:[%s4607 + $0x8] sm:$0xff]
        %v4610 = vld [vmem:[%s4607 + $0x10] sm:$0xff]
        %v4611 = vld [vmem:[%s4607 + $0x18] sm:$0xff]
        %v4612 = vld [vmem:[%s4607 + $0x20] sm:$0xff]
        %v4613 = vld [vmem:[%s4607 + $0x28] sm:$0xff]
        %v4614 = vld [vmem:[%s4607 + $0x30] sm:$0xff]
        %v4615 = vld [vmem:[%s4607 + $0x38] sm:$0xff]
        %v4616 = vld [vmem:[%s4607 + $0x40] sm:$0xff]
        %v4617 = vld [vmem:[%s4607 + $0x48] sm:$0xff]
        %v4618 = vld [vmem:[%s4607 + $0x50] sm:$0xff]
        %v4619 = vld [vmem:[%s4607 + $0x58] sm:$0xff]
        %v4620 = vld [vmem:[%s4607 + $0x60] sm:$0xff]
        %v4621 = vld [vmem:[%s4607 + $0x68] sm:$0xff]
        %v4622 = vld [vmem:[%s4607 + $0x70] sm:$0xff]
        %v4623 = vld [vmem:[%s4607 + $0x78] sm:$0xff]
        %v4624 = vld [vmem:[%s4607 + $0x80] sm:$0xff]
        %v4625 = vld [vmem:[%s4607 + $0x88] sm:$0xff]
        %v4626 = vld [vmem:[%s4607 + $0x90] sm:$0xff]
        %v4627 = vld [vmem:[%s4607 + $0x98] sm:$0xff]
        %v4628 = vld [vmem:[%s4607 + $0xa0] sm:$0xff]
        %v4629 = vld [vmem:[%s4607 + $0xa8] sm:$0xff]
        %v4630 = vld [vmem:[%s4607 + $0xb0] sm:$0xff]
        %v4631 = vld [vmem:[%s4607 + $0xb8] sm:$0xff]
        %v4632 = vld [vmem:[%s4607 + $0xc0] sm:$0xff]
        %v4633 = vld [vmem:[%s4607 + $0xc8] sm:$0xff]
        %v4634 = vld [vmem:[%s4607 + $0xd0] sm:$0xff]
        %v4635 = vld [vmem:[%s4607 + $0xd8] sm:$0xff]
        %v4636 = vld [vmem:[%s4607 + $0xe0] sm:$0xff]
        %v4637 = vld [vmem:[%s4607 + $0xe8] sm:$0xff]
        %v4638 = vld [vmem:[%s4607 + $0xf0] sm:$0xff]
        %v4639 = vld [vmem:[%s4607 + $0xf8] sm:$0xff]
        %v4640 = vld [vmem:[%s4607 + $0x100] sm:$0xff]
        %v4641 = vld [vmem:[%s4607 + $0x108] sm:$0xff]
        %v4642 = vld [vmem:[%s4607 + $0x110] sm:$0xff]
        %v4643 = vld [vmem:[%s4607 + $0x118] sm:$0xff]
        %v4644 = vld [vmem:[%s4607 + $0x120] sm:$0xff]
        %v4645 = vld [vmem:[%s4607 + $0x128] sm:$0xff]
        %v4646 = vld [vmem:[%s4607 + $0x130] sm:$0xff]
        %v4647 = vld [vmem:[%s4607 + $0x138] sm:$0xff]
        %v4648 = vld [vmem:[%s4607 + $0x140] sm:$0xff]
        %v4649 = vld [vmem:[%s4607 + $0x148] sm:$0xff]
        %v4650 = vld [vmem:[%s4607 + $0x150] sm:$0xff]
        %v4651 = vld [vmem:[%s4607 + $0x158] sm:$0xff]
        %v4652 = vld [vmem:[%s4607 + $0x160] sm:$0xff]
        %v4653 = vld [vmem:[%s4607 + $0x168] sm:$0xff]
        %v4654 = vld [vmem:[%s4607 + $0x170] sm:$0xff]
        %v4655 = vld [vmem:[%s4607 + $0x178] sm:$0xff]
        %v4656 = vld [vmem:[%s4607 + $0x180] sm:$0xff]
        %v4657 = vld [vmem:[%s4607 + $0x188] sm:$0xff]
        %v4658 = vld [vmem:[%s4607 + $0x190] sm:$0xff]
        %v4659 = vld [vmem:[%s4607 + $0x198] sm:$0xff]
        %v4660 = vld [vmem:[%s4607 + $0x1a0] sm:$0xff]
        %v4661 = vld [vmem:[%s4607 + $0x1a8] sm:$0xff]
        %v4662 = vld [vmem:[%s4607 + $0x1b0] sm:$0xff]
        %v4663 = vld [vmem:[%s4607 + $0x1b8] sm:$0xff]
        %v4664 = vld [vmem:[%s4607 + $0x1c0] sm:$0xff]
        %v4665 = vld [vmem:[%s4607 + $0x1c8] sm:$0xff]
        %v4666 = vld [vmem:[%s4607 + $0x1d0] sm:$0xff]
        %v4667 = vld [vmem:[%s4607 + $0x1d8] sm:$0xff]
        %v4668 = vld [vmem:[%s4607 + $0x1e0] sm:$0xff]
        %v4669 = vld [vmem:[%s4607 + $0x1e8] sm:$0xff]
        %v4670 = vld [vmem:[%s4607 + $0x1f0] sm:$0xff]
        %v4671 = vld [vmem:[%s4607 + $0x1f8] sm:$0xff]
        %4698 = vrot.lane.b32.xlu0 %v4517, 127
        %v4699 = vpop.permute.xlu0 %4698
        %4700 = vrot.lane.b32.xlu0 %v4518, 127
        %v4701 = vpop.permute.xlu0 %4700
        %4702 = vrot.lane.b32.xlu0 %v4519, 127
        %v4703 = vpop.permute.xlu0 %4702
        %4704 = vrot.lane.b32.xlu0 %v4520, 127
        %v4705 = vpop.permute.xlu0 %4704
        %4706 = vrot.lane.b32.xlu0 %v4521, 127
        %v4707 = vpop.permute.xlu0 %4706
        %4708 = vrot.lane.b32.xlu0 %v4522, 127
        %v4709 = vpop.permute.xlu0 %4708
        %4710 = vrot.lane.b32.xlu0 %v4523, 127
        %v4711 = vpop.permute.xlu0 %4710
        %4712 = vrot.lane.b32.xlu0 %v4524, 127
        %v4713 = vpop.permute.xlu0 %4712
        %4714 = vrot.lane.b32.xlu0 %v4525, 127
        %v4715 = vpop.permute.xlu0 %4714
        %4716 = vrot.lane.b32.xlu0 %v4526, 127
        %v4717 = vpop.permute.xlu0 %4716
        %4718 = vrot.lane.b32.xlu0 %v4527, 127
        %v4719 = vpop.permute.xlu0 %4718
        %4720 = vrot.lane.b32.xlu0 %v4528, 127
        %v4721 = vpop.permute.xlu0 %4720
        %4722 = vrot.lane.b32.xlu0 %v4529, 127
        %v4723 = vpop.permute.xlu0 %4722
        %4724 = vrot.lane.b32.xlu0 %v4530, 127
        %v4725 = vpop.permute.xlu0 %4724
        %4726 = vrot.lane.b32.xlu0 %v4531, 127
        %v4727 = vpop.permute.xlu0 %4726
        %4728 = vrot.lane.b32.xlu0 %v4532, 127
        %v4729 = vpop.permute.xlu0 %4728
        %4730 = vrot.lane.b32.xlu0 %v4533, 127
        %v4731 = vpop.permute.xlu0 %4730
        %4732 = vrot.lane.b32.xlu0 %v4534, 127
        %v4733 = vpop.permute.xlu0 %4732
        %4734 = vrot.lane.b32.xlu0 %v4535, 127
        %v4735 = vpop.permute.xlu0 %4734
        %4736 = vrot.lane.b32.xlu0 %v4536, 127
        %v4737 = vpop.permute.xlu0 %4736
        %4738 = vrot.lane.b32.xlu0 %v4537, 127
        %v4739 = vpop.permute.xlu0 %4738
        %4740 = vrot.lane.b32.xlu0 %v4538, 127
        %v4741 = vpop.permute.xlu0 %4740
        %4742 = vrot.lane.b32.xlu0 %v4539, 127
        %v4743 = vpop.permute.xlu0 %4742
        %4744 = vrot.lane.b32.xlu0 %v4540, 127
        %v4745 = vpop.permute.xlu0 %4744
        %4746 = vrot.lane.b32.xlu0 %v4541, 127
        %v4747 = vpop.permute.xlu0 %4746
        %4748 = vrot.lane.b32.xlu0 %v4542, 127
        %v4749 = vpop.permute.xlu0 %4748
        %vm4776 = vcmask 654336
        %v4778 = vsel %vm4776, %v4609, 0
        %v4781 = vsel %vm4776, %v4611, 0
        %v4784 = vsel %vm4776, %v4613, 0
        %v4787 = vsel %vm4776, %v4615, 0
        %v4790 = vsel %vm4776, %v4617, 0
        %v4793 = vsel %vm4776, %v4619, 0
        %v4796 = vsel %vm4776, %v4621, 0
        %v4799 = vsel %vm4776, %v4623, 0
        %v4802 = vsel %vm4776, %v4625, 0
        %v4805 = vsel %vm4776, %v4627, 0
        %v4808 = vsel %vm4776, %v4629, 0
        %v4811 = vsel %vm4776, %v4631, 0
        %v4814 = vsel %vm4776, %v4633, 0
        %v4817 = vsel %vm4776, %v4635, 0
        %v4820 = vsel %vm4776, %v4637, 0
        %v4823 = vsel %vm4776, %v4639, 0
        %v4826 = vsel %vm4776, %v4641, 0
        %v4829 = vsel %vm4776, %v4643, 0
        %v4832 = vsel %vm4776, %v4645, 0
        %v4835 = vsel %vm4776, %v4647, 0
        %v4838 = vsel %vm4776, %v4649, 0
        %v4841 = vsel %vm4776, %v4651, 0
        %v4844 = vsel %vm4776, %v4653, 0
        %v4847 = vsel %vm4776, %v4655, 0
        %v4850 = vsel %vm4776, %v4657, 0
        %v4853 = vsel %vm4776, %v4659, 0
        %v4856 = vsel %vm4776, %v4661, 0
        %v4859 = vsel %vm4776, %v4663, 0
        %v4862 = vsel %vm4776, %v4665, 0
        %v4865 = vsel %vm4776, %v4667, 0
        %v4868 = vsel %vm4776, %v4669, 0
        %v4871 = vsel %vm4776, %v4671, 0
        %4873 = vmatprep.subr.mxu0 0.0
        %4874 = vmatpush1.msra.mxu0 %v4729
        %4875 = vmatprep.subr.mxu0 0.0
        %4876 = vmatpush1.msra.mxu0 %v4727
        %4877 = vmatprep.subr.mxu0 0.0
        %4878 = vmatpush1.msra.mxu0 %v4725
        %4879 = vmatprep.subr.mxu0 0.0
        %4880 = vmatpush1.msra.mxu0 %v4723
        %4881 = vmatprep.subr.mxu0 0.0
        %4882 = vmatpush1.msra.mxu0 %v4721
        %4883 = vmatprep.subr.mxu0 0.0
        %4884 = vmatpush1.msra.mxu0 %v4719
        %4885 = vmatprep.subr.mxu0 0.0
        %4886 = vmatpush1.msra.mxu0 %v4717
        %4887 = vmatprep.subr.mxu0 0.0
        %4888 = vmatpush1.msra.mxu0 %v4715
        %4889 = vmatprep.subr.mxu0 0.0
        %4890 = vmatpush1.msra.mxu0 %v4713
        %4891 = vmatprep.subr.mxu0 0.0
        %4892 = vmatpush1.msra.mxu0 %v4711
        %4893 = vmatprep.subr.mxu0 0.0
        %4894 = vmatpush1.msra.mxu0 %v4709
        %4895 = vmatprep.subr.mxu0 0.0
        %4896 = vmatpush1.msra.mxu0 %v4707
        %4897 = vmatprep.subr.mxu0 0.0
        %4898 = vmatpush1.msra.mxu0 %v4705
        %4899 = vmatprep.subr.mxu0 0.0
        %4900 = vmatpush1.msra.mxu0 %v4703
        %4901 = vmatprep.subr.mxu0 0.0
        %4902 = vmatpush1.msra.mxu0 %v4701
        %4903 = vmatprep.subr.mxu0 0.0
        %4904 = vmatpush1.msra.mxu0 %v4699
        %4905 = vmatprep.subr.mxu0 0.0
        %4906 = vmatpush2.msra.mxu0 0.0
        %4907 = vmatprep.subr.mxu0 0.0
        %4908 = vmatpush2.msra.mxu0 0.0
        %4909 = vmatprep.subr.mxu0 0.0
        %4910 = vmatpush2.msra.mxu0 0.0
        %4911 = vmatprep.subr.mxu0 0.0
        %4912 = vmatpush2.msra.mxu0 0.0
        %4913 = vmatprep.subr.mxu0 0.0
        %4914 = vmatpush2.msra.mxu0 0.0
        %4915 = vmatprep.subr.mxu0 0.0
        %4916 = vmatpush2.msra.mxu0 0.0
        %4917 = vmatprep.subr.mxu0 0.0
        %4918 = vmatpush2.msra.mxu0 %v4749
        %4919 = vmatprep.subr.mxu0 0.0
        %4920 = vmatpush2.msra.mxu0 %v4747
        %4921 = vmatprep.subr.mxu0 0.0
        %4922 = vmatpush2.msra.mxu0 %v4745
        %4923 = vmatprep.subr.mxu0 0.0
        %4924 = vmatpush2.msra.mxu0 %v4743
        %4925 = vmatprep.subr.mxu0 0.0
        %4926 = vmatpush2.msra.mxu0 %v4741
        %4927 = vmatprep.subr.mxu0 0.0
        %4928 = vmatpush2.msra.mxu0 %v4739
        %4929 = vmatprep.subr.mxu0 0.0
        %4930 = vmatpush2.msra.mxu0 %v4737
        %4931 = vmatprep.subr.mxu0 0.0
        %4932 = vmatpush2.msra.mxu0 %v4735
        %4933 = vmatprep.subr.mxu0 0.0
        %4934 = vmatpush2.msra.mxu0 %v4733
        %4935 = vmatprep.subr.mxu0 0.0
        %4936 = vmatpush2.msra.mxu0 %v4731
        %4937 = vmatprep.mubr.f32.mxu0 %v4778
        %4938 = vmatmul.mubr.f32.gmra.mxu0 %v4608
        %v4939 = vpop.f32.mrf.mxu0
        %v4940 = vadd.f32 0.0, %v4939
        %v4941 = vpop.f32.mrf.mxu0
        %4942 = vmatprep.mubr.f32.mxu0 %v4781
        %4943 = vmatmul.mubr.f32.gmra.mxu0 %v4610
        %v4944 = vpop.f32.mrf.mxu0
        %v4945 = vadd.f32 0.0, %v4944
        %v4946 = vpop.f32.mrf.mxu0
        %4947 = vmatprep.mubr.f32.mxu0 %v4784
        %4948 = vmatmul.mubr.f32.gmra.mxu0 %v4612
        %v4949 = vpop.f32.mrf.mxu0
        %v4950 = vadd.f32 0.0, %v4949
        %v4951 = vpop.f32.mrf.mxu0
        %4952 = vmatprep.mubr.f32.mxu0 %v4787
        %4953 = vmatmul.mubr.f32.gmra.mxu0 %v4614
        %v4954 = vpop.f32.mrf.mxu0
        %v4955 = vadd.f32 0.0, %v4954
        %v4956 = vpop.f32.mrf.mxu0
        %4957 = vmatprep.mubr.f32.mxu0 %v4790
        %4958 = vmatmul.mubr.f32.gmra.mxu0 %v4616
        %v4959 = vpop.f32.mrf.mxu0
        %v4960 = vadd.f32 0.0, %v4959
        %v4961 = vpop.f32.mrf.mxu0
        %4962 = vmatprep.mubr.f32.mxu0 %v4793
        %4963 = vmatmul.mubr.f32.gmra.mxu0 %v4618
        %v4964 = vpop.f32.mrf.mxu0
        %v4965 = vadd.f32 0.0, %v4964
        %v4966 = vpop.f32.mrf.mxu0
        %4967 = vmatprep.mubr.f32.mxu0 %v4796
        %4968 = vmatmul.mubr.f32.gmra.mxu0 %v4620
        %v4969 = vpop.f32.mrf.mxu0
        %v4970 = vadd.f32 0.0, %v4969
        %v4971 = vpop.f32.mrf.mxu0
        %4972 = vmatprep.mubr.f32.mxu0 %v4799
        %4973 = vmatmul.mubr.f32.gmra.mxu0 %v4622
        %v4974 = vpop.f32.mrf.mxu0
        %v4975 = vadd.f32 0.0, %v4974
        %v4976 = vpop.f32.mrf.mxu0
        %4977 = vmatprep.mubr.f32.mxu0 %v4802
        %4978 = vmatmul.mubr.f32.gmra.mxu0 %v4624
        %v4979 = vpop.f32.mrf.mxu0
        %v4980 = vadd.f32 0.0, %v4979
        %v4981 = vpop.f32.mrf.mxu0
        %4982 = vmatprep.mubr.f32.mxu0 %v4805
        %4983 = vmatmul.mubr.f32.gmra.mxu0 %v4626
        %v4984 = vpop.f32.mrf.mxu0
        %v4985 = vadd.f32 0.0, %v4984
        %v4986 = vpop.f32.mrf.mxu0
        %4987 = vmatprep.mubr.f32.mxu0 %v4808
        %4988 = vmatmul.mubr.f32.gmra.mxu0 %v4628
        %v4989 = vpop.f32.mrf.mxu0
        %v4990 = vadd.f32 0.0, %v4989
        %v4991 = vpop.f32.mrf.mxu0
        %4992 = vmatprep.mubr.f32.mxu0 %v4811
        %4993 = vmatmul.mubr.f32.gmra.mxu0 %v4630
        %v4994 = vpop.f32.mrf.mxu0
        %v4995 = vadd.f32 0.0, %v4994
        %v4996 = vpop.f32.mrf.mxu0
        %4997 = vmatprep.mubr.f32.mxu0 %v4814
        %4998 = vmatmul.mubr.f32.gmra.mxu0 %v4632
        %v4999 = vpop.f32.mrf.mxu0
        %v5000 = vadd.f32 0.0, %v4999
        %v5001 = vpop.f32.mrf.mxu0
        %5002 = vmatprep.mubr.f32.mxu0 %v4817
        %5003 = vmatmul.mubr.f32.gmra.mxu0 %v4634
        %v5004 = vpop.f32.mrf.mxu0
        %v5005 = vadd.f32 0.0, %v5004
        %v5006 = vpop.f32.mrf.mxu0
        %5007 = vmatprep.mubr.f32.mxu0 %v4820
        %5008 = vmatmul.mubr.f32.gmra.mxu0 %v4636
        %v5009 = vpop.f32.mrf.mxu0
        %v5010 = vadd.f32 0.0, %v5009
        %v5011 = vpop.f32.mrf.mxu0
        %5012 = vmatprep.mubr.f32.mxu0 %v4823
        %5013 = vmatmul.mubr.f32.gmra.mxu0 %v4638
        %v5014 = vpop.f32.mrf.mxu0
        %v5015 = vadd.f32 0.0, %v5014
        %v5016 = vpop.f32.mrf.mxu0
        %5017 = vmatprep.mubr.f32.mxu0 %v4826
        %5018 = vmatmul.mubr.f32.gmra.mxu0 %v4640
        %v5019 = vpop.f32.mrf.mxu0
        %v5020 = vadd.f32 0.0, %v5019
        %v5021 = vpop.f32.mrf.mxu0
        %5022 = vmatprep.mubr.f32.mxu0 %v4829
        %5023 = vmatmul.mubr.f32.gmra.mxu0 %v4642
        %v5024 = vpop.f32.mrf.mxu0
        %v5025 = vadd.f32 0.0, %v5024
        %v5026 = vpop.f32.mrf.mxu0
        %5027 = vmatprep.mubr.f32.mxu0 %v4832
        %5028 = vmatmul.mubr.f32.gmra.mxu0 %v4644
        %v5029 = vpop.f32.mrf.mxu0
        %v5030 = vadd.f32 0.0, %v5029
        %v5031 = vpop.f32.mrf.mxu0
        %5032 = vmatprep.mubr.f32.mxu0 %v4835
        %5033 = vmatmul.mubr.f32.gmra.mxu0 %v4646
        %v5034 = vpop.f32.mrf.mxu0
        %v5035 = vadd.f32 0.0, %v5034
        %v5036 = vpop.f32.mrf.mxu0
        %5037 = vmatprep.mubr.f32.mxu0 %v4838
        %5038 = vmatmul.mubr.f32.gmra.mxu0 %v4648
        %v5039 = vpop.f32.mrf.mxu0
        %v5040 = vadd.f32 0.0, %v5039
        %v5041 = vpop.f32.mrf.mxu0
        %5042 = vmatprep.mubr.f32.mxu0 %v4841
        %5043 = vmatmul.mubr.f32.gmra.mxu0 %v4650
        %v5044 = vpop.f32.mrf.mxu0
        %v5045 = vadd.f32 0.0, %v5044
        %v5046 = vpop.f32.mrf.mxu0
        %5047 = vmatprep.mubr.f32.mxu0 %v4844
        %5048 = vmatmul.mubr.f32.gmra.mxu0 %v4652
        %v5049 = vpop.f32.mrf.mxu0
        %v5050 = vadd.f32 0.0, %v5049
        %v5051 = vpop.f32.mrf.mxu0
        %5052 = vmatprep.mubr.f32.mxu0 %v4847
        %5053 = vmatmul.mubr.f32.gmra.mxu0 %v4654
        %v5054 = vpop.f32.mrf.mxu0
        %v5055 = vadd.f32 0.0, %v5054
        %v5056 = vpop.f32.mrf.mxu0
        %5057 = vmatprep.mubr.f32.mxu0 %v4850
        %5058 = vmatmul.mubr.f32.gmra.mxu0 %v4656
        %v5059 = vpop.f32.mrf.mxu0
        %v5060 = vadd.f32 0.0, %v5059
        %v5061 = vpop.f32.mrf.mxu0
        %5062 = vmatprep.mubr.f32.mxu0 %v4853
        %5063 = vmatmul.mubr.f32.gmra.mxu0 %v4658
        %v5064 = vpop.f32.mrf.mxu0
        %v5065 = vadd.f32 0.0, %v5064
        %v5066 = vpop.f32.mrf.mxu0
        %5067 = vmatprep.mubr.f32.mxu0 %v4856
        %5068 = vmatmul.mubr.f32.gmra.mxu0 %v4660
        %v5069 = vpop.f32.mrf.mxu0
        %v5070 = vadd.f32 0.0, %v5069
        %v5071 = vpop.f32.mrf.mxu0
        %5072 = vmatprep.mubr.f32.mxu0 %v4859
        %5073 = vmatmul.mubr.f32.gmra.mxu0 %v4662
        %v5074 = vpop.f32.mrf.mxu0
        %v5075 = vadd.f32 0.0, %v5074
        %v5076 = vpop.f32.mrf.mxu0
        %5077 = vmatprep.mubr.f32.mxu0 %v4862
        %5078 = vmatmul.mubr.f32.gmra.mxu0 %v4664
        %v5079 = vpop.f32.mrf.mxu0
        %v5080 = vadd.f32 0.0, %v5079
        %v5081 = vpop.f32.mrf.mxu0
        %5082 = vmatprep.mubr.f32.mxu0 %v4865
        %5083 = vmatmul.mubr.f32.gmra.mxu0 %v4666
        %v5084 = vpop.f32.mrf.mxu0
        %v5085 = vadd.f32 0.0, %v5084
        %v5086 = vpop.f32.mrf.mxu0
        %5087 = vmatprep.mubr.f32.mxu0 %v4868
        %5088 = vmatmul.mubr.f32.gmra.mxu0 %v4668
        %v5089 = vpop.f32.mrf.mxu0
        %v5090 = vadd.f32 0.0, %v5089
        %v5091 = vpop.f32.mrf.mxu0
        %5092 = vmatprep.mubr.f32.mxu0 %v4871
        %5093 = vmatmul.mubr.f32.gmra.mxu0 %v4670
        %v5094 = vpop.f32.mrf.mxu0
        %v5095 = vadd.f32 0.0, %v5094
        %v5096 = vpop.f32.mrf.mxu0
        %5097 = vdwg.mxu0
        %v5099 = vsel %vm4776, %v4544, 0
        %v5102 = vsel %vm4776, %v4546, 0
        %v5105 = vsel %vm4776, %v4548, 0
        %v5108 = vsel %vm4776, %v4550, 0
        %v5111 = vsel %vm4776, %v4552, 0
        %v5114 = vsel %vm4776, %v4554, 0
        %v5117 = vsel %vm4776, %v4556, 0
        %v5120 = vsel %vm4776, %v4558, 0
        %v5123 = vsel %vm4776, %v4560, 0
        %v5126 = vsel %vm4776, %v4562, 0
        %v5129 = vsel %vm4776, %v4564, 0
        %v5132 = vsel %vm4776, %v4566, 0
        %v5135 = vsel %vm4776, %v4568, 0
        %v5138 = vsel %vm4776, %v4570, 0
        %v5141 = vsel %vm4776, %v4572, 0
        %v5144 = vsel %vm4776, %v4574, 0
        %v5147 = vsel %vm4776, %v4576, 0
        %v5150 = vsel %vm4776, %v4578, 0
        %v5153 = vsel %vm4776, %v4580, 0
        %v5156 = vsel %vm4776, %v4582, 0
        %v5159 = vsel %vm4776, %v4584, 0
        %v5162 = vsel %vm4776, %v4586, 0
        %v5165 = vsel %vm4776, %v4588, 0
        %v5168 = vsel %vm4776, %v4590, 0
        %v5171 = vsel %vm4776, %v4592, 0
        %v5174 = vsel %vm4776, %v4594, 0
        %v5177 = vsel %vm4776, %v4596, 0
        %v5180 = vsel %vm4776, %v4598, 0
        %v5183 = vsel %vm4776, %v4600, 0
        %v5186 = vsel %vm4776, %v4602, 0
        %v5189 = vsel %vm4776, %v4604, 0
        %v5192 = vsel %vm4776, %v4606, 0
        %5194 = vmatprep.subr.mxu0 0.0
        %5195 = vmatpush1.msra.mxu0 %v4532
        %5196 = vmatprep.subr.mxu0 0.0
        %5197 = vmatpush1.msra.mxu0 %v4531
        %5198 = vmatprep.subr.mxu0 0.0
        %5199 = vmatpush1.msra.mxu0 %v4530
        %5200 = vmatprep.subr.mxu0 0.0
        %5201 = vmatpush1.msra.mxu0 %v4529
        %5202 = vmatprep.subr.mxu0 0.0
        %5203 = vmatpush1.msra.mxu0 %v4528
        %5204 = vmatprep.subr.mxu0 0.0
        %5205 = vmatpush1.msra.mxu0 %v4527
        %5206 = vmatprep.subr.mxu0 0.0
        %5207 = vmatpush1.msra.mxu0 %v4526
        %5208 = vmatprep.subr.mxu0 0.0
        %5209 = vmatpush1.msra.mxu0 %v4525
        %5210 = vmatprep.subr.mxu0 0.0
        %5211 = vmatpush1.msra.mxu0 %v4524
        %5212 = vmatprep.subr.mxu0 0.0
        %5213 = vmatpush1.msra.mxu0 %v4523
        %5214 = vmatprep.subr.mxu0 0.0
        %5215 = vmatpush1.msra.mxu0 %v4522
        %5216 = vmatprep.subr.mxu0 0.0
        %5217 = vmatpush1.msra.mxu0 %v4521
        %5218 = vmatprep.subr.mxu0 0.0
        %5219 = vmatpush1.msra.mxu0 %v4520
        %5220 = vmatprep.subr.mxu0 0.0
        %5221 = vmatpush1.msra.mxu0 %v4519
        %5222 = vmatprep.subr.mxu0 0.0
        %5223 = vmatpush1.msra.mxu0 %v4518
        %5224 = vmatprep.subr.mxu0 0.0
        %5225 = vmatpush1.msra.mxu0 %v4517
        %5226 = vmatprep.subr.mxu0 0.0
        %5227 = vmatpush2.msra.mxu0 0.0
        %5228 = vmatprep.subr.mxu0 0.0
        %5229 = vmatpush2.msra.mxu0 0.0
        %5230 = vmatprep.subr.mxu0 0.0
        %5231 = vmatpush2.msra.mxu0 0.0
        %5232 = vmatprep.subr.mxu0 0.0
        %5233 = vmatpush2.msra.mxu0 0.0
        %5234 = vmatprep.subr.mxu0 0.0
        %5235 = vmatpush2.msra.mxu0 0.0
        %5236 = vmatprep.subr.mxu0 0.0
        %5237 = vmatpush2.msra.mxu0 0.0
        %5238 = vmatprep.subr.mxu0 0.0
        %5239 = vmatpush2.msra.mxu0 %v4542
        %5240 = vmatprep.subr.mxu0 0.0
        %5241 = vmatpush2.msra.mxu0 %v4541
        %5242 = vmatprep.subr.mxu0 0.0
        %5243 = vmatpush2.msra.mxu0 %v4540
        %5244 = vmatprep.subr.mxu0 0.0
        %5245 = vmatpush2.msra.mxu0 %v4539
        %5246 = vmatprep.subr.mxu0 0.0
        %5247 = vmatpush2.msra.mxu0 %v4538
        %5248 = vmatprep.subr.mxu0 0.0
        %5249 = vmatpush2.msra.mxu0 %v4537
        %5250 = vmatprep.subr.mxu0 0.0
        %5251 = vmatpush2.msra.mxu0 %v4536
        %5252 = vmatprep.subr.mxu0 0.0
        %5253 = vmatpush2.msra.mxu0 %v4535
        %5254 = vmatprep.subr.mxu0 0.0
        %5255 = vmatpush2.msra.mxu0 %v4534
        %5256 = vmatprep.subr.mxu0 0.0
        %5257 = vmatpush2.msra.mxu0 %v4533
        %5258 = vmatprep.mubr.f32.mxu0 %v5099
        %5259 = vmatmul.mubr.f32.gmra.mxu0 %v4543
        %v5260 = vpop.f32.mrf.mxu0
        %v5261 = vadd.f32 %v4940, %v5260
        %v5262 = vpop.f32.mrf.mxu0
        %5263 = vmatprep.mubr.f32.mxu0 %v5102
        %5264 = vmatmul.mubr.f32.gmra.mxu0 %v4545
        %v5265 = vpop.f32.mrf.mxu0
        %v5266 = vadd.f32 %v4945, %v5265
        %v5267 = vpop.f32.mrf.mxu0
        %5268 = vmatprep.mubr.f32.mxu0 %v5105
        %5269 = vmatmul.mubr.f32.gmra.mxu0 %v4547
        %v5270 = vpop.f32.mrf.mxu0
        %v5271 = vadd.f32 %v4950, %v5270
        %v5272 = vpop.f32.mrf.mxu0
        %5273 = vmatprep.mubr.f32.mxu0 %v5108
        %5274 = vmatmul.mubr.f32.gmra.mxu0 %v4549
        %v5275 = vpop.f32.mrf.mxu0
        %v5276 = vadd.f32 %v4955, %v5275
        %v5277 = vpop.f32.mrf.mxu0
        %5278 = vmatprep.mubr.f32.mxu0 %v5111
        %5279 = vmatmul.mubr.f32.gmra.mxu0 %v4551
        %v5280 = vpop.f32.mrf.mxu0
        %v5281 = vadd.f32 %v4960, %v5280
        %v5282 = vpop.f32.mrf.mxu0
        %5283 = vmatprep.mubr.f32.mxu0 %v5114
        %5284 = vmatmul.mubr.f32.gmra.mxu0 %v4553
        %v5285 = vpop.f32.mrf.mxu0
        %v5286 = vadd.f32 %v4965, %v5285
        %v5287 = vpop.f32.mrf.mxu0
        %5288 = vmatprep.mubr.f32.mxu0 %v5117
        %5289 = vmatmul.mubr.f32.gmra.mxu0 %v4555
        %v5290 = vpop.f32.mrf.mxu0
        %v5291 = vadd.f32 %v4970, %v5290
        %v5292 = vpop.f32.mrf.mxu0
        %5293 = vmatprep.mubr.f32.mxu0 %v5120
        %5294 = vmatmul.mubr.f32.gmra.mxu0 %v4557
        %v5295 = vpop.f32.mrf.mxu0
        %v5296 = vadd.f32 %v4975, %v5295
        %v5297 = vpop.f32.mrf.mxu0
        %5298 = vmatprep.mubr.f32.mxu0 %v5123
        %5299 = vmatmul.mubr.f32.gmra.mxu0 %v4559
        %v5300 = vpop.f32.mrf.mxu0
        %v5301 = vadd.f32 %v4980, %v5300
        %v5302 = vpop.f32.mrf.mxu0
        %5303 = vmatprep.mubr.f32.mxu0 %v5126
        %5304 = vmatmul.mubr.f32.gmra.mxu0 %v4561
        %v5305 = vpop.f32.mrf.mxu0
        %v5306 = vadd.f32 %v4985, %v5305
        %v5307 = vpop.f32.mrf.mxu0
        %5308 = vmatprep.mubr.f32.mxu0 %v5129
        %5309 = vmatmul.mubr.f32.gmra.mxu0 %v4563
        %v5310 = vpop.f32.mrf.mxu0
        %v5311 = vadd.f32 %v4990, %v5310
        %v5312 = vpop.f32.mrf.mxu0
        %5313 = vmatprep.mubr.f32.mxu0 %v5132
        %5314 = vmatmul.mubr.f32.gmra.mxu0 %v4565
        %v5315 = vpop.f32.mrf.mxu0
        %v5316 = vadd.f32 %v4995, %v5315
        %v5317 = vpop.f32.mrf.mxu0
        %5318 = vmatprep.mubr.f32.mxu0 %v5135
        %5319 = vmatmul.mubr.f32.gmra.mxu0 %v4567
        %v5320 = vpop.f32.mrf.mxu0
        %v5321 = vadd.f32 %v5000, %v5320
        %v5322 = vpop.f32.mrf.mxu0
        %5323 = vmatprep.mubr.f32.mxu0 %v5138
        %5324 = vmatmul.mubr.f32.gmra.mxu0 %v4569
        %v5325 = vpop.f32.mrf.mxu0
        %v5326 = vadd.f32 %v5005, %v5325
        %v5327 = vpop.f32.mrf.mxu0
        %5328 = vmatprep.mubr.f32.mxu0 %v5141
        %5329 = vmatmul.mubr.f32.gmra.mxu0 %v4571
        %v5330 = vpop.f32.mrf.mxu0
        %v5331 = vadd.f32 %v5010, %v5330
        %v5332 = vpop.f32.mrf.mxu0
        %5333 = vmatprep.mubr.f32.mxu0 %v5144
        %5334 = vmatmul.mubr.f32.gmra.mxu0 %v4573
        %v5335 = vpop.f32.mrf.mxu0
        %v5336 = vadd.f32 %v5015, %v5335
        %v5337 = vpop.f32.mrf.mxu0
        %5338 = vmatprep.mubr.f32.mxu0 %v5147
        %5339 = vmatmul.mubr.f32.gmra.mxu0 %v4575
        %v5340 = vpop.f32.mrf.mxu0
        %v5341 = vadd.f32 %v5020, %v5340
        %v5342 = vpop.f32.mrf.mxu0
        %5343 = vmatprep.mubr.f32.mxu0 %v5150
        %5344 = vmatmul.mubr.f32.gmra.mxu0 %v4577
        %v5345 = vpop.f32.mrf.mxu0
        %v5346 = vadd.f32 %v5025, %v5345
        %v5347 = vpop.f32.mrf.mxu0
        %5348 = vmatprep.mubr.f32.mxu0 %v5153
        %5349 = vmatmul.mubr.f32.gmra.mxu0 %v4579
        %v5350 = vpop.f32.mrf.mxu0
        %v5351 = vadd.f32 %v5030, %v5350
        %v5352 = vpop.f32.mrf.mxu0
        %5353 = vmatprep.mubr.f32.mxu0 %v5156
        %5354 = vmatmul.mubr.f32.gmra.mxu0 %v4581
        %v5355 = vpop.f32.mrf.mxu0
        %v5356 = vadd.f32 %v5035, %v5355
        %v5357 = vpop.f32.mrf.mxu0
        %5358 = vmatprep.mubr.f32.mxu0 %v5159
        %5359 = vmatmul.mubr.f32.gmra.mxu0 %v4583
        %v5360 = vpop.f32.mrf.mxu0
        %v5361 = vadd.f32 %v5040, %v5360
        %v5362 = vpop.f32.mrf.mxu0
        %5363 = vmatprep.mubr.f32.mxu0 %v5162
        %5364 = vmatmul.mubr.f32.gmra.mxu0 %v4585
        %v5365 = vpop.f32.mrf.mxu0
        %v5366 = vadd.f32 %v5045, %v5365
        %v5367 = vpop.f32.mrf.mxu0
        %5368 = vmatprep.mubr.f32.mxu0 %v5165
        %5369 = vmatmul.mubr.f32.gmra.mxu0 %v4587
        %v5370 = vpop.f32.mrf.mxu0
        %v5371 = vadd.f32 %v5050, %v5370
        %v5372 = vpop.f32.mrf.mxu0
        %5373 = vmatprep.mubr.f32.mxu0 %v5168
        %5374 = vmatmul.mubr.f32.gmra.mxu0 %v4589
        %v5375 = vpop.f32.mrf.mxu0
        %v5376 = vadd.f32 %v5055, %v5375
        %v5377 = vpop.f32.mrf.mxu0
        %5378 = vmatprep.mubr.f32.mxu0 %v5171
        %5379 = vmatmul.mubr.f32.gmra.mxu0 %v4591
        %v5380 = vpop.f32.mrf.mxu0
        %v5381 = vadd.f32 %v5060, %v5380
        %v5382 = vpop.f32.mrf.mxu0
        %5383 = vmatprep.mubr.f32.mxu0 %v5174
        %5384 = vmatmul.mubr.f32.gmra.mxu0 %v4593
        %v5385 = vpop.f32.mrf.mxu0
        %v5386 = vadd.f32 %v5065, %v5385
        %v5387 = vpop.f32.mrf.mxu0
        %5388 = vmatprep.mubr.f32.mxu0 %v5177
        %5389 = vmatmul.mubr.f32.gmra.mxu0 %v4595
        %v5390 = vpop.f32.mrf.mxu0
        %v5391 = vadd.f32 %v5070, %v5390
        %v5392 = vpop.f32.mrf.mxu0
        %5393 = vmatprep.mubr.f32.mxu0 %v5180
        %5394 = vmatmul.mubr.f32.gmra.mxu0 %v4597
        %v5395 = vpop.f32.mrf.mxu0
        %v5396 = vadd.f32 %v5075, %v5395
        %v5397 = vpop.f32.mrf.mxu0
        %5398 = vmatprep.mubr.f32.mxu0 %v5183
        %5399 = vmatmul.mubr.f32.gmra.mxu0 %v4599
        %v5400 = vpop.f32.mrf.mxu0
        %v5401 = vadd.f32 %v5080, %v5400
        %v5402 = vpop.f32.mrf.mxu0
        %5403 = vmatprep.mubr.f32.mxu0 %v5186
        %5404 = vmatmul.mubr.f32.gmra.mxu0 %v4601
        %v5405 = vpop.f32.mrf.mxu0
        %v5406 = vadd.f32 %v5085, %v5405
        %v5407 = vpop.f32.mrf.mxu0
        %5408 = vmatprep.mubr.f32.mxu0 %v5189
        %5409 = vmatmul.mubr.f32.gmra.mxu0 %v4603
        %v5410 = vpop.f32.mrf.mxu0
        %v5411 = vadd.f32 %v5090, %v5410
        %v5412 = vpop.f32.mrf.mxu0
        %5413 = vmatprep.mubr.f32.mxu0 %v5192
        %5414 = vmatmul.mubr.f32.gmra.mxu0 %v4605
        %v5415 = vpop.f32.mrf.mxu0
        %v5416 = vadd.f32 %v5095, %v5415
        %v5417 = vpop.f32.mrf.mxu0
        %5418 = vdwg.mxu0
        %s5419 = scalar_lea.vmem [#allocation11], 1024
        %v5420 = vld [vmem:[%s5419] sm:$0xff]
        %v5421 = vld [vmem:[%s5419 + $0x8] sm:$0xff]
        %v5422 = vld [vmem:[%s5419 + $0x10] sm:$0xff]
        %v5423 = vld [vmem:[%s5419 + $0x18] sm:$0xff]
        %v5424 = vld [vmem:[%s5419 + $0x20] sm:$0xff]
        %v5425 = vld [vmem:[%s5419 + $0x28] sm:$0xff]
        %v5426 = vld [vmem:[%s5419 + $0x30] sm:$0xff]
        %v5427 = vld [vmem:[%s5419 + $0x38] sm:$0xff]
        %v5428 = vld [vmem:[%s5419 + $0x40] sm:$0xff]
        %v5429 = vld [vmem:[%s5419 + $0x48] sm:$0xff]
        %v5430 = vld [vmem:[%s5419 + $0x50] sm:$0xff]
        %v5431 = vld [vmem:[%s5419 + $0x58] sm:$0xff]
        %v5432 = vld [vmem:[%s5419 + $0x60] sm:$0xff]
        %v5433 = vld [vmem:[%s5419 + $0x68] sm:$0xff]
        %v5434 = vld [vmem:[%s5419 + $0x70] sm:$0xff]
        %v5435 = vld [vmem:[%s5419 + $0x78] sm:$0xff]
        %v5436 = vld [vmem:[%s5419 + $0x80] sm:$0xff]
        %v5437 = vld [vmem:[%s5419 + $0x88] sm:$0xff]
        %v5438 = vld [vmem:[%s5419 + $0x90] sm:$0xff]
        %v5439 = vld [vmem:[%s5419 + $0x98] sm:$0xff]
        %v5440 = vld [vmem:[%s5419 + $0xa0] sm:$0xff]
        %v5441 = vld [vmem:[%s5419 + $0xa8] sm:$0xff]
        %v5442 = vld [vmem:[%s5419 + $0xb0] sm:$0xff]
        %v5443 = vld [vmem:[%s5419 + $0xb8] sm:$0xff]
        %v5444 = vld [vmem:[%s5419 + $0xc0] sm:$0xff]
        %v5445 = vld [vmem:[%s5419 + $0xc8] sm:$0xff]
        %v5446 = vld [vmem:[%s5419 + $0xd0] sm:$0xff]
        %v5447 = vld [vmem:[%s5419 + $0xd8] sm:$0xff]
        %v5448 = vld [vmem:[%s5419 + $0xe0] sm:$0xff]
        %v5449 = vld [vmem:[%s5419 + $0xe8] sm:$0xff]
        %v5450 = vld [vmem:[%s5419 + $0xf0] sm:$0xff]
        %v5451 = vld [vmem:[%s5419 + $0xf8] sm:$0xff]
        %v5452 = vld [vmem:[%s5419 + $0x100] sm:$0xff]
        %v5453 = vld [vmem:[%s5419 + $0x108] sm:$0xff]
        %v5454 = vld [vmem:[%s5419 + $0x110] sm:$0xff]
        %v5455 = vld [vmem:[%s5419 + $0x118] sm:$0xff]
        %v5456 = vld [vmem:[%s5419 + $0x120] sm:$0xff]
        %v5457 = vld [vmem:[%s5419 + $0x128] sm:$0xff]
        %v5458 = vld [vmem:[%s5419 + $0x130] sm:$0xff]
        %v5459 = vld [vmem:[%s5419 + $0x138] sm:$0xff]
        %v5460 = vld [vmem:[%s5419 + $0x140] sm:$0xff]
        %v5461 = vld [vmem:[%s5419 + $0x148] sm:$0xff]
        %v5462 = vld [vmem:[%s5419 + $0x150] sm:$0xff]
        %v5463 = vld [vmem:[%s5419 + $0x158] sm:$0xff]
        %v5464 = vld [vmem:[%s5419 + $0x160] sm:$0xff]
        %v5465 = vld [vmem:[%s5419 + $0x168] sm:$0xff]
        %v5466 = vld [vmem:[%s5419 + $0x170] sm:$0xff]
        %v5467 = vld [vmem:[%s5419 + $0x178] sm:$0xff]
        %v5468 = vld [vmem:[%s5419 + $0x180] sm:$0xff]
        %v5469 = vld [vmem:[%s5419 + $0x188] sm:$0xff]
        %v5470 = vld [vmem:[%s5419 + $0x190] sm:$0xff]
        %v5471 = vld [vmem:[%s5419 + $0x198] sm:$0xff]
        %v5472 = vld [vmem:[%s5419 + $0x1a0] sm:$0xff]
        %v5473 = vld [vmem:[%s5419 + $0x1a8] sm:$0xff]
        %v5474 = vld [vmem:[%s5419 + $0x1b0] sm:$0xff]
        %v5475 = vld [vmem:[%s5419 + $0x1b8] sm:$0xff]
        %v5476 = vld [vmem:[%s5419 + $0x1c0] sm:$0xff]
        %v5477 = vld [vmem:[%s5419 + $0x1c8] sm:$0xff]
        %v5478 = vld [vmem:[%s5419 + $0x1d0] sm:$0xff]
        %v5479 = vld [vmem:[%s5419 + $0x1d8] sm:$0xff]
        %v5480 = vld [vmem:[%s5419 + $0x1e0] sm:$0xff]
        %v5481 = vld [vmem:[%s5419 + $0x1e8] sm:$0xff]
        %v5482 = vld [vmem:[%s5419 + $0x1f0] sm:$0xff]
        %v5483 = vld [vmem:[%s5419 + $0x1f8] sm:$0xff]
        %5484 = vrot.lane.b32.xlu0 %v4517, 126
        %v5485 = vpop.permute.xlu0 %5484
        %5486 = vrot.lane.b32.xlu0 %v4518, 126
        %v5487 = vpop.permute.xlu0 %5486
        %5488 = vrot.lane.b32.xlu0 %v4519, 126
        %v5489 = vpop.permute.xlu0 %5488
        %5490 = vrot.lane.b32.xlu0 %v4520, 126
        %v5491 = vpop.permute.xlu0 %5490
        %5492 = vrot.lane.b32.xlu0 %v4521, 126
        %v5493 = vpop.permute.xlu0 %5492
        %5494 = vrot.lane.b32.xlu0 %v4522, 126
        %v5495 = vpop.permute.xlu0 %5494
        %5496 = vrot.lane.b32.xlu0 %v4523, 126
        %v5497 = vpop.permute.xlu0 %5496
        %5498 = vrot.lane.b32.xlu0 %v4524, 126
        %v5499 = vpop.permute.xlu0 %5498
        %5500 = vrot.lane.b32.xlu0 %v4525, 126
        %v5501 = vpop.permute.xlu0 %5500
        %5502 = vrot.lane.b32.xlu0 %v4526, 126
        %v5503 = vpop.permute.xlu0 %5502
        %5504 = vrot.lane.b32.xlu0 %v4527, 126
        %v5505 = vpop.permute.xlu0 %5504
        %5506 = vrot.lane.b32.xlu0 %v4528, 126
        %v5507 = vpop.permute.xlu0 %5506
        %5508 = vrot.lane.b32.xlu0 %v4529, 126
        %v5509 = vpop.permute.xlu0 %5508
        %5510 = vrot.lane.b32.xlu0 %v4530, 126
        %v5511 = vpop.permute.xlu0 %5510
        %5512 = vrot.lane.b32.xlu0 %v4531, 126
        %v5513 = vpop.permute.xlu0 %5512
        %5514 = vrot.lane.b32.xlu0 %v4532, 126
        %v5515 = vpop.permute.xlu0 %5514
        %5516 = vrot.lane.b32.xlu0 %v4533, 126
        %v5517 = vpop.permute.xlu0 %5516
        %5518 = vrot.lane.b32.xlu0 %v4534, 126
        %v5519 = vpop.permute.xlu0 %5518
        %5520 = vrot.lane.b32.xlu0 %v4535, 126
        %v5521 = vpop.permute.xlu0 %5520
        %5522 = vrot.lane.b32.xlu0 %v4536, 126
        %v5523 = vpop.permute.xlu0 %5522
        %5524 = vrot.lane.b32.xlu0 %v4537, 126
        %v5525 = vpop.permute.xlu0 %5524
        %5526 = vrot.lane.b32.xlu0 %v4538, 126
        %v5527 = vpop.permute.xlu0 %5526
        %5528 = vrot.lane.b32.xlu0 %v4539, 126
        %v5529 = vpop.permute.xlu0 %5528
        %5530 = vrot.lane.b32.xlu0 %v4540, 126
        %v5531 = vpop.permute.xlu0 %5530
        %5532 = vrot.lane.b32.xlu0 %v4541, 126
        %v5533 = vpop.permute.xlu0 %5532
        %5534 = vrot.lane.b32.xlu0 %v4542, 126
        %v5535 = vpop.permute.xlu0 %5534
        %v5563 = vsel %vm4776, %v5421, 0
        %v5566 = vsel %vm4776, %v5423, 0
        %v5569 = vsel %vm4776, %v5425, 0
        %v5572 = vsel %vm4776, %v5427, 0
        %v5575 = vsel %vm4776, %v5429, 0
        %v5578 = vsel %vm4776, %v5431, 0
        %v5581 = vsel %vm4776, %v5433, 0
        %v5584 = vsel %vm4776, %v5435, 0
        %v5587 = vsel %vm4776, %v5437, 0
        %v5590 = vsel %vm4776, %v5439, 0
        %v5593 = vsel %vm4776, %v5441, 0
        %v5596 = vsel %vm4776, %v5443, 0
        %v5599 = vsel %vm4776, %v5445, 0
        %v5602 = vsel %vm4776, %v5447, 0
        %v5605 = vsel %vm4776, %v5449, 0
        %v5608 = vsel %vm4776, %v5451, 0
        %v5611 = vsel %vm4776, %v5453, 0
        %v5614 = vsel %vm4776, %v5455, 0
        %v5617 = vsel %vm4776, %v5457, 0
        %v5620 = vsel %vm4776, %v5459, 0
        %v5623 = vsel %vm4776, %v5461, 0
        %v5626 = vsel %vm4776, %v5463, 0
        %v5629 = vsel %vm4776, %v5465, 0
        %v5632 = vsel %vm4776, %v5467, 0
        %v5635 = vsel %vm4776, %v5469, 0
        %v5638 = vsel %vm4776, %v5471, 0
        %v5641 = vsel %vm4776, %v5473, 0
        %v5644 = vsel %vm4776, %v5475, 0
        %v5647 = vsel %vm4776, %v5477, 0
        %v5650 = vsel %vm4776, %v5479, 0
        %v5653 = vsel %vm4776, %v5481, 0
        %v5656 = vsel %vm4776, %v5483, 0
        %5658 = vmatprep.subr.mxu0 0.0
        %5659 = vmatpush1.msra.mxu0 %v5515
        %5660 = vmatprep.subr.mxu0 0.0
        %5661 = vmatpush1.msra.mxu0 %v5513
        %5662 = vmatprep.subr.mxu0 0.0
        %5663 = vmatpush1.msra.mxu0 %v5511
        %5664 = vmatprep.subr.mxu0 0.0
        %5665 = vmatpush1.msra.mxu0 %v5509
        %5666 = vmatprep.subr.mxu0 0.0
        %5667 = vmatpush1.msra.mxu0 %v5507
        %5668 = vmatprep.subr.mxu0 0.0
        %5669 = vmatpush1.msra.mxu0 %v5505
        %5670 = vmatprep.subr.mxu0 0.0
        %5671 = vmatpush1.msra.mxu0 %v5503
        %5672 = vmatprep.subr.mxu0 0.0
        %5673 = vmatpush1.msra.mxu0 %v5501
        %5674 = vmatprep.subr.mxu0 0.0
        %5675 = vmatpush1.msra.mxu0 %v5499
        %5676 = vmatprep.subr.mxu0 0.0
        %5677 = vmatpush1.msra.mxu0 %v5497
        %5678 = vmatprep.subr.mxu0 0.0
        %5679 = vmatpush1.msra.mxu0 %v5495
        %5680 = vmatprep.subr.mxu0 0.0
        %5681 = vmatpush1.msra.mxu0 %v5493
        %5682 = vmatprep.subr.mxu0 0.0
        %5683 = vmatpush1.msra.mxu0 %v5491
        %5684 = vmatprep.subr.mxu0 0.0
        %5685 = vmatpush1.msra.mxu0 %v5489
        %5686 = vmatprep.subr.mxu0 0.0
        %5687 = vmatpush1.msra.mxu0 %v5487
        %5688 = vmatprep.subr.mxu0 0.0
        %5689 = vmatpush1.msra.mxu0 %v5485
        %5690 = vmatprep.subr.mxu0 0.0
        %5691 = vmatpush2.msra.mxu0 0.0
        %5692 = vmatprep.subr.mxu0 0.0
        %5693 = vmatpush2.msra.mxu0 0.0
        %5694 = vmatprep.subr.mxu0 0.0
        %5695 = vmatpush2.msra.mxu0 0.0
        %5696 = vmatprep.subr.mxu0 0.0
        %5697 = vmatpush2.msra.mxu0 0.0
        %5698 = vmatprep.subr.mxu0 0.0
        %5699 = vmatpush2.msra.mxu0 0.0
        %5700 = vmatprep.subr.mxu0 0.0
        %5701 = vmatpush2.msra.mxu0 0.0
        %5702 = vmatprep.subr.mxu0 0.0
        %5703 = vmatpush2.msra.mxu0 %v5535
        %5704 = vmatprep.subr.mxu0 0.0
        %5705 = vmatpush2.msra.mxu0 %v5533
        %5706 = vmatprep.subr.mxu0 0.0
        %5707 = vmatpush2.msra.mxu0 %v5531
        %5708 = vmatprep.subr.mxu0 0.0
        %5709 = vmatpush2.msra.mxu0 %v5529
        %5710 = vmatprep.subr.mxu0 0.0
        %5711 = vmatpush2.msra.mxu0 %v5527
        %5712 = vmatprep.subr.mxu0 0.0
        %5713 = vmatpush2.msra.mxu0 %v5525
        %5714 = vmatprep.subr.mxu0 0.0
        %5715 = vmatpush2.msra.mxu0 %v5523
        %5716 = vmatprep.subr.mxu0 0.0
        %5717 = vmatpush2.msra.mxu0 %v5521
        %5718 = vmatprep.subr.mxu0 0.0
        %5719 = vmatpush2.msra.mxu0 %v5519
        %5720 = vmatprep.subr.mxu0 0.0
        %5721 = vmatpush2.msra.mxu0 %v5517
        %5722 = vmatprep.mubr.f32.mxu0 %v5563
        %5723 = vmatmul.mubr.f32.gmra.mxu0 %v5420
        %v5724 = vpop.f32.mrf.mxu0
        %v5725 = vadd.f32 0.0, %v5724
        %v5726 = vpop.f32.mrf.mxu0
        %5727 = vmatprep.mubr.f32.mxu0 %v5566
        %5728 = vmatmul.mubr.f32.gmra.mxu0 %v5422
        %v5729 = vpop.f32.mrf.mxu0
        %v5730 = vadd.f32 0.0, %v5729
        %v5731 = vpop.f32.mrf.mxu0
        %5732 = vmatprep.mubr.f32.mxu0 %v5569
        %5733 = vmatmul.mubr.f32.gmra.mxu0 %v5424
        %v5734 = vpop.f32.mrf.mxu0
        %v5735 = vadd.f32 0.0, %v5734
        %v5736 = vpop.f32.mrf.mxu0
        %5737 = vmatprep.mubr.f32.mxu0 %v5572
        %5738 = vmatmul.mubr.f32.gmra.mxu0 %v5426
        %v5739 = vpop.f32.mrf.mxu0
        %v5740 = vadd.f32 0.0, %v5739
        %v5741 = vpop.f32.mrf.mxu0
        %5742 = vmatprep.mubr.f32.mxu0 %v5575
        %5743 = vmatmul.mubr.f32.gmra.mxu0 %v5428
        %v5744 = vpop.f32.mrf.mxu0
        %v5745 = vadd.f32 0.0, %v5744
        %v5746 = vpop.f32.mrf.mxu0
        %5747 = vmatprep.mubr.f32.mxu0 %v5578
        %5748 = vmatmul.mubr.f32.gmra.mxu0 %v5430
        %v5749 = vpop.f32.mrf.mxu0
        %v5750 = vadd.f32 0.0, %v5749
        %v5751 = vpop.f32.mrf.mxu0
        %5752 = vmatprep.mubr.f32.mxu0 %v5581
        %5753 = vmatmul.mubr.f32.gmra.mxu0 %v5432
        %v5754 = vpop.f32.mrf.mxu0
        %v5755 = vadd.f32 0.0, %v5754
        %v5756 = vpop.f32.mrf.mxu0
        %5757 = vmatprep.mubr.f32.mxu0 %v5584
        %5758 = vmatmul.mubr.f32.gmra.mxu0 %v5434
        %v5759 = vpop.f32.mrf.mxu0
        %v5760 = vadd.f32 0.0, %v5759
        %v5761 = vpop.f32.mrf.mxu0
        %5762 = vmatprep.mubr.f32.mxu0 %v5587
        %5763 = vmatmul.mubr.f32.gmra.mxu0 %v5436
        %v5764 = vpop.f32.mrf.mxu0
        %v5765 = vadd.f32 0.0, %v5764
        %v5766 = vpop.f32.mrf.mxu0
        %5767 = vmatprep.mubr.f32.mxu0 %v5590
        %5768 = vmatmul.mubr.f32.gmra.mxu0 %v5438
        %v5769 = vpop.f32.mrf.mxu0
        %v5770 = vadd.f32 0.0, %v5769
        %v5771 = vpop.f32.mrf.mxu0
        %5772 = vmatprep.mubr.f32.mxu0 %v5593
        %5773 = vmatmul.mubr.f32.gmra.mxu0 %v5440
        %v5774 = vpop.f32.mrf.mxu0
        %v5775 = vadd.f32 0.0, %v5774
        %v5776 = vpop.f32.mrf.mxu0
        %5777 = vmatprep.mubr.f32.mxu0 %v5596
        %5778 = vmatmul.mubr.f32.gmra.mxu0 %v5442
        %v5779 = vpop.f32.mrf.mxu0
        %v5780 = vadd.f32 0.0, %v5779
        %v5781 = vpop.f32.mrf.mxu0
        %5782 = vmatprep.mubr.f32.mxu0 %v5599
        %5783 = vmatmul.mubr.f32.gmra.mxu0 %v5444
        %v5784 = vpop.f32.mrf.mxu0
        %v5785 = vadd.f32 0.0, %v5784
        %v5786 = vpop.f32.mrf.mxu0
        %5787 = vmatprep.mubr.f32.mxu0 %v5602
        %5788 = vmatmul.mubr.f32.gmra.mxu0 %v5446
        %v5789 = vpop.f32.mrf.mxu0
        %v5790 = vadd.f32 0.0, %v5789
        %v5791 = vpop.f32.mrf.mxu0
        %5792 = vmatprep.mubr.f32.mxu0 %v5605
        %5793 = vmatmul.mubr.f32.gmra.mxu0 %v5448
        %v5794 = vpop.f32.mrf.mxu0
        %v5795 = vadd.f32 0.0, %v5794
        %v5796 = vpop.f32.mrf.mxu0
        %5797 = vmatprep.mubr.f32.mxu0 %v5608
        %5798 = vmatmul.mubr.f32.gmra.mxu0 %v5450
        %v5799 = vpop.f32.mrf.mxu0
        %v5800 = vadd.f32 0.0, %v5799
        %v5801 = vpop.f32.mrf.mxu0
        %5802 = vmatprep.mubr.f32.mxu0 %v5611
        %5803 = vmatmul.mubr.f32.gmra.mxu0 %v5452
        %v5804 = vpop.f32.mrf.mxu0
        %v5805 = vadd.f32 0.0, %v5804
        %v5806 = vpop.f32.mrf.mxu0
        %5807 = vmatprep.mubr.f32.mxu0 %v5614
        %5808 = vmatmul.mubr.f32.gmra.mxu0 %v5454
        %v5809 = vpop.f32.mrf.mxu0
        %v5810 = vadd.f32 0.0, %v5809
        %v5811 = vpop.f32.mrf.mxu0
        %5812 = vmatprep.mubr.f32.mxu0 %v5617
        %5813 = vmatmul.mubr.f32.gmra.mxu0 %v5456
        %v5814 = vpop.f32.mrf.mxu0
        %v5815 = vadd.f32 0.0, %v5814
        %v5816 = vpop.f32.mrf.mxu0
        %5817 = vmatprep.mubr.f32.mxu0 %v5620
        %5818 = vmatmul.mubr.f32.gmra.mxu0 %v5458
        %v5819 = vpop.f32.mrf.mxu0
        %v5820 = vadd.f32 0.0, %v5819
        %v5821 = vpop.f32.mrf.mxu0
        %5822 = vmatprep.mubr.f32.mxu0 %v5623
        %5823 = vmatmul.mubr.f32.gmra.mxu0 %v5460
        %v5824 = vpop.f32.mrf.mxu0
        %v5825 = vadd.f32 0.0, %v5824
        %v5826 = vpop.f32.mrf.mxu0
        %5827 = vmatprep.mubr.f32.mxu0 %v5626
        %5828 = vmatmul.mubr.f32.gmra.mxu0 %v5462
        %v5829 = vpop.f32.mrf.mxu0
        %v5830 = vadd.f32 0.0, %v5829
        %v5831 = vpop.f32.mrf.mxu0
        %5832 = vmatprep.mubr.f32.mxu0 %v5629
        %5833 = vmatmul.mubr.f32.gmra.mxu0 %v5464
        %v5834 = vpop.f32.mrf.mxu0
        %v5835 = vadd.f32 0.0, %v5834
        %v5836 = vpop.f32.mrf.mxu0
        %5837 = vmatprep.mubr.f32.mxu0 %v5632
        %5838 = vmatmul.mubr.f32.gmra.mxu0 %v5466
        %v5839 = vpop.f32.mrf.mxu0
        %v5840 = vadd.f32 0.0, %v5839
        %v5841 = vpop.f32.mrf.mxu0
        %5842 = vmatprep.mubr.f32.mxu0 %v5635
        %5843 = vmatmul.mubr.f32.gmra.mxu0 %v5468
        %v5844 = vpop.f32.mrf.mxu0
        %v5845 = vadd.f32 0.0, %v5844
        %v5846 = vpop.f32.mrf.mxu0
        %5847 = vmatprep.mubr.f32.mxu0 %v5638
        %5848 = vmatmul.mubr.f32.gmra.mxu0 %v5470
        %v5849 = vpop.f32.mrf.mxu0
        %v5850 = vadd.f32 0.0, %v5849
        %v5851 = vpop.f32.mrf.mxu0
        %5852 = vmatprep.mubr.f32.mxu0 %v5641
        %5853 = vmatmul.mubr.f32.gmra.mxu0 %v5472
        %v5854 = vpop.f32.mrf.mxu0
        %v5855 = vadd.f32 0.0, %v5854
        %v5856 = vpop.f32.mrf.mxu0
        %5857 = vmatprep.mubr.f32.mxu0 %v5644
        %5858 = vmatmul.mubr.f32.gmra.mxu0 %v5474
        %v5859 = vpop.f32.mrf.mxu0
        %v5860 = vadd.f32 0.0, %v5859
        %v5861 = vpop.f32.mrf.mxu0
        %5862 = vmatprep.mubr.f32.mxu0 %v5647
        %5863 = vmatmul.mubr.f32.gmra.mxu0 %v5476
        %v5864 = vpop.f32.mrf.mxu0
        %v5865 = vadd.f32 0.0, %v5864
        %v5866 = vpop.f32.mrf.mxu0
        %5867 = vmatprep.mubr.f32.mxu0 %v5650
        %5868 = vmatmul.mubr.f32.gmra.mxu0 %v5478
        %v5869 = vpop.f32.mrf.mxu0
        %v5870 = vadd.f32 0.0, %v5869
        %v5871 = vpop.f32.mrf.mxu0
        %5872 = vmatprep.mubr.f32.mxu0 %v5653
        %5873 = vmatmul.mubr.f32.gmra.mxu0 %v5480
        %v5874 = vpop.f32.mrf.mxu0
        %v5875 = vadd.f32 0.0, %v5874
        %v5876 = vpop.f32.mrf.mxu0
        %5877 = vmatprep.mubr.f32.mxu0 %v5656
        %5878 = vmatmul.mubr.f32.gmra.mxu0 %v5482
        %v5879 = vpop.f32.mrf.mxu0
        %v5880 = vadd.f32 0.0, %v5879
        %v5881 = vpop.f32.mrf.mxu0
        %5882 = vdwg.mxu0
        %v5883 = vadd.f32 %v5261, %v5725
        %v5884 = vadd.f32 %v5266, %v5730
        %v5885 = vadd.f32 %v5271, %v5735
        %v5886 = vadd.f32 %v5276, %v5740
        %v5887 = vadd.f32 %v5281, %v5745
        %v5888 = vadd.f32 %v5286, %v5750
        %v5889 = vadd.f32 %v5291, %v5755
        %v5890 = vadd.f32 %v5296, %v5760
        %v5891 = vadd.f32 %v5301, %v5765
        %v5892 = vadd.f32 %v5306, %v5770
        %v5893 = vadd.f32 %v5311, %v5775
        %v5894 = vadd.f32 %v5316, %v5780
        %v5895 = vadd.f32 %v5321, %v5785
        %v5896 = vadd.f32 %v5326, %v5790
        %v5897 = vadd.f32 %v5331, %v5795
        %v5898 = vadd.f32 %v5336, %v5800
        %v5899 = vadd.f32 %v5341, %v5805
        %v5900 = vadd.f32 %v5346, %v5810
        %v5901 = vadd.f32 %v5351, %v5815
        %v5902 = vadd.f32 %v5356, %v5820
        %v5903 = vadd.f32 %v5361, %v5825
        %v5904 = vadd.f32 %v5366, %v5830
        %v5905 = vadd.f32 %v5371, %v5835
        %v5906 = vadd.f32 %v5376, %v5840
        %v5907 = vadd.f32 %v5381, %v5845
        %v5908 = vadd.f32 %v5386, %v5850
        %v5909 = vadd.f32 %v5391, %v5855
        %v5910 = vadd.f32 %v5396, %v5860
        %v5911 = vadd.f32 %v5401, %v5865
        %v5912 = vadd.f32 %v5406, %v5870
        %v5913 = vadd.f32 %v5411, %v5875
        %v5914 = vadd.f32 %v5416, %v5880
        %s5915 = scalar_lea.vmem [#allocation11], 1536
        %v5916 = vld [vmem:[%s5915] sm:$0xff]
        %v5917 = vld [vmem:[%s5915 + $0x8] sm:$0xff]
        %v5918 = vld [vmem:[%s5915 + $0x10] sm:$0xff]
        %v5919 = vld [vmem:[%s5915 + $0x18] sm:$0xff]
        %v5920 = vld [vmem:[%s5915 + $0x20] sm:$0xff]
        %v5921 = vld [vmem:[%s5915 + $0x28] sm:$0xff]
        %v5922 = vld [vmem:[%s5915 + $0x30] sm:$0xff]
        %v5923 = vld [vmem:[%s5915 + $0x38] sm:$0xff]
        %v5924 = vld [vmem:[%s5915 + $0x40] sm:$0xff]
        %v5925 = vld [vmem:[%s5915 + $0x48] sm:$0xff]
        %v5926 = vld [vmem:[%s5915 + $0x50] sm:$0xff]
        %v5927 = vld [vmem:[%s5915 + $0x58] sm:$0xff]
        %v5928 = vld [vmem:[%s5915 + $0x60] sm:$0xff]
        %v5929 = vld [vmem:[%s5915 + $0x68] sm:$0xff]
        %v5930 = vld [vmem:[%s5915 + $0x70] sm:$0xff]
        %v5931 = vld [vmem:[%s5915 + $0x78] sm:$0xff]
        %v5932 = vld [vmem:[%s5915 + $0x80] sm:$0xff]
        %v5933 = vld [vmem:[%s5915 + $0x88] sm:$0xff]
        %v5934 = vld [vmem:[%s5915 + $0x90] sm:$0xff]
        %v5935 = vld [vmem:[%s5915 + $0x98] sm:$0xff]
        %v5936 = vld [vmem:[%s5915 + $0xa0] sm:$0xff]
        %v5937 = vld [vmem:[%s5915 + $0xa8] sm:$0xff]
        %v5938 = vld [vmem:[%s5915 + $0xb0] sm:$0xff]
        %v5939 = vld [vmem:[%s5915 + $0xb8] sm:$0xff]
        %v5940 = vld [vmem:[%s5915 + $0xc0] sm:$0xff]
        %v5941 = vld [vmem:[%s5915 + $0xc8] sm:$0xff]
        %v5942 = vld [vmem:[%s5915 + $0xd0] sm:$0xff]
        %v5943 = vld [vmem:[%s5915 + $0xd8] sm:$0xff]
        %v5944 = vld [vmem:[%s5915 + $0xe0] sm:$0xff]
        %v5945 = vld [vmem:[%s5915 + $0xe8] sm:$0xff]
        %v5946 = vld [vmem:[%s5915 + $0xf0] sm:$0xff]
        %v5947 = vld [vmem:[%s5915 + $0xf8] sm:$0xff]
        %v5948 = vld [vmem:[%s5915 + $0x100] sm:$0xff]
        %v5949 = vld [vmem:[%s5915 + $0x108] sm:$0xff]
        %v5950 = vld [vmem:[%s5915 + $0x110] sm:$0xff]
        %v5951 = vld [vmem:[%s5915 + $0x118] sm:$0xff]
        %v5952 = vld [vmem:[%s5915 + $0x120] sm:$0xff]
        %v5953 = vld [vmem:[%s5915 + $0x128] sm:$0xff]
        %v5954 = vld [vmem:[%s5915 + $0x130] sm:$0xff]
        %v5955 = vld [vmem:[%s5915 + $0x138] sm:$0xff]
        %v5956 = vld [vmem:[%s5915 + $0x140] sm:$0xff]
        %v5957 = vld [vmem:[%s5915 + $0x148] sm:$0xff]
        %v5958 = vld [vmem:[%s5915 + $0x150] sm:$0xff]
        %v5959 = vld [vmem:[%s5915 + $0x158] sm:$0xff]
        %v5960 = vld [vmem:[%s5915 + $0x160] sm:$0xff]
        %v5961 = vld [vmem:[%s5915 + $0x168] sm:$0xff]
        %v5962 = vld [vmem:[%s5915 + $0x170] sm:$0xff]
        %v5963 = vld [vmem:[%s5915 + $0x178] sm:$0xff]
        %v5964 = vld [vmem:[%s5915 + $0x180] sm:$0xff]
        %v5965 = vld [vmem:[%s5915 + $0x188] sm:$0xff]
        %v5966 = vld [vmem:[%s5915 + $0x190] sm:$0xff]
        %v5967 = vld [vmem:[%s5915 + $0x198] sm:$0xff]
        %v5968 = vld [vmem:[%s5915 + $0x1a0] sm:$0xff]
        %v5969 = vld [vmem:[%s5915 + $0x1a8] sm:$0xff]
        %v5970 = vld [vmem:[%s5915 + $0x1b0] sm:$0xff]
        %v5971 = vld [vmem:[%s5915 + $0x1b8] sm:$0xff]
        %v5972 = vld [vmem:[%s5915 + $0x1c0] sm:$0xff]
        %v5973 = vld [vmem:[%s5915 + $0x1c8] sm:$0xff]
        %v5974 = vld [vmem:[%s5915 + $0x1d0] sm:$0xff]
        %v5975 = vld [vmem:[%s5915 + $0x1d8] sm:$0xff]
        %v5976 = vld [vmem:[%s5915 + $0x1e0] sm:$0xff]
        %v5977 = vld [vmem:[%s5915 + $0x1e8] sm:$0xff]
        %v5978 = vld [vmem:[%s5915 + $0x1f0] sm:$0xff]
        %v5979 = vld [vmem:[%s5915 + $0x1f8] sm:$0xff]
        %5980 = vrot.lane.b32.xlu0 %v4517, 125
        %v5981 = vpop.permute.xlu0 %5980
        %5982 = vrot.lane.b32.xlu0 %v4518, 125
        %v5983 = vpop.permute.xlu0 %5982
        %5984 = vrot.lane.b32.xlu0 %v4519, 125
        %v5985 = vpop.permute.xlu0 %5984
        %5986 = vrot.lane.b32.xlu0 %v4520, 125
        %v5987 = vpop.permute.xlu0 %5986
        %5988 = vrot.lane.b32.xlu0 %v4521, 125
        %v5989 = vpop.permute.xlu0 %5988
        %5990 = vrot.lane.b32.xlu0 %v4522, 125
        %v5991 = vpop.permute.xlu0 %5990
        %5992 = vrot.lane.b32.xlu0 %v4523, 125
        %v5993 = vpop.permute.xlu0 %5992
        %5994 = vrot.lane.b32.xlu0 %v4524, 125
        %v5995 = vpop.permute.xlu0 %5994
        %5996 = vrot.lane.b32.xlu0 %v4525, 125
        %v5997 = vpop.permute.xlu0 %5996
        %5998 = vrot.lane.b32.xlu0 %v4526, 125
        %v5999 = vpop.permute.xlu0 %5998
        %6000 = vrot.lane.b32.xlu0 %v4527, 125
        %v6001 = vpop.permute.xlu0 %6000
        %6002 = vrot.lane.b32.xlu0 %v4528, 125
        %v6003 = vpop.permute.xlu0 %6002
        %6004 = vrot.lane.b32.xlu0 %v4529, 125
        %v6005 = vpop.permute.xlu0 %6004
        %6006 = vrot.lane.b32.xlu0 %v4530, 125
        %v6007 = vpop.permute.xlu0 %6006
        %6008 = vrot.lane.b32.xlu0 %v4531, 125
        %v6009 = vpop.permute.xlu0 %6008
        %6010 = vrot.lane.b32.xlu0 %v4532, 125
        %v6011 = vpop.permute.xlu0 %6010
        %6012 = vrot.lane.b32.xlu0 %v4533, 125
        %v6013 = vpop.permute.xlu0 %6012
        %6014 = vrot.lane.b32.xlu0 %v4534, 125
        %v6015 = vpop.permute.xlu0 %6014
        %6016 = vrot.lane.b32.xlu0 %v4535, 125
        %v6017 = vpop.permute.xlu0 %6016
        %6018 = vrot.lane.b32.xlu0 %v4536, 125
        %v6019 = vpop.permute.xlu0 %6018
        %6020 = vrot.lane.b32.xlu0 %v4537, 125
        %v6021 = vpop.permute.xlu0 %6020
        %6022 = vrot.lane.b32.xlu0 %v4538, 125
        %v6023 = vpop.permute.xlu0 %6022
        %6024 = vrot.lane.b32.xlu0 %v4539, 125
        %v6025 = vpop.permute.xlu0 %6024
        %6026 = vrot.lane.b32.xlu0 %v4540, 125
        %v6027 = vpop.permute.xlu0 %6026
        %6028 = vrot.lane.b32.xlu0 %v4541, 125
        %v6029 = vpop.permute.xlu0 %6028
        %6030 = vrot.lane.b32.xlu0 %v4542, 125
        %v6031 = vpop.permute.xlu0 %6030
        %v6059 = vsel %vm4776, %v5917, 0
        %v6062 = vsel %vm4776, %v5919, 0
        %v6065 = vsel %vm4776, %v5921, 0
        %v6068 = vsel %vm4776, %v5923, 0
        %v6071 = vsel %vm4776, %v5925, 0
        %v6074 = vsel %vm4776, %v5927, 0
        %v6077 = vsel %vm4776, %v5929, 0
        %v6080 = vsel %vm4776, %v5931, 0
        %v6083 = vsel %vm4776, %v5933, 0
        %v6086 = vsel %vm4776, %v5935, 0
        %v6089 = vsel %vm4776, %v5937, 0
        %v6092 = vsel %vm4776, %v5939, 0
        %v6095 = vsel %vm4776, %v5941, 0
        %v6098 = vsel %vm4776, %v5943, 0
        %v6101 = vsel %vm4776, %v5945, 0
        %v6104 = vsel %vm4776, %v5947, 0
        %v6107 = vsel %vm4776, %v5949, 0
        %v6110 = vsel %vm4776, %v5951, 0
        %v6113 = vsel %vm4776, %v5953, 0
        %v6116 = vsel %vm4776, %v5955, 0
        %v6119 = vsel %vm4776, %v5957, 0
        %v6122 = vsel %vm4776, %v5959, 0
        %v6125 = vsel %vm4776, %v5961, 0
        %v6128 = vsel %vm4776, %v5963, 0
        %v6131 = vsel %vm4776, %v5965, 0
        %v6134 = vsel %vm4776, %v5967, 0
        %v6137 = vsel %vm4776, %v5969, 0
        %v6140 = vsel %vm4776, %v5971, 0
        %v6143 = vsel %vm4776, %v5973, 0
        %v6146 = vsel %vm4776, %v5975, 0
        %v6149 = vsel %vm4776, %v5977, 0
        %v6152 = vsel %vm4776, %v5979, 0
        %6154 = vmatprep.subr.mxu0 0.0
        %6155 = vmatpush1.msra.mxu0 %v6011
        %6156 = vmatprep.subr.mxu0 0.0
        %6157 = vmatpush1.msra.mxu0 %v6009
        %6158 = vmatprep.subr.mxu0 0.0
        %6159 = vmatpush1.msra.mxu0 %v6007
        %6160 = vmatprep.subr.mxu0 0.0
        %6161 = vmatpush1.msra.mxu0 %v6005
        %6162 = vmatprep.subr.mxu0 0.0
        %6163 = vmatpush1.msra.mxu0 %v6003
        %6164 = vmatprep.subr.mxu0 0.0
        %6165 = vmatpush1.msra.mxu0 %v6001
        %6166 = vmatprep.subr.mxu0 0.0
        %6167 = vmatpush1.msra.mxu0 %v5999
        %6168 = vmatprep.subr.mxu0 0.0
        %6169 = vmatpush1.msra.mxu0 %v5997
        %6170 = vmatprep.subr.mxu0 0.0
        %6171 = vmatpush1.msra.mxu0 %v5995
        %6172 = vmatprep.subr.mxu0 0.0
        %6173 = vmatpush1.msra.mxu0 %v5993
        %6174 = vmatprep.subr.mxu0 0.0
        %6175 = vmatpush1.msra.mxu0 %v5991
        %6176 = vmatprep.subr.mxu0 0.0
        %6177 = vmatpush1.msra.mxu0 %v5989
        %6178 = vmatprep.subr.mxu0 0.0
        %6179 = vmatpush1.msra.mxu0 %v5987
        %6180 = vmatprep.subr.mxu0 0.0
        %6181 = vmatpush1.msra.mxu0 %v5985
        %6182 = vmatprep.subr.mxu0 0.0
        %6183 = vmatpush1.msra.mxu0 %v5983
        %6184 = vmatprep.subr.mxu0 0.0
        %6185 = vmatpush1.msra.mxu0 %v5981
        %6186 = vmatprep.subr.mxu0 0.0
        %6187 = vmatpush2.msra.mxu0 0.0
        %6188 = vmatprep.subr.mxu0 0.0
        %6189 = vmatpush2.msra.mxu0 0.0
        %6190 = vmatprep.subr.mxu0 0.0
        %6191 = vmatpush2.msra.mxu0 0.0
        %6192 = vmatprep.subr.mxu0 0.0
        %6193 = vmatpush2.msra.mxu0 0.0
        %6194 = vmatprep.subr.mxu0 0.0
        %6195 = vmatpush2.msra.mxu0 0.0
        %6196 = vmatprep.subr.mxu0 0.0
        %6197 = vmatpush2.msra.mxu0 0.0
        %6198 = vmatprep.subr.mxu0 0.0
        %6199 = vmatpush2.msra.mxu0 %v6031
        %6200 = vmatprep.subr.mxu0 0.0
        %6201 = vmatpush2.msra.mxu0 %v6029
        %6202 = vmatprep.subr.mxu0 0.0
        %6203 = vmatpush2.msra.mxu0 %v6027
        %6204 = vmatprep.subr.mxu0 0.0
        %6205 = vmatpush2.msra.mxu0 %v6025
        %6206 = vmatprep.subr.mxu0 0.0
        %6207 = vmatpush2.msra.mxu0 %v6023
        %6208 = vmatprep.subr.mxu0 0.0
        %6209 = vmatpush2.msra.mxu0 %v6021
        %6210 = vmatprep.subr.mxu0 0.0
        %6211 = vmatpush2.msra.mxu0 %v6019
        %6212 = vmatprep.subr.mxu0 0.0
        %6213 = vmatpush2.msra.mxu0 %v6017
        %6214 = vmatprep.subr.mxu0 0.0
        %6215 = vmatpush2.msra.mxu0 %v6015
        %6216 = vmatprep.subr.mxu0 0.0
        %6217 = vmatpush2.msra.mxu0 %v6013
        %6218 = vmatprep.mubr.f32.mxu0 %v6059
        %6219 = vmatmul.mubr.f32.gmra.mxu0 %v5916
        %v6220 = vpop.f32.mrf.mxu0
        %v6221 = vadd.f32 0.0, %v6220
        %v6222 = vpop.f32.mrf.mxu0
        %6223 = vmatprep.mubr.f32.mxu0 %v6062
        %6224 = vmatmul.mubr.f32.gmra.mxu0 %v5918
        %v6225 = vpop.f32.mrf.mxu0
        %v6226 = vadd.f32 0.0, %v6225
        %v6227 = vpop.f32.mrf.mxu0
        %6228 = vmatprep.mubr.f32.mxu0 %v6065
        %6229 = vmatmul.mubr.f32.gmra.mxu0 %v5920
        %v6230 = vpop.f32.mrf.mxu0
        %v6231 = vadd.f32 0.0, %v6230
        %v6232 = vpop.f32.mrf.mxu0
        %6233 = vmatprep.mubr.f32.mxu0 %v6068
        %6234 = vmatmul.mubr.f32.gmra.mxu0 %v5922
        %v6235 = vpop.f32.mrf.mxu0
        %v6236 = vadd.f32 0.0, %v6235
        %v6237 = vpop.f32.mrf.mxu0
        %6238 = vmatprep.mubr.f32.mxu0 %v6071
        %6239 = vmatmul.mubr.f32.gmra.mxu0 %v5924
        %v6240 = vpop.f32.mrf.mxu0
        %v6241 = vadd.f32 0.0, %v6240
        %v6242 = vpop.f32.mrf.mxu0
        %6243 = vmatprep.mubr.f32.mxu0 %v6074
        %6244 = vmatmul.mubr.f32.gmra.mxu0 %v5926
        %v6245 = vpop.f32.mrf.mxu0
        %v6246 = vadd.f32 0.0, %v6245
        %v6247 = vpop.f32.mrf.mxu0
        %6248 = vmatprep.mubr.f32.mxu0 %v6077
        %6249 = vmatmul.mubr.f32.gmra.mxu0 %v5928
        %v6250 = vpop.f32.mrf.mxu0
        %v6251 = vadd.f32 0.0, %v6250
        %v6252 = vpop.f32.mrf.mxu0
        %6253 = vmatprep.mubr.f32.mxu0 %v6080
        %6254 = vmatmul.mubr.f32.gmra.mxu0 %v5930
        %v6255 = vpop.f32.mrf.mxu0
        %v6256 = vadd.f32 0.0, %v6255
        %v6257 = vpop.f32.mrf.mxu0
        %6258 = vmatprep.mubr.f32.mxu0 %v6083
        %6259 = vmatmul.mubr.f32.gmra.mxu0 %v5932
        %v6260 = vpop.f32.mrf.mxu0
        %v6261 = vadd.f32 0.0, %v6260
        %v6262 = vpop.f32.mrf.mxu0
        %6263 = vmatprep.mubr.f32.mxu0 %v6086
        %6264 = vmatmul.mubr.f32.gmra.mxu0 %v5934
        %v6265 = vpop.f32.mrf.mxu0
        %v6266 = vadd.f32 0.0, %v6265
        %v6267 = vpop.f32.mrf.mxu0
        %6268 = vmatprep.mubr.f32.mxu0 %v6089
        %6269 = vmatmul.mubr.f32.gmra.mxu0 %v5936
        %v6270 = vpop.f32.mrf.mxu0
        %v6271 = vadd.f32 0.0, %v6270
        %v6272 = vpop.f32.mrf.mxu0
        %6273 = vmatprep.mubr.f32.mxu0 %v6092
        %6274 = vmatmul.mubr.f32.gmra.mxu0 %v5938
        %v6275 = vpop.f32.mrf.mxu0
        %v6276 = vadd.f32 0.0, %v6275
        %v6277 = vpop.f32.mrf.mxu0
        %6278 = vmatprep.mubr.f32.mxu0 %v6095
        %6279 = vmatmul.mubr.f32.gmra.mxu0 %v5940
        %v6280 = vpop.f32.mrf.mxu0
        %v6281 = vadd.f32 0.0, %v6280
        %v6282 = vpop.f32.mrf.mxu0
        %6283 = vmatprep.mubr.f32.mxu0 %v6098
        %6284 = vmatmul.mubr.f32.gmra.mxu0 %v5942
        %v6285 = vpop.f32.mrf.mxu0
        %v6286 = vadd.f32 0.0, %v6285
        %v6287 = vpop.f32.mrf.mxu0
        %6288 = vmatprep.mubr.f32.mxu0 %v6101
        %6289 = vmatmul.mubr.f32.gmra.mxu0 %v5944
        %v6290 = vpop.f32.mrf.mxu0
        %v6291 = vadd.f32 0.0, %v6290
        %v6292 = vpop.f32.mrf.mxu0
        %6293 = vmatprep.mubr.f32.mxu0 %v6104
        %6294 = vmatmul.mubr.f32.gmra.mxu0 %v5946
        %v6295 = vpop.f32.mrf.mxu0
        %v6296 = vadd.f32 0.0, %v6295
        %v6297 = vpop.f32.mrf.mxu0
        %6298 = vmatprep.mubr.f32.mxu0 %v6107
        %6299 = vmatmul.mubr.f32.gmra.mxu0 %v5948
        %v6300 = vpop.f32.mrf.mxu0
        %v6301 = vadd.f32 0.0, %v6300
        %v6302 = vpop.f32.mrf.mxu0
        %6303 = vmatprep.mubr.f32.mxu0 %v6110
        %6304 = vmatmul.mubr.f32.gmra.mxu0 %v5950
        %v6305 = vpop.f32.mrf.mxu0
        %v6306 = vadd.f32 0.0, %v6305
        %v6307 = vpop.f32.mrf.mxu0
        %6308 = vmatprep.mubr.f32.mxu0 %v6113
        %6309 = vmatmul.mubr.f32.gmra.mxu0 %v5952
        %v6310 = vpop.f32.mrf.mxu0
        %v6311 = vadd.f32 0.0, %v6310
        %v6312 = vpop.f32.mrf.mxu0
        %6313 = vmatprep.mubr.f32.mxu0 %v6116
        %6314 = vmatmul.mubr.f32.gmra.mxu0 %v5954
        %v6315 = vpop.f32.mrf.mxu0
        %v6316 = vadd.f32 0.0, %v6315
        %v6317 = vpop.f32.mrf.mxu0
        %6318 = vmatprep.mubr.f32.mxu0 %v6119
        %6319 = vmatmul.mubr.f32.gmra.mxu0 %v5956
        %v6320 = vpop.f32.mrf.mxu0
        %v6321 = vadd.f32 0.0, %v6320
        %v6322 = vpop.f32.mrf.mxu0
        %6323 = vmatprep.mubr.f32.mxu0 %v6122
        %6324 = vmatmul.mubr.f32.gmra.mxu0 %v5958
        %v6325 = vpop.f32.mrf.mxu0
        %v6326 = vadd.f32 0.0, %v6325
        %v6327 = vpop.f32.mrf.mxu0
        %6328 = vmatprep.mubr.f32.mxu0 %v6125
        %6329 = vmatmul.mubr.f32.gmra.mxu0 %v5960
        %v6330 = vpop.f32.mrf.mxu0
        %v6331 = vadd.f32 0.0, %v6330
        %v6332 = vpop.f32.mrf.mxu0
        %6333 = vmatprep.mubr.f32.mxu0 %v6128
        %6334 = vmatmul.mubr.f32.gmra.mxu0 %v5962
        %v6335 = vpop.f32.mrf.mxu0
        %v6336 = vadd.f32 0.0, %v6335
        %v6337 = vpop.f32.mrf.mxu0
        %6338 = vmatprep.mubr.f32.mxu0 %v6131
        %6339 = vmatmul.mubr.f32.gmra.mxu0 %v5964
        %v6340 = vpop.f32.mrf.mxu0
        %v6341 = vadd.f32 0.0, %v6340
        %v6342 = vpop.f32.mrf.mxu0
        %6343 = vmatprep.mubr.f32.mxu0 %v6134
        %6344 = vmatmul.mubr.f32.gmra.mxu0 %v5966
        %v6345 = vpop.f32.mrf.mxu0
        %v6346 = vadd.f32 0.0, %v6345
        %v6347 = vpop.f32.mrf.mxu0
        %6348 = vmatprep.mubr.f32.mxu0 %v6137
        %6349 = vmatmul.mubr.f32.gmra.mxu0 %v5968
        %v6350 = vpop.f32.mrf.mxu0
        %v6351 = vadd.f32 0.0, %v6350
        %v6352 = vpop.f32.mrf.mxu0
        %6353 = vmatprep.mubr.f32.mxu0 %v6140
        %6354 = vmatmul.mubr.f32.gmra.mxu0 %v5970
        %v6355 = vpop.f32.mrf.mxu0
        %v6356 = vadd.f32 0.0, %v6355
        %v6357 = vpop.f32.mrf.mxu0
        %6358 = vmatprep.mubr.f32.mxu0 %v6143
        %6359 = vmatmul.mubr.f32.gmra.mxu0 %v5972
        %v6360 = vpop.f32.mrf.mxu0
        %v6361 = vadd.f32 0.0, %v6360
        %v6362 = vpop.f32.mrf.mxu0
        %6363 = vmatprep.mubr.f32.mxu0 %v6146
        %6364 = vmatmul.mubr.f32.gmra.mxu0 %v5974
        %v6365 = vpop.f32.mrf.mxu0
        %v6366 = vadd.f32 0.0, %v6365
        %v6367 = vpop.f32.mrf.mxu0
        %6368 = vmatprep.mubr.f32.mxu0 %v6149
        %6369 = vmatmul.mubr.f32.gmra.mxu0 %v5976
        %v6370 = vpop.f32.mrf.mxu0
        %v6371 = vadd.f32 0.0, %v6370
        %v6372 = vpop.f32.mrf.mxu0
        %6373 = vmatprep.mubr.f32.mxu0 %v6152
        %6374 = vmatmul.mubr.f32.gmra.mxu0 %v5978
        %v6375 = vpop.f32.mrf.mxu0
        %v6376 = vadd.f32 0.0, %v6375
        %v6377 = vpop.f32.mrf.mxu0
        %6378 = vdwg.mxu0
        %v6379 = vadd.f32 %v5883, %v6221
        %v6380 = vadd.f32 %v5884, %v6226
        %v6381 = vadd.f32 %v5885, %v6231
        %v6382 = vadd.f32 %v5886, %v6236
        %v6383 = vadd.f32 %v5887, %v6241
        %v6384 = vadd.f32 %v5888, %v6246
        %v6385 = vadd.f32 %v5889, %v6251
        %v6386 = vadd.f32 %v5890, %v6256
        %v6387 = vadd.f32 %v5891, %v6261
        %v6388 = vadd.f32 %v5892, %v6266
        %v6389 = vadd.f32 %v5893, %v6271
        %v6390 = vadd.f32 %v5894, %v6276
        %v6391 = vadd.f32 %v5895, %v6281
        %v6392 = vadd.f32 %v5896, %v6286
        %v6393 = vadd.f32 %v5897, %v6291
        %v6394 = vadd.f32 %v5898, %v6296
        %v6395 = vadd.f32 %v5899, %v6301
        %v6396 = vadd.f32 %v5900, %v6306
        %v6397 = vadd.f32 %v5901, %v6311
        %v6398 = vadd.f32 %v5902, %v6316
        %v6399 = vadd.f32 %v5903, %v6321
        %v6400 = vadd.f32 %v5904, %v6326
        %v6401 = vadd.f32 %v5905, %v6331
        %v6402 = vadd.f32 %v5906, %v6336
        %v6403 = vadd.f32 %v5907, %v6341
        %v6404 = vadd.f32 %v5908, %v6346
        %v6405 = vadd.f32 %v5909, %v6351
        %v6406 = vadd.f32 %v5910, %v6356
        %v6407 = vadd.f32 %v5911, %v6361
        %v6408 = vadd.f32 %v5912, %v6366
        %v6409 = vadd.f32 %v5913, %v6371
        %v6410 = vadd.f32 %v5914, %v6376
        %s6411 = scalar_lea.vmem [#allocation11], 2048
        %v6412 = vld [vmem:[%s6411] sm:$0xff]
        %v6413 = vld [vmem:[%s6411 + $0x8] sm:$0xff]
        %v6414 = vld [vmem:[%s6411 + $0x10] sm:$0xff]
        %v6415 = vld [vmem:[%s6411 + $0x18] sm:$0xff]
        %v6416 = vld [vmem:[%s6411 + $0x20] sm:$0xff]
        %v6417 = vld [vmem:[%s6411 + $0x28] sm:$0xff]
        %v6418 = vld [vmem:[%s6411 + $0x30] sm:$0xff]
        %v6419 = vld [vmem:[%s6411 + $0x38] sm:$0xff]
        %v6420 = vld [vmem:[%s6411 + $0x40] sm:$0xff]
        %v6421 = vld [vmem:[%s6411 + $0x48] sm:$0xff]
        %v6422 = vld [vmem:[%s6411 + $0x50] sm:$0xff]
        %v6423 = vld [vmem:[%s6411 + $0x58] sm:$0xff]
        %v6424 = vld [vmem:[%s6411 + $0x60] sm:$0xff]
        %v6425 = vld [vmem:[%s6411 + $0x68] sm:$0xff]
        %v6426 = vld [vmem:[%s6411 + $0x70] sm:$0xff]
        %v6427 = vld [vmem:[%s6411 + $0x78] sm:$0xff]
        %v6428 = vld [vmem:[%s6411 + $0x80] sm:$0xff]
        %v6429 = vld [vmem:[%s6411 + $0x88] sm:$0xff]
        %v6430 = vld [vmem:[%s6411 + $0x90] sm:$0xff]
        %v6431 = vld [vmem:[%s6411 + $0x98] sm:$0xff]
        %v6432 = vld [vmem:[%s6411 + $0xa0] sm:$0xff]
        %v6433 = vld [vmem:[%s6411 + $0xa8] sm:$0xff]
        %v6434 = vld [vmem:[%s6411 + $0xb0] sm:$0xff]
        %v6435 = vld [vmem:[%s6411 + $0xb8] sm:$0xff]
        %v6436 = vld [vmem:[%s6411 + $0xc0] sm:$0xff]
        %v6437 = vld [vmem:[%s6411 + $0xc8] sm:$0xff]
        %v6438 = vld [vmem:[%s6411 + $0xd0] sm:$0xff]
        %v6439 = vld [vmem:[%s6411 + $0xd8] sm:$0xff]
        %v6440 = vld [vmem:[%s6411 + $0xe0] sm:$0xff]
        %v6441 = vld [vmem:[%s6411 + $0xe8] sm:$0xff]
        %v6442 = vld [vmem:[%s6411 + $0xf0] sm:$0xff]
        %v6443 = vld [vmem:[%s6411 + $0xf8] sm:$0xff]
        %v6444 = vld [vmem:[%s6411 + $0x100] sm:$0xff]
        %v6445 = vld [vmem:[%s6411 + $0x108] sm:$0xff]
        %v6446 = vld [vmem:[%s6411 + $0x110] sm:$0xff]
        %v6447 = vld [vmem:[%s6411 + $0x118] sm:$0xff]
        %v6448 = vld [vmem:[%s6411 + $0x120] sm:$0xff]
        %v6449 = vld [vmem:[%s6411 + $0x128] sm:$0xff]
        %v6450 = vld [vmem:[%s6411 + $0x130] sm:$0xff]
        %v6451 = vld [vmem:[%s6411 + $0x138] sm:$0xff]
        %v6452 = vld [vmem:[%s6411 + $0x140] sm:$0xff]
        %v6453 = vld [vmem:[%s6411 + $0x148] sm:$0xff]
        %v6454 = vld [vmem:[%s6411 + $0x150] sm:$0xff]
        %v6455 = vld [vmem:[%s6411 + $0x158] sm:$0xff]
        %v6456 = vld [vmem:[%s6411 + $0x160] sm:$0xff]
        %v6457 = vld [vmem:[%s6411 + $0x168] sm:$0xff]
        %v6458 = vld [vmem:[%s6411 + $0x170] sm:$0xff]
        %v6459 = vld [vmem:[%s6411 + $0x178] sm:$0xff]
        %v6460 = vld [vmem:[%s6411 + $0x180] sm:$0xff]
        %v6461 = vld [vmem:[%s6411 + $0x188] sm:$0xff]
        %v6462 = vld [vmem:[%s6411 + $0x190] sm:$0xff]
        %v6463 = vld [vmem:[%s6411 + $0x198] sm:$0xff]
        %v6464 = vld [vmem:[%s6411 + $0x1a0] sm:$0xff]
        %v6465 = vld [vmem:[%s6411 + $0x1a8] sm:$0xff]
        %v6466 = vld [vmem:[%s6411 + $0x1b0] sm:$0xff]
        %v6467 = vld [vmem:[%s6411 + $0x1b8] sm:$0xff]
        %v6468 = vld [vmem:[%s6411 + $0x1c0] sm:$0xff]
        %v6469 = vld [vmem:[%s6411 + $0x1c8] sm:$0xff]
        %v6470 = vld [vmem:[%s6411 + $0x1d0] sm:$0xff]
        %v6471 = vld [vmem:[%s6411 + $0x1d8] sm:$0xff]
        %v6472 = vld [vmem:[%s6411 + $0x1e0] sm:$0xff]
        %v6473 = vld [vmem:[%s6411 + $0x1e8] sm:$0xff]
        %v6474 = vld [vmem:[%s6411 + $0x1f0] sm:$0xff]
        %v6475 = vld [vmem:[%s6411 + $0x1f8] sm:$0xff]
        %6476 = vrot.lane.b32.xlu0 %v4517, 124
        %v6477 = vpop.permute.xlu0 %6476
        %6478 = vrot.lane.b32.xlu0 %v4518, 124
        %v6479 = vpop.permute.xlu0 %6478
        %6480 = vrot.lane.b32.xlu0 %v4519, 124
        %v6481 = vpop.permute.xlu0 %6480
        %6482 = vrot.lane.b32.xlu0 %v4520, 124
        %v6483 = vpop.permute.xlu0 %6482
        %6484 = vrot.lane.b32.xlu0 %v4521, 124
        %v6485 = vpop.permute.xlu0 %6484
        %6486 = vrot.lane.b32.xlu0 %v4522, 124
        %v6487 = vpop.permute.xlu0 %6486
        %6488 = vrot.lane.b32.xlu0 %v4523, 124
        %v6489 = vpop.permute.xlu0 %6488
        %6490 = vrot.lane.b32.xlu0 %v4524, 124
        %v6491 = vpop.permute.xlu0 %6490
        %6492 = vrot.lane.b32.xlu0 %v4525, 124
        %v6493 = vpop.permute.xlu0 %6492
        %6494 = vrot.lane.b32.xlu0 %v4526, 124
        %v6495 = vpop.permute.xlu0 %6494
        %6496 = vrot.lane.b32.xlu0 %v4527, 124
        %v6497 = vpop.permute.xlu0 %6496
        %6498 = vrot.lane.b32.xlu0 %v4528, 124
        %v6499 = vpop.permute.xlu0 %6498
        %6500 = vrot.lane.b32.xlu0 %v4529, 124
        %v6501 = vpop.permute.xlu0 %6500
        %6502 = vrot.lane.b32.xlu0 %v4530, 124
        %v6503 = vpop.permute.xlu0 %6502
        %6504 = vrot.lane.b32.xlu0 %v4531, 124
        %v6505 = vpop.permute.xlu0 %6504
        %6506 = vrot.lane.b32.xlu0 %v4532, 124
        %v6507 = vpop.permute.xlu0 %6506
        %6508 = vrot.lane.b32.xlu0 %v4533, 124
        %v6509 = vpop.permute.xlu0 %6508
        %6510 = vrot.lane.b32.xlu0 %v4534, 124
        %v6511 = vpop.permute.xlu0 %6510
        %6512 = vrot.lane.b32.xlu0 %v4535, 124
        %v6513 = vpop.permute.xlu0 %6512
        %6514 = vrot.lane.b32.xlu0 %v4536, 124
        %v6515 = vpop.permute.xlu0 %6514
        %6516 = vrot.lane.b32.xlu0 %v4537, 124
        %v6517 = vpop.permute.xlu0 %6516
        %6518 = vrot.lane.b32.xlu0 %v4538, 124
        %v6519 = vpop.permute.xlu0 %6518
        %6520 = vrot.lane.b32.xlu0 %v4539, 124
        %v6521 = vpop.permute.xlu0 %6520
        %6522 = vrot.lane.b32.xlu0 %v4540, 124
        %v6523 = vpop.permute.xlu0 %6522
        %6524 = vrot.lane.b32.xlu0 %v4541, 124
        %v6525 = vpop.permute.xlu0 %6524
        %6526 = vrot.lane.b32.xlu0 %v4542, 124
        %v6527 = vpop.permute.xlu0 %6526
        %v6555 = vsel %vm4776, %v6413, 0
        %v6558 = vsel %vm4776, %v6415, 0
        %v6561 = vsel %vm4776, %v6417, 0
        %v6564 = vsel %vm4776, %v6419, 0
        %v6567 = vsel %vm4776, %v6421, 0
        %v6570 = vsel %vm4776, %v6423, 0
        %v6573 = vsel %vm4776, %v6425, 0
        %v6576 = vsel %vm4776, %v6427, 0
        %v6579 = vsel %vm4776, %v6429, 0
        %v6582 = vsel %vm4776, %v6431, 0
        %v6585 = vsel %vm4776, %v6433, 0
        %v6588 = vsel %vm4776, %v6435, 0
        %v6591 = vsel %vm4776, %v6437, 0
        %v6594 = vsel %vm4776, %v6439, 0
        %v6597 = vsel %vm4776, %v6441, 0
        %v6600 = vsel %vm4776, %v6443, 0
        %v6603 = vsel %vm4776, %v6445, 0
        %v6606 = vsel %vm4776, %v6447, 0
        %v6609 = vsel %vm4776, %v6449, 0
        %v6612 = vsel %vm4776, %v6451, 0
        %v6615 = vsel %vm4776, %v6453, 0
        %v6618 = vsel %vm4776, %v6455, 0
        %v6621 = vsel %vm4776, %v6457, 0
        %v6624 = vsel %vm4776, %v6459, 0
        %v6627 = vsel %vm4776, %v6461, 0
        %v6630 = vsel %vm4776, %v6463, 0
        %v6633 = vsel %vm4776, %v6465, 0
        %v6636 = vsel %vm4776, %v6467, 0
        %v6639 = vsel %vm4776, %v6469, 0
        %v6642 = vsel %vm4776, %v6471, 0
        %v6645 = vsel %vm4776, %v6473, 0
        %v6648 = vsel %vm4776, %v6475, 0
        %6650 = vmatprep.subr.mxu0 0.0
        %6651 = vmatpush1.msra.mxu0 %v6507
        %6652 = vmatprep.subr.mxu0 0.0
        %6653 = vmatpush1.msra.mxu0 %v6505
        %6654 = vmatprep.subr.mxu0 0.0
        %6655 = vmatpush1.msra.mxu0 %v6503
        %6656 = vmatprep.subr.mxu0 0.0
        %6657 = vmatpush1.msra.mxu0 %v6501
        %6658 = vmatprep.subr.mxu0 0.0
        %6659 = vmatpush1.msra.mxu0 %v6499
        %6660 = vmatprep.subr.mxu0 0.0
        %6661 = vmatpush1.msra.mxu0 %v6497
        %6662 = vmatprep.subr.mxu0 0.0
        %6663 = vmatpush1.msra.mxu0 %v6495
        %6664 = vmatprep.subr.mxu0 0.0
        %6665 = vmatpush1.msra.mxu0 %v6493
        %6666 = vmatprep.subr.mxu0 0.0
        %6667 = vmatpush1.msra.mxu0 %v6491
        %6668 = vmatprep.subr.mxu0 0.0
        %6669 = vmatpush1.msra.mxu0 %v6489
        %6670 = vmatprep.subr.mxu0 0.0
        %6671 = vmatpush1.msra.mxu0 %v6487
        %6672 = vmatprep.subr.mxu0 0.0
        %6673 = vmatpush1.msra.mxu0 %v6485
        %6674 = vmatprep.subr.mxu0 0.0
        %6675 = vmatpush1.msra.mxu0 %v6483
        %6676 = vmatprep.subr.mxu0 0.0
        %6677 = vmatpush1.msra.mxu0 %v6481
        %6678 = vmatprep.subr.mxu0 0.0
        %6679 = vmatpush1.msra.mxu0 %v6479
        %6680 = vmatprep.subr.mxu0 0.0
        %6681 = vmatpush1.msra.mxu0 %v6477
        %6682 = vmatprep.subr.mxu0 0.0
        %6683 = vmatpush2.msra.mxu0 0.0
        %6684 = vmatprep.subr.mxu0 0.0
        %6685 = vmatpush2.msra.mxu0 0.0
        %6686 = vmatprep.subr.mxu0 0.0
        %6687 = vmatpush2.msra.mxu0 0.0
        %6688 = vmatprep.subr.mxu0 0.0
        %6689 = vmatpush2.msra.mxu0 0.0
        %6690 = vmatprep.subr.mxu0 0.0
        %6691 = vmatpush2.msra.mxu0 0.0
        %6692 = vmatprep.subr.mxu0 0.0
        %6693 = vmatpush2.msra.mxu0 0.0
        %6694 = vmatprep.subr.mxu0 0.0
        %6695 = vmatpush2.msra.mxu0 %v6527
        %6696 = vmatprep.subr.mxu0 0.0
        %6697 = vmatpush2.msra.mxu0 %v6525
        %6698 = vmatprep.subr.mxu0 0.0
        %6699 = vmatpush2.msra.mxu0 %v6523
        %6700 = vmatprep.subr.mxu0 0.0
        %6701 = vmatpush2.msra.mxu0 %v6521
        %6702 = vmatprep.subr.mxu0 0.0
        %6703 = vmatpush2.msra.mxu0 %v6519
        %6704 = vmatprep.subr.mxu0 0.0
        %6705 = vmatpush2.msra.mxu0 %v6517
        %6706 = vmatprep.subr.mxu0 0.0
        %6707 = vmatpush2.msra.mxu0 %v6515
        %6708 = vmatprep.subr.mxu0 0.0
        %6709 = vmatpush2.msra.mxu0 %v6513
        %6710 = vmatprep.subr.mxu0 0.0
        %6711 = vmatpush2.msra.mxu0 %v6511
        %6712 = vmatprep.subr.mxu0 0.0
        %6713 = vmatpush2.msra.mxu0 %v6509
        %6714 = vmatprep.mubr.f32.mxu0 %v6555
        %6715 = vmatmul.mubr.f32.gmra.mxu0 %v6412
        %v6716 = vpop.f32.mrf.mxu0
        %v6717 = vadd.f32 0.0, %v6716
        %v6718 = vpop.f32.mrf.mxu0
        %6719 = vmatprep.mubr.f32.mxu0 %v6558
        %6720 = vmatmul.mubr.f32.gmra.mxu0 %v6414
        %v6721 = vpop.f32.mrf.mxu0
        %v6722 = vadd.f32 0.0, %v6721
        %v6723 = vpop.f32.mrf.mxu0
        %6724 = vmatprep.mubr.f32.mxu0 %v6561
        %6725 = vmatmul.mubr.f32.gmra.mxu0 %v6416
        %v6726 = vpop.f32.mrf.mxu0
        %v6727 = vadd.f32 0.0, %v6726
        %v6728 = vpop.f32.mrf.mxu0
        %6729 = vmatprep.mubr.f32.mxu0 %v6564
        %6730 = vmatmul.mubr.f32.gmra.mxu0 %v6418
        %v6731 = vpop.f32.mrf.mxu0
        %v6732 = vadd.f32 0.0, %v6731
        %v6733 = vpop.f32.mrf.mxu0
        %6734 = vmatprep.mubr.f32.mxu0 %v6567
        %6735 = vmatmul.mubr.f32.gmra.mxu0 %v6420
        %v6736 = vpop.f32.mrf.mxu0
        %v6737 = vadd.f32 0.0, %v6736
        %v6738 = vpop.f32.mrf.mxu0
        %6739 = vmatprep.mubr.f32.mxu0 %v6570
        %6740 = vmatmul.mubr.f32.gmra.mxu0 %v6422
        %v6741 = vpop.f32.mrf.mxu0
        %v6742 = vadd.f32 0.0, %v6741
        %v6743 = vpop.f32.mrf.mxu0
        %6744 = vmatprep.mubr.f32.mxu0 %v6573
        %6745 = vmatmul.mubr.f32.gmra.mxu0 %v6424
        %v6746 = vpop.f32.mrf.mxu0
        %v6747 = vadd.f32 0.0, %v6746
        %v6748 = vpop.f32.mrf.mxu0
        %6749 = vmatprep.mubr.f32.mxu0 %v6576
        %6750 = vmatmul.mubr.f32.gmra.mxu0 %v6426
        %v6751 = vpop.f32.mrf.mxu0
        %v6752 = vadd.f32 0.0, %v6751
        %v6753 = vpop.f32.mrf.mxu0
        %6754 = vmatprep.mubr.f32.mxu0 %v6579
        %6755 = vmatmul.mubr.f32.gmra.mxu0 %v6428
        %v6756 = vpop.f32.mrf.mxu0
        %v6757 = vadd.f32 0.0, %v6756
        %v6758 = vpop.f32.mrf.mxu0
        %6759 = vmatprep.mubr.f32.mxu0 %v6582
        %6760 = vmatmul.mubr.f32.gmra.mxu0 %v6430
        %v6761 = vpop.f32.mrf.mxu0
        %v6762 = vadd.f32 0.0, %v6761
        %v6763 = vpop.f32.mrf.mxu0
        %6764 = vmatprep.mubr.f32.mxu0 %v6585
        %6765 = vmatmul.mubr.f32.gmra.mxu0 %v6432
        %v6766 = vpop.f32.mrf.mxu0
        %v6767 = vadd.f32 0.0, %v6766
        %v6768 = vpop.f32.mrf.mxu0
        %6769 = vmatprep.mubr.f32.mxu0 %v6588
        %6770 = vmatmul.mubr.f32.gmra.mxu0 %v6434
        %v6771 = vpop.f32.mrf.mxu0
        %v6772 = vadd.f32 0.0, %v6771
        %v6773 = vpop.f32.mrf.mxu0
        %6774 = vmatprep.mubr.f32.mxu0 %v6591
        %6775 = vmatmul.mubr.f32.gmra.mxu0 %v6436
        %v6776 = vpop.f32.mrf.mxu0
        %v6777 = vadd.f32 0.0, %v6776
        %v6778 = vpop.f32.mrf.mxu0
        %6779 = vmatprep.mubr.f32.mxu0 %v6594
        %6780 = vmatmul.mubr.f32.gmra.mxu0 %v6438
        %v6781 = vpop.f32.mrf.mxu0
        %v6782 = vadd.f32 0.0, %v6781
        %v6783 = vpop.f32.mrf.mxu0
        %6784 = vmatprep.mubr.f32.mxu0 %v6597
        %6785 = vmatmul.mubr.f32.gmra.mxu0 %v6440
        %v6786 = vpop.f32.mrf.mxu0
        %v6787 = vadd.f32 0.0, %v6786
        %v6788 = vpop.f32.mrf.mxu0
        %6789 = vmatprep.mubr.f32.mxu0 %v6600
        %6790 = vmatmul.mubr.f32.gmra.mxu0 %v6442
        %v6791 = vpop.f32.mrf.mxu0
        %v6792 = vadd.f32 0.0, %v6791
        %v6793 = vpop.f32.mrf.mxu0
        %6794 = vmatprep.mubr.f32.mxu0 %v6603
        %6795 = vmatmul.mubr.f32.gmra.mxu0 %v6444
        %v6796 = vpop.f32.mrf.mxu0
        %v6797 = vadd.f32 0.0, %v6796
        %v6798 = vpop.f32.mrf.mxu0
        %6799 = vmatprep.mubr.f32.mxu0 %v6606
        %6800 = vmatmul.mubr.f32.gmra.mxu0 %v6446
        %v6801 = vpop.f32.mrf.mxu0
        %v6802 = vadd.f32 0.0, %v6801
        %v6803 = vpop.f32.mrf.mxu0
        %6804 = vmatprep.mubr.f32.mxu0 %v6609
        %6805 = vmatmul.mubr.f32.gmra.mxu0 %v6448
        %v6806 = vpop.f32.mrf.mxu0
        %v6807 = vadd.f32 0.0, %v6806
        %v6808 = vpop.f32.mrf.mxu0
        %6809 = vmatprep.mubr.f32.mxu0 %v6612
        %6810 = vmatmul.mubr.f32.gmra.mxu0 %v6450
        %v6811 = vpop.f32.mrf.mxu0
        %v6812 = vadd.f32 0.0, %v6811
        %v6813 = vpop.f32.mrf.mxu0
        %6814 = vmatprep.mubr.f32.mxu0 %v6615
        %6815 = vmatmul.mubr.f32.gmra.mxu0 %v6452
        %v6816 = vpop.f32.mrf.mxu0
        %v6817 = vadd.f32 0.0, %v6816
        %v6818 = vpop.f32.mrf.mxu0
        %6819 = vmatprep.mubr.f32.mxu0 %v6618
        %6820 = vmatmul.mubr.f32.gmra.mxu0 %v6454
        %v6821 = vpop.f32.mrf.mxu0
        %v6822 = vadd.f32 0.0, %v6821
        %v6823 = vpop.f32.mrf.mxu0
        %6824 = vmatprep.mubr.f32.mxu0 %v6621
        %6825 = vmatmul.mubr.f32.gmra.mxu0 %v6456
        %v6826 = vpop.f32.mrf.mxu0
        %v6827 = vadd.f32 0.0, %v6826
        %v6828 = vpop.f32.mrf.mxu0
        %6829 = vmatprep.mubr.f32.mxu0 %v6624
        %6830 = vmatmul.mubr.f32.gmra.mxu0 %v6458
        %v6831 = vpop.f32.mrf.mxu0
        %v6832 = vadd.f32 0.0, %v6831
        %v6833 = vpop.f32.mrf.mxu0
        %6834 = vmatprep.mubr.f32.mxu0 %v6627
        %6835 = vmatmul.mubr.f32.gmra.mxu0 %v6460
        %v6836 = vpop.f32.mrf.mxu0
        %v6837 = vadd.f32 0.0, %v6836
        %v6838 = vpop.f32.mrf.mxu0
        %6839 = vmatprep.mubr.f32.mxu0 %v6630
        %6840 = vmatmul.mubr.f32.gmra.mxu0 %v6462
        %v6841 = vpop.f32.mrf.mxu0
        %v6842 = vadd.f32 0.0, %v6841
        %v6843 = vpop.f32.mrf.mxu0
        %6844 = vmatprep.mubr.f32.mxu0 %v6633
        %6845 = vmatmul.mubr.f32.gmra.mxu0 %v6464
        %v6846 = vpop.f32.mrf.mxu0
        %v6847 = vadd.f32 0.0, %v6846
        %v6848 = vpop.f32.mrf.mxu0
        %6849 = vmatprep.mubr.f32.mxu0 %v6636
        %6850 = vmatmul.mubr.f32.gmra.mxu0 %v6466
        %v6851 = vpop.f32.mrf.mxu0
        %v6852 = vadd.f32 0.0, %v6851
        %v6853 = vpop.f32.mrf.mxu0
        %6854 = vmatprep.mubr.f32.mxu0 %v6639
        %6855 = vmatmul.mubr.f32.gmra.mxu0 %v6468
        %v6856 = vpop.f32.mrf.mxu0
        %v6857 = vadd.f32 0.0, %v6856
        %v6858 = vpop.f32.mrf.mxu0
        %6859 = vmatprep.mubr.f32.mxu0 %v6642
        %6860 = vmatmul.mubr.f32.gmra.mxu0 %v6470
        %v6861 = vpop.f32.mrf.mxu0
        %v6862 = vadd.f32 0.0, %v6861
        %v6863 = vpop.f32.mrf.mxu0
        %6864 = vmatprep.mubr.f32.mxu0 %v6645
        %6865 = vmatmul.mubr.f32.gmra.mxu0 %v6472
        %v6866 = vpop.f32.mrf.mxu0
        %v6867 = vadd.f32 0.0, %v6866
        %v6868 = vpop.f32.mrf.mxu0
        %6869 = vmatprep.mubr.f32.mxu0 %v6648
        %6870 = vmatmul.mubr.f32.gmra.mxu0 %v6474
        %v6871 = vpop.f32.mrf.mxu0
        %v6872 = vadd.f32 0.0, %v6871
        %v6873 = vpop.f32.mrf.mxu0
        %6874 = vdwg.mxu0
        %v6875 = vadd.f32 %v6379, %v6717
        %v6876 = vadd.f32 %v6380, %v6722
        %v6877 = vadd.f32 %v6381, %v6727
        %v6878 = vadd.f32 %v6382, %v6732
        %v6879 = vadd.f32 %v6383, %v6737
        %v6880 = vadd.f32 %v6384, %v6742
        %v6881 = vadd.f32 %v6385, %v6747
        %v6882 = vadd.f32 %v6386, %v6752
        %v6883 = vadd.f32 %v6387, %v6757
        %v6884 = vadd.f32 %v6388, %v6762
        %v6885 = vadd.f32 %v6389, %v6767
        %v6886 = vadd.f32 %v6390, %v6772
        %v6887 = vadd.f32 %v6391, %v6777
        %v6888 = vadd.f32 %v6392, %v6782
        %v6889 = vadd.f32 %v6393, %v6787
        %v6890 = vadd.f32 %v6394, %v6792
        %v6891 = vadd.f32 %v6395, %v6797
        %v6892 = vadd.f32 %v6396, %v6802
        %v6893 = vadd.f32 %v6397, %v6807
        %v6894 = vadd.f32 %v6398, %v6812
        %v6895 = vadd.f32 %v6399, %v6817
        %v6896 = vadd.f32 %v6400, %v6822
        %v6897 = vadd.f32 %v6401, %v6827
        %v6898 = vadd.f32 %v6402, %v6832
        %v6899 = vadd.f32 %v6403, %v6837
        %v6900 = vadd.f32 %v6404, %v6842
        %v6901 = vadd.f32 %v6405, %v6847
        %v6902 = vadd.f32 %v6406, %v6852
        %v6903 = vadd.f32 %v6407, %v6857
        %v6904 = vadd.f32 %v6408, %v6862
        %v6905 = vadd.f32 %v6409, %v6867
        %v6906 = vadd.f32 %v6410, %v6872
        %s6907 = scalar_lea.vmem [#allocation11], 2560
        %v6908 = vld [vmem:[%s6907] sm:$0xff]
        %v6909 = vld [vmem:[%s6907 + $0x8] sm:$0xff]
        %v6910 = vld [vmem:[%s6907 + $0x10] sm:$0xff]
        %v6911 = vld [vmem:[%s6907 + $0x18] sm:$0xff]
        %v6912 = vld [vmem:[%s6907 + $0x20] sm:$0xff]
        %v6913 = vld [vmem:[%s6907 + $0x28] sm:$0xff]
        %v6914 = vld [vmem:[%s6907 + $0x30] sm:$0xff]
        %v6915 = vld [vmem:[%s6907 + $0x38] sm:$0xff]
        %v6916 = vld [vmem:[%s6907 + $0x40] sm:$0xff]
        %v6917 = vld [vmem:[%s6907 + $0x48] sm:$0xff]
        %v6918 = vld [vmem:[%s6907 + $0x50] sm:$0xff]
        %v6919 = vld [vmem:[%s6907 + $0x58] sm:$0xff]
        %v6920 = vld [vmem:[%s6907 + $0x60] sm:$0xff]
        %v6921 = vld [vmem:[%s6907 + $0x68] sm:$0xff]
        %v6922 = vld [vmem:[%s6907 + $0x70] sm:$0xff]
        %v6923 = vld [vmem:[%s6907 + $0x78] sm:$0xff]
        %v6924 = vld [vmem:[%s6907 + $0x80] sm:$0xff]
        %v6925 = vld [vmem:[%s6907 + $0x88] sm:$0xff]
        %v6926 = vld [vmem:[%s6907 + $0x90] sm:$0xff]
        %v6927 = vld [vmem:[%s6907 + $0x98] sm:$0xff]
        %v6928 = vld [vmem:[%s6907 + $0xa0] sm:$0xff]
        %v6929 = vld [vmem:[%s6907 + $0xa8] sm:$0xff]
        %v6930 = vld [vmem:[%s6907 + $0xb0] sm:$0xff]
        %v6931 = vld [vmem:[%s6907 + $0xb8] sm:$0xff]
        %v6932 = vld [vmem:[%s6907 + $0xc0] sm:$0xff]
        %v6933 = vld [vmem:[%s6907 + $0xc8] sm:$0xff]
        %v6934 = vld [vmem:[%s6907 + $0xd0] sm:$0xff]
        %v6935 = vld [vmem:[%s6907 + $0xd8] sm:$0xff]
        %v6936 = vld [vmem:[%s6907 + $0xe0] sm:$0xff]
        %v6937 = vld [vmem:[%s6907 + $0xe8] sm:$0xff]
        %v6938 = vld [vmem:[%s6907 + $0xf0] sm:$0xff]
        %v6939 = vld [vmem:[%s6907 + $0xf8] sm:$0xff]
        %v6940 = vld [vmem:[%s6907 + $0x100] sm:$0xff]
        %v6941 = vld [vmem:[%s6907 + $0x108] sm:$0xff]
        %v6942 = vld [vmem:[%s6907 + $0x110] sm:$0xff]
        %v6943 = vld [vmem:[%s6907 + $0x118] sm:$0xff]
        %v6944 = vld [vmem:[%s6907 + $0x120] sm:$0xff]
        %v6945 = vld [vmem:[%s6907 + $0x128] sm:$0xff]
        %v6946 = vld [vmem:[%s6907 + $0x130] sm:$0xff]
        %v6947 = vld [vmem:[%s6907 + $0x138] sm:$0xff]
        %v6948 = vld [vmem:[%s6907 + $0x140] sm:$0xff]
        %v6949 = vld [vmem:[%s6907 + $0x148] sm:$0xff]
        %v6950 = vld [vmem:[%s6907 + $0x150] sm:$0xff]
        %v6951 = vld [vmem:[%s6907 + $0x158] sm:$0xff]
        %v6952 = vld [vmem:[%s6907 + $0x160] sm:$0xff]
        %v6953 = vld [vmem:[%s6907 + $0x168] sm:$0xff]
        %v6954 = vld [vmem:[%s6907 + $0x170] sm:$0xff]
        %v6955 = vld [vmem:[%s6907 + $0x178] sm:$0xff]
        %v6956 = vld [vmem:[%s6907 + $0x180] sm:$0xff]
        %v6957 = vld [vmem:[%s6907 + $0x188] sm:$0xff]
        %v6958 = vld [vmem:[%s6907 + $0x190] sm:$0xff]
        %v6959 = vld [vmem:[%s6907 + $0x198] sm:$0xff]
        %v6960 = vld [vmem:[%s6907 + $0x1a0] sm:$0xff]
        %v6961 = vld [vmem:[%s6907 + $0x1a8] sm:$0xff]
        %v6962 = vld [vmem:[%s6907 + $0x1b0] sm:$0xff]
        %v6963 = vld [vmem:[%s6907 + $0x1b8] sm:$0xff]
        %v6964 = vld [vmem:[%s6907 + $0x1c0] sm:$0xff]
        %v6965 = vld [vmem:[%s6907 + $0x1c8] sm:$0xff]
        %v6966 = vld [vmem:[%s6907 + $0x1d0] sm:$0xff]
        %v6967 = vld [vmem:[%s6907 + $0x1d8] sm:$0xff]
        %v6968 = vld [vmem:[%s6907 + $0x1e0] sm:$0xff]
        %v6969 = vld [vmem:[%s6907 + $0x1e8] sm:$0xff]
        %v6970 = vld [vmem:[%s6907 + $0x1f0] sm:$0xff]
        %v6971 = vld [vmem:[%s6907 + $0x1f8] sm:$0xff]
        %6972 = vrot.lane.b32.xlu0 %v4517, 123
        %v6973 = vpop.permute.xlu0 %6972
        %6974 = vrot.lane.b32.xlu0 %v4518, 123
        %v6975 = vpop.permute.xlu0 %6974
        %6976 = vrot.lane.b32.xlu0 %v4519, 123
        %v6977 = vpop.permute.xlu0 %6976
        %6978 = vrot.lane.b32.xlu0 %v4520, 123
        %v6979 = vpop.permute.xlu0 %6978
        %6980 = vrot.lane.b32.xlu0 %v4521, 123
        %v6981 = vpop.permute.xlu0 %6980
        %6982 = vrot.lane.b32.xlu0 %v4522, 123
        %v6983 = vpop.permute.xlu0 %6982
        %6984 = vrot.lane.b32.xlu0 %v4523, 123
        %v6985 = vpop.permute.xlu0 %6984
        %6986 = vrot.lane.b32.xlu0 %v4524, 123
        %v6987 = vpop.permute.xlu0 %6986
        %6988 = vrot.lane.b32.xlu0 %v4525, 123
        %v6989 = vpop.permute.xlu0 %6988
        %6990 = vrot.lane.b32.xlu0 %v4526, 123
        %v6991 = vpop.permute.xlu0 %6990
        %6992 = vrot.lane.b32.xlu0 %v4527, 123
        %v6993 = vpop.permute.xlu0 %6992
        %6994 = vrot.lane.b32.xlu0 %v4528, 123
        %v6995 = vpop.permute.xlu0 %6994
        %6996 = vrot.lane.b32.xlu0 %v4529, 123
        %v6997 = vpop.permute.xlu0 %6996
        %6998 = vrot.lane.b32.xlu0 %v4530, 123
        %v6999 = vpop.permute.xlu0 %6998
        %7000 = vrot.lane.b32.xlu0 %v4531, 123
        %v7001 = vpop.permute.xlu0 %7000
        %7002 = vrot.lane.b32.xlu0 %v4532, 123
        %v7003 = vpop.permute.xlu0 %7002
        %7004 = vrot.lane.b32.xlu0 %v4533, 123
        %v7005 = vpop.permute.xlu0 %7004
        %7006 = vrot.lane.b32.xlu0 %v4534, 123
        %v7007 = vpop.permute.xlu0 %7006
        %7008 = vrot.lane.b32.xlu0 %v4535, 123
        %v7009 = vpop.permute.xlu0 %7008
        %7010 = vrot.lane.b32.xlu0 %v4536, 123
        %v7011 = vpop.permute.xlu0 %7010
        %7012 = vrot.lane.b32.xlu0 %v4537, 123
        %v7013 = vpop.permute.xlu0 %7012
        %7014 = vrot.lane.b32.xlu0 %v4538, 123
        %v7015 = vpop.permute.xlu0 %7014
        %7016 = vrot.lane.b32.xlu0 %v4539, 123
        %v7017 = vpop.permute.xlu0 %7016
        %7018 = vrot.lane.b32.xlu0 %v4540, 123
        %v7019 = vpop.permute.xlu0 %7018
        %7020 = vrot.lane.b32.xlu0 %v4541, 123
        %v7021 = vpop.permute.xlu0 %7020
        %7022 = vrot.lane.b32.xlu0 %v4542, 123
        %v7023 = vpop.permute.xlu0 %7022
        %v7051 = vsel %vm4776, %v6909, 0
        %v7054 = vsel %vm4776, %v6911, 0
        %v7057 = vsel %vm4776, %v6913, 0
        %v7060 = vsel %vm4776, %v6915, 0
        %v7063 = vsel %vm4776, %v6917, 0
        %v7066 = vsel %vm4776, %v6919, 0
        %v7069 = vsel %vm4776, %v6921, 0
        %v7072 = vsel %vm4776, %v6923, 0
        %v7075 = vsel %vm4776, %v6925, 0
        %v7078 = vsel %vm4776, %v6927, 0
        %v7081 = vsel %vm4776, %v6929, 0
        %v7084 = vsel %vm4776, %v6931, 0
        %v7087 = vsel %vm4776, %v6933, 0
        %v7090 = vsel %vm4776, %v6935, 0
        %v7093 = vsel %vm4776, %v6937, 0
        %v7096 = vsel %vm4776, %v6939, 0
        %v7099 = vsel %vm4776, %v6941, 0
        %v7102 = vsel %vm4776, %v6943, 0
        %v7105 = vsel %vm4776, %v6945, 0
        %v7108 = vsel %vm4776, %v6947, 0
        %v7111 = vsel %vm4776, %v6949, 0
        %v7114 = vsel %vm4776, %v6951, 0
        %v7117 = vsel %vm4776, %v6953, 0
        %v7120 = vsel %vm4776, %v6955, 0
        %v7123 = vsel %vm4776, %v6957, 0
        %v7126 = vsel %vm4776, %v6959, 0
        %v7129 = vsel %vm4776, %v6961, 0
        %v7132 = vsel %vm4776, %v6963, 0
        %v7135 = vsel %vm4776, %v6965, 0
        %v7138 = vsel %vm4776, %v6967, 0
        %v7141 = vsel %vm4776, %v6969, 0
        %v7144 = vsel %vm4776, %v6971, 0
        %7146 = vmatprep.subr.mxu0 0.0
        %7147 = vmatpush1.msra.mxu0 %v7003
        %7148 = vmatprep.subr.mxu0 0.0
        %7149 = vmatpush1.msra.mxu0 %v7001
        %7150 = vmatprep.subr.mxu0 0.0
        %7151 = vmatpush1.msra.mxu0 %v6999
        %7152 = vmatprep.subr.mxu0 0.0
        %7153 = vmatpush1.msra.mxu0 %v6997
        %7154 = vmatprep.subr.mxu0 0.0
        %7155 = vmatpush1.msra.mxu0 %v6995
        %7156 = vmatprep.subr.mxu0 0.0
        %7157 = vmatpush1.msra.mxu0 %v6993
        %7158 = vmatprep.subr.mxu0 0.0
        %7159 = vmatpush1.msra.mxu0 %v6991
        %7160 = vmatprep.subr.mxu0 0.0
        %7161 = vmatpush1.msra.mxu0 %v6989
        %7162 = vmatprep.subr.mxu0 0.0
        %7163 = vmatpush1.msra.mxu0 %v6987
        %7164 = vmatprep.subr.mxu0 0.0
        %7165 = vmatpush1.msra.mxu0 %v6985
        %7166 = vmatprep.subr.mxu0 0.0
        %7167 = vmatpush1.msra.mxu0 %v6983
        %7168 = vmatprep.subr.mxu0 0.0
        %7169 = vmatpush1.msra.mxu0 %v6981
        %7170 = vmatprep.subr.mxu0 0.0
        %7171 = vmatpush1.msra.mxu0 %v6979
        %7172 = vmatprep.subr.mxu0 0.0
        %7173 = vmatpush1.msra.mxu0 %v6977
        %7174 = vmatprep.subr.mxu0 0.0
        %7175 = vmatpush1.msra.mxu0 %v6975
        %7176 = vmatprep.subr.mxu0 0.0
        %7177 = vmatpush1.msra.mxu0 %v6973
        %7178 = vmatprep.subr.mxu0 0.0
        %7179 = vmatpush2.msra.mxu0 0.0
        %7180 = vmatprep.subr.mxu0 0.0
        %7181 = vmatpush2.msra.mxu0 0.0
        %7182 = vmatprep.subr.mxu0 0.0
        %7183 = vmatpush2.msra.mxu0 0.0
        %7184 = vmatprep.subr.mxu0 0.0
        %7185 = vmatpush2.msra.mxu0 0.0
        %7186 = vmatprep.subr.mxu0 0.0
        %7187 = vmatpush2.msra.mxu0 0.0
        %7188 = vmatprep.subr.mxu0 0.0
        %7189 = vmatpush2.msra.mxu0 0.0
        %7190 = vmatprep.subr.mxu0 0.0
        %7191 = vmatpush2.msra.mxu0 %v7023
        %7192 = vmatprep.subr.mxu0 0.0
        %7193 = vmatpush2.msra.mxu0 %v7021
        %7194 = vmatprep.subr.mxu0 0.0
        %7195 = vmatpush2.msra.mxu0 %v7019
        %7196 = vmatprep.subr.mxu0 0.0
        %7197 = vmatpush2.msra.mxu0 %v7017
        %7198 = vmatprep.subr.mxu0 0.0
        %7199 = vmatpush2.msra.mxu0 %v7015
        %7200 = vmatprep.subr.mxu0 0.0
        %7201 = vmatpush2.msra.mxu0 %v7013
        %7202 = vmatprep.subr.mxu0 0.0
        %7203 = vmatpush2.msra.mxu0 %v7011
        %7204 = vmatprep.subr.mxu0 0.0
        %7205 = vmatpush2.msra.mxu0 %v7009
        %7206 = vmatprep.subr.mxu0 0.0
        %7207 = vmatpush2.msra.mxu0 %v7007
        %7208 = vmatprep.subr.mxu0 0.0
        %7209 = vmatpush2.msra.mxu0 %v7005
        %7210 = vmatprep.mubr.f32.mxu0 %v7051
        %7211 = vmatmul.mubr.f32.gmra.mxu0 %v6908
        %v7212 = vpop.f32.mrf.mxu0
        %v7213 = vadd.f32 0.0, %v7212
        %v7214 = vpop.f32.mrf.mxu0
        %7215 = vmatprep.mubr.f32.mxu0 %v7054
        %7216 = vmatmul.mubr.f32.gmra.mxu0 %v6910
        %v7217 = vpop.f32.mrf.mxu0
        %v7218 = vadd.f32 0.0, %v7217
        %v7219 = vpop.f32.mrf.mxu0
        %7220 = vmatprep.mubr.f32.mxu0 %v7057
        %7221 = vmatmul.mubr.f32.gmra.mxu0 %v6912
        %v7222 = vpop.f32.mrf.mxu0
        %v7223 = vadd.f32 0.0, %v7222
        %v7224 = vpop.f32.mrf.mxu0
        %7225 = vmatprep.mubr.f32.mxu0 %v7060
        %7226 = vmatmul.mubr.f32.gmra.mxu0 %v6914
        %v7227 = vpop.f32.mrf.mxu0
        %v7228 = vadd.f32 0.0, %v7227
        %v7229 = vpop.f32.mrf.mxu0
        %7230 = vmatprep.mubr.f32.mxu0 %v7063
        %7231 = vmatmul.mubr.f32.gmra.mxu0 %v6916
        %v7232 = vpop.f32.mrf.mxu0
        %v7233 = vadd.f32 0.0, %v7232
        %v7234 = vpop.f32.mrf.mxu0
        %7235 = vmatprep.mubr.f32.mxu0 %v7066
        %7236 = vmatmul.mubr.f32.gmra.mxu0 %v6918
        %v7237 = vpop.f32.mrf.mxu0
        %v7238 = vadd.f32 0.0, %v7237
        %v7239 = vpop.f32.mrf.mxu0
        %7240 = vmatprep.mubr.f32.mxu0 %v7069
        %7241 = vmatmul.mubr.f32.gmra.mxu0 %v6920
        %v7242 = vpop.f32.mrf.mxu0
        %v7243 = vadd.f32 0.0, %v7242
        %v7244 = vpop.f32.mrf.mxu0
        %7245 = vmatprep.mubr.f32.mxu0 %v7072
        %7246 = vmatmul.mubr.f32.gmra.mxu0 %v6922
        %v7247 = vpop.f32.mrf.mxu0
        %v7248 = vadd.f32 0.0, %v7247
        %v7249 = vpop.f32.mrf.mxu0
        %7250 = vmatprep.mubr.f32.mxu0 %v7075
        %7251 = vmatmul.mubr.f32.gmra.mxu0 %v6924
        %v7252 = vpop.f32.mrf.mxu0
        %v7253 = vadd.f32 0.0, %v7252
        %v7254 = vpop.f32.mrf.mxu0
        %7255 = vmatprep.mubr.f32.mxu0 %v7078
        %7256 = vmatmul.mubr.f32.gmra.mxu0 %v6926
        %v7257 = vpop.f32.mrf.mxu0
        %v7258 = vadd.f32 0.0, %v7257
        %v7259 = vpop.f32.mrf.mxu0
        %7260 = vmatprep.mubr.f32.mxu0 %v7081
        %7261 = vmatmul.mubr.f32.gmra.mxu0 %v6928
        %v7262 = vpop.f32.mrf.mxu0
        %v7263 = vadd.f32 0.0, %v7262
        %v7264 = vpop.f32.mrf.mxu0
        %7265 = vmatprep.mubr.f32.mxu0 %v7084
        %7266 = vmatmul.mubr.f32.gmra.mxu0 %v6930
        %v7267 = vpop.f32.mrf.mxu0
        %v7268 = vadd.f32 0.0, %v7267
        %v7269 = vpop.f32.mrf.mxu0
        %7270 = vmatprep.mubr.f32.mxu0 %v7087
        %7271 = vmatmul.mubr.f32.gmra.mxu0 %v6932
        %v7272 = vpop.f32.mrf.mxu0
        %v7273 = vadd.f32 0.0, %v7272
        %v7274 = vpop.f32.mrf.mxu0
        %7275 = vmatprep.mubr.f32.mxu0 %v7090
        %7276 = vmatmul.mubr.f32.gmra.mxu0 %v6934
        %v7277 = vpop.f32.mrf.mxu0
        %v7278 = vadd.f32 0.0, %v7277
        %v7279 = vpop.f32.mrf.mxu0
        %7280 = vmatprep.mubr.f32.mxu0 %v7093
        %7281 = vmatmul.mubr.f32.gmra.mxu0 %v6936
        %v7282 = vpop.f32.mrf.mxu0
        %v7283 = vadd.f32 0.0, %v7282
        %v7284 = vpop.f32.mrf.mxu0
        %7285 = vmatprep.mubr.f32.mxu0 %v7096
        %7286 = vmatmul.mubr.f32.gmra.mxu0 %v6938
        %v7287 = vpop.f32.mrf.mxu0
        %v7288 = vadd.f32 0.0, %v7287
        %v7289 = vpop.f32.mrf.mxu0
        %7290 = vmatprep.mubr.f32.mxu0 %v7099
        %7291 = vmatmul.mubr.f32.gmra.mxu0 %v6940
        %v7292 = vpop.f32.mrf.mxu0
        %v7293 = vadd.f32 0.0, %v7292
        %v7294 = vpop.f32.mrf.mxu0
        %7295 = vmatprep.mubr.f32.mxu0 %v7102
        %7296 = vmatmul.mubr.f32.gmra.mxu0 %v6942
        %v7297 = vpop.f32.mrf.mxu0
        %v7298 = vadd.f32 0.0, %v7297
        %v7299 = vpop.f32.mrf.mxu0
        %7300 = vmatprep.mubr.f32.mxu0 %v7105
        %7301 = vmatmul.mubr.f32.gmra.mxu0 %v6944
        %v7302 = vpop.f32.mrf.mxu0
        %v7303 = vadd.f32 0.0, %v7302
        %v7304 = vpop.f32.mrf.mxu0
        %7305 = vmatprep.mubr.f32.mxu0 %v7108
        %7306 = vmatmul.mubr.f32.gmra.mxu0 %v6946
        %v7307 = vpop.f32.mrf.mxu0
        %v7308 = vadd.f32 0.0, %v7307
        %v7309 = vpop.f32.mrf.mxu0
        %7310 = vmatprep.mubr.f32.mxu0 %v7111
        %7311 = vmatmul.mubr.f32.gmra.mxu0 %v6948
        %v7312 = vpop.f32.mrf.mxu0
        %v7313 = vadd.f32 0.0, %v7312
        %v7314 = vpop.f32.mrf.mxu0
        %7315 = vmatprep.mubr.f32.mxu0 %v7114
        %7316 = vmatmul.mubr.f32.gmra.mxu0 %v6950
        %v7317 = vpop.f32.mrf.mxu0
        %v7318 = vadd.f32 0.0, %v7317
        %v7319 = vpop.f32.mrf.mxu0
        %7320 = vmatprep.mubr.f32.mxu0 %v7117
        %7321 = vmatmul.mubr.f32.gmra.mxu0 %v6952
        %v7322 = vpop.f32.mrf.mxu0
        %v7323 = vadd.f32 0.0, %v7322
        %v7324 = vpop.f32.mrf.mxu0
        %7325 = vmatprep.mubr.f32.mxu0 %v7120
        %7326 = vmatmul.mubr.f32.gmra.mxu0 %v6954
        %v7327 = vpop.f32.mrf.mxu0
        %v7328 = vadd.f32 0.0, %v7327
        %v7329 = vpop.f32.mrf.mxu0
        %7330 = vmatprep.mubr.f32.mxu0 %v7123
        %7331 = vmatmul.mubr.f32.gmra.mxu0 %v6956
        %v7332 = vpop.f32.mrf.mxu0
        %v7333 = vadd.f32 0.0, %v7332
        %v7334 = vpop.f32.mrf.mxu0
        %7335 = vmatprep.mubr.f32.mxu0 %v7126
        %7336 = vmatmul.mubr.f32.gmra.mxu0 %v6958
        %v7337 = vpop.f32.mrf.mxu0
        %v7338 = vadd.f32 0.0, %v7337
        %v7339 = vpop.f32.mrf.mxu0
        %7340 = vmatprep.mubr.f32.mxu0 %v7129
        %7341 = vmatmul.mubr.f32.gmra.mxu0 %v6960
        %v7342 = vpop.f32.mrf.mxu0
        %v7343 = vadd.f32 0.0, %v7342
        %v7344 = vpop.f32.mrf.mxu0
        %7345 = vmatprep.mubr.f32.mxu0 %v7132
        %7346 = vmatmul.mubr.f32.gmra.mxu0 %v6962
        %v7347 = vpop.f32.mrf.mxu0
        %v7348 = vadd.f32 0.0, %v7347
        %v7349 = vpop.f32.mrf.mxu0
        %7350 = vmatprep.mubr.f32.mxu0 %v7135
        %7351 = vmatmul.mubr.f32.gmra.mxu0 %v6964
        %v7352 = vpop.f32.mrf.mxu0
        %v7353 = vadd.f32 0.0, %v7352
        %v7354 = vpop.f32.mrf.mxu0
        %7355 = vmatprep.mubr.f32.mxu0 %v7138
        %7356 = vmatmul.mubr.f32.gmra.mxu0 %v6966
        %v7357 = vpop.f32.mrf.mxu0
        %v7358 = vadd.f32 0.0, %v7357
        %v7359 = vpop.f32.mrf.mxu0
        %7360 = vmatprep.mubr.f32.mxu0 %v7141
        %7361 = vmatmul.mubr.f32.gmra.mxu0 %v6968
        %v7362 = vpop.f32.mrf.mxu0
        %v7363 = vadd.f32 0.0, %v7362
        %v7364 = vpop.f32.mrf.mxu0
        %7365 = vmatprep.mubr.f32.mxu0 %v7144
        %7366 = vmatmul.mubr.f32.gmra.mxu0 %v6970
        %v7367 = vpop.f32.mrf.mxu0
        %v7368 = vadd.f32 0.0, %v7367
        %v7369 = vpop.f32.mrf.mxu0
        %7370 = vdwg.mxu0
        %v7371 = vadd.f32 %v6875, %v7213
        %v7372 = vadd.f32 %v6876, %v7218
        %v7373 = vadd.f32 %v6877, %v7223
        %v7374 = vadd.f32 %v6878, %v7228
        %v7375 = vadd.f32 %v6879, %v7233
        %v7376 = vadd.f32 %v6880, %v7238
        %v7377 = vadd.f32 %v6881, %v7243
        %v7378 = vadd.f32 %v6882, %v7248
        %v7379 = vadd.f32 %v6883, %v7253
        %v7380 = vadd.f32 %v6884, %v7258
        %v7381 = vadd.f32 %v6885, %v7263
        %v7382 = vadd.f32 %v6886, %v7268
        %v7383 = vadd.f32 %v6887, %v7273
        %v7384 = vadd.f32 %v6888, %v7278
        %v7385 = vadd.f32 %v6889, %v7283
        %v7386 = vadd.f32 %v6890, %v7288
        %v7387 = vadd.f32 %v6891, %v7293
        %v7388 = vadd.f32 %v6892, %v7298
        %v7389 = vadd.f32 %v6893, %v7303
        %v7390 = vadd.f32 %v6894, %v7308
        %v7391 = vadd.f32 %v6895, %v7313
        %v7392 = vadd.f32 %v6896, %v7318
        %v7393 = vadd.f32 %v6897, %v7323
        %v7394 = vadd.f32 %v6898, %v7328
        %v7395 = vadd.f32 %v6899, %v7333
        %v7396 = vadd.f32 %v6900, %v7338
        %v7397 = vadd.f32 %v6901, %v7343
        %v7398 = vadd.f32 %v6902, %v7348
        %v7399 = vadd.f32 %v6903, %v7353
        %v7400 = vadd.f32 %v6904, %v7358
        %v7401 = vadd.f32 %v6905, %v7363
        %v7402 = vadd.f32 %v6906, %v7368
        %s7403 = scalar_lea.vmem [#allocation11], 3072
        %v7404 = vld [vmem:[%s7403] sm:$0xff]
        %v7405 = vld [vmem:[%s7403 + $0x8] sm:$0xff]
        %v7406 = vld [vmem:[%s7403 + $0x10] sm:$0xff]
        %v7407 = vld [vmem:[%s7403 + $0x18] sm:$0xff]
        %v7408 = vld [vmem:[%s7403 + $0x20] sm:$0xff]
        %v7409 = vld [vmem:[%s7403 + $0x28] sm:$0xff]
        %v7410 = vld [vmem:[%s7403 + $0x30] sm:$0xff]
        %v7411 = vld [vmem:[%s7403 + $0x38] sm:$0xff]
        %v7412 = vld [vmem:[%s7403 + $0x40] sm:$0xff]
        %v7413 = vld [vmem:[%s7403 + $0x48] sm:$0xff]
        %v7414 = vld [vmem:[%s7403 + $0x50] sm:$0xff]
        %v7415 = vld [vmem:[%s7403 + $0x58] sm:$0xff]
        %v7416 = vld [vmem:[%s7403 + $0x60] sm:$0xff]
        %v7417 = vld [vmem:[%s7403 + $0x68] sm:$0xff]
        %v7418 = vld [vmem:[%s7403 + $0x70] sm:$0xff]
        %v7419 = vld [vmem:[%s7403 + $0x78] sm:$0xff]
        %v7420 = vld [vmem:[%s7403 + $0x80] sm:$0xff]
        %v7421 = vld [vmem:[%s7403 + $0x88] sm:$0xff]
        %v7422 = vld [vmem:[%s7403 + $0x90] sm:$0xff]
        %v7423 = vld [vmem:[%s7403 + $0x98] sm:$0xff]
        %v7424 = vld [vmem:[%s7403 + $0xa0] sm:$0xff]
        %v7425 = vld [vmem:[%s7403 + $0xa8] sm:$0xff]
        %v7426 = vld [vmem:[%s7403 + $0xb0] sm:$0xff]
        %v7427 = vld [vmem:[%s7403 + $0xb8] sm:$0xff]
        %v7428 = vld [vmem:[%s7403 + $0xc0] sm:$0xff]
        %v7429 = vld [vmem:[%s7403 + $0xc8] sm:$0xff]
        %v7430 = vld [vmem:[%s7403 + $0xd0] sm:$0xff]
        %v7431 = vld [vmem:[%s7403 + $0xd8] sm:$0xff]
        %v7432 = vld [vmem:[%s7403 + $0xe0] sm:$0xff]
        %v7433 = vld [vmem:[%s7403 + $0xe8] sm:$0xff]
        %v7434 = vld [vmem:[%s7403 + $0xf0] sm:$0xff]
        %v7435 = vld [vmem:[%s7403 + $0xf8] sm:$0xff]
        %v7436 = vld [vmem:[%s7403 + $0x100] sm:$0xff]
        %v7437 = vld [vmem:[%s7403 + $0x108] sm:$0xff]
        %v7438 = vld [vmem:[%s7403 + $0x110] sm:$0xff]
        %v7439 = vld [vmem:[%s7403 + $0x118] sm:$0xff]
        %v7440 = vld [vmem:[%s7403 + $0x120] sm:$0xff]
        %v7441 = vld [vmem:[%s7403 + $0x128] sm:$0xff]
        %v7442 = vld [vmem:[%s7403 + $0x130] sm:$0xff]
        %v7443 = vld [vmem:[%s7403 + $0x138] sm:$0xff]
        %v7444 = vld [vmem:[%s7403 + $0x140] sm:$0xff]
        %v7445 = vld [vmem:[%s7403 + $0x148] sm:$0xff]
        %v7446 = vld [vmem:[%s7403 + $0x150] sm:$0xff]
        %v7447 = vld [vmem:[%s7403 + $0x158] sm:$0xff]
        %v7448 = vld [vmem:[%s7403 + $0x160] sm:$0xff]
        %v7449 = vld [vmem:[%s7403 + $0x168] sm:$0xff]
        %v7450 = vld [vmem:[%s7403 + $0x170] sm:$0xff]
        %v7451 = vld [vmem:[%s7403 + $0x178] sm:$0xff]
        %v7452 = vld [vmem:[%s7403 + $0x180] sm:$0xff]
        %v7453 = vld [vmem:[%s7403 + $0x188] sm:$0xff]
        %v7454 = vld [vmem:[%s7403 + $0x190] sm:$0xff]
        %v7455 = vld [vmem:[%s7403 + $0x198] sm:$0xff]
        %v7456 = vld [vmem:[%s7403 + $0x1a0] sm:$0xff]
        %v7457 = vld [vmem:[%s7403 + $0x1a8] sm:$0xff]
        %v7458 = vld [vmem:[%s7403 + $0x1b0] sm:$0xff]
        %v7459 = vld [vmem:[%s7403 + $0x1b8] sm:$0xff]
        %v7460 = vld [vmem:[%s7403 + $0x1c0] sm:$0xff]
        %v7461 = vld [vmem:[%s7403 + $0x1c8] sm:$0xff]
        %v7462 = vld [vmem:[%s7403 + $0x1d0] sm:$0xff]
        %v7463 = vld [vmem:[%s7403 + $0x1d8] sm:$0xff]
        %v7464 = vld [vmem:[%s7403 + $0x1e0] sm:$0xff]
        %v7465 = vld [vmem:[%s7403 + $0x1e8] sm:$0xff]
        %v7466 = vld [vmem:[%s7403 + $0x1f0] sm:$0xff]
        %v7467 = vld [vmem:[%s7403 + $0x1f8] sm:$0xff]
        %7468 = vrot.lane.b32.xlu0 %v4517, 122
        %v7469 = vpop.permute.xlu0 %7468
        %7470 = vrot.lane.b32.xlu0 %v4518, 122
        %v7471 = vpop.permute.xlu0 %7470
        %7472 = vrot.lane.b32.xlu0 %v4519, 122
        %v7473 = vpop.permute.xlu0 %7472
        %7474 = vrot.lane.b32.xlu0 %v4520, 122
        %v7475 = vpop.permute.xlu0 %7474
        %7476 = vrot.lane.b32.xlu0 %v4521, 122
        %v7477 = vpop.permute.xlu0 %7476
        %7478 = vrot.lane.b32.xlu0 %v4522, 122
        %v7479 = vpop.permute.xlu0 %7478
        %7480 = vrot.lane.b32.xlu0 %v4523, 122
        %v7481 = vpop.permute.xlu0 %7480
        %7482 = vrot.lane.b32.xlu0 %v4524, 122
        %v7483 = vpop.permute.xlu0 %7482
        %7484 = vrot.lane.b32.xlu0 %v4525, 122
        %v7485 = vpop.permute.xlu0 %7484
        %7486 = vrot.lane.b32.xlu0 %v4526, 122
        %v7487 = vpop.permute.xlu0 %7486
        %7488 = vrot.lane.b32.xlu0 %v4527, 122
        %v7489 = vpop.permute.xlu0 %7488
        %7490 = vrot.lane.b32.xlu0 %v4528, 122
        %v7491 = vpop.permute.xlu0 %7490
        %7492 = vrot.lane.b32.xlu0 %v4529, 122
        %v7493 = vpop.permute.xlu0 %7492
        %7494 = vrot.lane.b32.xlu0 %v4530, 122
        %v7495 = vpop.permute.xlu0 %7494
        %7496 = vrot.lane.b32.xlu0 %v4531, 122
        %v7497 = vpop.permute.xlu0 %7496
        %7498 = vrot.lane.b32.xlu0 %v4532, 122
        %v7499 = vpop.permute.xlu0 %7498
        %7500 = vrot.lane.b32.xlu0 %v4533, 122
        %v7501 = vpop.permute.xlu0 %7500
        %7502 = vrot.lane.b32.xlu0 %v4534, 122
        %v7503 = vpop.permute.xlu0 %7502
        %7504 = vrot.lane.b32.xlu0 %v4535, 122
        %v7505 = vpop.permute.xlu0 %7504
        %7506 = vrot.lane.b32.xlu0 %v4536, 122
        %v7507 = vpop.permute.xlu0 %7506
        %7508 = vrot.lane.b32.xlu0 %v4537, 122
        %v7509 = vpop.permute.xlu0 %7508
        %7510 = vrot.lane.b32.xlu0 %v4538, 122
        %v7511 = vpop.permute.xlu0 %7510
        %7512 = vrot.lane.b32.xlu0 %v4539, 122
        %v7513 = vpop.permute.xlu0 %7512
        %7514 = vrot.lane.b32.xlu0 %v4540, 122
        %v7515 = vpop.permute.xlu0 %7514
        %7516 = vrot.lane.b32.xlu0 %v4541, 122
        %v7517 = vpop.permute.xlu0 %7516
        %7518 = vrot.lane.b32.xlu0 %v4542, 122
        %v7519 = vpop.permute.xlu0 %7518
        %v7547 = vsel %vm4776, %v7405, 0
        %v7550 = vsel %vm4776, %v7407, 0
        %v7553 = vsel %vm4776, %v7409, 0
        %v7556 = vsel %vm4776, %v7411, 0
        %v7559 = vsel %vm4776, %v7413, 0
        %v7562 = vsel %vm4776, %v7415, 0
        %v7565 = vsel %vm4776, %v7417, 0
        %v7568 = vsel %vm4776, %v7419, 0
        %v7571 = vsel %vm4776, %v7421, 0
        %v7574 = vsel %vm4776, %v7423, 0
        %v7577 = vsel %vm4776, %v7425, 0
        %v7580 = vsel %vm4776, %v7427, 0
        %v7583 = vsel %vm4776, %v7429, 0
        %v7586 = vsel %vm4776, %v7431, 0
        %v7589 = vsel %vm4776, %v7433, 0
        %v7592 = vsel %vm4776, %v7435, 0
        %v7595 = vsel %vm4776, %v7437, 0
        %v7598 = vsel %vm4776, %v7439, 0
        %v7601 = vsel %vm4776, %v7441, 0
        %v7604 = vsel %vm4776, %v7443, 0
        %v7607 = vsel %vm4776, %v7445, 0
        %v7610 = vsel %vm4776, %v7447, 0
        %v7613 = vsel %vm4776, %v7449, 0
        %v7616 = vsel %vm4776, %v7451, 0
        %v7619 = vsel %vm4776, %v7453, 0
        %v7622 = vsel %vm4776, %v7455, 0
        %v7625 = vsel %vm4776, %v7457, 0
        %v7628 = vsel %vm4776, %v7459, 0
        %v7631 = vsel %vm4776, %v7461, 0
        %v7634 = vsel %vm4776, %v7463, 0
        %v7637 = vsel %vm4776, %v7465, 0
        %v7640 = vsel %vm4776, %v7467, 0
        %7642 = vmatprep.subr.mxu0 0.0
        %7643 = vmatpush1.msra.mxu0 %v7499
        %7644 = vmatprep.subr.mxu0 0.0
        %7645 = vmatpush1.msra.mxu0 %v7497
        %7646 = vmatprep.subr.mxu0 0.0
        %7647 = vmatpush1.msra.mxu0 %v7495
        %7648 = vmatprep.subr.mxu0 0.0
        %7649 = vmatpush1.msra.mxu0 %v7493
        %7650 = vmatprep.subr.mxu0 0.0
        %7651 = vmatpush1.msra.mxu0 %v7491
        %7652 = vmatprep.subr.mxu0 0.0
        %7653 = vmatpush1.msra.mxu0 %v7489
        %7654 = vmatprep.subr.mxu0 0.0
        %7655 = vmatpush1.msra.mxu0 %v7487
        %7656 = vmatprep.subr.mxu0 0.0
        %7657 = vmatpush1.msra.mxu0 %v7485
        %7658 = vmatprep.subr.mxu0 0.0
        %7659 = vmatpush1.msra.mxu0 %v7483
        %7660 = vmatprep.subr.mxu0 0.0
        %7661 = vmatpush1.msra.mxu0 %v7481
        %7662 = vmatprep.subr.mxu0 0.0
        %7663 = vmatpush1.msra.mxu0 %v7479
        %7664 = vmatprep.subr.mxu0 0.0
        %7665 = vmatpush1.msra.mxu0 %v7477
        %7666 = vmatprep.subr.mxu0 0.0
        %7667 = vmatpush1.msra.mxu0 %v7475
        %7668 = vmatprep.subr.mxu0 0.0
        %7669 = vmatpush1.msra.mxu0 %v7473
        %7670 = vmatprep.subr.mxu0 0.0
        %7671 = vmatpush1.msra.mxu0 %v7471
        %7672 = vmatprep.subr.mxu0 0.0
        %7673 = vmatpush1.msra.mxu0 %v7469
        %7674 = vmatprep.subr.mxu0 0.0
        %7675 = vmatpush2.msra.mxu0 0.0
        %7676 = vmatprep.subr.mxu0 0.0
        %7677 = vmatpush2.msra.mxu0 0.0
        %7678 = vmatprep.subr.mxu0 0.0
        %7679 = vmatpush2.msra.mxu0 0.0
        %7680 = vmatprep.subr.mxu0 0.0
        %7681 = vmatpush2.msra.mxu0 0.0
        %7682 = vmatprep.subr.mxu0 0.0
        %7683 = vmatpush2.msra.mxu0 0.0
        %7684 = vmatprep.subr.mxu0 0.0
        %7685 = vmatpush2.msra.mxu0 0.0
        %7686 = vmatprep.subr.mxu0 0.0
        %7687 = vmatpush2.msra.mxu0 %v7519
        %7688 = vmatprep.subr.mxu0 0.0
        %7689 = vmatpush2.msra.mxu0 %v7517
        %7690 = vmatprep.subr.mxu0 0.0
        %7691 = vmatpush2.msra.mxu0 %v7515
        %7692 = vmatprep.subr.mxu0 0.0
        %7693 = vmatpush2.msra.mxu0 %v7513
        %7694 = vmatprep.subr.mxu0 0.0
        %7695 = vmatpush2.msra.mxu0 %v7511
        %7696 = vmatprep.subr.mxu0 0.0
        %7697 = vmatpush2.msra.mxu0 %v7509
        %7698 = vmatprep.subr.mxu0 0.0
        %7699 = vmatpush2.msra.mxu0 %v7507
        %7700 = vmatprep.subr.mxu0 0.0
        %7701 = vmatpush2.msra.mxu0 %v7505
        %7702 = vmatprep.subr.mxu0 0.0
        %7703 = vmatpush2.msra.mxu0 %v7503
        %7704 = vmatprep.subr.mxu0 0.0
        %7705 = vmatpush2.msra.mxu0 %v7501
        %7706 = vmatprep.mubr.f32.mxu0 %v7547
        %7707 = vmatmul.mubr.f32.gmra.mxu0 %v7404
        %v7708 = vpop.f32.mrf.mxu0
        %v7709 = vadd.f32 0.0, %v7708
        %v7710 = vpop.f32.mrf.mxu0
        %7711 = vmatprep.mubr.f32.mxu0 %v7550
        %7712 = vmatmul.mubr.f32.gmra.mxu0 %v7406
        %v7713 = vpop.f32.mrf.mxu0
        %v7714 = vadd.f32 0.0, %v7713
        %v7715 = vpop.f32.mrf.mxu0
        %7716 = vmatprep.mubr.f32.mxu0 %v7553
        %7717 = vmatmul.mubr.f32.gmra.mxu0 %v7408
        %v7718 = vpop.f32.mrf.mxu0
        %v7719 = vadd.f32 0.0, %v7718
        %v7720 = vpop.f32.mrf.mxu0
        %7721 = vmatprep.mubr.f32.mxu0 %v7556
        %7722 = vmatmul.mubr.f32.gmra.mxu0 %v7410
        %v7723 = vpop.f32.mrf.mxu0
        %v7724 = vadd.f32 0.0, %v7723
        %v7725 = vpop.f32.mrf.mxu0
        %7726 = vmatprep.mubr.f32.mxu0 %v7559
        %7727 = vmatmul.mubr.f32.gmra.mxu0 %v7412
        %v7728 = vpop.f32.mrf.mxu0
        %v7729 = vadd.f32 0.0, %v7728
        %v7730 = vpop.f32.mrf.mxu0
        %7731 = vmatprep.mubr.f32.mxu0 %v7562
        %7732 = vmatmul.mubr.f32.gmra.mxu0 %v7414
        %v7733 = vpop.f32.mrf.mxu0
        %v7734 = vadd.f32 0.0, %v7733
        %v7735 = vpop.f32.mrf.mxu0
        %7736 = vmatprep.mubr.f32.mxu0 %v7565
        %7737 = vmatmul.mubr.f32.gmra.mxu0 %v7416
        %v7738 = vpop.f32.mrf.mxu0
        %v7739 = vadd.f32 0.0, %v7738
        %v7740 = vpop.f32.mrf.mxu0
        %7741 = vmatprep.mubr.f32.mxu0 %v7568
        %7742 = vmatmul.mubr.f32.gmra.mxu0 %v7418
        %v7743 = vpop.f32.mrf.mxu0
        %v7744 = vadd.f32 0.0, %v7743
        %v7745 = vpop.f32.mrf.mxu0
        %7746 = vmatprep.mubr.f32.mxu0 %v7571
        %7747 = vmatmul.mubr.f32.gmra.mxu0 %v7420
        %v7748 = vpop.f32.mrf.mxu0
        %v7749 = vadd.f32 0.0, %v7748
        %v7750 = vpop.f32.mrf.mxu0
        %7751 = vmatprep.mubr.f32.mxu0 %v7574
        %7752 = vmatmul.mubr.f32.gmra.mxu0 %v7422
        %v7753 = vpop.f32.mrf.mxu0
        %v7754 = vadd.f32 0.0, %v7753
        %v7755 = vpop.f32.mrf.mxu0
        %7756 = vmatprep.mubr.f32.mxu0 %v7577
        %7757 = vmatmul.mubr.f32.gmra.mxu0 %v7424
        %v7758 = vpop.f32.mrf.mxu0
        %v7759 = vadd.f32 0.0, %v7758
        %v7760 = vpop.f32.mrf.mxu0
        %7761 = vmatprep.mubr.f32.mxu0 %v7580
        %7762 = vmatmul.mubr.f32.gmra.mxu0 %v7426
        %v7763 = vpop.f32.mrf.mxu0
        %v7764 = vadd.f32 0.0, %v7763
        %v7765 = vpop.f32.mrf.mxu0
        %7766 = vmatprep.mubr.f32.mxu0 %v7583
        %7767 = vmatmul.mubr.f32.gmra.mxu0 %v7428
        %v7768 = vpop.f32.mrf.mxu0
        %v7769 = vadd.f32 0.0, %v7768
        %v7770 = vpop.f32.mrf.mxu0
        %7771 = vmatprep.mubr.f32.mxu0 %v7586
        %7772 = vmatmul.mubr.f32.gmra.mxu0 %v7430
        %v7773 = vpop.f32.mrf.mxu0
        %v7774 = vadd.f32 0.0, %v7773
        %v7775 = vpop.f32.mrf.mxu0
        %7776 = vmatprep.mubr.f32.mxu0 %v7589
        %7777 = vmatmul.mubr.f32.gmra.mxu0 %v7432
        %v7778 = vpop.f32.mrf.mxu0
        %v7779 = vadd.f32 0.0, %v7778
        %v7780 = vpop.f32.mrf.mxu0
        %7781 = vmatprep.mubr.f32.mxu0 %v7592
        %7782 = vmatmul.mubr.f32.gmra.mxu0 %v7434
        %v7783 = vpop.f32.mrf.mxu0
        %v7784 = vadd.f32 0.0, %v7783
        %v7785 = vpop.f32.mrf.mxu0
        %7786 = vmatprep.mubr.f32.mxu0 %v7595
        %7787 = vmatmul.mubr.f32.gmra.mxu0 %v7436
        %v7788 = vpop.f32.mrf.mxu0
        %v7789 = vadd.f32 0.0, %v7788
        %v7790 = vpop.f32.mrf.mxu0
        %7791 = vmatprep.mubr.f32.mxu0 %v7598
        %7792 = vmatmul.mubr.f32.gmra.mxu0 %v7438
        %v7793 = vpop.f32.mrf.mxu0
        %v7794 = vadd.f32 0.0, %v7793
        %v7795 = vpop.f32.mrf.mxu0
        %7796 = vmatprep.mubr.f32.mxu0 %v7601
        %7797 = vmatmul.mubr.f32.gmra.mxu0 %v7440
        %v7798 = vpop.f32.mrf.mxu0
        %v7799 = vadd.f32 0.0, %v7798
        %v7800 = vpop.f32.mrf.mxu0
        %7801 = vmatprep.mubr.f32.mxu0 %v7604
        %7802 = vmatmul.mubr.f32.gmra.mxu0 %v7442
        %v7803 = vpop.f32.mrf.mxu0
        %v7804 = vadd.f32 0.0, %v7803
        %v7805 = vpop.f32.mrf.mxu0
        %7806 = vmatprep.mubr.f32.mxu0 %v7607
        %7807 = vmatmul.mubr.f32.gmra.mxu0 %v7444
        %v7808 = vpop.f32.mrf.mxu0
        %v7809 = vadd.f32 0.0, %v7808
        %v7810 = vpop.f32.mrf.mxu0
        %7811 = vmatprep.mubr.f32.mxu0 %v7610
        %7812 = vmatmul.mubr.f32.gmra.mxu0 %v7446
        %v7813 = vpop.f32.mrf.mxu0
        %v7814 = vadd.f32 0.0, %v7813
        %v7815 = vpop.f32.mrf.mxu0
        %7816 = vmatprep.mubr.f32.mxu0 %v7613
        %7817 = vmatmul.mubr.f32.gmra.mxu0 %v7448
        %v7818 = vpop.f32.mrf.mxu0
        %v7819 = vadd.f32 0.0, %v7818
        %v7820 = vpop.f32.mrf.mxu0
        %7821 = vmatprep.mubr.f32.mxu0 %v7616
        %7822 = vmatmul.mubr.f32.gmra.mxu0 %v7450
        %v7823 = vpop.f32.mrf.mxu0
        %v7824 = vadd.f32 0.0, %v7823
        %v7825 = vpop.f32.mrf.mxu0
        %7826 = vmatprep.mubr.f32.mxu0 %v7619
        %7827 = vmatmul.mubr.f32.gmra.mxu0 %v7452
        %v7828 = vpop.f32.mrf.mxu0
        %v7829 = vadd.f32 0.0, %v7828
        %v7830 = vpop.f32.mrf.mxu0
        %7831 = vmatprep.mubr.f32.mxu0 %v7622
        %7832 = vmatmul.mubr.f32.gmra.mxu0 %v7454
        %v7833 = vpop.f32.mrf.mxu0
        %v7834 = vadd.f32 0.0, %v7833
        %v7835 = vpop.f32.mrf.mxu0
        %7836 = vmatprep.mubr.f32.mxu0 %v7625
        %7837 = vmatmul.mubr.f32.gmra.mxu0 %v7456
        %v7838 = vpop.f32.mrf.mxu0
        %v7839 = vadd.f32 0.0, %v7838
        %v7840 = vpop.f32.mrf.mxu0
        %7841 = vmatprep.mubr.f32.mxu0 %v7628
        %7842 = vmatmul.mubr.f32.gmra.mxu0 %v7458
        %v7843 = vpop.f32.mrf.mxu0
        %v7844 = vadd.f32 0.0, %v7843
        %v7845 = vpop.f32.mrf.mxu0
        %7846 = vmatprep.mubr.f32.mxu0 %v7631
        %7847 = vmatmul.mubr.f32.gmra.mxu0 %v7460
        %v7848 = vpop.f32.mrf.mxu0
        %v7849 = vadd.f32 0.0, %v7848
        %v7850 = vpop.f32.mrf.mxu0
        %7851 = vmatprep.mubr.f32.mxu0 %v7634
        %7852 = vmatmul.mubr.f32.gmra.mxu0 %v7462
        %v7853 = vpop.f32.mrf.mxu0
        %v7854 = vadd.f32 0.0, %v7853
        %v7855 = vpop.f32.mrf.mxu0
        %7856 = vmatprep.mubr.f32.mxu0 %v7637
        %7857 = vmatmul.mubr.f32.gmra.mxu0 %v7464
        %v7858 = vpop.f32.mrf.mxu0
        %v7859 = vadd.f32 0.0, %v7858
        %v7860 = vpop.f32.mrf.mxu0
        %7861 = vmatprep.mubr.f32.mxu0 %v7640
        %7862 = vmatmul.mubr.f32.gmra.mxu0 %v7466
        %v7863 = vpop.f32.mrf.mxu0
        %v7864 = vadd.f32 0.0, %v7863
        %v7865 = vpop.f32.mrf.mxu0
        %7866 = vdwg.mxu0
        %v7867 = vadd.f32 %v7371, %v7709
        %v7868 = vadd.f32 %v7372, %v7714
        %v7869 = vadd.f32 %v7373, %v7719
        %v7870 = vadd.f32 %v7374, %v7724
        %v7871 = vadd.f32 %v7375, %v7729
        %v7872 = vadd.f32 %v7376, %v7734
        %v7873 = vadd.f32 %v7377, %v7739
        %v7874 = vadd.f32 %v7378, %v7744
        %v7875 = vadd.f32 %v7379, %v7749
        %v7876 = vadd.f32 %v7380, %v7754
        %v7877 = vadd.f32 %v7381, %v7759
        %v7878 = vadd.f32 %v7382, %v7764
        %v7879 = vadd.f32 %v7383, %v7769
        %v7880 = vadd.f32 %v7384, %v7774
        %v7881 = vadd.f32 %v7385, %v7779
        %v7882 = vadd.f32 %v7386, %v7784
        %v7883 = vadd.f32 %v7387, %v7789
        %v7884 = vadd.f32 %v7388, %v7794
        %v7885 = vadd.f32 %v7389, %v7799
        %v7886 = vadd.f32 %v7390, %v7804
        %v7887 = vadd.f32 %v7391, %v7809
        %v7888 = vadd.f32 %v7392, %v7814
        %v7889 = vadd.f32 %v7393, %v7819
        %v7890 = vadd.f32 %v7394, %v7824
        %v7891 = vadd.f32 %v7395, %v7829
        %v7892 = vadd.f32 %v7396, %v7834
        %v7893 = vadd.f32 %v7397, %v7839
        %v7894 = vadd.f32 %v7398, %v7844
        %v7895 = vadd.f32 %v7399, %v7849
        %v7896 = vadd.f32 %v7400, %v7854
        %v7897 = vadd.f32 %v7401, %v7859
        %v7898 = vadd.f32 %v7402, %v7864
        %s7899 = scalar_lea.vmem [#allocation11], 3584
        %v7900 = vld [vmem:[%s7899] sm:$0xff]
        %v7901 = vld [vmem:[%s7899 + $0x8] sm:$0xff]
        %v7902 = vld [vmem:[%s7899 + $0x10] sm:$0xff]
        %v7903 = vld [vmem:[%s7899 + $0x18] sm:$0xff]
        %v7904 = vld [vmem:[%s7899 + $0x20] sm:$0xff]
        %v7905 = vld [vmem:[%s7899 + $0x28] sm:$0xff]
        %v7906 = vld [vmem:[%s7899 + $0x30] sm:$0xff]
        %v7907 = vld [vmem:[%s7899 + $0x38] sm:$0xff]
        %v7908 = vld [vmem:[%s7899 + $0x40] sm:$0xff]
        %v7909 = vld [vmem:[%s7899 + $0x48] sm:$0xff]
        %v7910 = vld [vmem:[%s7899 + $0x50] sm:$0xff]
        %v7911 = vld [vmem:[%s7899 + $0x58] sm:$0xff]
        %v7912 = vld [vmem:[%s7899 + $0x60] sm:$0xff]
        %v7913 = vld [vmem:[%s7899 + $0x68] sm:$0xff]
        %v7914 = vld [vmem:[%s7899 + $0x70] sm:$0xff]
        %v7915 = vld [vmem:[%s7899 + $0x78] sm:$0xff]
        %v7916 = vld [vmem:[%s7899 + $0x80] sm:$0xff]
        %v7917 = vld [vmem:[%s7899 + $0x88] sm:$0xff]
        %v7918 = vld [vmem:[%s7899 + $0x90] sm:$0xff]
        %v7919 = vld [vmem:[%s7899 + $0x98] sm:$0xff]
        %v7920 = vld [vmem:[%s7899 + $0xa0] sm:$0xff]
        %v7921 = vld [vmem:[%s7899 + $0xa8] sm:$0xff]
        %v7922 = vld [vmem:[%s7899 + $0xb0] sm:$0xff]
        %v7923 = vld [vmem:[%s7899 + $0xb8] sm:$0xff]
        %v7924 = vld [vmem:[%s7899 + $0xc0] sm:$0xff]
        %v7925 = vld [vmem:[%s7899 + $0xc8] sm:$0xff]
        %v7926 = vld [vmem:[%s7899 + $0xd0] sm:$0xff]
        %v7927 = vld [vmem:[%s7899 + $0xd8] sm:$0xff]
        %v7928 = vld [vmem:[%s7899 + $0xe0] sm:$0xff]
        %v7929 = vld [vmem:[%s7899 + $0xe8] sm:$0xff]
        %v7930 = vld [vmem:[%s7899 + $0xf0] sm:$0xff]
        %v7931 = vld [vmem:[%s7899 + $0xf8] sm:$0xff]
        %v7932 = vld [vmem:[%s7899 + $0x100] sm:$0xff]
        %v7933 = vld [vmem:[%s7899 + $0x108] sm:$0xff]
        %v7934 = vld [vmem:[%s7899 + $0x110] sm:$0xff]
        %v7935 = vld [vmem:[%s7899 + $0x118] sm:$0xff]
        %v7936 = vld [vmem:[%s7899 + $0x120] sm:$0xff]
        %v7937 = vld [vmem:[%s7899 + $0x128] sm:$0xff]
        %v7938 = vld [vmem:[%s7899 + $0x130] sm:$0xff]
        %v7939 = vld [vmem:[%s7899 + $0x138] sm:$0xff]
        %v7940 = vld [vmem:[%s7899 + $0x140] sm:$0xff]
        %v7941 = vld [vmem:[%s7899 + $0x148] sm:$0xff]
        %v7942 = vld [vmem:[%s7899 + $0x150] sm:$0xff]
        %v7943 = vld [vmem:[%s7899 + $0x158] sm:$0xff]
        %v7944 = vld [vmem:[%s7899 + $0x160] sm:$0xff]
        %v7945 = vld [vmem:[%s7899 + $0x168] sm:$0xff]
        %v7946 = vld [vmem:[%s7899 + $0x170] sm:$0xff]
        %v7947 = vld [vmem:[%s7899 + $0x178] sm:$0xff]
        %v7948 = vld [vmem:[%s7899 + $0x180] sm:$0xff]
        %v7949 = vld [vmem:[%s7899 + $0x188] sm:$0xff]
        %v7950 = vld [vmem:[%s7899 + $0x190] sm:$0xff]
        %v7951 = vld [vmem:[%s7899 + $0x198] sm:$0xff]
        %v7952 = vld [vmem:[%s7899 + $0x1a0] sm:$0xff]
        %v7953 = vld [vmem:[%s7899 + $0x1a8] sm:$0xff]
        %v7954 = vld [vmem:[%s7899 + $0x1b0] sm:$0xff]
        %v7955 = vld [vmem:[%s7899 + $0x1b8] sm:$0xff]
        %v7956 = vld [vmem:[%s7899 + $0x1c0] sm:$0xff]
        %v7957 = vld [vmem:[%s7899 + $0x1c8] sm:$0xff]
        %v7958 = vld [vmem:[%s7899 + $0x1d0] sm:$0xff]
        %v7959 = vld [vmem:[%s7899 + $0x1d8] sm:$0xff]
        %v7960 = vld [vmem:[%s7899 + $0x1e0] sm:$0xff]
        %v7961 = vld [vmem:[%s7899 + $0x1e8] sm:$0xff]
        %v7962 = vld [vmem:[%s7899 + $0x1f0] sm:$0xff]
        %v7963 = vld [vmem:[%s7899 + $0x1f8] sm:$0xff]
        %7964 = vrot.lane.b32.xlu0 %v4517, 121
        %v7965 = vpop.permute.xlu0 %7964
        %7966 = vrot.lane.b32.xlu0 %v4518, 121
        %v7967 = vpop.permute.xlu0 %7966
        %7968 = vrot.lane.b32.xlu0 %v4519, 121
        %v7969 = vpop.permute.xlu0 %7968
        %7970 = vrot.lane.b32.xlu0 %v4520, 121
        %v7971 = vpop.permute.xlu0 %7970
        %7972 = vrot.lane.b32.xlu0 %v4521, 121
        %v7973 = vpop.permute.xlu0 %7972
        %7974 = vrot.lane.b32.xlu0 %v4522, 121
        %v7975 = vpop.permute.xlu0 %7974
        %7976 = vrot.lane.b32.xlu0 %v4523, 121
        %v7977 = vpop.permute.xlu0 %7976
        %7978 = vrot.lane.b32.xlu0 %v4524, 121
        %v7979 = vpop.permute.xlu0 %7978
        %7980 = vrot.lane.b32.xlu0 %v4525, 121
        %v7981 = vpop.permute.xlu0 %7980
        %7982 = vrot.lane.b32.xlu0 %v4526, 121
        %v7983 = vpop.permute.xlu0 %7982
        %7984 = vrot.lane.b32.xlu0 %v4527, 121
        %v7985 = vpop.permute.xlu0 %7984
        %7986 = vrot.lane.b32.xlu0 %v4528, 121
        %v7987 = vpop.permute.xlu0 %7986
        %7988 = vrot.lane.b32.xlu0 %v4529, 121
        %v7989 = vpop.permute.xlu0 %7988
        %7990 = vrot.lane.b32.xlu0 %v4530, 121
        %v7991 = vpop.permute.xlu0 %7990
        %7992 = vrot.lane.b32.xlu0 %v4531, 121
        %v7993 = vpop.permute.xlu0 %7992
        %7994 = vrot.lane.b32.xlu0 %v4532, 121
        %v7995 = vpop.permute.xlu0 %7994
        %7996 = vrot.lane.b32.xlu0 %v4533, 121
        %v7997 = vpop.permute.xlu0 %7996
        %7998 = vrot.lane.b32.xlu0 %v4534, 121
        %v7999 = vpop.permute.xlu0 %7998
        %8000 = vrot.lane.b32.xlu0 %v4535, 121
        %v8001 = vpop.permute.xlu0 %8000
        %8002 = vrot.lane.b32.xlu0 %v4536, 121
        %v8003 = vpop.permute.xlu0 %8002
        %8004 = vrot.lane.b32.xlu0 %v4537, 121
        %v8005 = vpop.permute.xlu0 %8004
        %8006 = vrot.lane.b32.xlu0 %v4538, 121
        %v8007 = vpop.permute.xlu0 %8006
        %8008 = vrot.lane.b32.xlu0 %v4539, 121
        %v8009 = vpop.permute.xlu0 %8008
        %8010 = vrot.lane.b32.xlu0 %v4540, 121
        %v8011 = vpop.permute.xlu0 %8010
        %8012 = vrot.lane.b32.xlu0 %v4541, 121
        %v8013 = vpop.permute.xlu0 %8012
        %8014 = vrot.lane.b32.xlu0 %v4542, 121
        %v8015 = vpop.permute.xlu0 %8014
        %v8043 = vsel %vm4776, %v7901, 0
        %v8046 = vsel %vm4776, %v7903, 0
        %v8049 = vsel %vm4776, %v7905, 0
        %v8052 = vsel %vm4776, %v7907, 0
        %v8055 = vsel %vm4776, %v7909, 0
        %v8058 = vsel %vm4776, %v7911, 0
        %v8061 = vsel %vm4776, %v7913, 0
        %v8064 = vsel %vm4776, %v7915, 0
        %v8067 = vsel %vm4776, %v7917, 0
        %v8070 = vsel %vm4776, %v7919, 0
        %v8073 = vsel %vm4776, %v7921, 0
        %v8076 = vsel %vm4776, %v7923, 0
        %v8079 = vsel %vm4776, %v7925, 0
        %v8082 = vsel %vm4776, %v7927, 0
        %v8085 = vsel %vm4776, %v7929, 0
        %v8088 = vsel %vm4776, %v7931, 0
        %v8091 = vsel %vm4776, %v7933, 0
        %v8094 = vsel %vm4776, %v7935, 0
        %v8097 = vsel %vm4776, %v7937, 0
        %v8100 = vsel %vm4776, %v7939, 0
        %v8103 = vsel %vm4776, %v7941, 0
        %v8106 = vsel %vm4776, %v7943, 0
        %v8109 = vsel %vm4776, %v7945, 0
        %v8112 = vsel %vm4776, %v7947, 0
        %v8115 = vsel %vm4776, %v7949, 0
        %v8118 = vsel %vm4776, %v7951, 0
        %v8121 = vsel %vm4776, %v7953, 0
        %v8124 = vsel %vm4776, %v7955, 0
        %v8127 = vsel %vm4776, %v7957, 0
        %v8130 = vsel %vm4776, %v7959, 0
        %v8133 = vsel %vm4776, %v7961, 0
        %v8136 = vsel %vm4776, %v7963, 0
        %8138 = vmatprep.subr.mxu0 0.0
        %8139 = vmatpush1.msra.mxu0 %v7995
        %8140 = vmatprep.subr.mxu0 0.0
        %8141 = vmatpush1.msra.mxu0 %v7993
        %8142 = vmatprep.subr.mxu0 0.0
        %8143 = vmatpush1.msra.mxu0 %v7991
        %8144 = vmatprep.subr.mxu0 0.0
        %8145 = vmatpush1.msra.mxu0 %v7989
        %8146 = vmatprep.subr.mxu0 0.0
        %8147 = vmatpush1.msra.mxu0 %v7987
        %8148 = vmatprep.subr.mxu0 0.0
        %8149 = vmatpush1.msra.mxu0 %v7985
        %8150 = vmatprep.subr.mxu0 0.0
        %8151 = vmatpush1.msra.mxu0 %v7983
        %8152 = vmatprep.subr.mxu0 0.0
        %8153 = vmatpush1.msra.mxu0 %v7981
        %8154 = vmatprep.subr.mxu0 0.0
        %8155 = vmatpush1.msra.mxu0 %v7979
        %8156 = vmatprep.subr.mxu0 0.0
        %8157 = vmatpush1.msra.mxu0 %v7977
        %8158 = vmatprep.subr.mxu0 0.0
        %8159 = vmatpush1.msra.mxu0 %v7975
        %8160 = vmatprep.subr.mxu0 0.0
        %8161 = vmatpush1.msra.mxu0 %v7973
        %8162 = vmatprep.subr.mxu0 0.0
        %8163 = vmatpush1.msra.mxu0 %v7971
        %8164 = vmatprep.subr.mxu0 0.0
        %8165 = vmatpush1.msra.mxu0 %v7969
        %8166 = vmatprep.subr.mxu0 0.0
        %8167 = vmatpush1.msra.mxu0 %v7967
        %8168 = vmatprep.subr.mxu0 0.0
        %8169 = vmatpush1.msra.mxu0 %v7965
        %8170 = vmatprep.subr.mxu0 0.0
        %8171 = vmatpush2.msra.mxu0 0.0
        %8172 = vmatprep.subr.mxu0 0.0
        %8173 = vmatpush2.msra.mxu0 0.0
        %8174 = vmatprep.subr.mxu0 0.0
        %8175 = vmatpush2.msra.mxu0 0.0
        %8176 = vmatprep.subr.mxu0 0.0
        %8177 = vmatpush2.msra.mxu0 0.0
        %8178 = vmatprep.subr.mxu0 0.0
        %8179 = vmatpush2.msra.mxu0 0.0
        %8180 = vmatprep.subr.mxu0 0.0
        %8181 = vmatpush2.msra.mxu0 0.0
        %8182 = vmatprep.subr.mxu0 0.0
        %8183 = vmatpush2.msra.mxu0 %v8015
        %8184 = vmatprep.subr.mxu0 0.0
        %8185 = vmatpush2.msra.mxu0 %v8013
        %8186 = vmatprep.subr.mxu0 0.0
        %8187 = vmatpush2.msra.mxu0 %v8011
        %8188 = vmatprep.subr.mxu0 0.0
        %8189 = vmatpush2.msra.mxu0 %v8009
        %8190 = vmatprep.subr.mxu0 0.0
        %8191 = vmatpush2.msra.mxu0 %v8007
        %8192 = vmatprep.subr.mxu0 0.0
        %8193 = vmatpush2.msra.mxu0 %v8005
        %8194 = vmatprep.subr.mxu0 0.0
        %8195 = vmatpush2.msra.mxu0 %v8003
        %8196 = vmatprep.subr.mxu0 0.0
        %8197 = vmatpush2.msra.mxu0 %v8001
        %8198 = vmatprep.subr.mxu0 0.0
        %8199 = vmatpush2.msra.mxu0 %v7999
        %8200 = vmatprep.subr.mxu0 0.0
        %8201 = vmatpush2.msra.mxu0 %v7997
        %8202 = vmatprep.mubr.f32.mxu0 %v8043
        %8203 = vmatmul.mubr.f32.gmra.mxu0 %v7900
        %v8204 = vpop.f32.mrf.mxu0
        %v8205 = vadd.f32 0.0, %v8204
        %v8206 = vpop.f32.mrf.mxu0
        %8207 = vmatprep.mubr.f32.mxu0 %v8046
        %8208 = vmatmul.mubr.f32.gmra.mxu0 %v7902
        %v8209 = vpop.f32.mrf.mxu0
        %v8210 = vadd.f32 0.0, %v8209
        %v8211 = vpop.f32.mrf.mxu0
        %8212 = vmatprep.mubr.f32.mxu0 %v8049
        %8213 = vmatmul.mubr.f32.gmra.mxu0 %v7904
        %v8214 = vpop.f32.mrf.mxu0
        %v8215 = vadd.f32 0.0, %v8214
        %v8216 = vpop.f32.mrf.mxu0
        %8217 = vmatprep.mubr.f32.mxu0 %v8052
        %8218 = vmatmul.mubr.f32.gmra.mxu0 %v7906
        %v8219 = vpop.f32.mrf.mxu0
        %v8220 = vadd.f32 0.0, %v8219
        %v8221 = vpop.f32.mrf.mxu0
        %8222 = vmatprep.mubr.f32.mxu0 %v8055
        %8223 = vmatmul.mubr.f32.gmra.mxu0 %v7908
        %v8224 = vpop.f32.mrf.mxu0
        %v8225 = vadd.f32 0.0, %v8224
        %v8226 = vpop.f32.mrf.mxu0
        %8227 = vmatprep.mubr.f32.mxu0 %v8058
        %8228 = vmatmul.mubr.f32.gmra.mxu0 %v7910
        %v8229 = vpop.f32.mrf.mxu0
        %v8230 = vadd.f32 0.0, %v8229
        %v8231 = vpop.f32.mrf.mxu0
        %8232 = vmatprep.mubr.f32.mxu0 %v8061
        %8233 = vmatmul.mubr.f32.gmra.mxu0 %v7912
        %v8234 = vpop.f32.mrf.mxu0
        %v8235 = vadd.f32 0.0, %v8234
        %v8236 = vpop.f32.mrf.mxu0
        %8237 = vmatprep.mubr.f32.mxu0 %v8064
        %8238 = vmatmul.mubr.f32.gmra.mxu0 %v7914
        %v8239 = vpop.f32.mrf.mxu0
        %v8240 = vadd.f32 0.0, %v8239
        %v8241 = vpop.f32.mrf.mxu0
        %8242 = vmatprep.mubr.f32.mxu0 %v8067
        %8243 = vmatmul.mubr.f32.gmra.mxu0 %v7916
        %v8244 = vpop.f32.mrf.mxu0
        %v8245 = vadd.f32 0.0, %v8244
        %v8246 = vpop.f32.mrf.mxu0
        %8247 = vmatprep.mubr.f32.mxu0 %v8070
        %8248 = vmatmul.mubr.f32.gmra.mxu0 %v7918
        %v8249 = vpop.f32.mrf.mxu0
        %v8250 = vadd.f32 0.0, %v8249
        %v8251 = vpop.f32.mrf.mxu0
        %8252 = vmatprep.mubr.f32.mxu0 %v8073
        %8253 = vmatmul.mubr.f32.gmra.mxu0 %v7920
        %v8254 = vpop.f32.mrf.mxu0
        %v8255 = vadd.f32 0.0, %v8254
        %v8256 = vpop.f32.mrf.mxu0
        %8257 = vmatprep.mubr.f32.mxu0 %v8076
        %8258 = vmatmul.mubr.f32.gmra.mxu0 %v7922
        %v8259 = vpop.f32.mrf.mxu0
        %v8260 = vadd.f32 0.0, %v8259
        %v8261 = vpop.f32.mrf.mxu0
        %8262 = vmatprep.mubr.f32.mxu0 %v8079
        %8263 = vmatmul.mubr.f32.gmra.mxu0 %v7924
        %v8264 = vpop.f32.mrf.mxu0
        %v8265 = vadd.f32 0.0, %v8264
        %v8266 = vpop.f32.mrf.mxu0
        %8267 = vmatprep.mubr.f32.mxu0 %v8082
        %8268 = vmatmul.mubr.f32.gmra.mxu0 %v7926
        %v8269 = vpop.f32.mrf.mxu0
        %v8270 = vadd.f32 0.0, %v8269
        %v8271 = vpop.f32.mrf.mxu0
        %8272 = vmatprep.mubr.f32.mxu0 %v8085
        %8273 = vmatmul.mubr.f32.gmra.mxu0 %v7928
        %v8274 = vpop.f32.mrf.mxu0
        %v8275 = vadd.f32 0.0, %v8274
        %v8276 = vpop.f32.mrf.mxu0
        %8277 = vmatprep.mubr.f32.mxu0 %v8088
        %8278 = vmatmul.mubr.f32.gmra.mxu0 %v7930
        %v8279 = vpop.f32.mrf.mxu0
        %v8280 = vadd.f32 0.0, %v8279
        %v8281 = vpop.f32.mrf.mxu0
        %8282 = vmatprep.mubr.f32.mxu0 %v8091
        %8283 = vmatmul.mubr.f32.gmra.mxu0 %v7932
        %v8284 = vpop.f32.mrf.mxu0
        %v8285 = vadd.f32 0.0, %v8284
        %v8286 = vpop.f32.mrf.mxu0
        %8287 = vmatprep.mubr.f32.mxu0 %v8094
        %8288 = vmatmul.mubr.f32.gmra.mxu0 %v7934
        %v8289 = vpop.f32.mrf.mxu0
        %v8290 = vadd.f32 0.0, %v8289
        %v8291 = vpop.f32.mrf.mxu0
        %8292 = vmatprep.mubr.f32.mxu0 %v8097
        %8293 = vmatmul.mubr.f32.gmra.mxu0 %v7936
        %v8294 = vpop.f32.mrf.mxu0
        %v8295 = vadd.f32 0.0, %v8294
        %v8296 = vpop.f32.mrf.mxu0
        %8297 = vmatprep.mubr.f32.mxu0 %v8100
        %8298 = vmatmul.mubr.f32.gmra.mxu0 %v7938
        %v8299 = vpop.f32.mrf.mxu0
        %v8300 = vadd.f32 0.0, %v8299
        %v8301 = vpop.f32.mrf.mxu0
        %8302 = vmatprep.mubr.f32.mxu0 %v8103
        %8303 = vmatmul.mubr.f32.gmra.mxu0 %v7940
        %v8304 = vpop.f32.mrf.mxu0
        %v8305 = vadd.f32 0.0, %v8304
        %v8306 = vpop.f32.mrf.mxu0
        %8307 = vmatprep.mubr.f32.mxu0 %v8106
        %8308 = vmatmul.mubr.f32.gmra.mxu0 %v7942
        %v8309 = vpop.f32.mrf.mxu0
        %v8310 = vadd.f32 0.0, %v8309
        %v8311 = vpop.f32.mrf.mxu0
        %8312 = vmatprep.mubr.f32.mxu0 %v8109
        %8313 = vmatmul.mubr.f32.gmra.mxu0 %v7944
        %v8314 = vpop.f32.mrf.mxu0
        %v8315 = vadd.f32 0.0, %v8314
        %v8316 = vpop.f32.mrf.mxu0
        %8317 = vmatprep.mubr.f32.mxu0 %v8112
        %8318 = vmatmul.mubr.f32.gmra.mxu0 %v7946
        %v8319 = vpop.f32.mrf.mxu0
        %v8320 = vadd.f32 0.0, %v8319
        %v8321 = vpop.f32.mrf.mxu0
        %8322 = vmatprep.mubr.f32.mxu0 %v8115
        %8323 = vmatmul.mubr.f32.gmra.mxu0 %v7948
        %v8324 = vpop.f32.mrf.mxu0
        %v8325 = vadd.f32 0.0, %v8324
        %v8326 = vpop.f32.mrf.mxu0
        %8327 = vmatprep.mubr.f32.mxu0 %v8118
        %8328 = vmatmul.mubr.f32.gmra.mxu0 %v7950
        %v8329 = vpop.f32.mrf.mxu0
        %v8330 = vadd.f32 0.0, %v8329
        %v8331 = vpop.f32.mrf.mxu0
        %8332 = vmatprep.mubr.f32.mxu0 %v8121
        %8333 = vmatmul.mubr.f32.gmra.mxu0 %v7952
        %v8334 = vpop.f32.mrf.mxu0
        %v8335 = vadd.f32 0.0, %v8334
        %v8336 = vpop.f32.mrf.mxu0
        %8337 = vmatprep.mubr.f32.mxu0 %v8124
        %8338 = vmatmul.mubr.f32.gmra.mxu0 %v7954
        %v8339 = vpop.f32.mrf.mxu0
        %v8340 = vadd.f32 0.0, %v8339
        %v8341 = vpop.f32.mrf.mxu0
        %8342 = vmatprep.mubr.f32.mxu0 %v8127
        %8343 = vmatmul.mubr.f32.gmra.mxu0 %v7956
        %v8344 = vpop.f32.mrf.mxu0
        %v8345 = vadd.f32 0.0, %v8344
        %v8346 = vpop.f32.mrf.mxu0
        %8347 = vmatprep.mubr.f32.mxu0 %v8130
        %8348 = vmatmul.mubr.f32.gmra.mxu0 %v7958
        %v8349 = vpop.f32.mrf.mxu0
        %v8350 = vadd.f32 0.0, %v8349
        %v8351 = vpop.f32.mrf.mxu0
        %8352 = vmatprep.mubr.f32.mxu0 %v8133
        %8353 = vmatmul.mubr.f32.gmra.mxu0 %v7960
        %v8354 = vpop.f32.mrf.mxu0
        %v8355 = vadd.f32 0.0, %v8354
        %v8356 = vpop.f32.mrf.mxu0
        %8357 = vmatprep.mubr.f32.mxu0 %v8136
        %8358 = vmatmul.mubr.f32.gmra.mxu0 %v7962
        %v8359 = vpop.f32.mrf.mxu0
        %v8360 = vadd.f32 0.0, %v8359
        %v8361 = vpop.f32.mrf.mxu0
        %8362 = vdwg.mxu0
        %v8363 = vadd.f32 %v7867, %v8205
        %v8364 = vadd.f32 %v7868, %v8210
        %v8365 = vadd.f32 %v7869, %v8215
        %v8366 = vadd.f32 %v7870, %v8220
        %v8367 = vadd.f32 %v7871, %v8225
        %v8368 = vadd.f32 %v7872, %v8230
        %v8369 = vadd.f32 %v7873, %v8235
        %v8370 = vadd.f32 %v7874, %v8240
        %v8371 = vadd.f32 %v7875, %v8245
        %v8372 = vadd.f32 %v7876, %v8250
        %v8373 = vadd.f32 %v7877, %v8255
        %v8374 = vadd.f32 %v7878, %v8260
        %v8375 = vadd.f32 %v7879, %v8265
        %v8376 = vadd.f32 %v7880, %v8270
        %v8377 = vadd.f32 %v7881, %v8275
        %v8378 = vadd.f32 %v7882, %v8280
        %v8379 = vadd.f32 %v7883, %v8285
        %v8380 = vadd.f32 %v7884, %v8290
        %v8381 = vadd.f32 %v7885, %v8295
        %v8382 = vadd.f32 %v7886, %v8300
        %v8383 = vadd.f32 %v7887, %v8305
        %v8384 = vadd.f32 %v7888, %v8310
        %v8385 = vadd.f32 %v7889, %v8315
        %v8386 = vadd.f32 %v7890, %v8320
        %v8387 = vadd.f32 %v7891, %v8325
        %v8388 = vadd.f32 %v7892, %v8330
        %v8389 = vadd.f32 %v7893, %v8335
        %v8390 = vadd.f32 %v7894, %v8340
        %v8391 = vadd.f32 %v7895, %v8345
        %v8392 = vadd.f32 %v7896, %v8350
        %v8393 = vadd.f32 %v7897, %v8355
        %v8394 = vadd.f32 %v7898, %v8360
        %v8395 = vld [vmem:[#allocation12] sm:$0xff]
        %v8396 = vld [vmem:[#allocation12 + $0x8] sm:$0xff]
        %v8397 = vld [vmem:[#allocation12 + $0x10] sm:$0xff]
        %v8398 = vld [vmem:[#allocation12 + $0x18] sm:$0xff]
        %v8399 = vld [vmem:[#allocation12 + $0x20] sm:$0xff]
        %v8400 = vld [vmem:[#allocation12 + $0x28] sm:$0xff]
        %v8401 = vld [vmem:[#allocation12 + $0x30] sm:$0xff]
        %v8402 = vld [vmem:[#allocation12 + $0x38] sm:$0xff]
        %v8403 = vld [vmem:[#allocation12 + $0x40] sm:$0xff]
        %v8404 = vld [vmem:[#allocation12 + $0x48] sm:$0xff]
        %v8405 = vld [vmem:[#allocation12 + $0x50] sm:$0xff]
        %v8406 = vld [vmem:[#allocation12 + $0x58] sm:$0xff]
        %v8407 = vld [vmem:[#allocation12 + $0x60] sm:$0xff]
        %v8408 = vld [vmem:[#allocation12 + $0x68] sm:$0xff]
        %v8409 = vld [vmem:[#allocation12 + $0x70] sm:$0xff]
        %v8410 = vld [vmem:[#allocation12 + $0x78] sm:$0xff]
        %v8411 = vld [vmem:[#allocation12 + $0x80] sm:$0xff]
        %v8412 = vld [vmem:[#allocation12 + $0x88] sm:$0xff]
        %v8413 = vld [vmem:[#allocation12 + $0x90] sm:$0xff]
        %v8414 = vld [vmem:[#allocation12 + $0x98] sm:$0xff]
        %v8415 = vld [vmem:[#allocation12 + $0xa0] sm:$0xff]
        %v8416 = vld [vmem:[#allocation12 + $0xa8] sm:$0xff]
        %v8417 = vld [vmem:[#allocation12 + $0xb0] sm:$0xff]
        %v8418 = vld [vmem:[#allocation12 + $0xb8] sm:$0xff]
        %v8419 = vld [vmem:[#allocation12 + $0xc0] sm:$0xff]
        %v8420 = vld [vmem:[#allocation12 + $0xc8] sm:$0xff]
        %v8421 = vld [vmem:[#allocation12 + $0xd0] sm:$0xff]
        %v8422 = vld [vmem:[#allocation12 + $0xd8] sm:$0xff]
        %v8423 = vld [vmem:[#allocation12 + $0xe0] sm:$0xff]
        %v8424 = vld [vmem:[#allocation12 + $0xe8] sm:$0xff]
        %v8425 = vld [vmem:[#allocation12 + $0xf0] sm:$0xff]
        %v8426 = vld [vmem:[#allocation12 + $0xf8] sm:$0xff]
        %v8427 = vadd.f32 %v8363, %v8395
        %v8428 = vadd.f32 %v8364, %v8396
        %v8429 = vadd.f32 %v8365, %v8397
        %v8430 = vadd.f32 %v8366, %v8398
        %v8431 = vadd.f32 %v8367, %v8399
        %v8432 = vadd.f32 %v8368, %v8400
        %v8433 = vadd.f32 %v8369, %v8401
        %v8434 = vadd.f32 %v8370, %v8402
        %v8435 = vadd.f32 %v8371, %v8403
        %v8436 = vadd.f32 %v8372, %v8404
        %v8437 = vadd.f32 %v8373, %v8405
        %v8438 = vadd.f32 %v8374, %v8406
        %v8439 = vadd.f32 %v8375, %v8407
        %v8440 = vadd.f32 %v8376, %v8408
        %v8441 = vadd.f32 %v8377, %v8409
        %v8442 = vadd.f32 %v8378, %v8410
        %v8443 = vadd.f32 %v8379, %v8411
        %v8444 = vadd.f32 %v8380, %v8412
        %v8445 = vadd.f32 %v8381, %v8413
        %v8446 = vadd.f32 %v8382, %v8414
        %v8447 = vadd.f32 %v8383, %v8415
        %v8448 = vadd.f32 %v8384, %v8416
        %v8449 = vadd.f32 %v8385, %v8417
        %v8450 = vadd.f32 %v8386, %v8418
        %v8451 = vadd.f32 %v8387, %v8419
        %v8452 = vadd.f32 %v8388, %v8420
        %v8453 = vadd.f32 %v8389, %v8421
        %v8454 = vadd.f32 %v8390, %v8422
        %v8455 = vadd.f32 %v8391, %v8423
        %v8456 = vadd.f32 %v8392, %v8424
        %v8457 = vadd.f32 %v8393, %v8425
        %v8458 = vadd.f32 %v8394, %v8426
        %v8459 = vmax.f32 %v8427, 0.0
        %v8460 = vmax.f32 %v8428, 0.0
        %v8461 = vmax.f32 %v8429, 0.0
        %v8462 = vmax.f32 %v8430, 0.0
        %v8463 = vmax.f32 %v8431, 0.0
        %v8464 = vmax.f32 %v8432, 0.0
        %v8465 = vmax.f32 %v8433, 0.0
        %v8466 = vmax.f32 %v8434, 0.0
        %v8467 = vmax.f32 %v8435, 0.0
        %v8468 = vmax.f32 %v8436, 0.0
        %v8469 = vmax.f32 %v8437, 0.0
        %v8470 = vmax.f32 %v8438, 0.0
        %v8471 = vmax.f32 %v8439, 0.0
        %v8472 = vmax.f32 %v8440, 0.0
        %v8473 = vmax.f32 %v8441, 0.0
        %v8474 = vmax.f32 %v8442, 0.0
        %v8475 = vmax.f32 %v8443, 0.0
        %v8476 = vmax.f32 %v8444, 0.0
        %v8477 = vmax.f32 %v8445, 0.0
        %v8478 = vmax.f32 %v8446, 0.0
        %v8479 = vmax.f32 %v8447, 0.0
        %v8480 = vmax.f32 %v8448, 0.0
        %v8481 = vmax.f32 %v8449, 0.0
        %v8482 = vmax.f32 %v8450, 0.0
        %v8483 = vmax.f32 %v8451, 0.0
        %v8484 = vmax.f32 %v8452, 0.0
        %v8485 = vmax.f32 %v8453, 0.0
        %v8486 = vmax.f32 %v8454, 0.0
        %v8487 = vmax.f32 %v8455, 0.0
        %v8488 = vmax.f32 %v8456, 0.0
        %v8489 = vmax.f32 %v8457, 0.0
        %v8490 = vmax.f32 %v8458, 0.0
        %v8491 = vld [vmem:[#allocation14] sm:$0xff]
        %v8492 = vld [vmem:[#allocation14 + $0x8] sm:$0xff]
        %v8493 = vld [vmem:[#allocation14 + $0x10] sm:$0xff]
        %v8494 = vld [vmem:[#allocation14 + $0x18] sm:$0xff]
        %v8495 = vld [vmem:[#allocation14 + $0x20] sm:$0xff]
        %v8496 = vld [vmem:[#allocation14 + $0x28] sm:$0xff]
        %v8497 = vld [vmem:[#allocation14 + $0x30] sm:$0xff]
        %v8498 = vld [vmem:[#allocation14 + $0x38] sm:$0xff]
        %v8499 = vld [vmem:[#allocation14 + $0x40] sm:$0xff]
        %v8500 = vld [vmem:[#allocation14 + $0x48] sm:$0xff]
        %v8501 = vld [vmem:[#allocation14 + $0x50] sm:$0xff]
        %v8502 = vld [vmem:[#allocation14 + $0x58] sm:$0xff]
        %v8503 = vld [vmem:[#allocation14 + $0x60] sm:$0xff]
        %v8504 = vld [vmem:[#allocation14 + $0x68] sm:$0xff]
        %v8505 = vld [vmem:[#allocation14 + $0x70] sm:$0xff]
        %v8506 = vld [vmem:[#allocation14 + $0x78] sm:$0xff]
        %v8507 = vld [vmem:[#allocation14 + $0x80] sm:$0xff]
        %v8508 = vld [vmem:[#allocation14 + $0x88] sm:$0xff]
        %v8509 = vld [vmem:[#allocation14 + $0x90] sm:$0xff]
        %v8510 = vld [vmem:[#allocation14 + $0x98] sm:$0xff]
        %v8511 = vld [vmem:[#allocation14 + $0xa0] sm:$0xff]
        %v8512 = vld [vmem:[#allocation14 + $0xa8] sm:$0xff]
        %v8513 = vld [vmem:[#allocation14 + $0xb0] sm:$0xff]
        %v8514 = vld [vmem:[#allocation14 + $0xb8] sm:$0xff]
        %v8515 = vld [vmem:[#allocation14 + $0xc0] sm:$0xff]
        %v8516 = vld [vmem:[#allocation14 + $0xc8] sm:$0xff]
        %v8517 = vld [vmem:[#allocation14 + $0xd0] sm:$0xff]
        %v8518 = vld [vmem:[#allocation14 + $0xd8] sm:$0xff]
        %v8519 = vld [vmem:[#allocation14 + $0xe0] sm:$0xff]
        %v8520 = vld [vmem:[#allocation14 + $0xe8] sm:$0xff]
        %v8521 = vld [vmem:[#allocation14 + $0xf0] sm:$0xff]
        %v8522 = vld [vmem:[#allocation14 + $0xf8] sm:$0xff]
        %v8523 = vld [vmem:[#allocation15] sm:$0xff]
        %v8524 = vld [vmem:[#allocation15 + $0x8] sm:$0xff]
        %v8525 = vld [vmem:[#allocation15 + $0x10] sm:$0xff]
        %v8526 = vld [vmem:[#allocation15 + $0x18] sm:$0xff]
        %v8527 = vld [vmem:[#allocation15 + $0x20] sm:$0xff]
        %v8528 = vld [vmem:[#allocation15 + $0x28] sm:$0xff]
        %v8529 = vld [vmem:[#allocation15 + $0x30] sm:$0xff]
        %v8530 = vld [vmem:[#allocation15 + $0x38] sm:$0xff]
        %v8531 = vld [vmem:[#allocation15 + $0x40] sm:$0xff]
        %v8532 = vld [vmem:[#allocation15 + $0x48] sm:$0xff]
        %v8533 = vld [vmem:[#allocation15 + $0x50] sm:$0xff]
        %v8534 = vld [vmem:[#allocation15 + $0x58] sm:$0xff]
        %v8535 = vld [vmem:[#allocation15 + $0x60] sm:$0xff]
        %v8536 = vld [vmem:[#allocation15 + $0x68] sm:$0xff]
        %v8537 = vld [vmem:[#allocation15 + $0x70] sm:$0xff]
        %v8538 = vld [vmem:[#allocation15 + $0x78] sm:$0xff]
        %8539 = vmatprep.subr.mxu0 0.0
        %8540 = vmatpush1.msra.mxu0 %v8474
        %8541 = vmatprep.subr.mxu0 0.0
        %8542 = vmatpush1.msra.mxu0 %v8473
        %8543 = vmatprep.subr.mxu0 0.0
        %8544 = vmatpush1.msra.mxu0 %v8472
        %8545 = vmatprep.subr.mxu0 0.0
        %8546 = vmatpush1.msra.mxu0 %v8471
        %8547 = vmatprep.subr.mxu0 0.0
        %8548 = vmatpush1.msra.mxu0 %v8470
        %8549 = vmatprep.subr.mxu0 0.0
        %8550 = vmatpush1.msra.mxu0 %v8469
        %8551 = vmatprep.subr.mxu0 0.0
        %8552 = vmatpush1.msra.mxu0 %v8468
        %8553 = vmatprep.subr.mxu0 0.0
        %8554 = vmatpush1.msra.mxu0 %v8467
        %8555 = vmatprep.subr.mxu0 0.0
        %8556 = vmatpush1.msra.mxu0 %v8466
        %8557 = vmatprep.subr.mxu0 0.0
        %8558 = vmatpush1.msra.mxu0 %v8465
        %8559 = vmatprep.subr.mxu0 0.0
        %8560 = vmatpush1.msra.mxu0 %v8464
        %8561 = vmatprep.subr.mxu0 0.0
        %8562 = vmatpush1.msra.mxu0 %v8463
        %8563 = vmatprep.subr.mxu0 0.0
        %8564 = vmatpush1.msra.mxu0 %v8462
        %8565 = vmatprep.subr.mxu0 0.0
        %8566 = vmatpush1.msra.mxu0 %v8461
        %8567 = vmatprep.subr.mxu0 0.0
        %8568 = vmatpush1.msra.mxu0 %v8460
        %8569 = vmatprep.subr.mxu0 0.0
        %8570 = vmatpush1.msra.mxu0 %v8459
        %8571 = vmatprep.subr.mxu0 0.0
        %8572 = vmatpush2.msra.mxu0 %v8490
        %8573 = vmatprep.subr.mxu0 0.0
        %8574 = vmatpush2.msra.mxu0 %v8489
        %8575 = vmatprep.subr.mxu0 0.0
        %8576 = vmatpush2.msra.mxu0 %v8488
        %8577 = vmatprep.subr.mxu0 0.0
        %8578 = vmatpush2.msra.mxu0 %v8487
        %8579 = vmatprep.subr.mxu0 0.0
        %8580 = vmatpush2.msra.mxu0 %v8486
        %8581 = vmatprep.subr.mxu0 0.0
        %8582 = vmatpush2.msra.mxu0 %v8485
        %8583 = vmatprep.subr.mxu0 0.0
        %8584 = vmatpush2.msra.mxu0 %v8484
        %8585 = vmatprep.subr.mxu0 0.0
        %8586 = vmatpush2.msra.mxu0 %v8483
        %8587 = vmatprep.subr.mxu0 0.0
        %8588 = vmatpush2.msra.mxu0 %v8482
        %8589 = vmatprep.subr.mxu0 0.0
        %8590 = vmatpush2.msra.mxu0 %v8481
        %8591 = vmatprep.subr.mxu0 0.0
        %8592 = vmatpush2.msra.mxu0 %v8480
        %8593 = vmatprep.subr.mxu0 0.0
        %8594 = vmatpush2.msra.mxu0 %v8479
        %8595 = vmatprep.subr.mxu0 0.0
        %8596 = vmatpush2.msra.mxu0 %v8478
        %8597 = vmatprep.subr.mxu0 0.0
        %8598 = vmatpush2.msra.mxu0 %v8477
        %8599 = vmatprep.subr.mxu0 0.0
        %8600 = vmatpush2.msra.mxu0 %v8476
        %8601 = vmatprep.subr.mxu0 0.0
        %8602 = vmatpush2.msra.mxu0 %v8475
        %8603 = vmatprep.mubr.f32.mxu0 %v8492
        %8604 = vmatmul.mubr.f32.gmra.mxu0 %v8491
        %v8605 = vpop.f32.mrf.mxu0
        %v8606 = vadd.f32 %v8523, %v8605
        %v8607 = vpop.f32.mrf.mxu0
        %8608 = vmatprep.mubr.f32.mxu0 %v8494
        %8609 = vmatmul.mubr.f32.gmra.mxu0 %v8493
        %v8610 = vpop.f32.mrf.mxu0
        %v8611 = vadd.f32 %v8524, %v8610
        %v8612 = vpop.f32.mrf.mxu0
        %8613 = vmatprep.mubr.f32.mxu0 %v8496
        %8614 = vmatmul.mubr.f32.gmra.mxu0 %v8495
        %v8615 = vpop.f32.mrf.mxu0
        %v8616 = vadd.f32 %v8525, %v8615
        %v8617 = vpop.f32.mrf.mxu0
        %8618 = vmatprep.mubr.f32.mxu0 %v8498
        %8619 = vmatmul.mubr.f32.gmra.mxu0 %v8497
        %v8620 = vpop.f32.mrf.mxu0
        %v8621 = vadd.f32 %v8526, %v8620
        %v8622 = vpop.f32.mrf.mxu0
        %8623 = vmatprep.mubr.f32.mxu0 %v8500
        %8624 = vmatmul.mubr.f32.gmra.mxu0 %v8499
        %v8625 = vpop.f32.mrf.mxu0
        %v8626 = vadd.f32 %v8527, %v8625
        %v8627 = vpop.f32.mrf.mxu0
        %8628 = vmatprep.mubr.f32.mxu0 %v8502
        %8629 = vmatmul.mubr.f32.gmra.mxu0 %v8501
        %v8630 = vpop.f32.mrf.mxu0
        %v8631 = vadd.f32 %v8528, %v8630
        %v8632 = vpop.f32.mrf.mxu0
        %8633 = vmatprep.mubr.f32.mxu0 %v8504
        %8634 = vmatmul.mubr.f32.gmra.mxu0 %v8503
        %v8635 = vpop.f32.mrf.mxu0
        %v8636 = vadd.f32 %v8529, %v8635
        %v8637 = vpop.f32.mrf.mxu0
        %8638 = vmatprep.mubr.f32.mxu0 %v8506
        %8639 = vmatmul.mubr.f32.gmra.mxu0 %v8505
        %v8640 = vpop.f32.mrf.mxu0
        %v8641 = vadd.f32 %v8530, %v8640
        %v8642 = vpop.f32.mrf.mxu0
        %8643 = vmatprep.mubr.f32.mxu0 %v8508
        %8644 = vmatmul.mubr.f32.gmra.mxu0 %v8507
        %v8645 = vpop.f32.mrf.mxu0
        %v8646 = vadd.f32 %v8531, %v8645
        %v8647 = vpop.f32.mrf.mxu0
        %8648 = vmatprep.mubr.f32.mxu0 %v8510
        %8649 = vmatmul.mubr.f32.gmra.mxu0 %v8509
        %v8650 = vpop.f32.mrf.mxu0
        %v8651 = vadd.f32 %v8532, %v8650
        %v8652 = vpop.f32.mrf.mxu0
        %8653 = vmatprep.mubr.f32.mxu0 %v8512
        %8654 = vmatmul.mubr.f32.gmra.mxu0 %v8511
        %v8655 = vpop.f32.mrf.mxu0
        %v8656 = vadd.f32 %v8533, %v8655
        %v8657 = vpop.f32.mrf.mxu0
        %8658 = vmatprep.mubr.f32.mxu0 %v8514
        %8659 = vmatmul.mubr.f32.gmra.mxu0 %v8513
        %v8660 = vpop.f32.mrf.mxu0
        %v8661 = vadd.f32 %v8534, %v8660
        %v8662 = vpop.f32.mrf.mxu0
        %8663 = vmatprep.mubr.f32.mxu0 %v8516
        %8664 = vmatmul.mubr.f32.gmra.mxu0 %v8515
        %v8665 = vpop.f32.mrf.mxu0
        %v8666 = vadd.f32 %v8535, %v8665
        %v8667 = vpop.f32.mrf.mxu0
        %8668 = vmatprep.mubr.f32.mxu0 %v8518
        %8669 = vmatmul.mubr.f32.gmra.mxu0 %v8517
        %v8670 = vpop.f32.mrf.mxu0
        %v8671 = vadd.f32 %v8536, %v8670
        %v8672 = vpop.f32.mrf.mxu0
        %8673 = vmatprep.mubr.f32.mxu0 %v8520
        %8674 = vmatmul.mubr.f32.gmra.mxu0 %v8519
        %v8675 = vpop.f32.mrf.mxu0
        %v8676 = vadd.f32 %v8537, %v8675
        %v8677 = vpop.f32.mrf.mxu0
        %8678 = vmatprep.mubr.f32.mxu0 %v8522
        %8679 = vmatmul.mubr.f32.gmra.mxu0 %v8521
        %v8680 = vpop.f32.mrf.mxu0
        %v8681 = vadd.f32 %v8538, %v8680
        %v8682 = vpop.f32.mrf.mxu0
        %8683 = vdwg.mxu0
        %v8684 = vmax.f32 %v8606, 0.0
        %v8685 = vmax.f32 %v8611, 0.0
        %v8686 = vmax.f32 %v8616, 0.0
        %v8687 = vmax.f32 %v8621, 0.0
        %v8688 = vmax.f32 %v8626, 0.0
        %v8689 = vmax.f32 %v8631, 0.0
        %v8690 = vmax.f32 %v8636, 0.0
        %v8691 = vmax.f32 %v8641, 0.0
        %v8692 = vmax.f32 %v8646, 0.0
        %v8693 = vmax.f32 %v8651, 0.0
        %v8694 = vmax.f32 %v8656, 0.0
        %v8695 = vmax.f32 %v8661, 0.0
        %v8696 = vmax.f32 %v8666, 0.0
        %v8697 = vmax.f32 %v8671, 0.0
        %v8698 = vmax.f32 %v8676, 0.0
        %v8699 = vmax.f32 %v8681, 0.0
        %v8700 = vld [vmem:[#allocation17] sm:$0x1]
        %v8701 = vld [vmem:[#allocation3] sm:$0x1]
        %8702 = vmatprep.subr.mxu0 0.0
        %8703 = vmatpush1.msra.mxu0 %v8699
        %8704 = vmatprep.subr.mxu0 0.0
        %8705 = vmatpush1.msra.mxu0 %v8698
        %8706 = vmatprep.subr.mxu0 0.0
        %8707 = vmatpush1.msra.mxu0 %v8697
        %8708 = vmatprep.subr.mxu0 0.0
        %8709 = vmatpush1.msra.mxu0 %v8696
        %8710 = vmatprep.subr.mxu0 0.0
        %8711 = vmatpush1.msra.mxu0 %v8695
        %8712 = vmatprep.subr.mxu0 0.0
        %8713 = vmatpush1.msra.mxu0 %v8694
        %8714 = vmatprep.subr.mxu0 0.0
        %8715 = vmatpush1.msra.mxu0 %v8693
        %8716 = vmatprep.subr.mxu0 0.0
        %8717 = vmatpush1.msra.mxu0 %v8692
        %8718 = vmatprep.subr.mxu0 0.0
        %8719 = vmatpush1.msra.mxu0 %v8691
        %8720 = vmatprep.subr.mxu0 0.0
        %8721 = vmatpush1.msra.mxu0 %v8690
        %8722 = vmatprep.subr.mxu0 0.0
        %8723 = vmatpush1.msra.mxu0 %v8689
        %8724 = vmatprep.subr.mxu0 0.0
        %8725 = vmatpush1.msra.mxu0 %v8688
        %8726 = vmatprep.subr.mxu0 0.0
        %8727 = vmatpush1.msra.mxu0 %v8687
        %8728 = vmatprep.subr.mxu0 0.0
        %8729 = vmatpush1.msra.mxu0 %v8686
        %8730 = vmatprep.subr.mxu0 0.0
        %8731 = vmatpush1.msra.mxu0 %v8685
        %8732 = vmatprep.subr.mxu0 0.0
        %8733 = vmatpush1.msra.mxu0 %v8684
        %8734 = vmatprep.subr.mxu0 0.0
        %8735 = vmatpush2.msra.mxu0 0.0
        %8736 = vmatprep.subr.mxu0 0.0
        %8737 = vmatpush2.msra.mxu0 0.0
        %8738 = vmatprep.subr.mxu0 0.0
        %8739 = vmatpush2.msra.mxu0 0.0
        %8740 = vmatprep.subr.mxu0 0.0
        %8741 = vmatpush2.msra.mxu0 0.0
        %8742 = vmatprep.subr.mxu0 0.0
        %8743 = vmatpush2.msra.mxu0 0.0
        %8744 = vmatprep.subr.mxu0 0.0
        %8745 = vmatpush2.msra.mxu0 0.0
        %8746 = vmatprep.subr.mxu0 0.0
        %8747 = vmatpush2.msra.mxu0 0.0
        %8748 = vmatprep.subr.mxu0 0.0
        %8749 = vmatpush2.msra.mxu0 0.0
        %8750 = vmatprep.subr.mxu0 0.0
        %8751 = vmatpush2.msra.mxu0 0.0
        %8752 = vmatprep.subr.mxu0 0.0
        %8753 = vmatpush2.msra.mxu0 0.0
        %8754 = vmatprep.subr.mxu0 0.0
        %8755 = vmatpush2.msra.mxu0 0.0
        %8756 = vmatprep.subr.mxu0 0.0
        %8757 = vmatpush2.msra.mxu0 0.0
        %8758 = vmatprep.subr.mxu0 0.0
        %8759 = vmatpush2.msra.mxu0 0.0
        %8760 = vmatprep.subr.mxu0 0.0
        %8761 = vmatpush2.msra.mxu0 0.0
        %8762 = vmatprep.subr.mxu0 0.0
        %8763 = vmatpush2.msra.mxu0 0.0
        %8764 = vmatprep.subr.mxu0 0.0
        %8765 = vmatpush2.msra.mxu0 0.0
        %8766 = vmatprep.mubr.f32.mxu0 0.0
        %8767 = vmatmul.mubr.f32.gmra.mxu0 %v8700
        %v8768 = vpop.f32.mrf.mxu0
        %v8769 = vadd.f32 %v8701, %v8768
        %v8770 = vpop.f32.mrf.mxu0
        %8771 = vdwg.mxu0
        %v8772 = vsub.f32 0.0, %v8769
        %v8773 = vmul.f32 %v8772, 1.442695
        %v8774 = vpow.pop %v8773
        %v8775 = vadd.f32 %v8774, 1.0
        %v8776 = vrcp.pop %v8775
        %vm8777 = vcmask 0
        %8778 = vst.msk [vmem:[%s507] sm:$0x1] %vm8777, %v8776
        %p8779 = scmp.lt.s32.totalorder %s29, 1
        %s8780 = scalar_select %p8779, %s29, 1
        %s8781 = scalar_lea.vmem %s11, %s8780
        // Predicated region
        $region101: #{_lambda_.1} parent=63 // pred_check
          %p8782 = pneg %p283
        $region102: #{_lambda_.1} parent=63 // pred_check_branch
          %8784 = sbr.rel (%p8782) target = $region104
        $region103: #{_lambda_.1} parent=63 // pred_region
          _
        $region104: #{_lambda_.1} parent=63 // pred_fallthru
          _
      $region64: #{_lambda_.1} parent=5 // pred_fallthru
        _
      %p8785 = scmp.le.s32.totalorder 2, %s24
      // Predicated region
      $region105: #{_lambda_.1} parent=5 // pred_check
        %p8786 = pneg %p8785
      $region106: #{_lambda_.1} parent=5 // pred_check_branch
        %8788 = sbr.rel (%p8786) target = $region108
      $region107: #{_lambda_.1} parent=5 // pred_region
        %s8789 = ssub.s32 %s24, 2
        // Predicated region
        $region109: #{_lambda_.1} parent=107 // pred_check
          %p8790 = pneg %p289
        $region110: #{_lambda_.1} parent=107 // pred_check_branch
          %8792 = sbr.rel (%p8790) target = $region112
        $region111: #{_lambda_.1} parent=107 // pred_region
          %p8793 = scmp.lt.s32.totalorder %s30, 1
          %s8794 = scalar_select %p8793, %s30, 1
          %s8795 = scalar_lea.vmem %s11, %s8794
        $region112: #{_lambda_.1} parent=107 // pred_fallthru
          _
      $region108: #{_lambda_.1} parent=5 // pred_fallthru
        _
    $region6: #{_lambda_.1} parent=1 // loop_footer
      %s28 = sadd.s32 1, %s24
    $region7: #{_lambda_.1} parent=1 // loop_footer_branch
      %23 = sbr.rel target = $region3
    $region8: #{_lambda_.1} parent=1 // loop_exit
      _
    %8796 = vsyncpa [#allocation5], 1
    %s8797 = scalar_lea.sflag [#allocation5], 1
    %8798 = vsyncpa %s8797, 1
    %8799 = vsyncpa [#allocation7], 1
    %8800 = vsyncpa [#allocation10], 1
    %8801 = vsyncpa [#allocation13], 1
    %8802 = vsyncpa [#allocation16], 1

</llo_original>
